<compile_context>
chip_gen: v7x
topology: tpu7x:2x2x1
jax: 0.10.0
libtpu: 0.0.40
codegen_flags: <defaults>
</compile_context>

<pallas_src>
import functools

import jax
import jax.numpy as jnp
from jax.experimental import pallas as pl
from jax.experimental.pallas import tpu as pltpu


LEAKY_SLOPE = 0.01  # torch.nn.LeakyReLU default negative_slope
LAYER_DIMS = [(100, 1500), (1500, 1000), (1000, 200), (200, 50), (50, 1)]


def _round_up(n, m):
    return ((n + m - 1) // m) * m


def _use_bf16_activations():
    """bf16 VALU exists on v6e/v7x; v5e would emulate it, so keep f32 there."""
    try:
        kind = jax.devices()[0].device_kind.lower()
    except Exception:
        return False
    return ("v6" in kind) or ("v7" in kind)


def mlp_kernel(x_ref, w1_ref, w2_ref, w3_ref, w4_ref, w5_ref, o_ref,
               *, half, act_in_bf16):
    """Five fused matmuls (bf16 MXU, f32 accumulation).  Biases are pre-folded
    into the weights via the augmented ones column, so there are no bias adds."""

    def hidden_layer(h, w_ref):
        acc = jnp.dot(h, w_ref[...], preferred_element_type=jnp.float32)
        if act_in_bf16:
            acc = acc.astype(jnp.bfloat16)           # pack before the VPU pass
            return jnp.maximum(acc, acc * LEAKY_SLOPE)
        return jnp.maximum(acc, acc * LEAKY_SLOPE).astype(jnp.bfloat16)

    def final_layer(h, w_ref):
        acc = jnp.dot(h, w_ref[...], preferred_element_type=jnp.float32)
        return jax.nn.sigmoid(acc).astype(o_ref.dtype)

    # Two independent half-tiles -> the MXU matmul of one half overlaps the VPU
    # activation/cast epilogue of the other half within this basic block.
    ha = x_ref[:half, :]
    hb = x_ref[half:, :]
    for w_ref in (w1_ref, w2_ref, w3_ref, w4_ref):
        ha = hidden_layer(ha, w_ref)
        hb = hidden_layer(hb, w_ref)
    o_ref[:half, :] = final_layer(ha, w5_ref)
    o_ref[half:, :] = final_layer(hb, w5_ref)


def prepare_params(params):
    """One-time host-side prep (call once and cache the result).

    Pads each layer to 128-multiple widths, writes the bias into row d_in
    (multiplied by the ones-carry column of the activations), plants a 1 at
    [d_in, d_out] so the carry propagates through LeakyReLU/bf16 exactly, and
    casts the packed weight to bf16 (MXU-native)."""
    assert len(params) == len(LAYER_DIMS)
    folded = []
    for idx, ((w_t, b), (d_in, d_out)) in enumerate(zip(params, LAYER_DIMS)):
        ip, op = _round_up(d_in, 128), _round_up(d_out, 128)
        assert ip >= d_in + 1 and op >= d_out + 1
        w_p = jnp.zeros((ip, op), jnp.float32)
        w_p = w_p.at[:d_in, :d_out].set(w_t.astype(jnp.float32))
        w_p = w_p.at[d_in, :d_out].set(b.reshape(-1).astype(jnp.float32))  # bias row
        if idx < len(LAYER_DIMS) - 1:
            w_p = w_p.at[d_in, d_out].set(1.0)  # propagate the ones carry
        folded.append(w_p.astype(jnp.bfloat16))
    return folded


def _choose_batch_tile(B, block_batch):
    # Tile is a multiple of 32 so each in-kernel half-tile is a native
    # (>=16, 128) bf16 tile.
    bb = min(block_batch, _round_up(B, 32))
    bb = max(32, _round_up(bb, 32))
    Bp = _round_up(B, bb)
    # Prefer >= 2 grid steps so v7x's two TensorCores both get work.
    if Bp // bb == 1 and bb >= 64:
        bb = _round_up(bb // 2, 32)
        Bp = _round_up(B, bb)
    return bb, Bp


def bragg_class_conv1d_forward(x, folded_weights, *, block_batch=512):
    """x: (B, 100) float32.  folded_weights: output of prepare_params(params).
    Returns (B, 1) float32 sigmoid probabilities."""
    B, D_in = x.shape
    assert D_in == LAYER_DIMS[0][0]

    d_in_pad = _round_up(D_in, 128)
    out_pad = _round_up(LAYER_DIMS[-1][1], 128)
    bb, Bp = _choose_batch_tile(B, block_batch)

    # Zero-pad batch & features; column D_in carries the ones consumed by the
    # folded bias rows.
    x_p = jnp.pad(x.astype(jnp.bfloat16), ((0, Bp - B), (0, d_in_pad - D_in)))
    x_p = x_p.at[:, D_in].set(1.0)

    kernel = functools.partial(
        mlp_kernel, half=bb // 2, act_in_bf16=_use_bf16_activations())

    # x / out: pipelined over the batch grid.  Weights: full-array VMEM
    # residents (single buffer, loaded once, grid-invariant, ~4 MiB total).
    in_specs = [pl.BlockSpec((bb, d_in_pad), lambda i: (i, 0))]
    in_specs += [pl.BlockSpec(memory_space=pltpu.MemorySpace.VMEM)] * len(folded_weights)
    out_spec = pl.BlockSpec((bb, out_pad), lambda i: (i, 0))

    out = pl.pallas_call(
        kernel,
        out_shape=jax.ShapeDtypeStruct((Bp, out_pad), jnp.bfloat16),
        grid_spec=pltpu.PrefetchScalarGridSpec(
            num_scalar_prefetch=0,
            grid=(Bp // bb,),
            in_specs=in_specs,
            out_specs=out_spec,
        ),
        compiler_params=pltpu.CompilerParams(
            dimension_semantics=("parallel",),
            vmem_limit_bytes=48 << 20,   # safe on v7x's 64 MiB physical VMEM
        ),
    )(x_p, *folded_weights)

    return out[:B, :1].astype(jnp.float32)


def init_params(key):
    """Deterministic init mimicking nn.Linear's U(-1/sqrt(in), 1/sqrt(in)).
    Weights stored pre-transposed as (in, out)."""
    params = []
    for (d_in, d_out) in LAYER_DIMS:
        key, kw, kb = jax.random.split(key, 3)
        bound = 1.0 / jnp.sqrt(jnp.float32(d_in))
        w_t = jax.random.uniform(kw, (d_in, d_out), jnp.float32, -bound, bound)
        b = jax.random.uniform(kb, (1, d_out), jnp.float32, -bound, bound)
        params.append((w_t, b))
    return params


def reference_forward(x, params):
    h = x
    for idx, (w_t, b) in enumerate(params):
        h = h @ w_t + b
        if idx < len(params) - 1:
            h = jnp.where(h > 0, h, LEAKY_SLOPE * h)
    return jax.nn.sigmoid(h)


if __name__ == "__main__":
    key = jax.random.PRNGKey(0)
    key, kx1, kx2 = jax.random.split(key, 3)
    params = init_params(key)

    folded = prepare_params(params)   # one-time prep, reused across calls
    fwd = jax.jit(bragg_class_conv1d_forward, static_argnames=("block_batch",))

    # Case 1: tiny batch (single grid step, clamped tile).
    B1 = 4
    x1 = jax.random.normal(kx1, (B1, 100), dtype=jnp.float32)
    out1 = jax.block_until_ready(fwd(x1, folded))
    ref1 = reference_forward(x1, params)
    assert out1.shape == (B1, 1)
    assert jnp.allclose(out1, ref1, atol=3e-2), float(jnp.max(jnp.abs(out1 - ref1)))

    # Case 2: batch not a multiple of the tile, multi-step grid (exercises the
    # batch padding, the parallel grid axis, and the in-kernel half-tile split).
    B2 = 80
    x2 = jax.random.normal(kx2, (B2, 100), dtype=jnp.float32)
    out2 = jax.block_until_ready(fwd(x2, folded, block_batch=32))
    ref2 = reference_forward(x2, params)
    assert out2.shape == (B2, 1)
    assert jnp.allclose(out2, ref2, atol=3e-2), float(jnp.max(jnp.abs(out2 - ref2)))

    print("KERNEL_OK")
</pallas_src>

<mosaic_0001>
module attributes {stable_mosaic.version = 11 : i64} {
  func.func @mlp_kernel(%arg0: i32, %arg1: memref<32x128xbf16, #tpu.memory_space<vmem>>, %arg2: memref<128x1536xbf16, #tpu.memory_space<vmem>>, %arg3: memref<1536x1024xbf16, #tpu.memory_space<vmem>>, %arg4: memref<1024x256xbf16, #tpu.memory_space<vmem>>, %arg5: memref<256x128xbf16, #tpu.memory_space<vmem>>, %arg6: memref<128x128xbf16, #tpu.memory_space<vmem>>, %arg7: memref<32x128xbf16, #tpu.memory_space<vmem>>) attributes {dimension_semantics = [#tpu.dimension_semantics<parallel>], iteration_bounds = array<i64: 1>, scalar_prefetch = 0 : i64, scratch_operands = 0 : i64, tpu.core_type = #tpu.core_type<tc>, window_params = [{transform_indices = @transform_0, window_bounds = array<i64: 32, 128>}, {pipeline_mode = #tpu.pipeline_mode<synchronous>, transform_indices = @transform_1, window_bounds = array<i64: 128, 1536>}, {pipeline_mode = #tpu.pipeline_mode<synchronous>, transform_indices = @transform_2, window_bounds = array<i64: 1536, 1024>}, {pipeline_mode = #tpu.pipeline_mode<synchronous>, transform_indices = @transform_3, window_bounds = array<i64: 1024, 256>}, {pipeline_mode = #tpu.pipeline_mode<synchronous>, transform_indices = @transform_4, window_bounds = array<i64: 256, 128>}, {pipeline_mode = #tpu.pipeline_mode<synchronous>, transform_indices = @transform_5, window_bounds = array<i64: 128, 128>}, {transform_indices = @transform_6, window_bounds = array<i64: 32, 128>}]} {
    %c0 = arith.constant 0 : index
    %c0_0 = arith.constant 0 : index
    %0 = vector.load %arg1[%c0, %c0_0] : memref<32x128xbf16, #tpu.memory_space<vmem>>, vector<16x128xbf16>
    %c16 = arith.constant 16 : index
    %c0_1 = arith.constant 0 : index
    %1 = vector.load %arg1[%c16, %c0_1] : memref<32x128xbf16, #tpu.memory_space<vmem>>, vector<16x128xbf16>
    %c0_2 = arith.constant 0 : index
    %c0_3 = arith.constant 0 : index
    %2 = vector.load %arg2[%c0_2, %c0_3] : memref<128x1536xbf16, #tpu.memory_space<vmem>>, vector<128x1536xbf16>
    %cst = arith.constant dense<0.000000e+00> : vector<16x1536xf32>
    %3 = tpu.matmul %0, %2, %cst {dimension_numbers = #tpu.dot_dimension_numbers<[1], [0], [0], [1], [0, 0, 1, 1], [], []>} : vector<16x128xbf16>, vector<128x1536xbf16>, vector<16x1536xf32> -> vector<16x1536xf32>
    %cst_4 = arith.constant 0.00999999977 : f32
    %4 = vector.broadcast %cst_4 : f32 to vector<16x1536xf32>
    %5 = arith.mulf %3, %4 : vector<16x1536xf32>
    %6 = arith.maximumf %3, %5 : vector<16x1536xf32>
    %7 = arith.truncf %6 : vector<16x1536xf32> to vector<16x1536xbf16>
    %c0_5 = arith.constant 0 : index
    %c0_6 = arith.constant 0 : index
    %8 = vector.load %arg2[%c0_5, %c0_6] : memref<128x1536xbf16, #tpu.memory_space<vmem>>, vector<128x1536xbf16>
    %cst_7 = arith.constant dense<0.000000e+00> : vector<16x1536xf32>
    %9 = tpu.matmul %1, %8, %cst_7 {dimension_numbers = #tpu.dot_dimension_numbers<[1], [0], [0], [1], [0, 0, 1, 1], [], []>} : vector<16x128xbf16>, vector<128x1536xbf16>, vector<16x1536xf32> -> vector<16x1536xf32>
    %cst_8 = arith.constant 0.00999999977 : f32
    %10 = vector.broadcast %cst_8 : f32 to vector<16x1536xf32>
    %11 = arith.mulf %9, %10 : vector<16x1536xf32>
    %12 = arith.maximumf %9, %11 : vector<16x1536xf32>
    %13 = arith.truncf %12 : vector<16x1536xf32> to vector<16x1536xbf16>
    %c0_9 = arith.constant 0 : index
    %c0_10 = arith.constant 0 : index
    %14 = vector.load %arg3[%c0_9, %c0_10] : memref<1536x1024xbf16, #tpu.memory_space<vmem>>, vector<1536x1024xbf16>
    %cst_11 = arith.constant dense<0.000000e+00> : vector<16x1024xf32>
    %15 = tpu.matmul %7, %14, %cst_11 {dimension_numbers = #tpu.dot_dimension_numbers<[1], [0], [0], [1], [0, 0, 1, 1], [], []>} : vector<16x1536xbf16>, vector<1536x1024xbf16>, vector<16x1024xf32> -> vector<16x1024xf32>
    %cst_12 = arith.constant 0.00999999977 : f32
    %16 = vector.broadcast %cst_12 : f32 to vector<16x1024xf32>
    %17 = arith.mulf %15, %16 : vector<16x1024xf32>
    %18 = arith.maximumf %15, %17 : vector<16x1024xf32>
    %19 = arith.truncf %18 : vector<16x1024xf32> to vector<16x1024xbf16>
    %c0_13 = arith.constant 0 : index
    %c0_14 = arith.constant 0 : index
    %20 = vector.load %arg3[%c0_13, %c0_14] : memref<1536x1024xbf16, #tpu.memory_space<vmem>>, vector<1536x1024xbf16>
    %cst_15 = arith.constant dense<0.000000e+00> : vector<16x1024xf32>
    %21 = tpu.matmul %13, %20, %cst_15 {dimension_numbers = #tpu.dot_dimension_numbers<[1], [0], [0], [1], [0, 0, 1, 1], [], []>} : vector<16x1536xbf16>, vector<1536x1024xbf16>, vector<16x1024xf32> -> vector<16x1024xf32>
    %cst_16 = arith.constant 0.00999999977 : f32
    %22 = vector.broadcast %cst_16 : f32 to vector<16x1024xf32>
    %23 = arith.mulf %21, %22 : vector<16x1024xf32>
    %24 = arith.maximumf %21, %23 : vector<16x1024xf32>
    %25 = arith.truncf %24 : vector<16x1024xf32> to vector<16x1024xbf16>
    %c0_17 = arith.constant 0 : index
    %c0_18 = arith.constant 0 : index
    %26 = vector.load %arg4[%c0_17, %c0_18] : memref<1024x256xbf16, #tpu.memory_space<vmem>>, vector<1024x256xbf16>
    %cst_19 = arith.constant dense<0.000000e+00> : vector<16x256xf32>
    %27 = tpu.matmul %19, %26, %cst_19 {dimension_numbers = #tpu.dot_dimension_numbers<[1], [0], [0], [1], [0, 0, 1, 1], [], []>} : vector<16x1024xbf16>, vector<1024x256xbf16>, vector<16x256xf32> -> vector<16x256xf32>
    %cst_20 = arith.constant 0.00999999977 : f32
    %28 = vector.broadcast %cst_20 : f32 to vector<16x256xf32>
    %29 = arith.mulf %27, %28 : vector<16x256xf32>
    %30 = arith.maximumf %27, %29 : vector<16x256xf32>
    %31 = arith.truncf %30 : vector<16x256xf32> to vector<16x256xbf16>
    %c0_21 = arith.constant 0 : index
    %c0_22 = arith.constant 0 : index
    %32 = vector.load %arg4[%c0_21, %c0_22] : memref<1024x256xbf16, #tpu.memory_space<vmem>>, vector<1024x256xbf16>
    %cst_23 = arith.constant dense<0.000000e+00> : vector<16x256xf32>
    %33 = tpu.matmul %25, %32, %cst_23 {dimension_numbers = #tpu.dot_dimension_numbers<[1], [0], [0], [1], [0, 0, 1, 1], [], []>} : vector<16x1024xbf16>, vector<1024x256xbf16>, vector<16x256xf32> -> vector<16x256xf32>
    %cst_24 = arith.constant 0.00999999977 : f32
    %34 = vector.broadcast %cst_24 : f32 to vector<16x256xf32>
    %35 = arith.mulf %33, %34 : vector<16x256xf32>
    %36 = arith.maximumf %33, %35 : vector<16x256xf32>
    %37 = arith.truncf %36 : vector<16x256xf32> to vector<16x256xbf16>
    %c0_25 = arith.constant 0 : index
    %c0_26 = arith.constant 0 : index
    %38 = vector.load %arg5[%c0_25, %c0_26] : memref<256x128xbf16, #tpu.memory_space<vmem>>, vector<256x128xbf16>
    %cst_27 = arith.constant dense<0.000000e+00> : vector<16x128xf32>
    %39 = tpu.matmul %31, %38, %cst_27 {dimension_numbers = #tpu.dot_dimension_numbers<[1], [0], [0], [1], [0, 0, 1, 1], [], []>} : vector<16x256xbf16>, vector<256x128xbf16>, vector<16x128xf32> -> vector<16x128xf32>
    %cst_28 = arith.constant 0.00999999977 : f32
    %40 = vector.broadcast %cst_28 : f32 to vector<16x128xf32>
    %41 = arith.mulf %39, %40 : vector<16x128xf32>
    %42 = arith.maximumf %39, %41 : vector<16x128xf32>
    %43 = arith.truncf %42 : vector<16x128xf32> to vector<16x128xbf16>
    %c0_29 = arith.constant 0 : index
    %c0_30 = arith.constant 0 : index
    %44 = vector.load %arg5[%c0_29, %c0_30] : memref<256x128xbf16, #tpu.memory_space<vmem>>, vector<256x128xbf16>
    %cst_31 = arith.constant dense<0.000000e+00> : vector<16x128xf32>
    %45 = tpu.matmul %37, %44, %cst_31 {dimension_numbers = #tpu.dot_dimension_numbers<[1], [0], [0], [1], [0, 0, 1, 1], [], []>} : vector<16x256xbf16>, vector<256x128xbf16>, vector<16x128xf32> -> vector<16x128xf32>
    %cst_32 = arith.constant 0.00999999977 : f32
    %46 = vector.broadcast %cst_32 : f32 to vector<16x128xf32>
    %47 = arith.mulf %45, %46 : vector<16x128xf32>
    %48 = arith.maximumf %45, %47 : vector<16x128xf32>
    %49 = arith.truncf %48 : vector<16x128xf32> to vector<16x128xbf16>
    %c0_33 = arith.constant 0 : index
    %c0_34 = arith.constant 0 : index
    %50 = vector.load %arg6[%c0_33, %c0_34] : memref<128x128xbf16, #tpu.memory_space<vmem>>, vector<128x128xbf16>
    %cst_35 = arith.constant dense<0.000000e+00> : vector<16x128xf32>
    %51 = tpu.matmul %43, %50, %cst_35 {dimension_numbers = #tpu.dot_dimension_numbers<[1], [0], [0], [1], [0, 0, 1, 1], [], []>} : vector<16x128xbf16>, vector<128x128xbf16>, vector<16x128xf32> -> vector<16x128xf32>
    %52 = arith.negf %51 : vector<16x128xf32>
    %53 = math.exp %52 : vector<16x128xf32>
    %cst_36 = arith.constant 1.000000e+00 : f32
    %54 = vector.broadcast %cst_36 : f32 to vector<16x128xf32>
    %55 = arith.addf %54, %53 : vector<16x128xf32>
    %56 = arith.divf %54, %55 : vector<16x128xf32>
    %57 = arith.truncf %56 : vector<16x128xf32> to vector<16x128xbf16>
    %c0_37 = arith.constant 0 : index
    %c0_38 = arith.constant 0 : index
    %58 = vector.load %arg7[%c0_37, %c0_38] : memref<32x128xbf16, #tpu.memory_space<vmem>>, vector<16x128xbf16>
    tpu.vector_store %arg7[%c0_37, %c0_38], %57 {strides = array<i32>} : memref<32x128xbf16, #tpu.memory_space<vmem>>, vector<16x128xbf16>,
    %c0_39 = arith.constant 0 : index
    %c0_40 = arith.constant 0 : index
    %59 = vector.load %arg6[%c0_39, %c0_40] : memref<128x128xbf16, #tpu.memory_space<vmem>>, vector<128x128xbf16>
    %cst_41 = arith.constant dense<0.000000e+00> : vector<16x128xf32>
    %60 = tpu.matmul %49, %59, %cst_41 {dimension_numbers = #tpu.dot_dimension_numbers<[1], [0], [0], [1], [0, 0, 1, 1], [], []>} : vector<16x128xbf16>, vector<128x128xbf16>, vector<16x128xf32> -> vector<16x128xf32>
    %61 = arith.negf %60 : vector<16x128xf32>
    %62 = math.exp %61 : vector<16x128xf32>
    %cst_42 = arith.constant 1.000000e+00 : f32
    %63 = vector.broadcast %cst_42 : f32 to vector<16x128xf32>
    %64 = arith.addf %63, %62 : vector<16x128xf32>
    %65 = arith.divf %63, %64 : vector<16x128xf32>
    %66 = arith.truncf %65 : vector<16x128xf32> to vector<16x128xbf16>
    %c16_43 = arith.constant 16 : index
    %c0_44 = arith.constant 0 : index
    %67 = vector.load %arg7[%c16_43, %c0_44] : memref<32x128xbf16, #tpu.memory_space<vmem>>, vector<16x128xbf16>
    tpu.vector_store %arg7[%c16_43, %c0_44], %66 {strides = array<i32>} : memref<32x128xbf16, #tpu.memory_space<vmem>>, vector<16x128xbf16>,
    return
  }
  func.func @transform_0(%arg0: i32) -> (i32, i32) {
    %c0_i32 = arith.constant 0 : i32
    %c0_i32_0 = arith.constant 0 : i32
    return %arg0, %c0_i32 : i32, i32
  }
  func.func @transform_1(%arg0: i32) -> (i32, i32) {
    %c0_i32 = arith.constant 0 : i32
    %c0_i32_0 = arith.constant 0 : i32
    %c0_i32_1 = arith.constant 0 : i32
    return %c0_i32, %c0_i32_0 : i32, i32
  }
  func.func @transform_2(%arg0: i32) -> (i32, i32) {
    %c0_i32 = arith.constant 0 : i32
    %c0_i32_0 = arith.constant 0 : i32
    %c0_i32_1 = arith.constant 0 : i32
    return %c0_i32, %c0_i32_0 : i32, i32
  }
  func.func @transform_3(%arg0: i32) -> (i32, i32) {
    %c0_i32 = arith.constant 0 : i32
    %c0_i32_0 = arith.constant 0 : i32
    %c0_i32_1 = arith.constant 0 : i32
    return %c0_i32, %c0_i32_0 : i32, i32
  }
  func.func @transform_4(%arg0: i32) -> (i32, i32) {
    %c0_i32 = arith.constant 0 : i32
    %c0_i32_0 = arith.constant 0 : i32
    %c0_i32_1 = arith.constant 0 : i32
    return %c0_i32, %c0_i32_0 : i32, i32
  }
  func.func @transform_5(%arg0: i32) -> (i32, i32) {
    %c0_i32 = arith.constant 0 : i32
    %c0_i32_0 = arith.constant 0 : i32
    %c0_i32_1 = arith.constant 0 : i32
    return %c0_i32, %c0_i32_0 : i32, i32
  }
  func.func @transform_6(%arg0: i32) -> (i32, i32) {
    %c0_i32 = arith.constant 0 : i32
    %c0_i32_0 = arith.constant 0 : i32
    return %arg0, %c0_i32 : i32, i32
  }
}

</mosaic_0001>

<llo_original>
// kernel: bragg_class_conv1d_forward.1
$region0: #{bragg_class_conv1d_forward.1}
  #allocation0 [shape = 'u32[]', space=smem, size = 0x4, offset = 0x4, fixed_abs, tag = 'smem constant byte address 0x4 - core index']
  #allocation1 [shape = 'u32[144,128]{1,0:T(1,128)}', space=vmem, size = 0x12000, scoped, tag = 'internal scratch']
  %s0 = inlined_call_operand.vmem [shape: bf16[32,128], index: 0, kind: input, shape index: {}]
  %s1 = inlined_call_operand.hbm [shape: bf16[128,1536], index: 1, kind: input, shape index: {}]
  %s2 = inlined_call_operand.hbm [shape: bf16[1536,1024], index: 2, kind: input, shape index: {}]
  %s3 = inlined_call_operand.hbm [shape: bf16[1024,256], index: 3, kind: input, shape index: {}]
  %s4 = inlined_call_operand.hbm [shape: bf16[256,128], index: 4, kind: input, shape index: {}]
  %s5 = inlined_call_operand.hbm [shape: bf16[128,128], index: 5, kind: input, shape index: {}]
  %s6 = inlined_call_operand.vmem [shape: bf16[32,128], index: 6, kind: output, shape index: {}]
  %s7 = sld [smem:[#allocation0]]
  $region54: #{bragg_class_conv1d_forward.1} parent=0
    _
  %s9 = ssub.s32 1, %s7
  %s10 = scalar_select 0, %s9, %s7
  $region1: #{bragg_class_conv1d_forward.1} parent=0
    #allocation2 [shape = 'u8[393216]{0}', space=vmem, size = 0x60000, scoped, tag = 'input window, operand 1, single buffered']
    #allocation3 [shape = 's32[1]{0}', space=sflag, size = 0x4, scoped, tag = 'scoped memory for bragg_class_conv1d_forward.1']
    #allocation4 [shape = 'u8[3145728]{0}', space=vmem, size = 0x300000, scoped, tag = 'input window, operand 2, single buffered']
    #allocation5 [shape = 's32[1]{0}', space=sflag, size = 0x4, scoped, tag = 'scoped memory for bragg_class_conv1d_forward.1']
    #allocation6 [shape = 'u8[524288]{0}', space=vmem, size = 0x80000, scoped, tag = 'input window, operand 3, single buffered']
    #allocation7 [shape = 'u8[65536]{0}', space=vmem, size = 0x10000, scoped, tag = 'input window, operand 4, single buffered']
    #allocation8 [shape = 's32[1]{0}', space=sflag, size = 0x4, scoped, tag = 'scoped memory for bragg_class_conv1d_forward.1']
    #allocation9 [shape = 'u8[32768]{0}', space=vmem, size = 0x8000, scoped, tag = 'input window, operand 5, single buffered']
    %11 = vsyncpa [#allocation3], 0
    %12 = vsyncpa [#allocation5], 0
    %13 = vsyncpa [#allocation8], 0
    // Predicated region
    $region2: #{bragg_class_conv1d_forward.1} parent=1 // pred_check
      _
    $region3: #{bragg_class_conv1d_forward.1} parent=1 // pred_check_branch
      %15 = sbr.rel (0) target = $region5
    $region4: #{bragg_class_conv1d_forward.1} parent=1 // pred_region
      _
    $region5: #{bragg_class_conv1d_forward.1} parent=1 // pred_fallthru
      _
    // Predicated region
    $region6: #{bragg_class_conv1d_forward.1} parent=1 // pred_check
      _
    $region7: #{bragg_class_conv1d_forward.1} parent=1 // pred_check_branch
      %17 = sbr.rel (0) target = $region9
    $region8: #{bragg_class_conv1d_forward.1} parent=1 // pred_region
      %s19 = ssub.s32 12288, 12288
      %20 = vsyncadd [#allocation3], %s19
      %s21 = sshll.u32 [#allocation2], 4
      %s22 = int_to_ptr.vmem [resolvable:$true] %s21
      %27 = dma.hbm_to_vmem [thread:$0]  %s1, 12288, %s22, [#allocation3], 768, 768, 48
    $region9: #{bragg_class_conv1d_forward.1} parent=1 // pred_fallthru
      _
    // Predicated region
    $region10: #{bragg_class_conv1d_forward.1} parent=1 // pred_check
      _
    $region11: #{bragg_class_conv1d_forward.1} parent=1 // pred_check_branch
      %29 = sbr.rel (0) target = $region13
    $region12: #{bragg_class_conv1d_forward.1} parent=1 // pred_region
      %s31 = ssub.s32 98304, 98304
      %32 = vsyncadd [#allocation5], %s31
      %s33 = sshll.u32 [#allocation4], 4
      %s34 = int_to_ptr.vmem [resolvable:$true] %s33
      %39 = dma.hbm_to_vmem [thread:$0]  %s2, 98304, %s34, [#allocation5], 512, 512, 32
    $region13: #{bragg_class_conv1d_forward.1} parent=1 // pred_fallthru
      _
    // Predicated region
    $region14: #{bragg_class_conv1d_forward.1} parent=1 // pred_check
      _
    $region15: #{bragg_class_conv1d_forward.1} parent=1 // pred_check_branch
      %41 = sbr.rel (0) target = $region17
    $region16: #{bragg_class_conv1d_forward.1} parent=1 // pred_region
      %s43 = ssub.s32 16384, 16384
      %44 = vsyncadd [#allocation5], %s43
      %s45 = sshll.u32 [#allocation6], 4
      %s46 = int_to_ptr.vmem [resolvable:$true] %s45
      %51 = dma.hbm_to_vmem [thread:$0]  %s3, 16384, %s46, [#allocation5], 128, 128, 8
    $region17: #{bragg_class_conv1d_forward.1} parent=1 // pred_fallthru
      _
    // Predicated region
    $region18: #{bragg_class_conv1d_forward.1} parent=1 // pred_check
      _
    $region19: #{bragg_class_conv1d_forward.1} parent=1 // pred_check_branch
      %53 = sbr.rel (0) target = $region21
    $region20: #{bragg_class_conv1d_forward.1} parent=1 // pred_region
      %s55 = ssub.s32 2048, 2048
      %56 = vsyncadd [#allocation8], %s55
      %s57 = sshll.u32 [#allocation7], 4
      %s58 = int_to_ptr.vmem [resolvable:$true] %s57
      %63 = dma.hbm_to_vmem [thread:$0]  %s4, 2048, %s58, [#allocation8], 64, 64, 4
    $region21: #{bragg_class_conv1d_forward.1} parent=1 // pred_fallthru
      _
    // Predicated region
    $region22: #{bragg_class_conv1d_forward.1} parent=1 // pred_check
      _
    $region23: #{bragg_class_conv1d_forward.1} parent=1 // pred_check_branch
      %65 = sbr.rel (0) target = $region25
    $region24: #{bragg_class_conv1d_forward.1} parent=1 // pred_region
      %s67 = ssub.s32 1024, 1024
      %68 = vsyncadd [#allocation8], %s67
      %s69 = sshll.u32 [#allocation9], 4
      %s70 = int_to_ptr.vmem [resolvable:$true] %s69
      %75 = dma.hbm_to_vmem [thread:$0]  %s5, 1024, %s70, [#allocation8], 64, 64, 4
    $region25: #{bragg_class_conv1d_forward.1} parent=1 // pred_fallthru
      _
    // Predicated region
    $region26: #{bragg_class_conv1d_forward.1} parent=1 // pred_check
      _
    $region27: #{bragg_class_conv1d_forward.1} parent=1 // pred_check_branch
      %77 = sbr.rel (0) target = $region29
    $region28: #{bragg_class_conv1d_forward.1} parent=1 // pred_region
      %78 = dma.done [#allocation3], 12288
    $region29: #{bragg_class_conv1d_forward.1} parent=1 // pred_fallthru
      _
    // Predicated region
    $region30: #{bragg_class_conv1d_forward.1} parent=1 // pred_check
      _
    $region31: #{bragg_class_conv1d_forward.1} parent=1 // pred_check_branch
      %80 = sbr.rel (0) target = $region33
    $region32: #{bragg_class_conv1d_forward.1} parent=1 // pred_region
      %81 = dma.done [#allocation5], 98304
    $region33: #{bragg_class_conv1d_forward.1} parent=1 // pred_fallthru
      _
    // Predicated region
    $region34: #{bragg_class_conv1d_forward.1} parent=1 // pred_check
      _
    $region35: #{bragg_class_conv1d_forward.1} parent=1 // pred_check_branch
      %83 = sbr.rel (0) target = $region37
    $region36: #{bragg_class_conv1d_forward.1} parent=1 // pred_region
      %84 = dma.done [#allocation5], 16384
    $region37: #{bragg_class_conv1d_forward.1} parent=1 // pred_fallthru
      _
    // Predicated region
    $region38: #{bragg_class_conv1d_forward.1} parent=1 // pred_check
      _
    $region39: #{bragg_class_conv1d_forward.1} parent=1 // pred_check_branch
      %86 = sbr.rel (0) target = $region41
    $region40: #{bragg_class_conv1d_forward.1} parent=1 // pred_region
      %87 = dma.done [#allocation8], 2048
    $region41: #{bragg_class_conv1d_forward.1} parent=1 // pred_fallthru
      _
    // Predicated region
    $region42: #{bragg_class_conv1d_forward.1} parent=1 // pred_check
      _
    $region43: #{bragg_class_conv1d_forward.1} parent=1 // pred_check_branch
      %89 = sbr.rel (0) target = $region45
    $region44: #{bragg_class_conv1d_forward.1} parent=1 // pred_region
      %90 = dma.done [#allocation8], 1024
    $region45: #{bragg_class_conv1d_forward.1} parent=1 // pred_fallthru
      _
    %v92 = vld [vmem:[%s0] sm:$0xf]
    %v93 = vld [vmem:[%s0 + $0x4] sm:$0xf]
    %v94 = vld [vmem:[%s0 + $0x8] sm:$0xf]
    %v95 = vld [vmem:[%s0 + $0xc] sm:$0xf]
    %v96 = vld [vmem:[#allocation2] sm:$0xff]
    %v97 = vld [vmem:[#allocation2 + $0x8] sm:$0xff]
    %v98 = vld [vmem:[#allocation2 + $0x10] sm:$0xff]
    %v99 = vld [vmem:[#allocation2 + $0x18] sm:$0xff]
    %v100 = vld [vmem:[#allocation2 + $0x20] sm:$0xff]
    %v101 = vld [vmem:[#allocation2 + $0x28] sm:$0xff]
    %v102 = vld [vmem:[#allocation2 + $0x30] sm:$0xff]
    %v103 = vld [vmem:[#allocation2 + $0x38] sm:$0xff]
    %v104 = vld [vmem:[#allocation2 + $0x40] sm:$0xff]
    %v105 = vld [vmem:[#allocation2 + $0x48] sm:$0xff]
    %v106 = vld [vmem:[#allocation2 + $0x50] sm:$0xff]
    %v107 = vld [vmem:[#allocation2 + $0x58] sm:$0xff]
    %v108 = vld [vmem:[#allocation2 + $0x60] sm:$0xff]
    %v109 = vld [vmem:[#allocation2 + $0x68] sm:$0xff]
    %v110 = vld [vmem:[#allocation2 + $0x70] sm:$0xff]
    %v111 = vld [vmem:[#allocation2 + $0x78] sm:$0xff]
    %v112 = vld [vmem:[#allocation2 + $0x80] sm:$0xff]
    %v113 = vld [vmem:[#allocation2 + $0x88] sm:$0xff]
    %v114 = vld [vmem:[#allocation2 + $0x90] sm:$0xff]
    %v115 = vld [vmem:[#allocation2 + $0x98] sm:$0xff]
    %v116 = vld [vmem:[#allocation2 + $0xa0] sm:$0xff]
    %v117 = vld [vmem:[#allocation2 + $0xa8] sm:$0xff]
    %v118 = vld [vmem:[#allocation2 + $0xb0] sm:$0xff]
    %v119 = vld [vmem:[#allocation2 + $0xb8] sm:$0xff]
    %v120 = vld [vmem:[#allocation2 + $0xc0] sm:$0xff]
    %v121 = vld [vmem:[#allocation2 + $0xc8] sm:$0xff]
    %v122 = vld [vmem:[#allocation2 + $0xd0] sm:$0xff]
    %v123 = vld [vmem:[#allocation2 + $0xd8] sm:$0xff]
    %v124 = vld [vmem:[#allocation2 + $0xe0] sm:$0xff]
    %v125 = vld [vmem:[#allocation2 + $0xe8] sm:$0xff]
    %v126 = vld [vmem:[#allocation2 + $0xf0] sm:$0xff]
    %v127 = vld [vmem:[#allocation2 + $0xf8] sm:$0xff]
    %v128 = vld [vmem:[#allocation2 + $0x100] sm:$0xff]
    %v129 = vld [vmem:[#allocation2 + $0x108] sm:$0xff]
    %v130 = vld [vmem:[#allocation2 + $0x110] sm:$0xff]
    %v131 = vld [vmem:[#allocation2 + $0x118] sm:$0xff]
    %v132 = vld [vmem:[#allocation2 + $0x120] sm:$0xff]
    %v133 = vld [vmem:[#allocation2 + $0x128] sm:$0xff]
    %v134 = vld [vmem:[#allocation2 + $0x130] sm:$0xff]
    %v135 = vld [vmem:[#allocation2 + $0x138] sm:$0xff]
    %v136 = vld [vmem:[#allocation2 + $0x140] sm:$0xff]
    %v137 = vld [vmem:[#allocation2 + $0x148] sm:$0xff]
    %v138 = vld [vmem:[#allocation2 + $0x150] sm:$0xff]
    %v139 = vld [vmem:[#allocation2 + $0x158] sm:$0xff]
    %v140 = vld [vmem:[#allocation2 + $0x160] sm:$0xff]
    %v141 = vld [vmem:[#allocation2 + $0x168] sm:$0xff]
    %v142 = vld [vmem:[#allocation2 + $0x170] sm:$0xff]
    %v143 = vld [vmem:[#allocation2 + $0x178] sm:$0xff]
    %v144 = vld [vmem:[#allocation2 + $0x180] sm:$0xff]
    %v145 = vld [vmem:[#allocation2 + $0x188] sm:$0xff]
    %v146 = vld [vmem:[#allocation2 + $0x190] sm:$0xff]
    %v147 = vld [vmem:[#allocation2 + $0x198] sm:$0xff]
    %v148 = vld [vmem:[#allocation2 + $0x1a0] sm:$0xff]
    %v149 = vld [vmem:[#allocation2 + $0x1a8] sm:$0xff]
    %v150 = vld [vmem:[#allocation2 + $0x1b0] sm:$0xff]
    %v151 = vld [vmem:[#allocation2 + $0x1b8] sm:$0xff]
    %v152 = vld [vmem:[#allocation2 + $0x1c0] sm:$0xff]
    %v153 = vld [vmem:[#allocation2 + $0x1c8] sm:$0xff]
    %v154 = vld [vmem:[#allocation2 + $0x1d0] sm:$0xff]
    %v155 = vld [vmem:[#allocation2 + $0x1d8] sm:$0xff]
    %v156 = vld [vmem:[#allocation2 + $0x1e0] sm:$0xff]
    %v157 = vld [vmem:[#allocation2 + $0x1e8] sm:$0xff]
    %v158 = vld [vmem:[#allocation2 + $0x1f0] sm:$0xff]
    %v159 = vld [vmem:[#allocation2 + $0x1f8] sm:$0xff]
    %v160 = vld [vmem:[#allocation2 + $0x200] sm:$0xff]
    %v161 = vld [vmem:[#allocation2 + $0x208] sm:$0xff]
    %v162 = vld [vmem:[#allocation2 + $0x210] sm:$0xff]
    %v163 = vld [vmem:[#allocation2 + $0x218] sm:$0xff]
    %v164 = vld [vmem:[#allocation2 + $0x220] sm:$0xff]
    %v165 = vld [vmem:[#allocation2 + $0x228] sm:$0xff]
    %v166 = vld [vmem:[#allocation2 + $0x230] sm:$0xff]
    %v167 = vld [vmem:[#allocation2 + $0x238] sm:$0xff]
    %v168 = vld [vmem:[#allocation2 + $0x240] sm:$0xff]
    %v169 = vld [vmem:[#allocation2 + $0x248] sm:$0xff]
    %v170 = vld [vmem:[#allocation2 + $0x250] sm:$0xff]
    %v171 = vld [vmem:[#allocation2 + $0x258] sm:$0xff]
    %v172 = vld [vmem:[#allocation2 + $0x260] sm:$0xff]
    %v173 = vld [vmem:[#allocation2 + $0x268] sm:$0xff]
    %v174 = vld [vmem:[#allocation2 + $0x270] sm:$0xff]
    %v175 = vld [vmem:[#allocation2 + $0x278] sm:$0xff]
    %v176 = vld [vmem:[#allocation2 + $0x280] sm:$0xff]
    %v177 = vld [vmem:[#allocation2 + $0x288] sm:$0xff]
    %v178 = vld [vmem:[#allocation2 + $0x290] sm:$0xff]
    %v179 = vld [vmem:[#allocation2 + $0x298] sm:$0xff]
    %v180 = vld [vmem:[#allocation2 + $0x2a0] sm:$0xff]
    %v181 = vld [vmem:[#allocation2 + $0x2a8] sm:$0xff]
    %v182 = vld [vmem:[#allocation2 + $0x2b0] sm:$0xff]
    %v183 = vld [vmem:[#allocation2 + $0x2b8] sm:$0xff]
    %v184 = vld [vmem:[#allocation2 + $0x2c0] sm:$0xff]
    %v185 = vld [vmem:[#allocation2 + $0x2c8] sm:$0xff]
    %v186 = vld [vmem:[#allocation2 + $0x2d0] sm:$0xff]
    %v187 = vld [vmem:[#allocation2 + $0x2d8] sm:$0xff]
    %v188 = vld [vmem:[#allocation2 + $0x2e0] sm:$0xff]
    %v189 = vld [vmem:[#allocation2 + $0x2e8] sm:$0xff]
    %v190 = vld [vmem:[#allocation2 + $0x2f0] sm:$0xff]
    %v191 = vld [vmem:[#allocation2 + $0x2f8] sm:$0xff]
    %v194 = vunpack.c.l.b16 %v92
    %v195 = vunpack.c.l.b16 %v93
    %v196 = vpack.c.b16 %v195, %v194
    %v294 = vunpack.c.l.b16 %v96
    %v295 = vunpack.c.h.b16 %v96
    %v296 = vunpack.c.l.b16 %v97
    %v297 = vunpack.c.h.b16 %v97
    %v298 = vunpack.c.l.b16 %v98
    %v299 = vunpack.c.h.b16 %v98
    %v300 = vunpack.c.l.b16 %v99
    %v301 = vunpack.c.h.b16 %v99
    %v302 = vunpack.c.l.b16 %v100
    %v303 = vunpack.c.h.b16 %v100
    %v304 = vunpack.c.l.b16 %v101
    %v305 = vunpack.c.h.b16 %v101
    %v306 = vunpack.c.l.b16 %v102
    %v307 = vunpack.c.h.b16 %v102
    %v308 = vunpack.c.l.b16 %v103
    %v309 = vunpack.c.h.b16 %v103
    %v310 = vunpack.c.l.b16 %v104
    %v311 = vunpack.c.h.b16 %v104
    %v312 = vunpack.c.l.b16 %v105
    %v313 = vunpack.c.h.b16 %v105
    %v314 = vunpack.c.l.b16 %v106
    %v315 = vunpack.c.h.b16 %v106
    %v316 = vunpack.c.l.b16 %v107
    %v317 = vunpack.c.h.b16 %v107
    %v318 = vunpack.c.l.b16 %v108
    %v319 = vunpack.c.h.b16 %v108
    %v320 = vunpack.c.l.b16 %v109
    %v321 = vunpack.c.h.b16 %v109
    %v322 = vunpack.c.l.b16 %v110
    %v323 = vunpack.c.h.b16 %v110
    %v324 = vunpack.c.l.b16 %v111
    %v325 = vunpack.c.h.b16 %v111
    %v326 = vunpack.c.l.b16 %v112
    %v327 = vunpack.c.h.b16 %v112
    %v328 = vunpack.c.l.b16 %v113
    %v329 = vunpack.c.h.b16 %v113
    %v330 = vunpack.c.l.b16 %v114
    %v331 = vunpack.c.h.b16 %v114
    %v332 = vunpack.c.l.b16 %v115
    %v333 = vunpack.c.h.b16 %v115
    %v334 = vunpack.c.l.b16 %v116
    %v335 = vunpack.c.h.b16 %v116
    %v336 = vunpack.c.l.b16 %v117
    %v337 = vunpack.c.h.b16 %v117
    %v338 = vunpack.c.l.b16 %v118
    %v339 = vunpack.c.h.b16 %v118
    %v340 = vunpack.c.l.b16 %v119
    %v341 = vunpack.c.h.b16 %v119
    %v342 = vunpack.c.l.b16 %v120
    %v343 = vunpack.c.h.b16 %v120
    %v344 = vunpack.c.l.b16 %v121
    %v345 = vunpack.c.h.b16 %v121
    %v346 = vunpack.c.l.b16 %v122
    %v347 = vunpack.c.h.b16 %v122
    %v348 = vunpack.c.l.b16 %v123
    %v349 = vunpack.c.h.b16 %v123
    %v350 = vunpack.c.l.b16 %v124
    %v351 = vunpack.c.h.b16 %v124
    %v352 = vunpack.c.l.b16 %v125
    %v353 = vunpack.c.h.b16 %v125
    %v354 = vunpack.c.l.b16 %v126
    %v355 = vunpack.c.h.b16 %v126
    %v356 = vunpack.c.l.b16 %v127
    %v357 = vunpack.c.h.b16 %v127
    %v358 = vunpack.c.l.b16 %v128
    %v359 = vunpack.c.h.b16 %v128
    %v360 = vunpack.c.l.b16 %v129
    %v361 = vunpack.c.h.b16 %v129
    %v362 = vunpack.c.l.b16 %v130
    %v363 = vunpack.c.h.b16 %v130
    %v364 = vunpack.c.l.b16 %v131
    %v365 = vunpack.c.h.b16 %v131
    %v366 = vunpack.c.l.b16 %v132
    %v367 = vunpack.c.h.b16 %v132
    %v368 = vunpack.c.l.b16 %v133
    %v369 = vunpack.c.h.b16 %v133
    %v370 = vunpack.c.l.b16 %v134
    %v371 = vunpack.c.h.b16 %v134
    %v372 = vunpack.c.l.b16 %v135
    %v373 = vunpack.c.h.b16 %v135
    %v374 = vunpack.c.l.b16 %v136
    %v375 = vunpack.c.h.b16 %v136
    %v376 = vunpack.c.l.b16 %v137
    %v377 = vunpack.c.h.b16 %v137
    %v378 = vunpack.c.l.b16 %v138
    %v379 = vunpack.c.h.b16 %v138
    %v380 = vunpack.c.l.b16 %v139
    %v381 = vunpack.c.h.b16 %v139
    %v382 = vunpack.c.l.b16 %v140
    %v383 = vunpack.c.h.b16 %v140
    %v384 = vunpack.c.l.b16 %v141
    %v385 = vunpack.c.h.b16 %v141
    %v386 = vunpack.c.l.b16 %v142
    %v387 = vunpack.c.h.b16 %v142
    %v388 = vunpack.c.l.b16 %v143
    %v389 = vunpack.c.h.b16 %v143
    %v390 = vunpack.c.l.b16 %v144
    %v391 = vunpack.c.h.b16 %v144
    %v392 = vunpack.c.l.b16 %v145
    %v393 = vunpack.c.h.b16 %v145
    %v394 = vunpack.c.l.b16 %v146
    %v395 = vunpack.c.h.b16 %v146
    %v396 = vunpack.c.l.b16 %v147
    %v397 = vunpack.c.h.b16 %v147
    %v398 = vunpack.c.l.b16 %v148
    %v399 = vunpack.c.h.b16 %v148
    %v400 = vunpack.c.l.b16 %v149
    %v401 = vunpack.c.h.b16 %v149
    %v402 = vunpack.c.l.b16 %v150
    %v403 = vunpack.c.h.b16 %v150
    %v404 = vunpack.c.l.b16 %v151
    %v405 = vunpack.c.h.b16 %v151
    %v406 = vunpack.c.l.b16 %v152
    %v407 = vunpack.c.h.b16 %v152
    %v408 = vunpack.c.l.b16 %v153
    %v409 = vunpack.c.h.b16 %v153
    %v410 = vunpack.c.l.b16 %v154
    %v411 = vunpack.c.h.b16 %v154
    %v412 = vunpack.c.l.b16 %v155
    %v413 = vunpack.c.h.b16 %v155
    %v414 = vunpack.c.l.b16 %v156
    %v415 = vunpack.c.h.b16 %v156
    %v416 = vunpack.c.l.b16 %v157
    %v417 = vunpack.c.h.b16 %v157
    %v418 = vunpack.c.l.b16 %v158
    %v419 = vunpack.c.h.b16 %v158
    %v420 = vunpack.c.l.b16 %v159
    %v421 = vunpack.c.h.b16 %v159
    %v422 = vunpack.c.l.b16 %v160
    %v423 = vunpack.c.h.b16 %v160
    %v424 = vunpack.c.l.b16 %v161
    %v425 = vunpack.c.h.b16 %v161
    %v426 = vunpack.c.l.b16 %v162
    %v427 = vunpack.c.h.b16 %v162
    %v428 = vunpack.c.l.b16 %v163
    %v429 = vunpack.c.h.b16 %v163
    %v430 = vunpack.c.l.b16 %v164
    %v431 = vunpack.c.h.b16 %v164
    %v432 = vunpack.c.l.b16 %v165
    %v433 = vunpack.c.h.b16 %v165
    %v434 = vunpack.c.l.b16 %v166
    %v435 = vunpack.c.h.b16 %v166
    %v436 = vunpack.c.l.b16 %v167
    %v437 = vunpack.c.h.b16 %v167
    %v438 = vunpack.c.l.b16 %v168
    %v439 = vunpack.c.h.b16 %v168
    %v440 = vunpack.c.l.b16 %v169
    %v441 = vunpack.c.h.b16 %v169
    %v442 = vunpack.c.l.b16 %v170
    %v443 = vunpack.c.h.b16 %v170
    %v444 = vunpack.c.l.b16 %v171
    %v445 = vunpack.c.h.b16 %v171
    %v446 = vunpack.c.l.b16 %v172
    %v447 = vunpack.c.h.b16 %v172
    %v448 = vunpack.c.l.b16 %v173
    %v449 = vunpack.c.h.b16 %v173
    %v450 = vunpack.c.l.b16 %v174
    %v451 = vunpack.c.h.b16 %v174
    %v452 = vunpack.c.l.b16 %v175
    %v453 = vunpack.c.h.b16 %v175
    %v454 = vunpack.c.l.b16 %v176
    %v455 = vunpack.c.h.b16 %v176
    %v456 = vunpack.c.l.b16 %v177
    %v457 = vunpack.c.h.b16 %v177
    %v458 = vunpack.c.l.b16 %v178
    %v459 = vunpack.c.h.b16 %v178
    %v460 = vunpack.c.l.b16 %v179
    %v461 = vunpack.c.h.b16 %v179
    %v462 = vunpack.c.l.b16 %v180
    %v463 = vunpack.c.h.b16 %v180
    %v464 = vunpack.c.l.b16 %v181
    %v465 = vunpack.c.h.b16 %v181
    %v466 = vunpack.c.l.b16 %v182
    %v467 = vunpack.c.h.b16 %v182
    %v468 = vunpack.c.l.b16 %v183
    %v469 = vunpack.c.h.b16 %v183
    %v470 = vunpack.c.l.b16 %v184
    %v471 = vunpack.c.h.b16 %v184
    %v472 = vunpack.c.l.b16 %v185
    %v473 = vunpack.c.h.b16 %v185
    %v474 = vunpack.c.l.b16 %v186
    %v475 = vunpack.c.h.b16 %v186
    %v476 = vunpack.c.l.b16 %v187
    %v477 = vunpack.c.h.b16 %v187
    %v478 = vunpack.c.l.b16 %v188
    %v479 = vunpack.c.h.b16 %v188
    %v480 = vunpack.c.l.b16 %v189
    %v481 = vunpack.c.h.b16 %v189
    %v482 = vunpack.c.l.b16 %v190
    %v483 = vunpack.c.h.b16 %v190
    %v484 = vunpack.c.l.b16 %v191
    %v485 = vunpack.c.h.b16 %v191
    %v486 = vpack.c.b16 %v306, %v294
    %v487 = vpack.c.b16 %v307, %v295
    %v488 = vpack.c.b16 %v308, %v296
    %v489 = vpack.c.b16 %v309, %v297
    %v490 = vpack.c.b16 %v310, %v298
    %v491 = vpack.c.b16 %v311, %v299
    %v492 = vpack.c.b16 %v312, %v300
    %v493 = vpack.c.b16 %v313, %v301
    %v494 = vpack.c.b16 %v314, %v302
    %v495 = vpack.c.b16 %v315, %v303
    %v496 = vpack.c.b16 %v316, %v304
    %v497 = vpack.c.b16 %v317, %v305
    %v498 = vpack.c.b16 %v330, %v318
    %v499 = vpack.c.b16 %v331, %v319
    %v500 = vpack.c.b16 %v332, %v320
    %v501 = vpack.c.b16 %v333, %v321
    %v502 = vpack.c.b16 %v334, %v322
    %v503 = vpack.c.b16 %v335, %v323
    %v504 = vpack.c.b16 %v336, %v324
    %v505 = vpack.c.b16 %v337, %v325
    %v506 = vpack.c.b16 %v338, %v326
    %v507 = vpack.c.b16 %v339, %v327
    %v508 = vpack.c.b16 %v340, %v328
    %v509 = vpack.c.b16 %v341, %v329
    %v510 = vpack.c.b16 %v354, %v342
    %v511 = vpack.c.b16 %v355, %v343
    %v512 = vpack.c.b16 %v356, %v344
    %v513 = vpack.c.b16 %v357, %v345
    %v514 = vpack.c.b16 %v358, %v346
    %v515 = vpack.c.b16 %v359, %v347
    %v516 = vpack.c.b16 %v360, %v348
    %v517 = vpack.c.b16 %v361, %v349
    %v518 = vpack.c.b16 %v362, %v350
    %v519 = vpack.c.b16 %v363, %v351
    %v520 = vpack.c.b16 %v364, %v352
    %v521 = vpack.c.b16 %v365, %v353
    %v522 = vpack.c.b16 %v378, %v366
    %v523 = vpack.c.b16 %v379, %v367
    %v524 = vpack.c.b16 %v380, %v368
    %v525 = vpack.c.b16 %v381, %v369
    %v526 = vpack.c.b16 %v382, %v370
    %v527 = vpack.c.b16 %v383, %v371
    %v528 = vpack.c.b16 %v384, %v372
    %v529 = vpack.c.b16 %v385, %v373
    %v530 = vpack.c.b16 %v386, %v374
    %v531 = vpack.c.b16 %v387, %v375
    %v532 = vpack.c.b16 %v388, %v376
    %v533 = vpack.c.b16 %v389, %v377
    %v534 = vpack.c.b16 %v402, %v390
    %v535 = vpack.c.b16 %v403, %v391
    %v536 = vpack.c.b16 %v404, %v392
    %v537 = vpack.c.b16 %v405, %v393
    %v538 = vpack.c.b16 %v406, %v394
    %v539 = vpack.c.b16 %v407, %v395
    %v540 = vpack.c.b16 %v408, %v396
    %v541 = vpack.c.b16 %v409, %v397
    %v542 = vpack.c.b16 %v410, %v398
    %v543 = vpack.c.b16 %v411, %v399
    %v544 = vpack.c.b16 %v412, %v400
    %v545 = vpack.c.b16 %v413, %v401
    %v546 = vpack.c.b16 %v426, %v414
    %v547 = vpack.c.b16 %v427, %v415
    %v548 = vpack.c.b16 %v428, %v416
    %v549 = vpack.c.b16 %v429, %v417
    %v550 = vpack.c.b16 %v430, %v418
    %v551 = vpack.c.b16 %v431, %v419
    %v552 = vpack.c.b16 %v432, %v420
    %v553 = vpack.c.b16 %v433, %v421
    %v554 = vpack.c.b16 %v434, %v422
    %v555 = vpack.c.b16 %v435, %v423
    %v556 = vpack.c.b16 %v436, %v424
    %v557 = vpack.c.b16 %v437, %v425
    %v558 = vpack.c.b16 %v450, %v438
    %v559 = vpack.c.b16 %v451, %v439
    %v560 = vpack.c.b16 %v452, %v440
    %v561 = vpack.c.b16 %v453, %v441
    %v562 = vpack.c.b16 %v454, %v442
    %v563 = vpack.c.b16 %v455, %v443
    %v564 = vpack.c.b16 %v456, %v444
    %v565 = vpack.c.b16 %v457, %v445
    %v566 = vpack.c.b16 %v458, %v446
    %v567 = vpack.c.b16 %v459, %v447
    %v568 = vpack.c.b16 %v460, %v448
    %v569 = vpack.c.b16 %v461, %v449
    %v570 = vpack.c.b16 %v474, %v462
    %v571 = vpack.c.b16 %v475, %v463
    %v572 = vpack.c.b16 %v476, %v464
    %v573 = vpack.c.b16 %v477, %v465
    %v574 = vpack.c.b16 %v478, %v466
    %v575 = vpack.c.b16 %v479, %v467
    %v576 = vpack.c.b16 %v480, %v468
    %v577 = vpack.c.b16 %v481, %v469
    %v578 = vpack.c.b16 %v482, %v470
    %v579 = vpack.c.b16 %v483, %v471
    %v580 = vpack.c.b16 %v484, %v472
    %v581 = vpack.c.b16 %v485, %v473
    %678 = vmatprep.subr.bf16.mxu0 %v487
    %679 = vmatpush1.bf16.msra.mxu0 %v486
    %680 = vmatprep.subr.bf16.mxu0 %v499
    %681 = vmatpush1.bf16.msra.mxu0 %v498
    %682 = vmatprep.subr.bf16.mxu0 %v511
    %683 = vmatpush1.bf16.msra.mxu0 %v510
    %684 = vmatprep.subr.bf16.mxu0 %v523
    %685 = vmatpush1.bf16.msra.mxu0 %v522
    %686 = vmatprep.subr.bf16.mxu0 %v535
    %687 = vmatpush1.bf16.msra.mxu0 %v534
    %688 = vmatprep.subr.bf16.mxu0 %v547
    %689 = vmatpush1.bf16.msra.mxu0 %v546
    %690 = vmatprep.subr.bf16.mxu0 %v559
    %691 = vmatpush1.bf16.msra.mxu0 %v558
    %692 = vmatprep.subr.bf16.mxu0 %v571
    %693 = vmatpush1.bf16.msra.mxu0 %v570
    %694 = vmatprep.subr.bf16.mxu0 0
    %695 = vmatpush1.bf16.msra.mxu0 0
    %696 = vmatprep.subr.bf16.mxu0 0
    %697 = vmatpush1.bf16.msra.mxu0 0
    %698 = vmatprep.subr.bf16.mxu0 0
    %699 = vmatpush1.bf16.msra.mxu0 0
    %700 = vmatprep.subr.bf16.mxu0 0
    %701 = vmatpush1.bf16.msra.mxu0 0
    %702 = vmatprep.subr.bf16.mxu0 0
    %703 = vmatpush1.bf16.msra.mxu0 0
    %704 = vmatprep.subr.bf16.mxu0 0
    %705 = vmatpush1.bf16.msra.mxu0 0
    %706 = vmatprep.subr.bf16.mxu0 0
    %707 = vmatpush1.bf16.msra.mxu0 0
    %708 = vmatprep.subr.bf16.mxu0 0
    %709 = vmatpush1.bf16.msra.mxu0 0
    %710 = vmatprep.mubr.bf16.mxu0 0
    %711 = vmatmul.mubr.bf16.gmra.mrb[0].mxu0 %v196
    %v712 = vpop.f32.mrb[0].mxu0
    %v713 = vadd.f32 0.0, %v712
    %v714 = vpop.f32.mrb[0].mxu0
    %v715 = vadd.f32 0.0, %v714
    %v716 = vpop.f32.mrb[0].mxu0
    %v717 = vadd.f32 0.0, %v716
    %v718 = vpop.f32.mrb[0].mxu0
    %v719 = vadd.f32 0.0, %v718
    %720 = vdwg.mxu0
    %721 = vmatprep.subr.bf16.mxu0 %v489
    %722 = vmatpush1.bf16.msra.mxu0 %v488
    %723 = vmatprep.subr.bf16.mxu0 %v501
    %724 = vmatpush1.bf16.msra.mxu0 %v500
    %725 = vmatprep.subr.bf16.mxu0 %v513
    %726 = vmatpush1.bf16.msra.mxu0 %v512
    %727 = vmatprep.subr.bf16.mxu0 %v525
    %728 = vmatpush1.bf16.msra.mxu0 %v524
    %729 = vmatprep.subr.bf16.mxu0 %v537
    %730 = vmatpush1.bf16.msra.mxu0 %v536
    %731 = vmatprep.subr.bf16.mxu0 %v549
    %732 = vmatpush1.bf16.msra.mxu0 %v548
    %733 = vmatprep.subr.bf16.mxu0 %v561
    %734 = vmatpush1.bf16.msra.mxu0 %v560
    %735 = vmatprep.subr.bf16.mxu0 %v573
    %736 = vmatpush1.bf16.msra.mxu0 %v572
    %737 = vmatprep.subr.bf16.mxu0 0
    %738 = vmatpush1.bf16.msra.mxu0 0
    %739 = vmatprep.subr.bf16.mxu0 0
    %740 = vmatpush1.bf16.msra.mxu0 0
    %741 = vmatprep.subr.bf16.mxu0 0
    %742 = vmatpush1.bf16.msra.mxu0 0
    %743 = vmatprep.subr.bf16.mxu0 0
    %744 = vmatpush1.bf16.msra.mxu0 0
    %745 = vmatprep.subr.bf16.mxu0 0
    %746 = vmatpush1.bf16.msra.mxu0 0
    %747 = vmatprep.subr.bf16.mxu0 0
    %748 = vmatpush1.bf16.msra.mxu0 0
    %749 = vmatprep.subr.bf16.mxu0 0
    %750 = vmatpush1.bf16.msra.mxu0 0
    %751 = vmatprep.subr.bf16.mxu0 0
    %752 = vmatpush1.bf16.msra.mxu0 0
    %753 = vmatprep.mubr.bf16.mxu0 0
    %754 = vmatmul.mubr.bf16.gmra.mrb[0].mxu0 %v196
    %v755 = vpop.f32.mrb[0].mxu0
    %v756 = vadd.f32 0.0, %v755
    %v757 = vpop.f32.mrb[0].mxu0
    %v758 = vadd.f32 0.0, %v757
    %v759 = vpop.f32.mrb[0].mxu0
    %v760 = vadd.f32 0.0, %v759
    %v761 = vpop.f32.mrb[0].mxu0
    %v762 = vadd.f32 0.0, %v761
    %763 = vdwg.mxu0
    %764 = vmatprep.subr.bf16.mxu0 %v491
    %765 = vmatpush1.bf16.msra.mxu0 %v490
    %766 = vmatprep.subr.bf16.mxu0 %v503
    %767 = vmatpush1.bf16.msra.mxu0 %v502
    %768 = vmatprep.subr.bf16.mxu0 %v515
    %769 = vmatpush1.bf16.msra.mxu0 %v514
    %770 = vmatprep.subr.bf16.mxu0 %v527
    %771 = vmatpush1.bf16.msra.mxu0 %v526
    %772 = vmatprep.subr.bf16.mxu0 %v539
    %773 = vmatpush1.bf16.msra.mxu0 %v538
    %774 = vmatprep.subr.bf16.mxu0 %v551
    %775 = vmatpush1.bf16.msra.mxu0 %v550
    %776 = vmatprep.subr.bf16.mxu0 %v563
    %777 = vmatpush1.bf16.msra.mxu0 %v562
    %778 = vmatprep.subr.bf16.mxu0 %v575
    %779 = vmatpush1.bf16.msra.mxu0 %v574
    %780 = vmatprep.subr.bf16.mxu0 0
    %781 = vmatpush1.bf16.msra.mxu0 0
    %782 = vmatprep.subr.bf16.mxu0 0
    %783 = vmatpush1.bf16.msra.mxu0 0
    %784 = vmatprep.subr.bf16.mxu0 0
    %785 = vmatpush1.bf16.msra.mxu0 0
    %786 = vmatprep.subr.bf16.mxu0 0
    %787 = vmatpush1.bf16.msra.mxu0 0
    %788 = vmatprep.subr.bf16.mxu0 0
    %789 = vmatpush1.bf16.msra.mxu0 0
    %790 = vmatprep.subr.bf16.mxu0 0
    %791 = vmatpush1.bf16.msra.mxu0 0
    %792 = vmatprep.subr.bf16.mxu0 0
    %793 = vmatpush1.bf16.msra.mxu0 0
    %794 = vmatprep.subr.bf16.mxu0 0
    %795 = vmatpush1.bf16.msra.mxu0 0
    %796 = vmatprep.mubr.bf16.mxu0 0
    %797 = vmatmul.mubr.bf16.gmra.mrb[0].mxu0 %v196
    %v798 = vpop.f32.mrb[0].mxu0
    %v799 = vadd.f32 0.0, %v798
    %v800 = vpop.f32.mrb[0].mxu0
    %v801 = vadd.f32 0.0, %v800
    %v802 = vpop.f32.mrb[0].mxu0
    %v803 = vadd.f32 0.0, %v802
    %v804 = vpop.f32.mrb[0].mxu0
    %v805 = vadd.f32 0.0, %v804
    %806 = vdwg.mxu0
    %807 = vmatprep.subr.bf16.mxu0 %v493
    %808 = vmatpush1.bf16.msra.mxu0 %v492
    %809 = vmatprep.subr.bf16.mxu0 %v505
    %810 = vmatpush1.bf16.msra.mxu0 %v504
    %811 = vmatprep.subr.bf16.mxu0 %v517
    %812 = vmatpush1.bf16.msra.mxu0 %v516
    %813 = vmatprep.subr.bf16.mxu0 %v529
    %814 = vmatpush1.bf16.msra.mxu0 %v528
    %815 = vmatprep.subr.bf16.mxu0 %v541
    %816 = vmatpush1.bf16.msra.mxu0 %v540
    %817 = vmatprep.subr.bf16.mxu0 %v553
    %818 = vmatpush1.bf16.msra.mxu0 %v552
    %819 = vmatprep.subr.bf16.mxu0 %v565
    %820 = vmatpush1.bf16.msra.mxu0 %v564
    %821 = vmatprep.subr.bf16.mxu0 %v577
    %822 = vmatpush1.bf16.msra.mxu0 %v576
    %823 = vmatprep.subr.bf16.mxu0 0
    %824 = vmatpush1.bf16.msra.mxu0 0
    %825 = vmatprep.subr.bf16.mxu0 0
    %826 = vmatpush1.bf16.msra.mxu0 0
    %827 = vmatprep.subr.bf16.mxu0 0
    %828 = vmatpush1.bf16.msra.mxu0 0
    %829 = vmatprep.subr.bf16.mxu0 0
    %830 = vmatpush1.bf16.msra.mxu0 0
    %831 = vmatprep.subr.bf16.mxu0 0
    %832 = vmatpush1.bf16.msra.mxu0 0
    %833 = vmatprep.subr.bf16.mxu0 0
    %834 = vmatpush1.bf16.msra.mxu0 0
    %835 = vmatprep.subr.bf16.mxu0 0
    %836 = vmatpush1.bf16.msra.mxu0 0
    %837 = vmatprep.subr.bf16.mxu0 0
    %838 = vmatpush1.bf16.msra.mxu0 0
    %839 = vmatprep.mubr.bf16.mxu0 0
    %840 = vmatmul.mubr.bf16.gmra.mrb[0].mxu0 %v196
    %v841 = vpop.f32.mrb[0].mxu0
    %v842 = vadd.f32 0.0, %v841
    %v843 = vpop.f32.mrb[0].mxu0
    %v844 = vadd.f32 0.0, %v843
    %v845 = vpop.f32.mrb[0].mxu0
    %v846 = vadd.f32 0.0, %v845
    %v847 = vpop.f32.mrb[0].mxu0
    %v848 = vadd.f32 0.0, %v847
    %849 = vdwg.mxu0
    %850 = vmatprep.subr.bf16.mxu0 %v495
    %851 = vmatpush1.bf16.msra.mxu0 %v494
    %852 = vmatprep.subr.bf16.mxu0 %v507
    %853 = vmatpush1.bf16.msra.mxu0 %v506
    %854 = vmatprep.subr.bf16.mxu0 %v519
    %855 = vmatpush1.bf16.msra.mxu0 %v518
    %856 = vmatprep.subr.bf16.mxu0 %v531
    %857 = vmatpush1.bf16.msra.mxu0 %v530
    %858 = vmatprep.subr.bf16.mxu0 %v543
    %859 = vmatpush1.bf16.msra.mxu0 %v542
    %860 = vmatprep.subr.bf16.mxu0 %v555
    %861 = vmatpush1.bf16.msra.mxu0 %v554
    %862 = vmatprep.subr.bf16.mxu0 %v567
    %863 = vmatpush1.bf16.msra.mxu0 %v566
    %864 = vmatprep.subr.bf16.mxu0 %v579
    %865 = vmatpush1.bf16.msra.mxu0 %v578
    %866 = vmatprep.subr.bf16.mxu0 0
    %867 = vmatpush1.bf16.msra.mxu0 0
    %868 = vmatprep.subr.bf16.mxu0 0
    %869 = vmatpush1.bf16.msra.mxu0 0
    %870 = vmatprep.subr.bf16.mxu0 0
    %871 = vmatpush1.bf16.msra.mxu0 0
    %872 = vmatprep.subr.bf16.mxu0 0
    %873 = vmatpush1.bf16.msra.mxu0 0
    %874 = vmatprep.subr.bf16.mxu0 0
    %875 = vmatpush1.bf16.msra.mxu0 0
    %876 = vmatprep.subr.bf16.mxu0 0
    %877 = vmatpush1.bf16.msra.mxu0 0
    %878 = vmatprep.subr.bf16.mxu0 0
    %879 = vmatpush1.bf16.msra.mxu0 0
    %880 = vmatprep.subr.bf16.mxu0 0
    %881 = vmatpush1.bf16.msra.mxu0 0
    %882 = vmatprep.mubr.bf16.mxu0 0
    %883 = vmatmul.mubr.bf16.gmra.mrb[0].mxu0 %v196
    %v884 = vpop.f32.mrb[0].mxu0
    %v885 = vadd.f32 0.0, %v884
    %v886 = vpop.f32.mrb[0].mxu0
    %v887 = vadd.f32 0.0, %v886
    %v888 = vpop.f32.mrb[0].mxu0
    %v889 = vadd.f32 0.0, %v888
    %v890 = vpop.f32.mrb[0].mxu0
    %v891 = vadd.f32 0.0, %v890
    %892 = vdwg.mxu0
    %893 = vmatprep.subr.bf16.mxu0 %v497
    %894 = vmatpush1.bf16.msra.mxu0 %v496
    %895 = vmatprep.subr.bf16.mxu0 %v509
    %896 = vmatpush1.bf16.msra.mxu0 %v508
    %897 = vmatprep.subr.bf16.mxu0 %v521
    %898 = vmatpush1.bf16.msra.mxu0 %v520
    %899 = vmatprep.subr.bf16.mxu0 %v533
    %900 = vmatpush1.bf16.msra.mxu0 %v532
    %901 = vmatprep.subr.bf16.mxu0 %v545
    %902 = vmatpush1.bf16.msra.mxu0 %v544
    %903 = vmatprep.subr.bf16.mxu0 %v557
    %904 = vmatpush1.bf16.msra.mxu0 %v556
    %905 = vmatprep.subr.bf16.mxu0 %v569
    %906 = vmatpush1.bf16.msra.mxu0 %v568
    %907 = vmatprep.subr.bf16.mxu0 %v581
    %908 = vmatpush1.bf16.msra.mxu0 %v580
    %909 = vmatprep.subr.bf16.mxu0 0
    %910 = vmatpush1.bf16.msra.mxu0 0
    %911 = vmatprep.subr.bf16.mxu0 0
    %912 = vmatpush1.bf16.msra.mxu0 0
    %913 = vmatprep.subr.bf16.mxu0 0
    %914 = vmatpush1.bf16.msra.mxu0 0
    %915 = vmatprep.subr.bf16.mxu0 0
    %916 = vmatpush1.bf16.msra.mxu0 0
    %917 = vmatprep.subr.bf16.mxu0 0
    %918 = vmatpush1.bf16.msra.mxu0 0
    %919 = vmatprep.subr.bf16.mxu0 0
    %920 = vmatpush1.bf16.msra.mxu0 0
    %921 = vmatprep.subr.bf16.mxu0 0
    %922 = vmatpush1.bf16.msra.mxu0 0
    %923 = vmatprep.subr.bf16.mxu0 0
    %924 = vmatpush1.bf16.msra.mxu0 0
    %925 = vmatprep.mubr.bf16.mxu0 0
    %926 = vmatmul.mubr.bf16.gmra.mrb[0].mxu0 %v196
    %v927 = vpop.f32.mrb[0].mxu0
    %v928 = vadd.f32 0.0, %v927
    %v929 = vpop.f32.mrb[0].mxu0
    %v930 = vadd.f32 0.0, %v929
    %v931 = vpop.f32.mrb[0].mxu0
    %v932 = vadd.f32 0.0, %v931
    %v933 = vpop.f32.mrb[0].mxu0
    %v934 = vadd.f32 0.0, %v933
    %935 = vdwg.mxu0
    %v936 = vmul.f32 %v713, 0.01
    %v937 = vmul.f32 %v715, 0.01
    %v938 = vmul.f32 %v756, 0.01
    %v939 = vmul.f32 %v758, 0.01
    %v940 = vmul.f32 %v799, 0.01
    %v941 = vmul.f32 %v801, 0.01
    %v942 = vmul.f32 %v842, 0.01
    %v943 = vmul.f32 %v844, 0.01
    %v944 = vmul.f32 %v885, 0.01
    %v945 = vmul.f32 %v887, 0.01
    %v946 = vmul.f32 %v928, 0.01
    %v947 = vmul.f32 %v930, 0.01
    %v948 = vmul.f32 %v717, 0.01
    %v949 = vmul.f32 %v719, 0.01
    %v950 = vmul.f32 %v760, 0.01
    %v951 = vmul.f32 %v762, 0.01
    %v952 = vmul.f32 %v803, 0.01
    %v953 = vmul.f32 %v805, 0.01
    %v954 = vmul.f32 %v846, 0.01
    %v955 = vmul.f32 %v848, 0.01
    %v956 = vmul.f32 %v889, 0.01
    %v957 = vmul.f32 %v891, 0.01
    %v958 = vmul.f32 %v932, 0.01
    %v959 = vmul.f32 %v934, 0.01
    %v960 = vmax.f32 %v713, %v936
    %v961 = vmax.f32 %v715, %v937
    %v962 = vmax.f32 %v756, %v938
    %v963 = vmax.f32 %v758, %v939
    %v964 = vmax.f32 %v799, %v940
    %v965 = vmax.f32 %v801, %v941
    %v966 = vmax.f32 %v842, %v942
    %v967 = vmax.f32 %v844, %v943
    %v968 = vmax.f32 %v885, %v944
    %v969 = vmax.f32 %v887, %v945
    %v970 = vmax.f32 %v928, %v946
    %v971 = vmax.f32 %v930, %v947
    %v972 = vmax.f32 %v717, %v948
    %v973 = vmax.f32 %v719, %v949
    %v974 = vmax.f32 %v760, %v950
    %v975 = vmax.f32 %v762, %v951
    %v976 = vmax.f32 %v803, %v952
    %v977 = vmax.f32 %v805, %v953
    %v978 = vmax.f32 %v846, %v954
    %v979 = vmax.f32 %v848, %v955
    %v980 = vmax.f32 %v889, %v956
    %v981 = vmax.f32 %v891, %v957
    %v982 = vmax.f32 %v932, %v958
    %v983 = vmax.f32 %v934, %v959
    %v984 = vpack.c.bf16 %v972, %v960
    %v985 = vpack.c.bf16 %v973, %v961
    %v986 = vpack.c.bf16 %v974, %v962
    %v987 = vpack.c.bf16 %v975, %v963
    %v988 = vpack.c.bf16 %v976, %v964
    %v989 = vpack.c.bf16 %v977, %v965
    %v990 = vpack.c.bf16 %v978, %v966
    %v991 = vpack.c.bf16 %v979, %v967
    %v992 = vpack.c.bf16 %v980, %v968
    %v993 = vpack.c.bf16 %v981, %v969
    %v994 = vpack.c.bf16 %v982, %v970
    %v995 = vpack.c.bf16 %v983, %v971
    %v998 = vunpack.c.l.b16 %v94
    %v999 = vunpack.c.l.b16 %v95
    %v1000 = vpack.c.b16 %v999, %v998
    %1002 = vmatprep.subr.bf16.mxu0 %v487
    %1003 = vmatpush1.bf16.msra.mxu0 %v486
    %1004 = vmatprep.subr.bf16.mxu0 %v499
    %1005 = vmatpush1.bf16.msra.mxu0 %v498
    %1006 = vmatprep.subr.bf16.mxu0 %v511
    %1007 = vmatpush1.bf16.msra.mxu0 %v510
    %1008 = vmatprep.subr.bf16.mxu0 %v523
    %1009 = vmatpush1.bf16.msra.mxu0 %v522
    %1010 = vmatprep.subr.bf16.mxu0 %v535
    %1011 = vmatpush1.bf16.msra.mxu0 %v534
    %1012 = vmatprep.subr.bf16.mxu0 %v547
    %1013 = vmatpush1.bf16.msra.mxu0 %v546
    %1014 = vmatprep.subr.bf16.mxu0 %v559
    %1015 = vmatpush1.bf16.msra.mxu0 %v558
    %1016 = vmatprep.subr.bf16.mxu0 %v571
    %1017 = vmatpush1.bf16.msra.mxu0 %v570
    %1018 = vmatprep.subr.bf16.mxu0 0
    %1019 = vmatpush1.bf16.msra.mxu0 0
    %1020 = vmatprep.subr.bf16.mxu0 0
    %1021 = vmatpush1.bf16.msra.mxu0 0
    %1022 = vmatprep.subr.bf16.mxu0 0
    %1023 = vmatpush1.bf16.msra.mxu0 0
    %1024 = vmatprep.subr.bf16.mxu0 0
    %1025 = vmatpush1.bf16.msra.mxu0 0
    %1026 = vmatprep.subr.bf16.mxu0 0
    %1027 = vmatpush1.bf16.msra.mxu0 0
    %1028 = vmatprep.subr.bf16.mxu0 0
    %1029 = vmatpush1.bf16.msra.mxu0 0
    %1030 = vmatprep.subr.bf16.mxu0 0
    %1031 = vmatpush1.bf16.msra.mxu0 0
    %1032 = vmatprep.subr.bf16.mxu0 0
    %1033 = vmatpush1.bf16.msra.mxu0 0
    %1034 = vmatprep.mubr.bf16.mxu0 0
    %1035 = vmatmul.mubr.bf16.gmra.mrb[0].mxu0 %v1000
    %v1036 = vpop.f32.mrb[0].mxu0
    %v1037 = vadd.f32 0.0, %v1036
    %v1038 = vpop.f32.mrb[0].mxu0
    %v1039 = vadd.f32 0.0, %v1038
    %v1040 = vpop.f32.mrb[0].mxu0
    %v1041 = vadd.f32 0.0, %v1040
    %v1042 = vpop.f32.mrb[0].mxu0
    %v1043 = vadd.f32 0.0, %v1042
    %1044 = vdwg.mxu0
    %1045 = vmatprep.subr.bf16.mxu0 %v489
    %1046 = vmatpush1.bf16.msra.mxu0 %v488
    %1047 = vmatprep.subr.bf16.mxu0 %v501
    %1048 = vmatpush1.bf16.msra.mxu0 %v500
    %1049 = vmatprep.subr.bf16.mxu0 %v513
    %1050 = vmatpush1.bf16.msra.mxu0 %v512
    %1051 = vmatprep.subr.bf16.mxu0 %v525
    %1052 = vmatpush1.bf16.msra.mxu0 %v524
    %1053 = vmatprep.subr.bf16.mxu0 %v537
    %1054 = vmatpush1.bf16.msra.mxu0 %v536
    %1055 = vmatprep.subr.bf16.mxu0 %v549
    %1056 = vmatpush1.bf16.msra.mxu0 %v548
    %1057 = vmatprep.subr.bf16.mxu0 %v561
    %1058 = vmatpush1.bf16.msra.mxu0 %v560
    %1059 = vmatprep.subr.bf16.mxu0 %v573
    %1060 = vmatpush1.bf16.msra.mxu0 %v572
    %1061 = vmatprep.subr.bf16.mxu0 0
    %1062 = vmatpush1.bf16.msra.mxu0 0
    %1063 = vmatprep.subr.bf16.mxu0 0
    %1064 = vmatpush1.bf16.msra.mxu0 0
    %1065 = vmatprep.subr.bf16.mxu0 0
    %1066 = vmatpush1.bf16.msra.mxu0 0
    %1067 = vmatprep.subr.bf16.mxu0 0
    %1068 = vmatpush1.bf16.msra.mxu0 0
    %1069 = vmatprep.subr.bf16.mxu0 0
    %1070 = vmatpush1.bf16.msra.mxu0 0
    %1071 = vmatprep.subr.bf16.mxu0 0
    %1072 = vmatpush1.bf16.msra.mxu0 0
    %1073 = vmatprep.subr.bf16.mxu0 0
    %1074 = vmatpush1.bf16.msra.mxu0 0
    %1075 = vmatprep.subr.bf16.mxu0 0
    %1076 = vmatpush1.bf16.msra.mxu0 0
    %1077 = vmatprep.mubr.bf16.mxu0 0
    %1078 = vmatmul.mubr.bf16.gmra.mrb[0].mxu0 %v1000
    %v1079 = vpop.f32.mrb[0].mxu0
    %v1080 = vadd.f32 0.0, %v1079
    %v1081 = vpop.f32.mrb[0].mxu0
    %v1082 = vadd.f32 0.0, %v1081
    %v1083 = vpop.f32.mrb[0].mxu0
    %v1084 = vadd.f32 0.0, %v1083
    %v1085 = vpop.f32.mrb[0].mxu0
    %v1086 = vadd.f32 0.0, %v1085
    %1087 = vdwg.mxu0
    %1088 = vmatprep.subr.bf16.mxu0 %v491
    %1089 = vmatpush1.bf16.msra.mxu0 %v490
    %1090 = vmatprep.subr.bf16.mxu0 %v503
    %1091 = vmatpush1.bf16.msra.mxu0 %v502
    %1092 = vmatprep.subr.bf16.mxu0 %v515
    %1093 = vmatpush1.bf16.msra.mxu0 %v514
    %1094 = vmatprep.subr.bf16.mxu0 %v527
    %1095 = vmatpush1.bf16.msra.mxu0 %v526
    %1096 = vmatprep.subr.bf16.mxu0 %v539
    %1097 = vmatpush1.bf16.msra.mxu0 %v538
    %1098 = vmatprep.subr.bf16.mxu0 %v551
    %1099 = vmatpush1.bf16.msra.mxu0 %v550
    %1100 = vmatprep.subr.bf16.mxu0 %v563
    %1101 = vmatpush1.bf16.msra.mxu0 %v562
    %1102 = vmatprep.subr.bf16.mxu0 %v575
    %1103 = vmatpush1.bf16.msra.mxu0 %v574
    %1104 = vmatprep.subr.bf16.mxu0 0
    %1105 = vmatpush1.bf16.msra.mxu0 0
    %1106 = vmatprep.subr.bf16.mxu0 0
    %1107 = vmatpush1.bf16.msra.mxu0 0
    %1108 = vmatprep.subr.bf16.mxu0 0
    %1109 = vmatpush1.bf16.msra.mxu0 0
    %1110 = vmatprep.subr.bf16.mxu0 0
    %1111 = vmatpush1.bf16.msra.mxu0 0
    %1112 = vmatprep.subr.bf16.mxu0 0
    %1113 = vmatpush1.bf16.msra.mxu0 0
    %1114 = vmatprep.subr.bf16.mxu0 0
    %1115 = vmatpush1.bf16.msra.mxu0 0
    %1116 = vmatprep.subr.bf16.mxu0 0
    %1117 = vmatpush1.bf16.msra.mxu0 0
    %1118 = vmatprep.subr.bf16.mxu0 0
    %1119 = vmatpush1.bf16.msra.mxu0 0
    %1120 = vmatprep.mubr.bf16.mxu0 0
    %1121 = vmatmul.mubr.bf16.gmra.mrb[0].mxu0 %v1000
    %v1122 = vpop.f32.mrb[0].mxu0
    %v1123 = vadd.f32 0.0, %v1122
    %v1124 = vpop.f32.mrb[0].mxu0
    %v1125 = vadd.f32 0.0, %v1124
    %v1126 = vpop.f32.mrb[0].mxu0
    %v1127 = vadd.f32 0.0, %v1126
    %v1128 = vpop.f32.mrb[0].mxu0
    %v1129 = vadd.f32 0.0, %v1128
    %1130 = vdwg.mxu0
    %1131 = vmatprep.subr.bf16.mxu0 %v493
    %1132 = vmatpush1.bf16.msra.mxu0 %v492
    %1133 = vmatprep.subr.bf16.mxu0 %v505
    %1134 = vmatpush1.bf16.msra.mxu0 %v504
    %1135 = vmatprep.subr.bf16.mxu0 %v517
    %1136 = vmatpush1.bf16.msra.mxu0 %v516
    %1137 = vmatprep.subr.bf16.mxu0 %v529
    %1138 = vmatpush1.bf16.msra.mxu0 %v528
    %1139 = vmatprep.subr.bf16.mxu0 %v541
    %1140 = vmatpush1.bf16.msra.mxu0 %v540
    %1141 = vmatprep.subr.bf16.mxu0 %v553
    %1142 = vmatpush1.bf16.msra.mxu0 %v552
    %1143 = vmatprep.subr.bf16.mxu0 %v565
    %1144 = vmatpush1.bf16.msra.mxu0 %v564
    %1145 = vmatprep.subr.bf16.mxu0 %v577
    %1146 = vmatpush1.bf16.msra.mxu0 %v576
    %1147 = vmatprep.subr.bf16.mxu0 0
    %1148 = vmatpush1.bf16.msra.mxu0 0
    %1149 = vmatprep.subr.bf16.mxu0 0
    %1150 = vmatpush1.bf16.msra.mxu0 0
    %1151 = vmatprep.subr.bf16.mxu0 0
    %1152 = vmatpush1.bf16.msra.mxu0 0
    %1153 = vmatprep.subr.bf16.mxu0 0
    %1154 = vmatpush1.bf16.msra.mxu0 0
    %1155 = vmatprep.subr.bf16.mxu0 0
    %1156 = vmatpush1.bf16.msra.mxu0 0
    %1157 = vmatprep.subr.bf16.mxu0 0
    %1158 = vmatpush1.bf16.msra.mxu0 0
    %1159 = vmatprep.subr.bf16.mxu0 0
    %1160 = vmatpush1.bf16.msra.mxu0 0
    %1161 = vmatprep.subr.bf16.mxu0 0
    %1162 = vmatpush1.bf16.msra.mxu0 0
    %1163 = vmatprep.mubr.bf16.mxu0 0
    %1164 = vmatmul.mubr.bf16.gmra.mrb[0].mxu0 %v1000
    %v1165 = vpop.f32.mrb[0].mxu0
    %v1166 = vadd.f32 0.0, %v1165
    %v1167 = vpop.f32.mrb[0].mxu0
    %v1168 = vadd.f32 0.0, %v1167
    %v1169 = vpop.f32.mrb[0].mxu0
    %v1170 = vadd.f32 0.0, %v1169
    %v1171 = vpop.f32.mrb[0].mxu0
    %v1172 = vadd.f32 0.0, %v1171
    %1173 = vdwg.mxu0
    %1174 = vmatprep.subr.bf16.mxu0 %v495
    %1175 = vmatpush1.bf16.msra.mxu0 %v494
    %1176 = vmatprep.subr.bf16.mxu0 %v507
    %1177 = vmatpush1.bf16.msra.mxu0 %v506
    %1178 = vmatprep.subr.bf16.mxu0 %v519
    %1179 = vmatpush1.bf16.msra.mxu0 %v518
    %1180 = vmatprep.subr.bf16.mxu0 %v531
    %1181 = vmatpush1.bf16.msra.mxu0 %v530
    %1182 = vmatprep.subr.bf16.mxu0 %v543
    %1183 = vmatpush1.bf16.msra.mxu0 %v542
    %1184 = vmatprep.subr.bf16.mxu0 %v555
    %1185 = vmatpush1.bf16.msra.mxu0 %v554
    %1186 = vmatprep.subr.bf16.mxu0 %v567
    %1187 = vmatpush1.bf16.msra.mxu0 %v566
    %1188 = vmatprep.subr.bf16.mxu0 %v579
    %1189 = vmatpush1.bf16.msra.mxu0 %v578
    %1190 = vmatprep.subr.bf16.mxu0 0
    %1191 = vmatpush1.bf16.msra.mxu0 0
    %1192 = vmatprep.subr.bf16.mxu0 0
    %1193 = vmatpush1.bf16.msra.mxu0 0
    %1194 = vmatprep.subr.bf16.mxu0 0
    %1195 = vmatpush1.bf16.msra.mxu0 0
    %1196 = vmatprep.subr.bf16.mxu0 0
    %1197 = vmatpush1.bf16.msra.mxu0 0
    %1198 = vmatprep.subr.bf16.mxu0 0
    %1199 = vmatpush1.bf16.msra.mxu0 0
    %1200 = vmatprep.subr.bf16.mxu0 0
    %1201 = vmatpush1.bf16.msra.mxu0 0
    %1202 = vmatprep.subr.bf16.mxu0 0
    %1203 = vmatpush1.bf16.msra.mxu0 0
    %1204 = vmatprep.subr.bf16.mxu0 0
    %1205 = vmatpush1.bf16.msra.mxu0 0
    %1206 = vmatprep.mubr.bf16.mxu0 0
    %1207 = vmatmul.mubr.bf16.gmra.mrb[0].mxu0 %v1000
    %v1208 = vpop.f32.mrb[0].mxu0
    %v1209 = vadd.f32 0.0, %v1208
    %v1210 = vpop.f32.mrb[0].mxu0
    %v1211 = vadd.f32 0.0, %v1210
    %v1212 = vpop.f32.mrb[0].mxu0
    %v1213 = vadd.f32 0.0, %v1212
    %v1214 = vpop.f32.mrb[0].mxu0
    %v1215 = vadd.f32 0.0, %v1214
    %1216 = vdwg.mxu0
    %1217 = vmatprep.subr.bf16.mxu0 %v497
    %1218 = vmatpush1.bf16.msra.mxu0 %v496
    %1219 = vmatprep.subr.bf16.mxu0 %v509
    %1220 = vmatpush1.bf16.msra.mxu0 %v508
    %1221 = vmatprep.subr.bf16.mxu0 %v521
    %1222 = vmatpush1.bf16.msra.mxu0 %v520
    %1223 = vmatprep.subr.bf16.mxu0 %v533
    %1224 = vmatpush1.bf16.msra.mxu0 %v532
    %1225 = vmatprep.subr.bf16.mxu0 %v545
    %1226 = vmatpush1.bf16.msra.mxu0 %v544
    %1227 = vmatprep.subr.bf16.mxu0 %v557
    %1228 = vmatpush1.bf16.msra.mxu0 %v556
    %1229 = vmatprep.subr.bf16.mxu0 %v569
    %1230 = vmatpush1.bf16.msra.mxu0 %v568
    %1231 = vmatprep.subr.bf16.mxu0 %v581
    %1232 = vmatpush1.bf16.msra.mxu0 %v580
    %1233 = vmatprep.subr.bf16.mxu0 0
    %1234 = vmatpush1.bf16.msra.mxu0 0
    %1235 = vmatprep.subr.bf16.mxu0 0
    %1236 = vmatpush1.bf16.msra.mxu0 0
    %1237 = vmatprep.subr.bf16.mxu0 0
    %1238 = vmatpush1.bf16.msra.mxu0 0
    %1239 = vmatprep.subr.bf16.mxu0 0
    %1240 = vmatpush1.bf16.msra.mxu0 0
    %1241 = vmatprep.subr.bf16.mxu0 0
    %1242 = vmatpush1.bf16.msra.mxu0 0
    %1243 = vmatprep.subr.bf16.mxu0 0
    %1244 = vmatpush1.bf16.msra.mxu0 0
    %1245 = vmatprep.subr.bf16.mxu0 0
    %1246 = vmatpush1.bf16.msra.mxu0 0
    %1247 = vmatprep.subr.bf16.mxu0 0
    %1248 = vmatpush1.bf16.msra.mxu0 0
    %1249 = vmatprep.mubr.bf16.mxu0 0
    %1250 = vmatmul.mubr.bf16.gmra.mrb[0].mxu0 %v1000
    %v1251 = vpop.f32.mrb[0].mxu0
    %v1252 = vadd.f32 0.0, %v1251
    %v1253 = vpop.f32.mrb[0].mxu0
    %v1254 = vadd.f32 0.0, %v1253
    %v1255 = vpop.f32.mrb[0].mxu0
    %v1256 = vadd.f32 0.0, %v1255
    %v1257 = vpop.f32.mrb[0].mxu0
    %v1258 = vadd.f32 0.0, %v1257
    %1259 = vdwg.mxu0
    %v1260 = vmul.f32 %v1037, 0.01
    %v1261 = vmul.f32 %v1039, 0.01
    %v1262 = vmul.f32 %v1080, 0.01
    %v1263 = vmul.f32 %v1082, 0.01
    %v1264 = vmul.f32 %v1123, 0.01
    %v1265 = vmul.f32 %v1125, 0.01
    %v1266 = vmul.f32 %v1166, 0.01
    %v1267 = vmul.f32 %v1168, 0.01
    %v1268 = vmul.f32 %v1209, 0.01
    %v1269 = vmul.f32 %v1211, 0.01
    %v1270 = vmul.f32 %v1252, 0.01
    %v1271 = vmul.f32 %v1254, 0.01
    %v1272 = vmul.f32 %v1041, 0.01
    %v1273 = vmul.f32 %v1043, 0.01
    %v1274 = vmul.f32 %v1084, 0.01
    %v1275 = vmul.f32 %v1086, 0.01
    %v1276 = vmul.f32 %v1127, 0.01
    %v1277 = vmul.f32 %v1129, 0.01
    %v1278 = vmul.f32 %v1170, 0.01
    %v1279 = vmul.f32 %v1172, 0.01
    %v1280 = vmul.f32 %v1213, 0.01
    %v1281 = vmul.f32 %v1215, 0.01
    %v1282 = vmul.f32 %v1256, 0.01
    %v1283 = vmul.f32 %v1258, 0.01
    %v1284 = vmax.f32 %v1037, %v1260
    %v1285 = vmax.f32 %v1039, %v1261
    %v1286 = vmax.f32 %v1080, %v1262
    %v1287 = vmax.f32 %v1082, %v1263
    %v1288 = vmax.f32 %v1123, %v1264
    %v1289 = vmax.f32 %v1125, %v1265
    %v1290 = vmax.f32 %v1166, %v1266
    %v1291 = vmax.f32 %v1168, %v1267
    %v1292 = vmax.f32 %v1209, %v1268
    %v1293 = vmax.f32 %v1211, %v1269
    %v1294 = vmax.f32 %v1252, %v1270
    %v1295 = vmax.f32 %v1254, %v1271
    %v1296 = vmax.f32 %v1041, %v1272
    %v1297 = vmax.f32 %v1043, %v1273
    %v1298 = vmax.f32 %v1084, %v1274
    %v1299 = vmax.f32 %v1086, %v1275
    %v1300 = vmax.f32 %v1127, %v1276
    %v1301 = vmax.f32 %v1129, %v1277
    %v1302 = vmax.f32 %v1170, %v1278
    %v1303 = vmax.f32 %v1172, %v1279
    %v1304 = vmax.f32 %v1213, %v1280
    %v1305 = vmax.f32 %v1215, %v1281
    %v1306 = vmax.f32 %v1256, %v1282
    %v1307 = vmax.f32 %v1258, %v1283
    %v1308 = vpack.c.bf16 %v1296, %v1284
    %v1309 = vpack.c.bf16 %v1297, %v1285
    %v1310 = vpack.c.bf16 %v1298, %v1286
    %v1311 = vpack.c.bf16 %v1299, %v1287
    %v1312 = vpack.c.bf16 %v1300, %v1288
    %v1313 = vpack.c.bf16 %v1301, %v1289
    %v1314 = vpack.c.bf16 %v1302, %v1290
    %v1315 = vpack.c.bf16 %v1303, %v1291
    %v1316 = vpack.c.bf16 %v1304, %v1292
    %v1317 = vpack.c.bf16 %v1305, %v1293
    %v1318 = vpack.c.bf16 %v1306, %v1294
    %v1319 = vpack.c.bf16 %v1307, %v1295
    %v1320 = vld [vmem:[#allocation4] sm:$0xff]
    %v1321 = vld [vmem:[#allocation4 + $0x8] sm:$0xff]
    %v1322 = vld [vmem:[#allocation4 + $0x10] sm:$0xff]
    %v1323 = vld [vmem:[#allocation4 + $0x18] sm:$0xff]
    %v1324 = vld [vmem:[#allocation4 + $0x20] sm:$0xff]
    %v1325 = vld [vmem:[#allocation4 + $0x28] sm:$0xff]
    %v1326 = vld [vmem:[#allocation4 + $0x30] sm:$0xff]
    %v1327 = vld [vmem:[#allocation4 + $0x38] sm:$0xff]
    %v1328 = vld [vmem:[#allocation4 + $0x40] sm:$0xff]
    %v1329 = vld [vmem:[#allocation4 + $0x48] sm:$0xff]
    %v1330 = vld [vmem:[#allocation4 + $0x50] sm:$0xff]
    %v1331 = vld [vmem:[#allocation4 + $0x58] sm:$0xff]
    %v1332 = vld [vmem:[#allocation4 + $0x60] sm:$0xff]
    %v1333 = vld [vmem:[#allocation4 + $0x68] sm:$0xff]
    %v1334 = vld [vmem:[#allocation4 + $0x70] sm:$0xff]
    %v1335 = vld [vmem:[#allocation4 + $0x78] sm:$0xff]
    %v1336 = vld [vmem:[#allocation4 + $0x80] sm:$0xff]
    %v1337 = vld [vmem:[#allocation4 + $0x88] sm:$0xff]
    %v1338 = vld [vmem:[#allocation4 + $0x90] sm:$0xff]
    %v1339 = vld [vmem:[#allocation4 + $0x98] sm:$0xff]
    %v1340 = vld [vmem:[#allocation4 + $0xa0] sm:$0xff]
    %v1341 = vld [vmem:[#allocation4 + $0xa8] sm:$0xff]
    %v1342 = vld [vmem:[#allocation4 + $0xb0] sm:$0xff]
    %v1343 = vld [vmem:[#allocation4 + $0xb8] sm:$0xff]
    %v1344 = vld [vmem:[#allocation4 + $0xc0] sm:$0xff]
    %v1345 = vld [vmem:[#allocation4 + $0xc8] sm:$0xff]
    %v1346 = vld [vmem:[#allocation4 + $0xd0] sm:$0xff]
    %v1347 = vld [vmem:[#allocation4 + $0xd8] sm:$0xff]
    %v1348 = vld [vmem:[#allocation4 + $0xe0] sm:$0xff]
    %v1349 = vld [vmem:[#allocation4 + $0xe8] sm:$0xff]
    %v1350 = vld [vmem:[#allocation4 + $0xf0] sm:$0xff]
    %v1351 = vld [vmem:[#allocation4 + $0xf8] sm:$0xff]
    %v1352 = vld [vmem:[#allocation4 + $0x100] sm:$0xff]
    %v1353 = vld [vmem:[#allocation4 + $0x108] sm:$0xff]
    %v1354 = vld [vmem:[#allocation4 + $0x110] sm:$0xff]
    %v1355 = vld [vmem:[#allocation4 + $0x118] sm:$0xff]
    %v1356 = vld [vmem:[#allocation4 + $0x120] sm:$0xff]
    %v1357 = vld [vmem:[#allocation4 + $0x128] sm:$0xff]
    %v1358 = vld [vmem:[#allocation4 + $0x130] sm:$0xff]
    %v1359 = vld [vmem:[#allocation4 + $0x138] sm:$0xff]
    %v1360 = vld [vmem:[#allocation4 + $0x140] sm:$0xff]
    %v1361 = vld [vmem:[#allocation4 + $0x148] sm:$0xff]
    %v1362 = vld [vmem:[#allocation4 + $0x150] sm:$0xff]
    %v1363 = vld [vmem:[#allocation4 + $0x158] sm:$0xff]
    %v1364 = vld [vmem:[#allocation4 + $0x160] sm:$0xff]
    %v1365 = vld [vmem:[#allocation4 + $0x168] sm:$0xff]
    %v1366 = vld [vmem:[#allocation4 + $0x170] sm:$0xff]
    %v1367 = vld [vmem:[#allocation4 + $0x178] sm:$0xff]
    %v1368 = vld [vmem:[#allocation4 + $0x180] sm:$0xff]
    %v1369 = vld [vmem:[#allocation4 + $0x188] sm:$0xff]
    %v1370 = vld [vmem:[#allocation4 + $0x190] sm:$0xff]
    %v1371 = vld [vmem:[#allocation4 + $0x198] sm:$0xff]
    %v1372 = vld [vmem:[#allocation4 + $0x1a0] sm:$0xff]
    %v1373 = vld [vmem:[#allocation4 + $0x1a8] sm:$0xff]
    %v1374 = vld [vmem:[#allocation4 + $0x1b0] sm:$0xff]
    %v1375 = vld [vmem:[#allocation4 + $0x1b8] sm:$0xff]
    %v1376 = vld [vmem:[#allocation4 + $0x1c0] sm:$0xff]
    %v1377 = vld [vmem:[#allocation4 + $0x1c8] sm:$0xff]
    %v1378 = vld [vmem:[#allocation4 + $0x1d0] sm:$0xff]
    %v1379 = vld [vmem:[#allocation4 + $0x1d8] sm:$0xff]
    %v1380 = vld [vmem:[#allocation4 + $0x1e0] sm:$0xff]
    %v1381 = vld [vmem:[#allocation4 + $0x1e8] sm:$0xff]
    %v1382 = vld [vmem:[#allocation4 + $0x1f0] sm:$0xff]
    %v1383 = vld [vmem:[#allocation4 + $0x1f8] sm:$0xff]
    %v1384 = vld [vmem:[#allocation4 + $0x200] sm:$0xff]
    %v1385 = vld [vmem:[#allocation4 + $0x208] sm:$0xff]
    %v1386 = vld [vmem:[#allocation4 + $0x210] sm:$0xff]
    %v1387 = vld [vmem:[#allocation4 + $0x218] sm:$0xff]
    %v1388 = vld [vmem:[#allocation4 + $0x220] sm:$0xff]
    %v1389 = vld [vmem:[#allocation4 + $0x228] sm:$0xff]
    %v1390 = vld [vmem:[#allocation4 + $0x230] sm:$0xff]
    %v1391 = vld [vmem:[#allocation4 + $0x238] sm:$0xff]
    %v1392 = vld [vmem:[#allocation4 + $0x240] sm:$0xff]
    %v1393 = vld [vmem:[#allocation4 + $0x248] sm:$0xff]
    %v1394 = vld [vmem:[#allocation4 + $0x250] sm:$0xff]
    %v1395 = vld [vmem:[#allocation4 + $0x258] sm:$0xff]
    %v1396 = vld [vmem:[#allocation4 + $0x260] sm:$0xff]
    %v1397 = vld [vmem:[#allocation4 + $0x268] sm:$0xff]
    %v1398 = vld [vmem:[#allocation4 + $0x270] sm:$0xff]
    %v1399 = vld [vmem:[#allocation4 + $0x278] sm:$0xff]
    %v1400 = vld [vmem:[#allocation4 + $0x280] sm:$0xff]
    %v1401 = vld [vmem:[#allocation4 + $0x288] sm:$0xff]
    %v1402 = vld [vmem:[#allocation4 + $0x290] sm:$0xff]
    %v1403 = vld [vmem:[#allocation4 + $0x298] sm:$0xff]
    %v1404 = vld [vmem:[#allocation4 + $0x2a0] sm:$0xff]
    %v1405 = vld [vmem:[#allocation4 + $0x2a8] sm:$0xff]
    %v1406 = vld [vmem:[#allocation4 + $0x2b0] sm:$0xff]
    %v1407 = vld [vmem:[#allocation4 + $0x2b8] sm:$0xff]
    %v1408 = vld [vmem:[#allocation4 + $0x2c0] sm:$0xff]
    %v1409 = vld [vmem:[#allocation4 + $0x2c8] sm:$0xff]
    %v1410 = vld [vmem:[#allocation4 + $0x2d0] sm:$0xff]
    %v1411 = vld [vmem:[#allocation4 + $0x2d8] sm:$0xff]
    %v1412 = vld [vmem:[#allocation4 + $0x2e0] sm:$0xff]
    %v1413 = vld [vmem:[#allocation4 + $0x2e8] sm:$0xff]
    %v1414 = vld [vmem:[#allocation4 + $0x2f0] sm:$0xff]
    %v1415 = vld [vmem:[#allocation4 + $0x2f8] sm:$0xff]
    %v1416 = vld [vmem:[#allocation4 + $0x300] sm:$0xff]
    %v1417 = vld [vmem:[#allocation4 + $0x308] sm:$0xff]
    %v1418 = vld [vmem:[#allocation4 + $0x310] sm:$0xff]
    %v1419 = vld [vmem:[#allocation4 + $0x318] sm:$0xff]
    %v1420 = vld [vmem:[#allocation4 + $0x320] sm:$0xff]
    %v1421 = vld [vmem:[#allocation4 + $0x328] sm:$0xff]
    %v1422 = vld [vmem:[#allocation4 + $0x330] sm:$0xff]
    %v1423 = vld [vmem:[#allocation4 + $0x338] sm:$0xff]
    %v1424 = vld [vmem:[#allocation4 + $0x340] sm:$0xff]
    %v1425 = vld [vmem:[#allocation4 + $0x348] sm:$0xff]
    %v1426 = vld [vmem:[#allocation4 + $0x350] sm:$0xff]
    %v1427 = vld [vmem:[#allocation4 + $0x358] sm:$0xff]
    %v1428 = vld [vmem:[#allocation4 + $0x360] sm:$0xff]
    %v1429 = vld [vmem:[#allocation4 + $0x368] sm:$0xff]
    %v1430 = vld [vmem:[#allocation4 + $0x370] sm:$0xff]
    %v1431 = vld [vmem:[#allocation4 + $0x378] sm:$0xff]
    %v1432 = vld [vmem:[#allocation4 + $0x380] sm:$0xff]
    %v1433 = vld [vmem:[#allocation4 + $0x388] sm:$0xff]
    %v1434 = vld [vmem:[#allocation4 + $0x390] sm:$0xff]
    %v1435 = vld [vmem:[#allocation4 + $0x398] sm:$0xff]
    %v1436 = vld [vmem:[#allocation4 + $0x3a0] sm:$0xff]
    %v1437 = vld [vmem:[#allocation4 + $0x3a8] sm:$0xff]
    %v1438 = vld [vmem:[#allocation4 + $0x3b0] sm:$0xff]
    %v1439 = vld [vmem:[#allocation4 + $0x3b8] sm:$0xff]
    %v1440 = vld [vmem:[#allocation4 + $0x3c0] sm:$0xff]
    %v1441 = vld [vmem:[#allocation4 + $0x3c8] sm:$0xff]
    %v1442 = vld [vmem:[#allocation4 + $0x3d0] sm:$0xff]
    %v1443 = vld [vmem:[#allocation4 + $0x3d8] sm:$0xff]
    %v1444 = vld [vmem:[#allocation4 + $0x3e0] sm:$0xff]
    %v1445 = vld [vmem:[#allocation4 + $0x3e8] sm:$0xff]
    %v1446 = vld [vmem:[#allocation4 + $0x3f0] sm:$0xff]
    %v1447 = vld [vmem:[#allocation4 + $0x3f8] sm:$0xff]
    %v1448 = vld [vmem:[#allocation4 + $0x400] sm:$0xff]
    %v1449 = vld [vmem:[#allocation4 + $0x408] sm:$0xff]
    %v1450 = vld [vmem:[#allocation4 + $0x410] sm:$0xff]
    %v1451 = vld [vmem:[#allocation4 + $0x418] sm:$0xff]
    %v1452 = vld [vmem:[#allocation4 + $0x420] sm:$0xff]
    %v1453 = vld [vmem:[#allocation4 + $0x428] sm:$0xff]
    %v1454 = vld [vmem:[#allocation4 + $0x430] sm:$0xff]
    %v1455 = vld [vmem:[#allocation4 + $0x438] sm:$0xff]
    %v1456 = vld [vmem:[#allocation4 + $0x440] sm:$0xff]
    %v1457 = vld [vmem:[#allocation4 + $0x448] sm:$0xff]
    %v1458 = vld [vmem:[#allocation4 + $0x450] sm:$0xff]
    %v1459 = vld [vmem:[#allocation4 + $0x458] sm:$0xff]
    %v1460 = vld [vmem:[#allocation4 + $0x460] sm:$0xff]
    %v1461 = vld [vmem:[#allocation4 + $0x468] sm:$0xff]
    %v1462 = vld [vmem:[#allocation4 + $0x470] sm:$0xff]
    %v1463 = vld [vmem:[#allocation4 + $0x478] sm:$0xff]
    %v1464 = vld [vmem:[#allocation4 + $0x480] sm:$0xff]
    %v1465 = vld [vmem:[#allocation4 + $0x488] sm:$0xff]
    %v1466 = vld [vmem:[#allocation4 + $0x490] sm:$0xff]
    %v1467 = vld [vmem:[#allocation4 + $0x498] sm:$0xff]
    %v1468 = vld [vmem:[#allocation4 + $0x4a0] sm:$0xff]
    %v1469 = vld [vmem:[#allocation4 + $0x4a8] sm:$0xff]
    %v1470 = vld [vmem:[#allocation4 + $0x4b0] sm:$0xff]
    %v1471 = vld [vmem:[#allocation4 + $0x4b8] sm:$0xff]
    %v1472 = vld [vmem:[#allocation4 + $0x4c0] sm:$0xff]
    %v1473 = vld [vmem:[#allocation4 + $0x4c8] sm:$0xff]
    %v1474 = vld [vmem:[#allocation4 + $0x4d0] sm:$0xff]
    %v1475 = vld [vmem:[#allocation4 + $0x4d8] sm:$0xff]
    %v1476 = vld [vmem:[#allocation4 + $0x4e0] sm:$0xff]
    %v1477 = vld [vmem:[#allocation4 + $0x4e8] sm:$0xff]
    %v1478 = vld [vmem:[#allocation4 + $0x4f0] sm:$0xff]
    %v1479 = vld [vmem:[#allocation4 + $0x4f8] sm:$0xff]
    %v1480 = vld [vmem:[#allocation4 + $0x500] sm:$0xff]
    %v1481 = vld [vmem:[#allocation4 + $0x508] sm:$0xff]
    %v1482 = vld [vmem:[#allocation4 + $0x510] sm:$0xff]
    %v1483 = vld [vmem:[#allocation4 + $0x518] sm:$0xff]
    %v1484 = vld [vmem:[#allocation4 + $0x520] sm:$0xff]
    %v1485 = vld [vmem:[#allocation4 + $0x528] sm:$0xff]
    %v1486 = vld [vmem:[#allocation4 + $0x530] sm:$0xff]
    %v1487 = vld [vmem:[#allocation4 + $0x538] sm:$0xff]
    %v1488 = vld [vmem:[#allocation4 + $0x540] sm:$0xff]
    %v1489 = vld [vmem:[#allocation4 + $0x548] sm:$0xff]
    %v1490 = vld [vmem:[#allocation4 + $0x550] sm:$0xff]
    %v1491 = vld [vmem:[#allocation4 + $0x558] sm:$0xff]
    %v1492 = vld [vmem:[#allocation4 + $0x560] sm:$0xff]
    %v1493 = vld [vmem:[#allocation4 + $0x568] sm:$0xff]
    %v1494 = vld [vmem:[#allocation4 + $0x570] sm:$0xff]
    %v1495 = vld [vmem:[#allocation4 + $0x578] sm:$0xff]
    %v1496 = vld [vmem:[#allocation4 + $0x580] sm:$0xff]
    %v1497 = vld [vmem:[#allocation4 + $0x588] sm:$0xff]
    %v1498 = vld [vmem:[#allocation4 + $0x590] sm:$0xff]
    %v1499 = vld [vmem:[#allocation4 + $0x598] sm:$0xff]
    %v1500 = vld [vmem:[#allocation4 + $0x5a0] sm:$0xff]
    %v1501 = vld [vmem:[#allocation4 + $0x5a8] sm:$0xff]
    %v1502 = vld [vmem:[#allocation4 + $0x5b0] sm:$0xff]
    %v1503 = vld [vmem:[#allocation4 + $0x5b8] sm:$0xff]
    %v1504 = vld [vmem:[#allocation4 + $0x5c0] sm:$0xff]
    %v1505 = vld [vmem:[#allocation4 + $0x5c8] sm:$0xff]
    %v1506 = vld [vmem:[#allocation4 + $0x5d0] sm:$0xff]
    %v1507 = vld [vmem:[#allocation4 + $0x5d8] sm:$0xff]
    %v1508 = vld [vmem:[#allocation4 + $0x5e0] sm:$0xff]
    %v1509 = vld [vmem:[#allocation4 + $0x5e8] sm:$0xff]
    %v1510 = vld [vmem:[#allocation4 + $0x5f0] sm:$0xff]
    %v1511 = vld [vmem:[#allocation4 + $0x5f8] sm:$0xff]
    %v1512 = vld [vmem:[#allocation4 + $0x600] sm:$0xff]
    %v1513 = vld [vmem:[#allocation4 + $0x608] sm:$0xff]
    %v1514 = vld [vmem:[#allocation4 + $0x610] sm:$0xff]
    %v1515 = vld [vmem:[#allocation4 + $0x618] sm:$0xff]
    %v1516 = vld [vmem:[#allocation4 + $0x620] sm:$0xff]
    %v1517 = vld [vmem:[#allocation4 + $0x628] sm:$0xff]
    %v1518 = vld [vmem:[#allocation4 + $0x630] sm:$0xff]
    %v1519 = vld [vmem:[#allocation4 + $0x638] sm:$0xff]
    %v1520 = vld [vmem:[#allocation4 + $0x640] sm:$0xff]
    %v1521 = vld [vmem:[#allocation4 + $0x648] sm:$0xff]
    %v1522 = vld [vmem:[#allocation4 + $0x650] sm:$0xff]
    %v1523 = vld [vmem:[#allocation4 + $0x658] sm:$0xff]
    %v1524 = vld [vmem:[#allocation4 + $0x660] sm:$0xff]
    %v1525 = vld [vmem:[#allocation4 + $0x668] sm:$0xff]
    %v1526 = vld [vmem:[#allocation4 + $0x670] sm:$0xff]
    %v1527 = vld [vmem:[#allocation4 + $0x678] sm:$0xff]
    %v1528 = vld [vmem:[#allocation4 + $0x680] sm:$0xff]
    %v1529 = vld [vmem:[#allocation4 + $0x688] sm:$0xff]
    %v1530 = vld [vmem:[#allocation4 + $0x690] sm:$0xff]
    %v1531 = vld [vmem:[#allocation4 + $0x698] sm:$0xff]
    %v1532 = vld [vmem:[#allocation4 + $0x6a0] sm:$0xff]
    %v1533 = vld [vmem:[#allocation4 + $0x6a8] sm:$0xff]
    %v1534 = vld [vmem:[#allocation4 + $0x6b0] sm:$0xff]
    %v1535 = vld [vmem:[#allocation4 + $0x6b8] sm:$0xff]
    %v1536 = vld [vmem:[#allocation4 + $0x6c0] sm:$0xff]
    %v1537 = vld [vmem:[#allocation4 + $0x6c8] sm:$0xff]
    %v1538 = vld [vmem:[#allocation4 + $0x6d0] sm:$0xff]
    %v1539 = vld [vmem:[#allocation4 + $0x6d8] sm:$0xff]
    %v1540 = vld [vmem:[#allocation4 + $0x6e0] sm:$0xff]
    %v1541 = vld [vmem:[#allocation4 + $0x6e8] sm:$0xff]
    %v1542 = vld [vmem:[#allocation4 + $0x6f0] sm:$0xff]
    %v1543 = vld [vmem:[#allocation4 + $0x6f8] sm:$0xff]
    %v1544 = vld [vmem:[#allocation4 + $0x700] sm:$0xff]
    %v1545 = vld [vmem:[#allocation4 + $0x708] sm:$0xff]
    %v1546 = vld [vmem:[#allocation4 + $0x710] sm:$0xff]
    %v1547 = vld [vmem:[#allocation4 + $0x718] sm:$0xff]
    %v1548 = vld [vmem:[#allocation4 + $0x720] sm:$0xff]
    %v1549 = vld [vmem:[#allocation4 + $0x728] sm:$0xff]
    %v1550 = vld [vmem:[#allocation4 + $0x730] sm:$0xff]
    %v1551 = vld [vmem:[#allocation4 + $0x738] sm:$0xff]
    %v1552 = vld [vmem:[#allocation4 + $0x740] sm:$0xff]
    %v1553 = vld [vmem:[#allocation4 + $0x748] sm:$0xff]
    %v1554 = vld [vmem:[#allocation4 + $0x750] sm:$0xff]
    %v1555 = vld [vmem:[#allocation4 + $0x758] sm:$0xff]
    %v1556 = vld [vmem:[#allocation4 + $0x760] sm:$0xff]
    %v1557 = vld [vmem:[#allocation4 + $0x768] sm:$0xff]
    %v1558 = vld [vmem:[#allocation4 + $0x770] sm:$0xff]
    %v1559 = vld [vmem:[#allocation4 + $0x778] sm:$0xff]
    %v1560 = vld [vmem:[#allocation4 + $0x780] sm:$0xff]
    %v1561 = vld [vmem:[#allocation4 + $0x788] sm:$0xff]
    %v1562 = vld [vmem:[#allocation4 + $0x790] sm:$0xff]
    %v1563 = vld [vmem:[#allocation4 + $0x798] sm:$0xff]
    %v1564 = vld [vmem:[#allocation4 + $0x7a0] sm:$0xff]
    %v1565 = vld [vmem:[#allocation4 + $0x7a8] sm:$0xff]
    %v1566 = vld [vmem:[#allocation4 + $0x7b0] sm:$0xff]
    %v1567 = vld [vmem:[#allocation4 + $0x7b8] sm:$0xff]
    %v1568 = vld [vmem:[#allocation4 + $0x7c0] sm:$0xff]
    %v1569 = vld [vmem:[#allocation4 + $0x7c8] sm:$0xff]
    %v1570 = vld [vmem:[#allocation4 + $0x7d0] sm:$0xff]
    %v1571 = vld [vmem:[#allocation4 + $0x7d8] sm:$0xff]
    %v1572 = vld [vmem:[#allocation4 + $0x7e0] sm:$0xff]
    %v1573 = vld [vmem:[#allocation4 + $0x7e8] sm:$0xff]
    %v1574 = vld [vmem:[#allocation4 + $0x7f0] sm:$0xff]
    %v1575 = vld [vmem:[#allocation4 + $0x7f8] sm:$0xff]
    %v1576 = vld [vmem:[#allocation4 + $0x800] sm:$0xff]
    %v1577 = vld [vmem:[#allocation4 + $0x808] sm:$0xff]
    %v1578 = vld [vmem:[#allocation4 + $0x810] sm:$0xff]
    %v1579 = vld [vmem:[#allocation4 + $0x818] sm:$0xff]
    %v1580 = vld [vmem:[#allocation4 + $0x820] sm:$0xff]
    %v1581 = vld [vmem:[#allocation4 + $0x828] sm:$0xff]
    %v1582 = vld [vmem:[#allocation4 + $0x830] sm:$0xff]
    %v1583 = vld [vmem:[#allocation4 + $0x838] sm:$0xff]
    %v1584 = vld [vmem:[#allocation4 + $0x840] sm:$0xff]
    %v1585 = vld [vmem:[#allocation4 + $0x848] sm:$0xff]
    %v1586 = vld [vmem:[#allocation4 + $0x850] sm:$0xff]
    %v1587 = vld [vmem:[#allocation4 + $0x858] sm:$0xff]
    %v1588 = vld [vmem:[#allocation4 + $0x860] sm:$0xff]
    %v1589 = vld [vmem:[#allocation4 + $0x868] sm:$0xff]
    %v1590 = vld [vmem:[#allocation4 + $0x870] sm:$0xff]
    %v1591 = vld [vmem:[#allocation4 + $0x878] sm:$0xff]
    %v1592 = vld [vmem:[#allocation4 + $0x880] sm:$0xff]
    %v1593 = vld [vmem:[#allocation4 + $0x888] sm:$0xff]
    %v1594 = vld [vmem:[#allocation4 + $0x890] sm:$0xff]
    %v1595 = vld [vmem:[#allocation4 + $0x898] sm:$0xff]
    %v1596 = vld [vmem:[#allocation4 + $0x8a0] sm:$0xff]
    %v1597 = vld [vmem:[#allocation4 + $0x8a8] sm:$0xff]
    %v1598 = vld [vmem:[#allocation4 + $0x8b0] sm:$0xff]
    %v1599 = vld [vmem:[#allocation4 + $0x8b8] sm:$0xff]
    %v1600 = vld [vmem:[#allocation4 + $0x8c0] sm:$0xff]
    %v1601 = vld [vmem:[#allocation4 + $0x8c8] sm:$0xff]
    %v1602 = vld [vmem:[#allocation4 + $0x8d0] sm:$0xff]
    %v1603 = vld [vmem:[#allocation4 + $0x8d8] sm:$0xff]
    %v1604 = vld [vmem:[#allocation4 + $0x8e0] sm:$0xff]
    %v1605 = vld [vmem:[#allocation4 + $0x8e8] sm:$0xff]
    %v1606 = vld [vmem:[#allocation4 + $0x8f0] sm:$0xff]
    %v1607 = vld [vmem:[#allocation4 + $0x8f8] sm:$0xff]
    %v1608 = vld [vmem:[#allocation4 + $0x900] sm:$0xff]
    %v1609 = vld [vmem:[#allocation4 + $0x908] sm:$0xff]
    %v1610 = vld [vmem:[#allocation4 + $0x910] sm:$0xff]
    %v1611 = vld [vmem:[#allocation4 + $0x918] sm:$0xff]
    %v1612 = vld [vmem:[#allocation4 + $0x920] sm:$0xff]
    %v1613 = vld [vmem:[#allocation4 + $0x928] sm:$0xff]
    %v1614 = vld [vmem:[#allocation4 + $0x930] sm:$0xff]
    %v1615 = vld [vmem:[#allocation4 + $0x938] sm:$0xff]
    %v1616 = vld [vmem:[#allocation4 + $0x940] sm:$0xff]
    %v1617 = vld [vmem:[#allocation4 + $0x948] sm:$0xff]
    %v1618 = vld [vmem:[#allocation4 + $0x950] sm:$0xff]
    %v1619 = vld [vmem:[#allocation4 + $0x958] sm:$0xff]
    %v1620 = vld [vmem:[#allocation4 + $0x960] sm:$0xff]
    %v1621 = vld [vmem:[#allocation4 + $0x968] sm:$0xff]
    %v1622 = vld [vmem:[#allocation4 + $0x970] sm:$0xff]
    %v1623 = vld [vmem:[#allocation4 + $0x978] sm:$0xff]
    %v1624 = vld [vmem:[#allocation4 + $0x980] sm:$0xff]
    %v1625 = vld [vmem:[#allocation4 + $0x988] sm:$0xff]
    %v1626 = vld [vmem:[#allocation4 + $0x990] sm:$0xff]
    %v1627 = vld [vmem:[#allocation4 + $0x998] sm:$0xff]
    %v1628 = vld [vmem:[#allocation4 + $0x9a0] sm:$0xff]
    %v1629 = vld [vmem:[#allocation4 + $0x9a8] sm:$0xff]
    %v1630 = vld [vmem:[#allocation4 + $0x9b0] sm:$0xff]
    %v1631 = vld [vmem:[#allocation4 + $0x9b8] sm:$0xff]
    %v1632 = vld [vmem:[#allocation4 + $0x9c0] sm:$0xff]
    %v1633 = vld [vmem:[#allocation4 + $0x9c8] sm:$0xff]
    %v1634 = vld [vmem:[#allocation4 + $0x9d0] sm:$0xff]
    %v1635 = vld [vmem:[#allocation4 + $0x9d8] sm:$0xff]
    %v1636 = vld [vmem:[#allocation4 + $0x9e0] sm:$0xff]
    %v1637 = vld [vmem:[#allocation4 + $0x9e8] sm:$0xff]
    %v1638 = vld [vmem:[#allocation4 + $0x9f0] sm:$0xff]
    %v1639 = vld [vmem:[#allocation4 + $0x9f8] sm:$0xff]
    %v1640 = vld [vmem:[#allocation4 + $0xa00] sm:$0xff]
    %v1641 = vld [vmem:[#allocation4 + $0xa08] sm:$0xff]
    %v1642 = vld [vmem:[#allocation4 + $0xa10] sm:$0xff]
    %v1643 = vld [vmem:[#allocation4 + $0xa18] sm:$0xff]
    %v1644 = vld [vmem:[#allocation4 + $0xa20] sm:$0xff]
    %v1645 = vld [vmem:[#allocation4 + $0xa28] sm:$0xff]
    %v1646 = vld [vmem:[#allocation4 + $0xa30] sm:$0xff]
    %v1647 = vld [vmem:[#allocation4 + $0xa38] sm:$0xff]
    %v1648 = vld [vmem:[#allocation4 + $0xa40] sm:$0xff]
    %v1649 = vld [vmem:[#allocation4 + $0xa48] sm:$0xff]
    %v1650 = vld [vmem:[#allocation4 + $0xa50] sm:$0xff]
    %v1651 = vld [vmem:[#allocation4 + $0xa58] sm:$0xff]
    %v1652 = vld [vmem:[#allocation4 + $0xa60] sm:$0xff]
    %v1653 = vld [vmem:[#allocation4 + $0xa68] sm:$0xff]
    %v1654 = vld [vmem:[#allocation4 + $0xa70] sm:$0xff]
    %v1655 = vld [vmem:[#allocation4 + $0xa78] sm:$0xff]
    %v1656 = vld [vmem:[#allocation4 + $0xa80] sm:$0xff]
    %v1657 = vld [vmem:[#allocation4 + $0xa88] sm:$0xff]
    %v1658 = vld [vmem:[#allocation4 + $0xa90] sm:$0xff]
    %v1659 = vld [vmem:[#allocation4 + $0xa98] sm:$0xff]
    %v1660 = vld [vmem:[#allocation4 + $0xaa0] sm:$0xff]
    %v1661 = vld [vmem:[#allocation4 + $0xaa8] sm:$0xff]
    %v1662 = vld [vmem:[#allocation4 + $0xab0] sm:$0xff]
    %v1663 = vld [vmem:[#allocation4 + $0xab8] sm:$0xff]
    %v1664 = vld [vmem:[#allocation4 + $0xac0] sm:$0xff]
    %v1665 = vld [vmem:[#allocation4 + $0xac8] sm:$0xff]
    %v1666 = vld [vmem:[#allocation4 + $0xad0] sm:$0xff]
    %v1667 = vld [vmem:[#allocation4 + $0xad8] sm:$0xff]
    %v1668 = vld [vmem:[#allocation4 + $0xae0] sm:$0xff]
    %v1669 = vld [vmem:[#allocation4 + $0xae8] sm:$0xff]
    %v1670 = vld [vmem:[#allocation4 + $0xaf0] sm:$0xff]
    %v1671 = vld [vmem:[#allocation4 + $0xaf8] sm:$0xff]
    %v1672 = vld [vmem:[#allocation4 + $0xb00] sm:$0xff]
    %v1673 = vld [vmem:[#allocation4 + $0xb08] sm:$0xff]
    %v1674 = vld [vmem:[#allocation4 + $0xb10] sm:$0xff]
    %v1675 = vld [vmem:[#allocation4 + $0xb18] sm:$0xff]
    %v1676 = vld [vmem:[#allocation4 + $0xb20] sm:$0xff]
    %v1677 = vld [vmem:[#allocation4 + $0xb28] sm:$0xff]
    %v1678 = vld [vmem:[#allocation4 + $0xb30] sm:$0xff]
    %v1679 = vld [vmem:[#allocation4 + $0xb38] sm:$0xff]
    %v1680 = vld [vmem:[#allocation4 + $0xb40] sm:$0xff]
    %v1681 = vld [vmem:[#allocation4 + $0xb48] sm:$0xff]
    %v1682 = vld [vmem:[#allocation4 + $0xb50] sm:$0xff]
    %v1683 = vld [vmem:[#allocation4 + $0xb58] sm:$0xff]
    %v1684 = vld [vmem:[#allocation4 + $0xb60] sm:$0xff]
    %v1685 = vld [vmem:[#allocation4 + $0xb68] sm:$0xff]
    %v1686 = vld [vmem:[#allocation4 + $0xb70] sm:$0xff]
    %v1687 = vld [vmem:[#allocation4 + $0xb78] sm:$0xff]
    %v1688 = vld [vmem:[#allocation4 + $0xb80] sm:$0xff]
    %v1689 = vld [vmem:[#allocation4 + $0xb88] sm:$0xff]
    %v1690 = vld [vmem:[#allocation4 + $0xb90] sm:$0xff]
    %v1691 = vld [vmem:[#allocation4 + $0xb98] sm:$0xff]
    %v1692 = vld [vmem:[#allocation4 + $0xba0] sm:$0xff]
    %v1693 = vld [vmem:[#allocation4 + $0xba8] sm:$0xff]
    %v1694 = vld [vmem:[#allocation4 + $0xbb0] sm:$0xff]
    %v1695 = vld [vmem:[#allocation4 + $0xbb8] sm:$0xff]
    %v1696 = vld [vmem:[#allocation4 + $0xbc0] sm:$0xff]
    %v1697 = vld [vmem:[#allocation4 + $0xbc8] sm:$0xff]
    %v1698 = vld [vmem:[#allocation4 + $0xbd0] sm:$0xff]
    %v1699 = vld [vmem:[#allocation4 + $0xbd8] sm:$0xff]
    %v1700 = vld [vmem:[#allocation4 + $0xbe0] sm:$0xff]
    %v1701 = vld [vmem:[#allocation4 + $0xbe8] sm:$0xff]
    %v1702 = vld [vmem:[#allocation4 + $0xbf0] sm:$0xff]
    %v1703 = vld [vmem:[#allocation4 + $0xbf8] sm:$0xff]
    %v1704 = vld [vmem:[#allocation4 + $0xc00] sm:$0xff]
    %v1705 = vld [vmem:[#allocation4 + $0xc08] sm:$0xff]
    %v1706 = vld [vmem:[#allocation4 + $0xc10] sm:$0xff]
    %v1707 = vld [vmem:[#allocation4 + $0xc18] sm:$0xff]
    %v1708 = vld [vmem:[#allocation4 + $0xc20] sm:$0xff]
    %v1709 = vld [vmem:[#allocation4 + $0xc28] sm:$0xff]
    %v1710 = vld [vmem:[#allocation4 + $0xc30] sm:$0xff]
    %v1711 = vld [vmem:[#allocation4 + $0xc38] sm:$0xff]
    %v1712 = vld [vmem:[#allocation4 + $0xc40] sm:$0xff]
    %v1713 = vld [vmem:[#allocation4 + $0xc48] sm:$0xff]
    %v1714 = vld [vmem:[#allocation4 + $0xc50] sm:$0xff]
    %v1715 = vld [vmem:[#allocation4 + $0xc58] sm:$0xff]
    %v1716 = vld [vmem:[#allocation4 + $0xc60] sm:$0xff]
    %v1717 = vld [vmem:[#allocation4 + $0xc68] sm:$0xff]
    %v1718 = vld [vmem:[#allocation4 + $0xc70] sm:$0xff]
    %v1719 = vld [vmem:[#allocation4 + $0xc78] sm:$0xff]
    %v1720 = vld [vmem:[#allocation4 + $0xc80] sm:$0xff]
    %v1721 = vld [vmem:[#allocation4 + $0xc88] sm:$0xff]
    %v1722 = vld [vmem:[#allocation4 + $0xc90] sm:$0xff]
    %v1723 = vld [vmem:[#allocation4 + $0xc98] sm:$0xff]
    %v1724 = vld [vmem:[#allocation4 + $0xca0] sm:$0xff]
    %v1725 = vld [vmem:[#allocation4 + $0xca8] sm:$0xff]
    %v1726 = vld [vmem:[#allocation4 + $0xcb0] sm:$0xff]
    %v1727 = vld [vmem:[#allocation4 + $0xcb8] sm:$0xff]
    %v1728 = vld [vmem:[#allocation4 + $0xcc0] sm:$0xff]
    %v1729 = vld [vmem:[#allocation4 + $0xcc8] sm:$0xff]
    %v1730 = vld [vmem:[#allocation4 + $0xcd0] sm:$0xff]
    %v1731 = vld [vmem:[#allocation4 + $0xcd8] sm:$0xff]
    %v1732 = vld [vmem:[#allocation4 + $0xce0] sm:$0xff]
    %v1733 = vld [vmem:[#allocation4 + $0xce8] sm:$0xff]
    %v1734 = vld [vmem:[#allocation4 + $0xcf0] sm:$0xff]
    %v1735 = vld [vmem:[#allocation4 + $0xcf8] sm:$0xff]
    %v1736 = vld [vmem:[#allocation4 + $0xd00] sm:$0xff]
    %v1737 = vld [vmem:[#allocation4 + $0xd08] sm:$0xff]
    %v1738 = vld [vmem:[#allocation4 + $0xd10] sm:$0xff]
    %v1739 = vld [vmem:[#allocation4 + $0xd18] sm:$0xff]
    %v1740 = vld [vmem:[#allocation4 + $0xd20] sm:$0xff]
    %v1741 = vld [vmem:[#allocation4 + $0xd28] sm:$0xff]
    %v1742 = vld [vmem:[#allocation4 + $0xd30] sm:$0xff]
    %v1743 = vld [vmem:[#allocation4 + $0xd38] sm:$0xff]
    %v1744 = vld [vmem:[#allocation4 + $0xd40] sm:$0xff]
    %v1745 = vld [vmem:[#allocation4 + $0xd48] sm:$0xff]
    %v1746 = vld [vmem:[#allocation4 + $0xd50] sm:$0xff]
    %v1747 = vld [vmem:[#allocation4 + $0xd58] sm:$0xff]
    %v1748 = vld [vmem:[#allocation4 + $0xd60] sm:$0xff]
    %v1749 = vld [vmem:[#allocation4 + $0xd68] sm:$0xff]
    %v1750 = vld [vmem:[#allocation4 + $0xd70] sm:$0xff]
    %v1751 = vld [vmem:[#allocation4 + $0xd78] sm:$0xff]
    %v1752 = vld [vmem:[#allocation4 + $0xd80] sm:$0xff]
    %v1753 = vld [vmem:[#allocation4 + $0xd88] sm:$0xff]
    %v1754 = vld [vmem:[#allocation4 + $0xd90] sm:$0xff]
    %v1755 = vld [vmem:[#allocation4 + $0xd98] sm:$0xff]
    %v1756 = vld [vmem:[#allocation4 + $0xda0] sm:$0xff]
    %v1757 = vld [vmem:[#allocation4 + $0xda8] sm:$0xff]
    %v1758 = vld [vmem:[#allocation4 + $0xdb0] sm:$0xff]
    %v1759 = vld [vmem:[#allocation4 + $0xdb8] sm:$0xff]
    %v1760 = vld [vmem:[#allocation4 + $0xdc0] sm:$0xff]
    %v1761 = vld [vmem:[#allocation4 + $0xdc8] sm:$0xff]
    %v1762 = vld [vmem:[#allocation4 + $0xdd0] sm:$0xff]
    %v1763 = vld [vmem:[#allocation4 + $0xdd8] sm:$0xff]
    %v1764 = vld [vmem:[#allocation4 + $0xde0] sm:$0xff]
    %v1765 = vld [vmem:[#allocation4 + $0xde8] sm:$0xff]
    %v1766 = vld [vmem:[#allocation4 + $0xdf0] sm:$0xff]
    %v1767 = vld [vmem:[#allocation4 + $0xdf8] sm:$0xff]
    %v1768 = vld [vmem:[#allocation4 + $0xe00] sm:$0xff]
    %v1769 = vld [vmem:[#allocation4 + $0xe08] sm:$0xff]
    %v1770 = vld [vmem:[#allocation4 + $0xe10] sm:$0xff]
    %v1771 = vld [vmem:[#allocation4 + $0xe18] sm:$0xff]
    %v1772 = vld [vmem:[#allocation4 + $0xe20] sm:$0xff]
    %v1773 = vld [vmem:[#allocation4 + $0xe28] sm:$0xff]
    %v1774 = vld [vmem:[#allocation4 + $0xe30] sm:$0xff]
    %v1775 = vld [vmem:[#allocation4 + $0xe38] sm:$0xff]
    %v1776 = vld [vmem:[#allocation4 + $0xe40] sm:$0xff]
    %v1777 = vld [vmem:[#allocation4 + $0xe48] sm:$0xff]
    %v1778 = vld [vmem:[#allocation4 + $0xe50] sm:$0xff]
    %v1779 = vld [vmem:[#allocation4 + $0xe58] sm:$0xff]
    %v1780 = vld [vmem:[#allocation4 + $0xe60] sm:$0xff]
    %v1781 = vld [vmem:[#allocation4 + $0xe68] sm:$0xff]
    %v1782 = vld [vmem:[#allocation4 + $0xe70] sm:$0xff]
    %v1783 = vld [vmem:[#allocation4 + $0xe78] sm:$0xff]
    %v1784 = vld [vmem:[#allocation4 + $0xe80] sm:$0xff]
    %v1785 = vld [vmem:[#allocation4 + $0xe88] sm:$0xff]
    %v1786 = vld [vmem:[#allocation4 + $0xe90] sm:$0xff]
    %v1787 = vld [vmem:[#allocation4 + $0xe98] sm:$0xff]
    %v1788 = vld [vmem:[#allocation4 + $0xea0] sm:$0xff]
    %v1789 = vld [vmem:[#allocation4 + $0xea8] sm:$0xff]
    %v1790 = vld [vmem:[#allocation4 + $0xeb0] sm:$0xff]
    %v1791 = vld [vmem:[#allocation4 + $0xeb8] sm:$0xff]
    %v1792 = vld [vmem:[#allocation4 + $0xec0] sm:$0xff]
    %v1793 = vld [vmem:[#allocation4 + $0xec8] sm:$0xff]
    %v1794 = vld [vmem:[#allocation4 + $0xed0] sm:$0xff]
    %v1795 = vld [vmem:[#allocation4 + $0xed8] sm:$0xff]
    %v1796 = vld [vmem:[#allocation4 + $0xee0] sm:$0xff]
    %v1797 = vld [vmem:[#allocation4 + $0xee8] sm:$0xff]
    %v1798 = vld [vmem:[#allocation4 + $0xef0] sm:$0xff]
    %v1799 = vld [vmem:[#allocation4 + $0xef8] sm:$0xff]
    %v1800 = vld [vmem:[#allocation4 + $0xf00] sm:$0xff]
    %v1801 = vld [vmem:[#allocation4 + $0xf08] sm:$0xff]
    %v1802 = vld [vmem:[#allocation4 + $0xf10] sm:$0xff]
    %v1803 = vld [vmem:[#allocation4 + $0xf18] sm:$0xff]
    %v1804 = vld [vmem:[#allocation4 + $0xf20] sm:$0xff]
    %v1805 = vld [vmem:[#allocation4 + $0xf28] sm:$0xff]
    %v1806 = vld [vmem:[#allocation4 + $0xf30] sm:$0xff]
    %v1807 = vld [vmem:[#allocation4 + $0xf38] sm:$0xff]
    %v1808 = vld [vmem:[#allocation4 + $0xf40] sm:$0xff]
    %v1809 = vld [vmem:[#allocation4 + $0xf48] sm:$0xff]
    %v1810 = vld [vmem:[#allocation4 + $0xf50] sm:$0xff]
    %v1811 = vld [vmem:[#allocation4 + $0xf58] sm:$0xff]
    %v1812 = vld [vmem:[#allocation4 + $0xf60] sm:$0xff]
    %v1813 = vld [vmem:[#allocation4 + $0xf68] sm:$0xff]
    %v1814 = vld [vmem:[#allocation4 + $0xf70] sm:$0xff]
    %v1815 = vld [vmem:[#allocation4 + $0xf78] sm:$0xff]
    %v1816 = vld [vmem:[#allocation4 + $0xf80] sm:$0xff]
    %v1817 = vld [vmem:[#allocation4 + $0xf88] sm:$0xff]
    %v1818 = vld [vmem:[#allocation4 + $0xf90] sm:$0xff]
    %v1819 = vld [vmem:[#allocation4 + $0xf98] sm:$0xff]
    %v1820 = vld [vmem:[#allocation4 + $0xfa0] sm:$0xff]
    %v1821 = vld [vmem:[#allocation4 + $0xfa8] sm:$0xff]
    %v1822 = vld [vmem:[#allocation4 + $0xfb0] sm:$0xff]
    %v1823 = vld [vmem:[#allocation4 + $0xfb8] sm:$0xff]
    %v1824 = vld [vmem:[#allocation4 + $0xfc0] sm:$0xff]
    %v1825 = vld [vmem:[#allocation4 + $0xfc8] sm:$0xff]
    %v1826 = vld [vmem:[#allocation4 + $0xfd0] sm:$0xff]
    %v1827 = vld [vmem:[#allocation4 + $0xfd8] sm:$0xff]
    %v1828 = vld [vmem:[#allocation4 + $0xfe0] sm:$0xff]
    %v1829 = vld [vmem:[#allocation4 + $0xfe8] sm:$0xff]
    %v1830 = vld [vmem:[#allocation4 + $0xff0] sm:$0xff]
    %v1831 = vld [vmem:[#allocation4 + $0xff8] sm:$0xff]
    %v1832 = vld [vmem:[#allocation4 + $0x1000] sm:$0xff]
    %v1833 = vld [vmem:[#allocation4 + $0x1008] sm:$0xff]
    %v1834 = vld [vmem:[#allocation4 + $0x1010] sm:$0xff]
    %v1835 = vld [vmem:[#allocation4 + $0x1018] sm:$0xff]
    %v1836 = vld [vmem:[#allocation4 + $0x1020] sm:$0xff]
    %v1837 = vld [vmem:[#allocation4 + $0x1028] sm:$0xff]
    %v1838 = vld [vmem:[#allocation4 + $0x1030] sm:$0xff]
    %v1839 = vld [vmem:[#allocation4 + $0x1038] sm:$0xff]
    %v1840 = vld [vmem:[#allocation4 + $0x1040] sm:$0xff]
    %v1841 = vld [vmem:[#allocation4 + $0x1048] sm:$0xff]
    %v1842 = vld [vmem:[#allocation4 + $0x1050] sm:$0xff]
    %v1843 = vld [vmem:[#allocation4 + $0x1058] sm:$0xff]
    %v1844 = vld [vmem:[#allocation4 + $0x1060] sm:$0xff]
    %v1845 = vld [vmem:[#allocation4 + $0x1068] sm:$0xff]
    %v1846 = vld [vmem:[#allocation4 + $0x1070] sm:$0xff]
    %v1847 = vld [vmem:[#allocation4 + $0x1078] sm:$0xff]
    %v1848 = vld [vmem:[#allocation4 + $0x1080] sm:$0xff]
    %v1849 = vld [vmem:[#allocation4 + $0x1088] sm:$0xff]
    %v1850 = vld [vmem:[#allocation4 + $0x1090] sm:$0xff]
    %v1851 = vld [vmem:[#allocation4 + $0x1098] sm:$0xff]
    %v1852 = vld [vmem:[#allocation4 + $0x10a0] sm:$0xff]
    %v1853 = vld [vmem:[#allocation4 + $0x10a8] sm:$0xff]
    %v1854 = vld [vmem:[#allocation4 + $0x10b0] sm:$0xff]
    %v1855 = vld [vmem:[#allocation4 + $0x10b8] sm:$0xff]
    %v1856 = vld [vmem:[#allocation4 + $0x10c0] sm:$0xff]
    %v1857 = vld [vmem:[#allocation4 + $0x10c8] sm:$0xff]
    %v1858 = vld [vmem:[#allocation4 + $0x10d0] sm:$0xff]
    %v1859 = vld [vmem:[#allocation4 + $0x10d8] sm:$0xff]
    %v1860 = vld [vmem:[#allocation4 + $0x10e0] sm:$0xff]
    %v1861 = vld [vmem:[#allocation4 + $0x10e8] sm:$0xff]
    %v1862 = vld [vmem:[#allocation4 + $0x10f0] sm:$0xff]
    %v1863 = vld [vmem:[#allocation4 + $0x10f8] sm:$0xff]
    %v1864 = vld [vmem:[#allocation4 + $0x1100] sm:$0xff]
    %v1865 = vld [vmem:[#allocation4 + $0x1108] sm:$0xff]
    %v1866 = vld [vmem:[#allocation4 + $0x1110] sm:$0xff]
    %v1867 = vld [vmem:[#allocation4 + $0x1118] sm:$0xff]
    %v1868 = vld [vmem:[#allocation4 + $0x1120] sm:$0xff]
    %v1869 = vld [vmem:[#allocation4 + $0x1128] sm:$0xff]
    %v1870 = vld [vmem:[#allocation4 + $0x1130] sm:$0xff]
    %v1871 = vld [vmem:[#allocation4 + $0x1138] sm:$0xff]
    %v1872 = vld [vmem:[#allocation4 + $0x1140] sm:$0xff]
    %v1873 = vld [vmem:[#allocation4 + $0x1148] sm:$0xff]
    %v1874 = vld [vmem:[#allocation4 + $0x1150] sm:$0xff]
    %v1875 = vld [vmem:[#allocation4 + $0x1158] sm:$0xff]
    %v1876 = vld [vmem:[#allocation4 + $0x1160] sm:$0xff]
    %v1877 = vld [vmem:[#allocation4 + $0x1168] sm:$0xff]
    %v1878 = vld [vmem:[#allocation4 + $0x1170] sm:$0xff]
    %v1879 = vld [vmem:[#allocation4 + $0x1178] sm:$0xff]
    %v1880 = vld [vmem:[#allocation4 + $0x1180] sm:$0xff]
    %v1881 = vld [vmem:[#allocation4 + $0x1188] sm:$0xff]
    %v1882 = vld [vmem:[#allocation4 + $0x1190] sm:$0xff]
    %v1883 = vld [vmem:[#allocation4 + $0x1198] sm:$0xff]
    %v1884 = vld [vmem:[#allocation4 + $0x11a0] sm:$0xff]
    %v1885 = vld [vmem:[#allocation4 + $0x11a8] sm:$0xff]
    %v1886 = vld [vmem:[#allocation4 + $0x11b0] sm:$0xff]
    %v1887 = vld [vmem:[#allocation4 + $0x11b8] sm:$0xff]
    %v1888 = vld [vmem:[#allocation4 + $0x11c0] sm:$0xff]
    %v1889 = vld [vmem:[#allocation4 + $0x11c8] sm:$0xff]
    %v1890 = vld [vmem:[#allocation4 + $0x11d0] sm:$0xff]
    %v1891 = vld [vmem:[#allocation4 + $0x11d8] sm:$0xff]
    %v1892 = vld [vmem:[#allocation4 + $0x11e0] sm:$0xff]
    %v1893 = vld [vmem:[#allocation4 + $0x11e8] sm:$0xff]
    %v1894 = vld [vmem:[#allocation4 + $0x11f0] sm:$0xff]
    %v1895 = vld [vmem:[#allocation4 + $0x11f8] sm:$0xff]
    %v1896 = vld [vmem:[#allocation4 + $0x1200] sm:$0xff]
    %v1897 = vld [vmem:[#allocation4 + $0x1208] sm:$0xff]
    %v1898 = vld [vmem:[#allocation4 + $0x1210] sm:$0xff]
    %v1899 = vld [vmem:[#allocation4 + $0x1218] sm:$0xff]
    %v1900 = vld [vmem:[#allocation4 + $0x1220] sm:$0xff]
    %v1901 = vld [vmem:[#allocation4 + $0x1228] sm:$0xff]
    %v1902 = vld [vmem:[#allocation4 + $0x1230] sm:$0xff]
    %v1903 = vld [vmem:[#allocation4 + $0x1238] sm:$0xff]
    %v1904 = vld [vmem:[#allocation4 + $0x1240] sm:$0xff]
    %v1905 = vld [vmem:[#allocation4 + $0x1248] sm:$0xff]
    %v1906 = vld [vmem:[#allocation4 + $0x1250] sm:$0xff]
    %v1907 = vld [vmem:[#allocation4 + $0x1258] sm:$0xff]
    %v1908 = vld [vmem:[#allocation4 + $0x1260] sm:$0xff]
    %v1909 = vld [vmem:[#allocation4 + $0x1268] sm:$0xff]
    %v1910 = vld [vmem:[#allocation4 + $0x1270] sm:$0xff]
    %v1911 = vld [vmem:[#allocation4 + $0x1278] sm:$0xff]
    %v1912 = vld [vmem:[#allocation4 + $0x1280] sm:$0xff]
    %v1913 = vld [vmem:[#allocation4 + $0x1288] sm:$0xff]
    %v1914 = vld [vmem:[#allocation4 + $0x1290] sm:$0xff]
    %v1915 = vld [vmem:[#allocation4 + $0x1298] sm:$0xff]
    %v1916 = vld [vmem:[#allocation4 + $0x12a0] sm:$0xff]
    %v1917 = vld [vmem:[#allocation4 + $0x12a8] sm:$0xff]
    %v1918 = vld [vmem:[#allocation4 + $0x12b0] sm:$0xff]
    %v1919 = vld [vmem:[#allocation4 + $0x12b8] sm:$0xff]
    %v1920 = vld [vmem:[#allocation4 + $0x12c0] sm:$0xff]
    %v1921 = vld [vmem:[#allocation4 + $0x12c8] sm:$0xff]
    %v1922 = vld [vmem:[#allocation4 + $0x12d0] sm:$0xff]
    %v1923 = vld [vmem:[#allocation4 + $0x12d8] sm:$0xff]
    %v1924 = vld [vmem:[#allocation4 + $0x12e0] sm:$0xff]
    %v1925 = vld [vmem:[#allocation4 + $0x12e8] sm:$0xff]
    %v1926 = vld [vmem:[#allocation4 + $0x12f0] sm:$0xff]
    %v1927 = vld [vmem:[#allocation4 + $0x12f8] sm:$0xff]
    %v1928 = vld [vmem:[#allocation4 + $0x1300] sm:$0xff]
    %v1929 = vld [vmem:[#allocation4 + $0x1308] sm:$0xff]
    %v1930 = vld [vmem:[#allocation4 + $0x1310] sm:$0xff]
    %v1931 = vld [vmem:[#allocation4 + $0x1318] sm:$0xff]
    %v1932 = vld [vmem:[#allocation4 + $0x1320] sm:$0xff]
    %v1933 = vld [vmem:[#allocation4 + $0x1328] sm:$0xff]
    %v1934 = vld [vmem:[#allocation4 + $0x1330] sm:$0xff]
    %v1935 = vld [vmem:[#allocation4 + $0x1338] sm:$0xff]
    %v1936 = vld [vmem:[#allocation4 + $0x1340] sm:$0xff]
    %v1937 = vld [vmem:[#allocation4 + $0x1348] sm:$0xff]
    %v1938 = vld [vmem:[#allocation4 + $0x1350] sm:$0xff]
    %v1939 = vld [vmem:[#allocation4 + $0x1358] sm:$0xff]
    %v1940 = vld [vmem:[#allocation4 + $0x1360] sm:$0xff]
    %v1941 = vld [vmem:[#allocation4 + $0x1368] sm:$0xff]
    %v1942 = vld [vmem:[#allocation4 + $0x1370] sm:$0xff]
    %v1943 = vld [vmem:[#allocation4 + $0x1378] sm:$0xff]
    %v1944 = vld [vmem:[#allocation4 + $0x1380] sm:$0xff]
    %v1945 = vld [vmem:[#allocation4 + $0x1388] sm:$0xff]
    %v1946 = vld [vmem:[#allocation4 + $0x1390] sm:$0xff]
    %v1947 = vld [vmem:[#allocation4 + $0x1398] sm:$0xff]
    %v1948 = vld [vmem:[#allocation4 + $0x13a0] sm:$0xff]
    %v1949 = vld [vmem:[#allocation4 + $0x13a8] sm:$0xff]
    %v1950 = vld [vmem:[#allocation4 + $0x13b0] sm:$0xff]
    %v1951 = vld [vmem:[#allocation4 + $0x13b8] sm:$0xff]
    %v1952 = vld [vmem:[#allocation4 + $0x13c0] sm:$0xff]
    %v1953 = vld [vmem:[#allocation4 + $0x13c8] sm:$0xff]
    %v1954 = vld [vmem:[#allocation4 + $0x13d0] sm:$0xff]
    %v1955 = vld [vmem:[#allocation4 + $0x13d8] sm:$0xff]
    %v1956 = vld [vmem:[#allocation4 + $0x13e0] sm:$0xff]
    %v1957 = vld [vmem:[#allocation4 + $0x13e8] sm:$0xff]
    %v1958 = vld [vmem:[#allocation4 + $0x13f0] sm:$0xff]
    %v1959 = vld [vmem:[#allocation4 + $0x13f8] sm:$0xff]
    %v1960 = vld [vmem:[#allocation4 + $0x1400] sm:$0xff]
    %v1961 = vld [vmem:[#allocation4 + $0x1408] sm:$0xff]
    %v1962 = vld [vmem:[#allocation4 + $0x1410] sm:$0xff]
    %v1963 = vld [vmem:[#allocation4 + $0x1418] sm:$0xff]
    %v1964 = vld [vmem:[#allocation4 + $0x1420] sm:$0xff]
    %v1965 = vld [vmem:[#allocation4 + $0x1428] sm:$0xff]
    %v1966 = vld [vmem:[#allocation4 + $0x1430] sm:$0xff]
    %v1967 = vld [vmem:[#allocation4 + $0x1438] sm:$0xff]
    %v1968 = vld [vmem:[#allocation4 + $0x1440] sm:$0xff]
    %v1969 = vld [vmem:[#allocation4 + $0x1448] sm:$0xff]
    %v1970 = vld [vmem:[#allocation4 + $0x1450] sm:$0xff]
    %v1971 = vld [vmem:[#allocation4 + $0x1458] sm:$0xff]
    %v1972 = vld [vmem:[#allocation4 + $0x1460] sm:$0xff]
    %v1973 = vld [vmem:[#allocation4 + $0x1468] sm:$0xff]
    %v1974 = vld [vmem:[#allocation4 + $0x1470] sm:$0xff]
    %v1975 = vld [vmem:[#allocation4 + $0x1478] sm:$0xff]
    %v1976 = vld [vmem:[#allocation4 + $0x1480] sm:$0xff]
    %v1977 = vld [vmem:[#allocation4 + $0x1488] sm:$0xff]
    %v1978 = vld [vmem:[#allocation4 + $0x1490] sm:$0xff]
    %v1979 = vld [vmem:[#allocation4 + $0x1498] sm:$0xff]
    %v1980 = vld [vmem:[#allocation4 + $0x14a0] sm:$0xff]
    %v1981 = vld [vmem:[#allocation4 + $0x14a8] sm:$0xff]
    %v1982 = vld [vmem:[#allocation4 + $0x14b0] sm:$0xff]
    %v1983 = vld [vmem:[#allocation4 + $0x14b8] sm:$0xff]
    %v1984 = vld [vmem:[#allocation4 + $0x14c0] sm:$0xff]
    %v1985 = vld [vmem:[#allocation4 + $0x14c8] sm:$0xff]
    %v1986 = vld [vmem:[#allocation4 + $0x14d0] sm:$0xff]
    %v1987 = vld [vmem:[#allocation4 + $0x14d8] sm:$0xff]
    %v1988 = vld [vmem:[#allocation4 + $0x14e0] sm:$0xff]
    %v1989 = vld [vmem:[#allocation4 + $0x14e8] sm:$0xff]
    %v1990 = vld [vmem:[#allocation4 + $0x14f0] sm:$0xff]
    %v1991 = vld [vmem:[#allocation4 + $0x14f8] sm:$0xff]
    %v1992 = vld [vmem:[#allocation4 + $0x1500] sm:$0xff]
    %v1993 = vld [vmem:[#allocation4 + $0x1508] sm:$0xff]
    %v1994 = vld [vmem:[#allocation4 + $0x1510] sm:$0xff]
    %v1995 = vld [vmem:[#allocation4 + $0x1518] sm:$0xff]
    %v1996 = vld [vmem:[#allocation4 + $0x1520] sm:$0xff]
    %v1997 = vld [vmem:[#allocation4 + $0x1528] sm:$0xff]
    %v1998 = vld [vmem:[#allocation4 + $0x1530] sm:$0xff]
    %v1999 = vld [vmem:[#allocation4 + $0x1538] sm:$0xff]
    %v2000 = vld [vmem:[#allocation4 + $0x1540] sm:$0xff]
    %v2001 = vld [vmem:[#allocation4 + $0x1548] sm:$0xff]
    %v2002 = vld [vmem:[#allocation4 + $0x1550] sm:$0xff]
    %v2003 = vld [vmem:[#allocation4 + $0x1558] sm:$0xff]
    %v2004 = vld [vmem:[#allocation4 + $0x1560] sm:$0xff]
    %v2005 = vld [vmem:[#allocation4 + $0x1568] sm:$0xff]
    %v2006 = vld [vmem:[#allocation4 + $0x1570] sm:$0xff]
    %v2007 = vld [vmem:[#allocation4 + $0x1578] sm:$0xff]
    %v2008 = vld [vmem:[#allocation4 + $0x1580] sm:$0xff]
    %v2009 = vld [vmem:[#allocation4 + $0x1588] sm:$0xff]
    %v2010 = vld [vmem:[#allocation4 + $0x1590] sm:$0xff]
    %v2011 = vld [vmem:[#allocation4 + $0x1598] sm:$0xff]
    %v2012 = vld [vmem:[#allocation4 + $0x15a0] sm:$0xff]
    %v2013 = vld [vmem:[#allocation4 + $0x15a8] sm:$0xff]
    %v2014 = vld [vmem:[#allocation4 + $0x15b0] sm:$0xff]
    %v2015 = vld [vmem:[#allocation4 + $0x15b8] sm:$0xff]
    %v2016 = vld [vmem:[#allocation4 + $0x15c0] sm:$0xff]
    %v2017 = vld [vmem:[#allocation4 + $0x15c8] sm:$0xff]
    %v2018 = vld [vmem:[#allocation4 + $0x15d0] sm:$0xff]
    %v2019 = vld [vmem:[#allocation4 + $0x15d8] sm:$0xff]
    %v2020 = vld [vmem:[#allocation4 + $0x15e0] sm:$0xff]
    %v2021 = vld [vmem:[#allocation4 + $0x15e8] sm:$0xff]
    %v2022 = vld [vmem:[#allocation4 + $0x15f0] sm:$0xff]
    %v2023 = vld [vmem:[#allocation4 + $0x15f8] sm:$0xff]
    %v2024 = vld [vmem:[#allocation4 + $0x1600] sm:$0xff]
    %v2025 = vld [vmem:[#allocation4 + $0x1608] sm:$0xff]
    %v2026 = vld [vmem:[#allocation4 + $0x1610] sm:$0xff]
    %v2027 = vld [vmem:[#allocation4 + $0x1618] sm:$0xff]
    %v2028 = vld [vmem:[#allocation4 + $0x1620] sm:$0xff]
    %v2029 = vld [vmem:[#allocation4 + $0x1628] sm:$0xff]
    %v2030 = vld [vmem:[#allocation4 + $0x1630] sm:$0xff]
    %v2031 = vld [vmem:[#allocation4 + $0x1638] sm:$0xff]
    %v2032 = vld [vmem:[#allocation4 + $0x1640] sm:$0xff]
    %v2033 = vld [vmem:[#allocation4 + $0x1648] sm:$0xff]
    %v2034 = vld [vmem:[#allocation4 + $0x1650] sm:$0xff]
    %v2035 = vld [vmem:[#allocation4 + $0x1658] sm:$0xff]
    %v2036 = vld [vmem:[#allocation4 + $0x1660] sm:$0xff]
    %v2037 = vld [vmem:[#allocation4 + $0x1668] sm:$0xff]
    %v2038 = vld [vmem:[#allocation4 + $0x1670] sm:$0xff]
    %v2039 = vld [vmem:[#allocation4 + $0x1678] sm:$0xff]
    %v2040 = vld [vmem:[#allocation4 + $0x1680] sm:$0xff]
    %v2041 = vld [vmem:[#allocation4 + $0x1688] sm:$0xff]
    %v2042 = vld [vmem:[#allocation4 + $0x1690] sm:$0xff]
    %v2043 = vld [vmem:[#allocation4 + $0x1698] sm:$0xff]
    %v2044 = vld [vmem:[#allocation4 + $0x16a0] sm:$0xff]
    %v2045 = vld [vmem:[#allocation4 + $0x16a8] sm:$0xff]
    %v2046 = vld [vmem:[#allocation4 + $0x16b0] sm:$0xff]
    %v2047 = vld [vmem:[#allocation4 + $0x16b8] sm:$0xff]
    %v2048 = vld [vmem:[#allocation4 + $0x16c0] sm:$0xff]
    %v2049 = vld [vmem:[#allocation4 + $0x16c8] sm:$0xff]
    %v2050 = vld [vmem:[#allocation4 + $0x16d0] sm:$0xff]
    %v2051 = vld [vmem:[#allocation4 + $0x16d8] sm:$0xff]
    %v2052 = vld [vmem:[#allocation4 + $0x16e0] sm:$0xff]
    %v2053 = vld [vmem:[#allocation4 + $0x16e8] sm:$0xff]
    %v2054 = vld [vmem:[#allocation4 + $0x16f0] sm:$0xff]
    %v2055 = vld [vmem:[#allocation4 + $0x16f8] sm:$0xff]
    %v2056 = vld [vmem:[#allocation4 + $0x1700] sm:$0xff]
    %v2057 = vld [vmem:[#allocation4 + $0x1708] sm:$0xff]
    %v2058 = vld [vmem:[#allocation4 + $0x1710] sm:$0xff]
    %v2059 = vld [vmem:[#allocation4 + $0x1718] sm:$0xff]
    %v2060 = vld [vmem:[#allocation4 + $0x1720] sm:$0xff]
    %v2061 = vld [vmem:[#allocation4 + $0x1728] sm:$0xff]
    %v2062 = vld [vmem:[#allocation4 + $0x1730] sm:$0xff]
    %v2063 = vld [vmem:[#allocation4 + $0x1738] sm:$0xff]
    %v2064 = vld [vmem:[#allocation4 + $0x1740] sm:$0xff]
    %v2065 = vld [vmem:[#allocation4 + $0x1748] sm:$0xff]
    %v2066 = vld [vmem:[#allocation4 + $0x1750] sm:$0xff]
    %v2067 = vld [vmem:[#allocation4 + $0x1758] sm:$0xff]
    %v2068 = vld [vmem:[#allocation4 + $0x1760] sm:$0xff]
    %v2069 = vld [vmem:[#allocation4 + $0x1768] sm:$0xff]
    %v2070 = vld [vmem:[#allocation4 + $0x1770] sm:$0xff]
    %v2071 = vld [vmem:[#allocation4 + $0x1778] sm:$0xff]
    %v2072 = vld [vmem:[#allocation4 + $0x1780] sm:$0xff]
    %v2073 = vld [vmem:[#allocation4 + $0x1788] sm:$0xff]
    %v2074 = vld [vmem:[#allocation4 + $0x1790] sm:$0xff]
    %v2075 = vld [vmem:[#allocation4 + $0x1798] sm:$0xff]
    %v2076 = vld [vmem:[#allocation4 + $0x17a0] sm:$0xff]
    %v2077 = vld [vmem:[#allocation4 + $0x17a8] sm:$0xff]
    %v2078 = vld [vmem:[#allocation4 + $0x17b0] sm:$0xff]
    %v2079 = vld [vmem:[#allocation4 + $0x17b8] sm:$0xff]
    %v2080 = vld [vmem:[#allocation4 + $0x17c0] sm:$0xff]
    %v2081 = vld [vmem:[#allocation4 + $0x17c8] sm:$0xff]
    %v2082 = vld [vmem:[#allocation4 + $0x17d0] sm:$0xff]
    %v2083 = vld [vmem:[#allocation4 + $0x17d8] sm:$0xff]
    %v2084 = vld [vmem:[#allocation4 + $0x17e0] sm:$0xff]
    %v2085 = vld [vmem:[#allocation4 + $0x17e8] sm:$0xff]
    %v2086 = vld [vmem:[#allocation4 + $0x17f0] sm:$0xff]
    %v2087 = vld [vmem:[#allocation4 + $0x17f8] sm:$0xff]
    %v2856 = vunpack.c.l.b16 %v1320
    %v2857 = vunpack.c.h.b16 %v1320
    %v2858 = vunpack.c.l.b16 %v1321
    %v2859 = vunpack.c.h.b16 %v1321
    %v2860 = vunpack.c.l.b16 %v1322
    %v2861 = vunpack.c.h.b16 %v1322
    %v2862 = vunpack.c.l.b16 %v1323
    %v2863 = vunpack.c.h.b16 %v1323
    %v2864 = vunpack.c.l.b16 %v1324
    %v2865 = vunpack.c.h.b16 %v1324
    %v2866 = vunpack.c.l.b16 %v1325
    %v2867 = vunpack.c.h.b16 %v1325
    %v2868 = vunpack.c.l.b16 %v1326
    %v2869 = vunpack.c.h.b16 %v1326
    %v2870 = vunpack.c.l.b16 %v1327
    %v2871 = vunpack.c.h.b16 %v1327
    %v2872 = vunpack.c.l.b16 %v1328
    %v2873 = vunpack.c.h.b16 %v1328
    %v2874 = vunpack.c.l.b16 %v1329
    %v2875 = vunpack.c.h.b16 %v1329
    %v2876 = vunpack.c.l.b16 %v1330
    %v2877 = vunpack.c.h.b16 %v1330
    %v2878 = vunpack.c.l.b16 %v1331
    %v2879 = vunpack.c.h.b16 %v1331
    %v2880 = vunpack.c.l.b16 %v1332
    %v2881 = vunpack.c.h.b16 %v1332
    %v2882 = vunpack.c.l.b16 %v1333
    %v2883 = vunpack.c.h.b16 %v1333
    %v2884 = vunpack.c.l.b16 %v1334
    %v2885 = vunpack.c.h.b16 %v1334
    %v2886 = vunpack.c.l.b16 %v1335
    %v2887 = vunpack.c.h.b16 %v1335
    %v2888 = vunpack.c.l.b16 %v1336
    %v2889 = vunpack.c.h.b16 %v1336
    %v2890 = vunpack.c.l.b16 %v1337
    %v2891 = vunpack.c.h.b16 %v1337
    %v2892 = vunpack.c.l.b16 %v1338
    %v2893 = vunpack.c.h.b16 %v1338
    %v2894 = vunpack.c.l.b16 %v1339
    %v2895 = vunpack.c.h.b16 %v1339
    %v2896 = vunpack.c.l.b16 %v1340
    %v2897 = vunpack.c.h.b16 %v1340
    %v2898 = vunpack.c.l.b16 %v1341
    %v2899 = vunpack.c.h.b16 %v1341
    %v2900 = vunpack.c.l.b16 %v1342
    %v2901 = vunpack.c.h.b16 %v1342
    %v2902 = vunpack.c.l.b16 %v1343
    %v2903 = vunpack.c.h.b16 %v1343
    %v2904 = vunpack.c.l.b16 %v1344
    %v2905 = vunpack.c.h.b16 %v1344
    %v2906 = vunpack.c.l.b16 %v1345
    %v2907 = vunpack.c.h.b16 %v1345
    %v2908 = vunpack.c.l.b16 %v1346
    %v2909 = vunpack.c.h.b16 %v1346
    %v2910 = vunpack.c.l.b16 %v1347
    %v2911 = vunpack.c.h.b16 %v1347
    %v2912 = vunpack.c.l.b16 %v1348
    %v2913 = vunpack.c.h.b16 %v1348
    %v2914 = vunpack.c.l.b16 %v1349
    %v2915 = vunpack.c.h.b16 %v1349
    %v2916 = vunpack.c.l.b16 %v1350
    %v2917 = vunpack.c.h.b16 %v1350
    %v2918 = vunpack.c.l.b16 %v1351
    %v2919 = vunpack.c.h.b16 %v1351
    %v2920 = vunpack.c.l.b16 %v1352
    %v2921 = vunpack.c.h.b16 %v1352
    %v2922 = vunpack.c.l.b16 %v1353
    %v2923 = vunpack.c.h.b16 %v1353
    %v2924 = vunpack.c.l.b16 %v1354
    %v2925 = vunpack.c.h.b16 %v1354
    %v2926 = vunpack.c.l.b16 %v1355
    %v2927 = vunpack.c.h.b16 %v1355
    %v2928 = vunpack.c.l.b16 %v1356
    %v2929 = vunpack.c.h.b16 %v1356
    %v2930 = vunpack.c.l.b16 %v1357
    %v2931 = vunpack.c.h.b16 %v1357
    %v2932 = vunpack.c.l.b16 %v1358
    %v2933 = vunpack.c.h.b16 %v1358
    %v2934 = vunpack.c.l.b16 %v1359
    %v2935 = vunpack.c.h.b16 %v1359
    %v2936 = vunpack.c.l.b16 %v1360
    %v2937 = vunpack.c.h.b16 %v1360
    %v2938 = vunpack.c.l.b16 %v1361
    %v2939 = vunpack.c.h.b16 %v1361
    %v2940 = vunpack.c.l.b16 %v1362
    %v2941 = vunpack.c.h.b16 %v1362
    %v2942 = vunpack.c.l.b16 %v1363
    %v2943 = vunpack.c.h.b16 %v1363
    %v2944 = vunpack.c.l.b16 %v1364
    %v2945 = vunpack.c.h.b16 %v1364
    %v2946 = vunpack.c.l.b16 %v1365
    %v2947 = vunpack.c.h.b16 %v1365
    %v2948 = vunpack.c.l.b16 %v1366
    %v2949 = vunpack.c.h.b16 %v1366
    %v2950 = vunpack.c.l.b16 %v1367
    %v2951 = vunpack.c.h.b16 %v1367
    %v2952 = vunpack.c.l.b16 %v1368
    %v2953 = vunpack.c.h.b16 %v1368
    %v2954 = vunpack.c.l.b16 %v1369
    %v2955 = vunpack.c.h.b16 %v1369
    %v2956 = vunpack.c.l.b16 %v1370
    %v2957 = vunpack.c.h.b16 %v1370
    %v2958 = vunpack.c.l.b16 %v1371
    %v2959 = vunpack.c.h.b16 %v1371
    %v2960 = vunpack.c.l.b16 %v1372
    %v2961 = vunpack.c.h.b16 %v1372
    %v2962 = vunpack.c.l.b16 %v1373
    %v2963 = vunpack.c.h.b16 %v1373
    %v2964 = vunpack.c.l.b16 %v1374
    %v2965 = vunpack.c.h.b16 %v1374
    %v2966 = vunpack.c.l.b16 %v1375
    %v2967 = vunpack.c.h.b16 %v1375
    %v2968 = vunpack.c.l.b16 %v1376
    %v2969 = vunpack.c.h.b16 %v1376
    %v2970 = vunpack.c.l.b16 %v1377
    %v2971 = vunpack.c.h.b16 %v1377
    %v2972 = vunpack.c.l.b16 %v1378
    %v2973 = vunpack.c.h.b16 %v1378
    %v2974 = vunpack.c.l.b16 %v1379
    %v2975 = vunpack.c.h.b16 %v1379
    %v2976 = vunpack.c.l.b16 %v1380
    %v2977 = vunpack.c.h.b16 %v1380
    %v2978 = vunpack.c.l.b16 %v1381
    %v2979 = vunpack.c.h.b16 %v1381
    %v2980 = vunpack.c.l.b16 %v1382
    %v2981 = vunpack.c.h.b16 %v1382
    %v2982 = vunpack.c.l.b16 %v1383
    %v2983 = vunpack.c.h.b16 %v1383
    %v2984 = vunpack.c.l.b16 %v1384
    %v2985 = vunpack.c.h.b16 %v1384
    %v2986 = vunpack.c.l.b16 %v1385
    %v2987 = vunpack.c.h.b16 %v1385
    %v2988 = vunpack.c.l.b16 %v1386
    %v2989 = vunpack.c.h.b16 %v1386
    %v2990 = vunpack.c.l.b16 %v1387
    %v2991 = vunpack.c.h.b16 %v1387
    %v2992 = vunpack.c.l.b16 %v1388
    %v2993 = vunpack.c.h.b16 %v1388
    %v2994 = vunpack.c.l.b16 %v1389
    %v2995 = vunpack.c.h.b16 %v1389
    %v2996 = vunpack.c.l.b16 %v1390
    %v2997 = vunpack.c.h.b16 %v1390
    %v2998 = vunpack.c.l.b16 %v1391
    %v2999 = vunpack.c.h.b16 %v1391
    %v3000 = vunpack.c.l.b16 %v1392
    %v3001 = vunpack.c.h.b16 %v1392
    %v3002 = vunpack.c.l.b16 %v1393
    %v3003 = vunpack.c.h.b16 %v1393
    %v3004 = vunpack.c.l.b16 %v1394
    %v3005 = vunpack.c.h.b16 %v1394
    %v3006 = vunpack.c.l.b16 %v1395
    %v3007 = vunpack.c.h.b16 %v1395
    %v3008 = vunpack.c.l.b16 %v1396
    %v3009 = vunpack.c.h.b16 %v1396
    %v3010 = vunpack.c.l.b16 %v1397
    %v3011 = vunpack.c.h.b16 %v1397
    %v3012 = vunpack.c.l.b16 %v1398
    %v3013 = vunpack.c.h.b16 %v1398
    %v3014 = vunpack.c.l.b16 %v1399
    %v3015 = vunpack.c.h.b16 %v1399
    %v3016 = vunpack.c.l.b16 %v1400
    %v3017 = vunpack.c.h.b16 %v1400
    %v3018 = vunpack.c.l.b16 %v1401
    %v3019 = vunpack.c.h.b16 %v1401
    %v3020 = vunpack.c.l.b16 %v1402
    %v3021 = vunpack.c.h.b16 %v1402
    %v3022 = vunpack.c.l.b16 %v1403
    %v3023 = vunpack.c.h.b16 %v1403
    %v3024 = vunpack.c.l.b16 %v1404
    %v3025 = vunpack.c.h.b16 %v1404
    %v3026 = vunpack.c.l.b16 %v1405
    %v3027 = vunpack.c.h.b16 %v1405
    %v3028 = vunpack.c.l.b16 %v1406
    %v3029 = vunpack.c.h.b16 %v1406
    %v3030 = vunpack.c.l.b16 %v1407
    %v3031 = vunpack.c.h.b16 %v1407
    %v3032 = vunpack.c.l.b16 %v1408
    %v3033 = vunpack.c.h.b16 %v1408
    %v3034 = vunpack.c.l.b16 %v1409
    %v3035 = vunpack.c.h.b16 %v1409
    %v3036 = vunpack.c.l.b16 %v1410
    %v3037 = vunpack.c.h.b16 %v1410
    %v3038 = vunpack.c.l.b16 %v1411
    %v3039 = vunpack.c.h.b16 %v1411
    %v3040 = vunpack.c.l.b16 %v1412
    %v3041 = vunpack.c.h.b16 %v1412
    %v3042 = vunpack.c.l.b16 %v1413
    %v3043 = vunpack.c.h.b16 %v1413
    %v3044 = vunpack.c.l.b16 %v1414
    %v3045 = vunpack.c.h.b16 %v1414
    %v3046 = vunpack.c.l.b16 %v1415
    %v3047 = vunpack.c.h.b16 %v1415
    %v3048 = vunpack.c.l.b16 %v1416
    %v3049 = vunpack.c.h.b16 %v1416
    %v3050 = vunpack.c.l.b16 %v1417
    %v3051 = vunpack.c.h.b16 %v1417
    %v3052 = vunpack.c.l.b16 %v1418
    %v3053 = vunpack.c.h.b16 %v1418
    %v3054 = vunpack.c.l.b16 %v1419
    %v3055 = vunpack.c.h.b16 %v1419
    %v3056 = vunpack.c.l.b16 %v1420
    %v3057 = vunpack.c.h.b16 %v1420
    %v3058 = vunpack.c.l.b16 %v1421
    %v3059 = vunpack.c.h.b16 %v1421
    %v3060 = vunpack.c.l.b16 %v1422
    %v3061 = vunpack.c.h.b16 %v1422
    %v3062 = vunpack.c.l.b16 %v1423
    %v3063 = vunpack.c.h.b16 %v1423
    %v3064 = vunpack.c.l.b16 %v1424
    %v3065 = vunpack.c.h.b16 %v1424
    %v3066 = vunpack.c.l.b16 %v1425
    %v3067 = vunpack.c.h.b16 %v1425
    %v3068 = vunpack.c.l.b16 %v1426
    %v3069 = vunpack.c.h.b16 %v1426
    %v3070 = vunpack.c.l.b16 %v1427
    %v3071 = vunpack.c.h.b16 %v1427
    %v3072 = vunpack.c.l.b16 %v1428
    %v3073 = vunpack.c.h.b16 %v1428
    %v3074 = vunpack.c.l.b16 %v1429
    %v3075 = vunpack.c.h.b16 %v1429
    %v3076 = vunpack.c.l.b16 %v1430
    %v3077 = vunpack.c.h.b16 %v1430
    %v3078 = vunpack.c.l.b16 %v1431
    %v3079 = vunpack.c.h.b16 %v1431
    %v3080 = vunpack.c.l.b16 %v1432
    %v3081 = vunpack.c.h.b16 %v1432
    %v3082 = vunpack.c.l.b16 %v1433
    %v3083 = vunpack.c.h.b16 %v1433
    %v3084 = vunpack.c.l.b16 %v1434
    %v3085 = vunpack.c.h.b16 %v1434
    %v3086 = vunpack.c.l.b16 %v1435
    %v3087 = vunpack.c.h.b16 %v1435
    %v3088 = vunpack.c.l.b16 %v1436
    %v3089 = vunpack.c.h.b16 %v1436
    %v3090 = vunpack.c.l.b16 %v1437
    %v3091 = vunpack.c.h.b16 %v1437
    %v3092 = vunpack.c.l.b16 %v1438
    %v3093 = vunpack.c.h.b16 %v1438
    %v3094 = vunpack.c.l.b16 %v1439
    %v3095 = vunpack.c.h.b16 %v1439
    %v3096 = vunpack.c.l.b16 %v1440
    %v3097 = vunpack.c.h.b16 %v1440
    %v3098 = vunpack.c.l.b16 %v1441
    %v3099 = vunpack.c.h.b16 %v1441
    %v3100 = vunpack.c.l.b16 %v1442
    %v3101 = vunpack.c.h.b16 %v1442
    %v3102 = vunpack.c.l.b16 %v1443
    %v3103 = vunpack.c.h.b16 %v1443
    %v3104 = vunpack.c.l.b16 %v1444
    %v3105 = vunpack.c.h.b16 %v1444
    %v3106 = vunpack.c.l.b16 %v1445
    %v3107 = vunpack.c.h.b16 %v1445
    %v3108 = vunpack.c.l.b16 %v1446
    %v3109 = vunpack.c.h.b16 %v1446
    %v3110 = vunpack.c.l.b16 %v1447
    %v3111 = vunpack.c.h.b16 %v1447
    %v3112 = vunpack.c.l.b16 %v1448
    %v3113 = vunpack.c.h.b16 %v1448
    %v3114 = vunpack.c.l.b16 %v1449
    %v3115 = vunpack.c.h.b16 %v1449
    %v3116 = vunpack.c.l.b16 %v1450
    %v3117 = vunpack.c.h.b16 %v1450
    %v3118 = vunpack.c.l.b16 %v1451
    %v3119 = vunpack.c.h.b16 %v1451
    %v3120 = vunpack.c.l.b16 %v1452
    %v3121 = vunpack.c.h.b16 %v1452
    %v3122 = vunpack.c.l.b16 %v1453
    %v3123 = vunpack.c.h.b16 %v1453
    %v3124 = vunpack.c.l.b16 %v1454
    %v3125 = vunpack.c.h.b16 %v1454
    %v3126 = vunpack.c.l.b16 %v1455
    %v3127 = vunpack.c.h.b16 %v1455
    %v3128 = vunpack.c.l.b16 %v1456
    %v3129 = vunpack.c.h.b16 %v1456
    %v3130 = vunpack.c.l.b16 %v1457
    %v3131 = vunpack.c.h.b16 %v1457
    %v3132 = vunpack.c.l.b16 %v1458
    %v3133 = vunpack.c.h.b16 %v1458
    %v3134 = vunpack.c.l.b16 %v1459
    %v3135 = vunpack.c.h.b16 %v1459
    %v3136 = vunpack.c.l.b16 %v1460
    %v3137 = vunpack.c.h.b16 %v1460
    %v3138 = vunpack.c.l.b16 %v1461
    %v3139 = vunpack.c.h.b16 %v1461
    %v3140 = vunpack.c.l.b16 %v1462
    %v3141 = vunpack.c.h.b16 %v1462
    %v3142 = vunpack.c.l.b16 %v1463
    %v3143 = vunpack.c.h.b16 %v1463
    %v3144 = vunpack.c.l.b16 %v1464
    %v3145 = vunpack.c.h.b16 %v1464
    %v3146 = vunpack.c.l.b16 %v1465
    %v3147 = vunpack.c.h.b16 %v1465
    %v3148 = vunpack.c.l.b16 %v1466
    %v3149 = vunpack.c.h.b16 %v1466
    %v3150 = vunpack.c.l.b16 %v1467
    %v3151 = vunpack.c.h.b16 %v1467
    %v3152 = vunpack.c.l.b16 %v1468
    %v3153 = vunpack.c.h.b16 %v1468
    %v3154 = vunpack.c.l.b16 %v1469
    %v3155 = vunpack.c.h.b16 %v1469
    %v3156 = vunpack.c.l.b16 %v1470
    %v3157 = vunpack.c.h.b16 %v1470
    %v3158 = vunpack.c.l.b16 %v1471
    %v3159 = vunpack.c.h.b16 %v1471
    %v3160 = vunpack.c.l.b16 %v1472
    %v3161 = vunpack.c.h.b16 %v1472
    %v3162 = vunpack.c.l.b16 %v1473
    %v3163 = vunpack.c.h.b16 %v1473
    %v3164 = vunpack.c.l.b16 %v1474
    %v3165 = vunpack.c.h.b16 %v1474
    %v3166 = vunpack.c.l.b16 %v1475
    %v3167 = vunpack.c.h.b16 %v1475
    %v3168 = vunpack.c.l.b16 %v1476
    %v3169 = vunpack.c.h.b16 %v1476
    %v3170 = vunpack.c.l.b16 %v1477
    %v3171 = vunpack.c.h.b16 %v1477
    %v3172 = vunpack.c.l.b16 %v1478
    %v3173 = vunpack.c.h.b16 %v1478
    %v3174 = vunpack.c.l.b16 %v1479
    %v3175 = vunpack.c.h.b16 %v1479
    %v3176 = vunpack.c.l.b16 %v1480
    %v3177 = vunpack.c.h.b16 %v1480
    %v3178 = vunpack.c.l.b16 %v1481
    %v3179 = vunpack.c.h.b16 %v1481
    %v3180 = vunpack.c.l.b16 %v1482
    %v3181 = vunpack.c.h.b16 %v1482
    %v3182 = vunpack.c.l.b16 %v1483
    %v3183 = vunpack.c.h.b16 %v1483
    %v3184 = vunpack.c.l.b16 %v1484
    %v3185 = vunpack.c.h.b16 %v1484
    %v3186 = vunpack.c.l.b16 %v1485
    %v3187 = vunpack.c.h.b16 %v1485
    %v3188 = vunpack.c.l.b16 %v1486
    %v3189 = vunpack.c.h.b16 %v1486
    %v3190 = vunpack.c.l.b16 %v1487
    %v3191 = vunpack.c.h.b16 %v1487
    %v3192 = vunpack.c.l.b16 %v1488
    %v3193 = vunpack.c.h.b16 %v1488
    %v3194 = vunpack.c.l.b16 %v1489
    %v3195 = vunpack.c.h.b16 %v1489
    %v3196 = vunpack.c.l.b16 %v1490
    %v3197 = vunpack.c.h.b16 %v1490
    %v3198 = vunpack.c.l.b16 %v1491
    %v3199 = vunpack.c.h.b16 %v1491
    %v3200 = vunpack.c.l.b16 %v1492
    %v3201 = vunpack.c.h.b16 %v1492
    %v3202 = vunpack.c.l.b16 %v1493
    %v3203 = vunpack.c.h.b16 %v1493
    %v3204 = vunpack.c.l.b16 %v1494
    %v3205 = vunpack.c.h.b16 %v1494
    %v3206 = vunpack.c.l.b16 %v1495
    %v3207 = vunpack.c.h.b16 %v1495
    %v3208 = vunpack.c.l.b16 %v1496
    %v3209 = vunpack.c.h.b16 %v1496
    %v3210 = vunpack.c.l.b16 %v1497
    %v3211 = vunpack.c.h.b16 %v1497
    %v3212 = vunpack.c.l.b16 %v1498
    %v3213 = vunpack.c.h.b16 %v1498
    %v3214 = vunpack.c.l.b16 %v1499
    %v3215 = vunpack.c.h.b16 %v1499
    %v3216 = vunpack.c.l.b16 %v1500
    %v3217 = vunpack.c.h.b16 %v1500
    %v3218 = vunpack.c.l.b16 %v1501
    %v3219 = vunpack.c.h.b16 %v1501
    %v3220 = vunpack.c.l.b16 %v1502
    %v3221 = vunpack.c.h.b16 %v1502
    %v3222 = vunpack.c.l.b16 %v1503
    %v3223 = vunpack.c.h.b16 %v1503
    %v3224 = vunpack.c.l.b16 %v1504
    %v3225 = vunpack.c.h.b16 %v1504
    %v3226 = vunpack.c.l.b16 %v1505
    %v3227 = vunpack.c.h.b16 %v1505
    %v3228 = vunpack.c.l.b16 %v1506
    %v3229 = vunpack.c.h.b16 %v1506
    %v3230 = vunpack.c.l.b16 %v1507
    %v3231 = vunpack.c.h.b16 %v1507
    %v3232 = vunpack.c.l.b16 %v1508
    %v3233 = vunpack.c.h.b16 %v1508
    %v3234 = vunpack.c.l.b16 %v1509
    %v3235 = vunpack.c.h.b16 %v1509
    %v3236 = vunpack.c.l.b16 %v1510
    %v3237 = vunpack.c.h.b16 %v1510
    %v3238 = vunpack.c.l.b16 %v1511
    %v3239 = vunpack.c.h.b16 %v1511
    %v3240 = vunpack.c.l.b16 %v1512
    %v3241 = vunpack.c.h.b16 %v1512
    %v3242 = vunpack.c.l.b16 %v1513
    %v3243 = vunpack.c.h.b16 %v1513
    %v3244 = vunpack.c.l.b16 %v1514
    %v3245 = vunpack.c.h.b16 %v1514
    %v3246 = vunpack.c.l.b16 %v1515
    %v3247 = vunpack.c.h.b16 %v1515
    %v3248 = vunpack.c.l.b16 %v1516
    %v3249 = vunpack.c.h.b16 %v1516
    %v3250 = vunpack.c.l.b16 %v1517
    %v3251 = vunpack.c.h.b16 %v1517
    %v3252 = vunpack.c.l.b16 %v1518
    %v3253 = vunpack.c.h.b16 %v1518
    %v3254 = vunpack.c.l.b16 %v1519
    %v3255 = vunpack.c.h.b16 %v1519
    %v3256 = vunpack.c.l.b16 %v1520
    %v3257 = vunpack.c.h.b16 %v1520
    %v3258 = vunpack.c.l.b16 %v1521
    %v3259 = vunpack.c.h.b16 %v1521
    %v3260 = vunpack.c.l.b16 %v1522
    %v3261 = vunpack.c.h.b16 %v1522
    %v3262 = vunpack.c.l.b16 %v1523
    %v3263 = vunpack.c.h.b16 %v1523
    %v3264 = vunpack.c.l.b16 %v1524
    %v3265 = vunpack.c.h.b16 %v1524
    %v3266 = vunpack.c.l.b16 %v1525
    %v3267 = vunpack.c.h.b16 %v1525
    %v3268 = vunpack.c.l.b16 %v1526
    %v3269 = vunpack.c.h.b16 %v1526
    %v3270 = vunpack.c.l.b16 %v1527
    %v3271 = vunpack.c.h.b16 %v1527
    %v3272 = vunpack.c.l.b16 %v1528
    %v3273 = vunpack.c.h.b16 %v1528
    %v3274 = vunpack.c.l.b16 %v1529
    %v3275 = vunpack.c.h.b16 %v1529
    %v3276 = vunpack.c.l.b16 %v1530
    %v3277 = vunpack.c.h.b16 %v1530
    %v3278 = vunpack.c.l.b16 %v1531
    %v3279 = vunpack.c.h.b16 %v1531
    %v3280 = vunpack.c.l.b16 %v1532
    %v3281 = vunpack.c.h.b16 %v1532
    %v3282 = vunpack.c.l.b16 %v1533
    %v3283 = vunpack.c.h.b16 %v1533
    %v3284 = vunpack.c.l.b16 %v1534
    %v3285 = vunpack.c.h.b16 %v1534
    %v3286 = vunpack.c.l.b16 %v1535
    %v3287 = vunpack.c.h.b16 %v1535
    %v3288 = vunpack.c.l.b16 %v1536
    %v3289 = vunpack.c.h.b16 %v1536
    %v3290 = vunpack.c.l.b16 %v1537
    %v3291 = vunpack.c.h.b16 %v1537
    %v3292 = vunpack.c.l.b16 %v1538
    %v3293 = vunpack.c.h.b16 %v1538
    %v3294 = vunpack.c.l.b16 %v1539
    %v3295 = vunpack.c.h.b16 %v1539
    %v3296 = vunpack.c.l.b16 %v1540
    %v3297 = vunpack.c.h.b16 %v1540
    %v3298 = vunpack.c.l.b16 %v1541
    %v3299 = vunpack.c.h.b16 %v1541
    %v3300 = vunpack.c.l.b16 %v1542
    %v3301 = vunpack.c.h.b16 %v1542
    %v3302 = vunpack.c.l.b16 %v1543
    %v3303 = vunpack.c.h.b16 %v1543
    %v3304 = vunpack.c.l.b16 %v1544
    %v3305 = vunpack.c.h.b16 %v1544
    %v3306 = vunpack.c.l.b16 %v1545
    %v3307 = vunpack.c.h.b16 %v1545
    %v3308 = vunpack.c.l.b16 %v1546
    %v3309 = vunpack.c.h.b16 %v1546
    %v3310 = vunpack.c.l.b16 %v1547
    %v3311 = vunpack.c.h.b16 %v1547
    %v3312 = vunpack.c.l.b16 %v1548
    %v3313 = vunpack.c.h.b16 %v1548
    %v3314 = vunpack.c.l.b16 %v1549
    %v3315 = vunpack.c.h.b16 %v1549
    %v3316 = vunpack.c.l.b16 %v1550
    %v3317 = vunpack.c.h.b16 %v1550
    %v3318 = vunpack.c.l.b16 %v1551
    %v3319 = vunpack.c.h.b16 %v1551
    %v3320 = vunpack.c.l.b16 %v1552
    %v3321 = vunpack.c.h.b16 %v1552
    %v3322 = vunpack.c.l.b16 %v1553
    %v3323 = vunpack.c.h.b16 %v1553
    %v3324 = vunpack.c.l.b16 %v1554
    %v3325 = vunpack.c.h.b16 %v1554
    %v3326 = vunpack.c.l.b16 %v1555
    %v3327 = vunpack.c.h.b16 %v1555
    %v3328 = vunpack.c.l.b16 %v1556
    %v3329 = vunpack.c.h.b16 %v1556
    %v3330 = vunpack.c.l.b16 %v1557
    %v3331 = vunpack.c.h.b16 %v1557
    %v3332 = vunpack.c.l.b16 %v1558
    %v3333 = vunpack.c.h.b16 %v1558
    %v3334 = vunpack.c.l.b16 %v1559
    %v3335 = vunpack.c.h.b16 %v1559
    %v3336 = vunpack.c.l.b16 %v1560
    %v3337 = vunpack.c.h.b16 %v1560
    %v3338 = vunpack.c.l.b16 %v1561
    %v3339 = vunpack.c.h.b16 %v1561
    %v3340 = vunpack.c.l.b16 %v1562
    %v3341 = vunpack.c.h.b16 %v1562
    %v3342 = vunpack.c.l.b16 %v1563
    %v3343 = vunpack.c.h.b16 %v1563
    %v3344 = vunpack.c.l.b16 %v1564
    %v3345 = vunpack.c.h.b16 %v1564
    %v3346 = vunpack.c.l.b16 %v1565
    %v3347 = vunpack.c.h.b16 %v1565
    %v3348 = vunpack.c.l.b16 %v1566
    %v3349 = vunpack.c.h.b16 %v1566
    %v3350 = vunpack.c.l.b16 %v1567
    %v3351 = vunpack.c.h.b16 %v1567
    %v3352 = vunpack.c.l.b16 %v1568
    %v3353 = vunpack.c.h.b16 %v1568
    %v3354 = vunpack.c.l.b16 %v1569
    %v3355 = vunpack.c.h.b16 %v1569
    %v3356 = vunpack.c.l.b16 %v1570
    %v3357 = vunpack.c.h.b16 %v1570
    %v3358 = vunpack.c.l.b16 %v1571
    %v3359 = vunpack.c.h.b16 %v1571
    %v3360 = vunpack.c.l.b16 %v1572
    %v3361 = vunpack.c.h.b16 %v1572
    %v3362 = vunpack.c.l.b16 %v1573
    %v3363 = vunpack.c.h.b16 %v1573
    %v3364 = vunpack.c.l.b16 %v1574
    %v3365 = vunpack.c.h.b16 %v1574
    %v3366 = vunpack.c.l.b16 %v1575
    %v3367 = vunpack.c.h.b16 %v1575
    %v3368 = vunpack.c.l.b16 %v1576
    %v3369 = vunpack.c.h.b16 %v1576
    %v3370 = vunpack.c.l.b16 %v1577
    %v3371 = vunpack.c.h.b16 %v1577
    %v3372 = vunpack.c.l.b16 %v1578
    %v3373 = vunpack.c.h.b16 %v1578
    %v3374 = vunpack.c.l.b16 %v1579
    %v3375 = vunpack.c.h.b16 %v1579
    %v3376 = vunpack.c.l.b16 %v1580
    %v3377 = vunpack.c.h.b16 %v1580
    %v3378 = vunpack.c.l.b16 %v1581
    %v3379 = vunpack.c.h.b16 %v1581
    %v3380 = vunpack.c.l.b16 %v1582
    %v3381 = vunpack.c.h.b16 %v1582
    %v3382 = vunpack.c.l.b16 %v1583
    %v3383 = vunpack.c.h.b16 %v1583
    %v3384 = vunpack.c.l.b16 %v1584
    %v3385 = vunpack.c.h.b16 %v1584
    %v3386 = vunpack.c.l.b16 %v1585
    %v3387 = vunpack.c.h.b16 %v1585
    %v3388 = vunpack.c.l.b16 %v1586
    %v3389 = vunpack.c.h.b16 %v1586
    %v3390 = vunpack.c.l.b16 %v1587
    %v3391 = vunpack.c.h.b16 %v1587
    %v3392 = vunpack.c.l.b16 %v1588
    %v3393 = vunpack.c.h.b16 %v1588
    %v3394 = vunpack.c.l.b16 %v1589
    %v3395 = vunpack.c.h.b16 %v1589
    %v3396 = vunpack.c.l.b16 %v1590
    %v3397 = vunpack.c.h.b16 %v1590
    %v3398 = vunpack.c.l.b16 %v1591
    %v3399 = vunpack.c.h.b16 %v1591
    %v3400 = vunpack.c.l.b16 %v1592
    %v3401 = vunpack.c.h.b16 %v1592
    %v3402 = vunpack.c.l.b16 %v1593
    %v3403 = vunpack.c.h.b16 %v1593
    %v3404 = vunpack.c.l.b16 %v1594
    %v3405 = vunpack.c.h.b16 %v1594
    %v3406 = vunpack.c.l.b16 %v1595
    %v3407 = vunpack.c.h.b16 %v1595
    %v3408 = vunpack.c.l.b16 %v1596
    %v3409 = vunpack.c.h.b16 %v1596
    %v3410 = vunpack.c.l.b16 %v1597
    %v3411 = vunpack.c.h.b16 %v1597
    %v3412 = vunpack.c.l.b16 %v1598
    %v3413 = vunpack.c.h.b16 %v1598
    %v3414 = vunpack.c.l.b16 %v1599
    %v3415 = vunpack.c.h.b16 %v1599
    %v3416 = vunpack.c.l.b16 %v1600
    %v3417 = vunpack.c.h.b16 %v1600
    %v3418 = vunpack.c.l.b16 %v1601
    %v3419 = vunpack.c.h.b16 %v1601
    %v3420 = vunpack.c.l.b16 %v1602
    %v3421 = vunpack.c.h.b16 %v1602
    %v3422 = vunpack.c.l.b16 %v1603
    %v3423 = vunpack.c.h.b16 %v1603
    %v3424 = vunpack.c.l.b16 %v1604
    %v3425 = vunpack.c.h.b16 %v1604
    %v3426 = vunpack.c.l.b16 %v1605
    %v3427 = vunpack.c.h.b16 %v1605
    %v3428 = vunpack.c.l.b16 %v1606
    %v3429 = vunpack.c.h.b16 %v1606
    %v3430 = vunpack.c.l.b16 %v1607
    %v3431 = vunpack.c.h.b16 %v1607
    %v3432 = vunpack.c.l.b16 %v1608
    %v3433 = vunpack.c.h.b16 %v1608
    %v3434 = vunpack.c.l.b16 %v1609
    %v3435 = vunpack.c.h.b16 %v1609
    %v3436 = vunpack.c.l.b16 %v1610
    %v3437 = vunpack.c.h.b16 %v1610
    %v3438 = vunpack.c.l.b16 %v1611
    %v3439 = vunpack.c.h.b16 %v1611
    %v3440 = vunpack.c.l.b16 %v1612
    %v3441 = vunpack.c.h.b16 %v1612
    %v3442 = vunpack.c.l.b16 %v1613
    %v3443 = vunpack.c.h.b16 %v1613
    %v3444 = vunpack.c.l.b16 %v1614
    %v3445 = vunpack.c.h.b16 %v1614
    %v3446 = vunpack.c.l.b16 %v1615
    %v3447 = vunpack.c.h.b16 %v1615
    %v3448 = vunpack.c.l.b16 %v1616
    %v3449 = vunpack.c.h.b16 %v1616
    %v3450 = vunpack.c.l.b16 %v1617
    %v3451 = vunpack.c.h.b16 %v1617
    %v3452 = vunpack.c.l.b16 %v1618
    %v3453 = vunpack.c.h.b16 %v1618
    %v3454 = vunpack.c.l.b16 %v1619
    %v3455 = vunpack.c.h.b16 %v1619
    %v3456 = vunpack.c.l.b16 %v1620
    %v3457 = vunpack.c.h.b16 %v1620
    %v3458 = vunpack.c.l.b16 %v1621
    %v3459 = vunpack.c.h.b16 %v1621
    %v3460 = vunpack.c.l.b16 %v1622
    %v3461 = vunpack.c.h.b16 %v1622
    %v3462 = vunpack.c.l.b16 %v1623
    %v3463 = vunpack.c.h.b16 %v1623
    %v3464 = vunpack.c.l.b16 %v1624
    %v3465 = vunpack.c.h.b16 %v1624
    %v3466 = vunpack.c.l.b16 %v1625
    %v3467 = vunpack.c.h.b16 %v1625
    %v3468 = vunpack.c.l.b16 %v1626
    %v3469 = vunpack.c.h.b16 %v1626
    %v3470 = vunpack.c.l.b16 %v1627
    %v3471 = vunpack.c.h.b16 %v1627
    %v3472 = vunpack.c.l.b16 %v1628
    %v3473 = vunpack.c.h.b16 %v1628
    %v3474 = vunpack.c.l.b16 %v1629
    %v3475 = vunpack.c.h.b16 %v1629
    %v3476 = vunpack.c.l.b16 %v1630
    %v3477 = vunpack.c.h.b16 %v1630
    %v3478 = vunpack.c.l.b16 %v1631
    %v3479 = vunpack.c.h.b16 %v1631
    %v3480 = vunpack.c.l.b16 %v1632
    %v3481 = vunpack.c.h.b16 %v1632
    %v3482 = vunpack.c.l.b16 %v1633
    %v3483 = vunpack.c.h.b16 %v1633
    %v3484 = vunpack.c.l.b16 %v1634
    %v3485 = vunpack.c.h.b16 %v1634
    %v3486 = vunpack.c.l.b16 %v1635
    %v3487 = vunpack.c.h.b16 %v1635
    %v3488 = vunpack.c.l.b16 %v1636
    %v3489 = vunpack.c.h.b16 %v1636
    %v3490 = vunpack.c.l.b16 %v1637
    %v3491 = vunpack.c.h.b16 %v1637
    %v3492 = vunpack.c.l.b16 %v1638
    %v3493 = vunpack.c.h.b16 %v1638
    %v3494 = vunpack.c.l.b16 %v1639
    %v3495 = vunpack.c.h.b16 %v1639
    %v3496 = vunpack.c.l.b16 %v1640
    %v3497 = vunpack.c.h.b16 %v1640
    %v3498 = vunpack.c.l.b16 %v1641
    %v3499 = vunpack.c.h.b16 %v1641
    %v3500 = vunpack.c.l.b16 %v1642
    %v3501 = vunpack.c.h.b16 %v1642
    %v3502 = vunpack.c.l.b16 %v1643
    %v3503 = vunpack.c.h.b16 %v1643
    %v3504 = vunpack.c.l.b16 %v1644
    %v3505 = vunpack.c.h.b16 %v1644
    %v3506 = vunpack.c.l.b16 %v1645
    %v3507 = vunpack.c.h.b16 %v1645
    %v3508 = vunpack.c.l.b16 %v1646
    %v3509 = vunpack.c.h.b16 %v1646
    %v3510 = vunpack.c.l.b16 %v1647
    %v3511 = vunpack.c.h.b16 %v1647
    %v3512 = vunpack.c.l.b16 %v1648
    %v3513 = vunpack.c.h.b16 %v1648
    %v3514 = vunpack.c.l.b16 %v1649
    %v3515 = vunpack.c.h.b16 %v1649
    %v3516 = vunpack.c.l.b16 %v1650
    %v3517 = vunpack.c.h.b16 %v1650
    %v3518 = vunpack.c.l.b16 %v1651
    %v3519 = vunpack.c.h.b16 %v1651
    %v3520 = vunpack.c.l.b16 %v1652
    %v3521 = vunpack.c.h.b16 %v1652
    %v3522 = vunpack.c.l.b16 %v1653
    %v3523 = vunpack.c.h.b16 %v1653
    %v3524 = vunpack.c.l.b16 %v1654
    %v3525 = vunpack.c.h.b16 %v1654
    %v3526 = vunpack.c.l.b16 %v1655
    %v3527 = vunpack.c.h.b16 %v1655
    %v3528 = vunpack.c.l.b16 %v1656
    %v3529 = vunpack.c.h.b16 %v1656
    %v3530 = vunpack.c.l.b16 %v1657
    %v3531 = vunpack.c.h.b16 %v1657
    %v3532 = vunpack.c.l.b16 %v1658
    %v3533 = vunpack.c.h.b16 %v1658
    %v3534 = vunpack.c.l.b16 %v1659
    %v3535 = vunpack.c.h.b16 %v1659
    %v3536 = vunpack.c.l.b16 %v1660
    %v3537 = vunpack.c.h.b16 %v1660
    %v3538 = vunpack.c.l.b16 %v1661
    %v3539 = vunpack.c.h.b16 %v1661
    %v3540 = vunpack.c.l.b16 %v1662
    %v3541 = vunpack.c.h.b16 %v1662
    %v3542 = vunpack.c.l.b16 %v1663
    %v3543 = vunpack.c.h.b16 %v1663
    %v3544 = vunpack.c.l.b16 %v1664
    %v3545 = vunpack.c.h.b16 %v1664
    %v3546 = vunpack.c.l.b16 %v1665
    %v3547 = vunpack.c.h.b16 %v1665
    %v3548 = vunpack.c.l.b16 %v1666
    %v3549 = vunpack.c.h.b16 %v1666
    %v3550 = vunpack.c.l.b16 %v1667
    %v3551 = vunpack.c.h.b16 %v1667
    %v3552 = vunpack.c.l.b16 %v1668
    %v3553 = vunpack.c.h.b16 %v1668
    %v3554 = vunpack.c.l.b16 %v1669
    %v3555 = vunpack.c.h.b16 %v1669
    %v3556 = vunpack.c.l.b16 %v1670
    %v3557 = vunpack.c.h.b16 %v1670
    %v3558 = vunpack.c.l.b16 %v1671
    %v3559 = vunpack.c.h.b16 %v1671
    %v3560 = vunpack.c.l.b16 %v1672
    %v3561 = vunpack.c.h.b16 %v1672
    %v3562 = vunpack.c.l.b16 %v1673
    %v3563 = vunpack.c.h.b16 %v1673
    %v3564 = vunpack.c.l.b16 %v1674
    %v3565 = vunpack.c.h.b16 %v1674
    %v3566 = vunpack.c.l.b16 %v1675
    %v3567 = vunpack.c.h.b16 %v1675
    %v3568 = vunpack.c.l.b16 %v1676
    %v3569 = vunpack.c.h.b16 %v1676
    %v3570 = vunpack.c.l.b16 %v1677
    %v3571 = vunpack.c.h.b16 %v1677
    %v3572 = vunpack.c.l.b16 %v1678
    %v3573 = vunpack.c.h.b16 %v1678
    %v3574 = vunpack.c.l.b16 %v1679
    %v3575 = vunpack.c.h.b16 %v1679
    %v3576 = vunpack.c.l.b16 %v1680
    %v3577 = vunpack.c.h.b16 %v1680
    %v3578 = vunpack.c.l.b16 %v1681
    %v3579 = vunpack.c.h.b16 %v1681
    %v3580 = vunpack.c.l.b16 %v1682
    %v3581 = vunpack.c.h.b16 %v1682
    %v3582 = vunpack.c.l.b16 %v1683
    %v3583 = vunpack.c.h.b16 %v1683
    %v3584 = vunpack.c.l.b16 %v1684
    %v3585 = vunpack.c.h.b16 %v1684
    %v3586 = vunpack.c.l.b16 %v1685
    %v3587 = vunpack.c.h.b16 %v1685
    %v3588 = vunpack.c.l.b16 %v1686
    %v3589 = vunpack.c.h.b16 %v1686
    %v3590 = vunpack.c.l.b16 %v1687
    %v3591 = vunpack.c.h.b16 %v1687
    %v3592 = vunpack.c.l.b16 %v1688
    %v3593 = vunpack.c.h.b16 %v1688
    %v3594 = vunpack.c.l.b16 %v1689
    %v3595 = vunpack.c.h.b16 %v1689
    %v3596 = vunpack.c.l.b16 %v1690
    %v3597 = vunpack.c.h.b16 %v1690
    %v3598 = vunpack.c.l.b16 %v1691
    %v3599 = vunpack.c.h.b16 %v1691
    %v3600 = vunpack.c.l.b16 %v1692
    %v3601 = vunpack.c.h.b16 %v1692
    %v3602 = vunpack.c.l.b16 %v1693
    %v3603 = vunpack.c.h.b16 %v1693
    %v3604 = vunpack.c.l.b16 %v1694
    %v3605 = vunpack.c.h.b16 %v1694
    %v3606 = vunpack.c.l.b16 %v1695
    %v3607 = vunpack.c.h.b16 %v1695
    %v3608 = vunpack.c.l.b16 %v1696
    %v3609 = vunpack.c.h.b16 %v1696
    %v3610 = vunpack.c.l.b16 %v1697
    %v3611 = vunpack.c.h.b16 %v1697
    %v3612 = vunpack.c.l.b16 %v1698
    %v3613 = vunpack.c.h.b16 %v1698
    %v3614 = vunpack.c.l.b16 %v1699
    %v3615 = vunpack.c.h.b16 %v1699
    %v3616 = vunpack.c.l.b16 %v1700
    %v3617 = vunpack.c.h.b16 %v1700
    %v3618 = vunpack.c.l.b16 %v1701
    %v3619 = vunpack.c.h.b16 %v1701
    %v3620 = vunpack.c.l.b16 %v1702
    %v3621 = vunpack.c.h.b16 %v1702
    %v3622 = vunpack.c.l.b16 %v1703
    %v3623 = vunpack.c.h.b16 %v1703
    %v3624 = vunpack.c.l.b16 %v1704
    %v3625 = vunpack.c.h.b16 %v1704
    %v3626 = vunpack.c.l.b16 %v1705
    %v3627 = vunpack.c.h.b16 %v1705
    %v3628 = vunpack.c.l.b16 %v1706
    %v3629 = vunpack.c.h.b16 %v1706
    %v3630 = vunpack.c.l.b16 %v1707
    %v3631 = vunpack.c.h.b16 %v1707
    %v3632 = vunpack.c.l.b16 %v1708
    %v3633 = vunpack.c.h.b16 %v1708
    %v3634 = vunpack.c.l.b16 %v1709
    %v3635 = vunpack.c.h.b16 %v1709
    %v3636 = vunpack.c.l.b16 %v1710
    %v3637 = vunpack.c.h.b16 %v1710
    %v3638 = vunpack.c.l.b16 %v1711
    %v3639 = vunpack.c.h.b16 %v1711
    %v3640 = vunpack.c.l.b16 %v1712
    %v3641 = vunpack.c.h.b16 %v1712
    %v3642 = vunpack.c.l.b16 %v1713
    %v3643 = vunpack.c.h.b16 %v1713
    %v3644 = vunpack.c.l.b16 %v1714
    %v3645 = vunpack.c.h.b16 %v1714
    %v3646 = vunpack.c.l.b16 %v1715
    %v3647 = vunpack.c.h.b16 %v1715
    %v3648 = vunpack.c.l.b16 %v1716
    %v3649 = vunpack.c.h.b16 %v1716
    %v3650 = vunpack.c.l.b16 %v1717
    %v3651 = vunpack.c.h.b16 %v1717
    %v3652 = vunpack.c.l.b16 %v1718
    %v3653 = vunpack.c.h.b16 %v1718
    %v3654 = vunpack.c.l.b16 %v1719
    %v3655 = vunpack.c.h.b16 %v1719
    %v3656 = vunpack.c.l.b16 %v1720
    %v3657 = vunpack.c.h.b16 %v1720
    %v3658 = vunpack.c.l.b16 %v1721
    %v3659 = vunpack.c.h.b16 %v1721
    %v3660 = vunpack.c.l.b16 %v1722
    %v3661 = vunpack.c.h.b16 %v1722
    %v3662 = vunpack.c.l.b16 %v1723
    %v3663 = vunpack.c.h.b16 %v1723
    %v3664 = vunpack.c.l.b16 %v1724
    %v3665 = vunpack.c.h.b16 %v1724
    %v3666 = vunpack.c.l.b16 %v1725
    %v3667 = vunpack.c.h.b16 %v1725
    %v3668 = vunpack.c.l.b16 %v1726
    %v3669 = vunpack.c.h.b16 %v1726
    %v3670 = vunpack.c.l.b16 %v1727
    %v3671 = vunpack.c.h.b16 %v1727
    %v3672 = vunpack.c.l.b16 %v1728
    %v3673 = vunpack.c.h.b16 %v1728
    %v3674 = vunpack.c.l.b16 %v1729
    %v3675 = vunpack.c.h.b16 %v1729
    %v3676 = vunpack.c.l.b16 %v1730
    %v3677 = vunpack.c.h.b16 %v1730
    %v3678 = vunpack.c.l.b16 %v1731
    %v3679 = vunpack.c.h.b16 %v1731
    %v3680 = vunpack.c.l.b16 %v1732
    %v3681 = vunpack.c.h.b16 %v1732
    %v3682 = vunpack.c.l.b16 %v1733
    %v3683 = vunpack.c.h.b16 %v1733
    %v3684 = vunpack.c.l.b16 %v1734
    %v3685 = vunpack.c.h.b16 %v1734
    %v3686 = vunpack.c.l.b16 %v1735
    %v3687 = vunpack.c.h.b16 %v1735
    %v3688 = vunpack.c.l.b16 %v1736
    %v3689 = vunpack.c.h.b16 %v1736
    %v3690 = vunpack.c.l.b16 %v1737
    %v3691 = vunpack.c.h.b16 %v1737
    %v3692 = vunpack.c.l.b16 %v1738
    %v3693 = vunpack.c.h.b16 %v1738
    %v3694 = vunpack.c.l.b16 %v1739
    %v3695 = vunpack.c.h.b16 %v1739
    %v3696 = vunpack.c.l.b16 %v1740
    %v3697 = vunpack.c.h.b16 %v1740
    %v3698 = vunpack.c.l.b16 %v1741
    %v3699 = vunpack.c.h.b16 %v1741
    %v3700 = vunpack.c.l.b16 %v1742
    %v3701 = vunpack.c.h.b16 %v1742
    %v3702 = vunpack.c.l.b16 %v1743
    %v3703 = vunpack.c.h.b16 %v1743
    %v3704 = vunpack.c.l.b16 %v1744
    %v3705 = vunpack.c.h.b16 %v1744
    %v3706 = vunpack.c.l.b16 %v1745
    %v3707 = vunpack.c.h.b16 %v1745
    %v3708 = vunpack.c.l.b16 %v1746
    %v3709 = vunpack.c.h.b16 %v1746
    %v3710 = vunpack.c.l.b16 %v1747
    %v3711 = vunpack.c.h.b16 %v1747
    %v3712 = vunpack.c.l.b16 %v1748
    %v3713 = vunpack.c.h.b16 %v1748
    %v3714 = vunpack.c.l.b16 %v1749
    %v3715 = vunpack.c.h.b16 %v1749
    %v3716 = vunpack.c.l.b16 %v1750
    %v3717 = vunpack.c.h.b16 %v1750
    %v3718 = vunpack.c.l.b16 %v1751
    %v3719 = vunpack.c.h.b16 %v1751
    %v3720 = vunpack.c.l.b16 %v1752
    %v3721 = vunpack.c.h.b16 %v1752
    %v3722 = vunpack.c.l.b16 %v1753
    %v3723 = vunpack.c.h.b16 %v1753
    %v3724 = vunpack.c.l.b16 %v1754
    %v3725 = vunpack.c.h.b16 %v1754
    %v3726 = vunpack.c.l.b16 %v1755
    %v3727 = vunpack.c.h.b16 %v1755
    %v3728 = vunpack.c.l.b16 %v1756
    %v3729 = vunpack.c.h.b16 %v1756
    %v3730 = vunpack.c.l.b16 %v1757
    %v3731 = vunpack.c.h.b16 %v1757
    %v3732 = vunpack.c.l.b16 %v1758
    %v3733 = vunpack.c.h.b16 %v1758
    %v3734 = vunpack.c.l.b16 %v1759
    %v3735 = vunpack.c.h.b16 %v1759
    %v3736 = vunpack.c.l.b16 %v1760
    %v3737 = vunpack.c.h.b16 %v1760
    %v3738 = vunpack.c.l.b16 %v1761
    %v3739 = vunpack.c.h.b16 %v1761
    %v3740 = vunpack.c.l.b16 %v1762
    %v3741 = vunpack.c.h.b16 %v1762
    %v3742 = vunpack.c.l.b16 %v1763
    %v3743 = vunpack.c.h.b16 %v1763
    %v3744 = vunpack.c.l.b16 %v1764
    %v3745 = vunpack.c.h.b16 %v1764
    %v3746 = vunpack.c.l.b16 %v1765
    %v3747 = vunpack.c.h.b16 %v1765
    %v3748 = vunpack.c.l.b16 %v1766
    %v3749 = vunpack.c.h.b16 %v1766
    %v3750 = vunpack.c.l.b16 %v1767
    %v3751 = vunpack.c.h.b16 %v1767
    %v3752 = vunpack.c.l.b16 %v1768
    %v3753 = vunpack.c.h.b16 %v1768
    %v3754 = vunpack.c.l.b16 %v1769
    %v3755 = vunpack.c.h.b16 %v1769
    %v3756 = vunpack.c.l.b16 %v1770
    %v3757 = vunpack.c.h.b16 %v1770
    %v3758 = vunpack.c.l.b16 %v1771
    %v3759 = vunpack.c.h.b16 %v1771
    %v3760 = vunpack.c.l.b16 %v1772
    %v3761 = vunpack.c.h.b16 %v1772
    %v3762 = vunpack.c.l.b16 %v1773
    %v3763 = vunpack.c.h.b16 %v1773
    %v3764 = vunpack.c.l.b16 %v1774
    %v3765 = vunpack.c.h.b16 %v1774
    %v3766 = vunpack.c.l.b16 %v1775
    %v3767 = vunpack.c.h.b16 %v1775
    %v3768 = vunpack.c.l.b16 %v1776
    %v3769 = vunpack.c.h.b16 %v1776
    %v3770 = vunpack.c.l.b16 %v1777
    %v3771 = vunpack.c.h.b16 %v1777
    %v3772 = vunpack.c.l.b16 %v1778
    %v3773 = vunpack.c.h.b16 %v1778
    %v3774 = vunpack.c.l.b16 %v1779
    %v3775 = vunpack.c.h.b16 %v1779
    %v3776 = vunpack.c.l.b16 %v1780
    %v3777 = vunpack.c.h.b16 %v1780
    %v3778 = vunpack.c.l.b16 %v1781
    %v3779 = vunpack.c.h.b16 %v1781
    %v3780 = vunpack.c.l.b16 %v1782
    %v3781 = vunpack.c.h.b16 %v1782
    %v3782 = vunpack.c.l.b16 %v1783
    %v3783 = vunpack.c.h.b16 %v1783
    %v3784 = vunpack.c.l.b16 %v1784
    %v3785 = vunpack.c.h.b16 %v1784
    %v3786 = vunpack.c.l.b16 %v1785
    %v3787 = vunpack.c.h.b16 %v1785
    %v3788 = vunpack.c.l.b16 %v1786
    %v3789 = vunpack.c.h.b16 %v1786
    %v3790 = vunpack.c.l.b16 %v1787
    %v3791 = vunpack.c.h.b16 %v1787
    %v3792 = vunpack.c.l.b16 %v1788
    %v3793 = vunpack.c.h.b16 %v1788
    %v3794 = vunpack.c.l.b16 %v1789
    %v3795 = vunpack.c.h.b16 %v1789
    %v3796 = vunpack.c.l.b16 %v1790
    %v3797 = vunpack.c.h.b16 %v1790
    %v3798 = vunpack.c.l.b16 %v1791
    %v3799 = vunpack.c.h.b16 %v1791
    %v3800 = vunpack.c.l.b16 %v1792
    %v3801 = vunpack.c.h.b16 %v1792
    %v3802 = vunpack.c.l.b16 %v1793
    %v3803 = vunpack.c.h.b16 %v1793
    %v3804 = vunpack.c.l.b16 %v1794
    %v3805 = vunpack.c.h.b16 %v1794
    %v3806 = vunpack.c.l.b16 %v1795
    %v3807 = vunpack.c.h.b16 %v1795
    %v3808 = vunpack.c.l.b16 %v1796
    %v3809 = vunpack.c.h.b16 %v1796
    %v3810 = vunpack.c.l.b16 %v1797
    %v3811 = vunpack.c.h.b16 %v1797
    %v3812 = vunpack.c.l.b16 %v1798
    %v3813 = vunpack.c.h.b16 %v1798
    %v3814 = vunpack.c.l.b16 %v1799
    %v3815 = vunpack.c.h.b16 %v1799
    %v3816 = vunpack.c.l.b16 %v1800
    %v3817 = vunpack.c.h.b16 %v1800
    %v3818 = vunpack.c.l.b16 %v1801
    %v3819 = vunpack.c.h.b16 %v1801
    %v3820 = vunpack.c.l.b16 %v1802
    %v3821 = vunpack.c.h.b16 %v1802
    %v3822 = vunpack.c.l.b16 %v1803
    %v3823 = vunpack.c.h.b16 %v1803
    %v3824 = vunpack.c.l.b16 %v1804
    %v3825 = vunpack.c.h.b16 %v1804
    %v3826 = vunpack.c.l.b16 %v1805
    %v3827 = vunpack.c.h.b16 %v1805
    %v3828 = vunpack.c.l.b16 %v1806
    %v3829 = vunpack.c.h.b16 %v1806
    %v3830 = vunpack.c.l.b16 %v1807
    %v3831 = vunpack.c.h.b16 %v1807
    %v3832 = vunpack.c.l.b16 %v1808
    %v3833 = vunpack.c.h.b16 %v1808
    %v3834 = vunpack.c.l.b16 %v1809
    %v3835 = vunpack.c.h.b16 %v1809
    %v3836 = vunpack.c.l.b16 %v1810
    %v3837 = vunpack.c.h.b16 %v1810
    %v3838 = vunpack.c.l.b16 %v1811
    %v3839 = vunpack.c.h.b16 %v1811
    %v3840 = vunpack.c.l.b16 %v1812
    %v3841 = vunpack.c.h.b16 %v1812
    %v3842 = vunpack.c.l.b16 %v1813
    %v3843 = vunpack.c.h.b16 %v1813
    %v3844 = vunpack.c.l.b16 %v1814
    %v3845 = vunpack.c.h.b16 %v1814
    %v3846 = vunpack.c.l.b16 %v1815
    %v3847 = vunpack.c.h.b16 %v1815
    %v3848 = vunpack.c.l.b16 %v1816
    %v3849 = vunpack.c.h.b16 %v1816
    %v3850 = vunpack.c.l.b16 %v1817
    %v3851 = vunpack.c.h.b16 %v1817
    %v3852 = vunpack.c.l.b16 %v1818
    %v3853 = vunpack.c.h.b16 %v1818
    %v3854 = vunpack.c.l.b16 %v1819
    %v3855 = vunpack.c.h.b16 %v1819
    %v3856 = vunpack.c.l.b16 %v1820
    %v3857 = vunpack.c.h.b16 %v1820
    %v3858 = vunpack.c.l.b16 %v1821
    %v3859 = vunpack.c.h.b16 %v1821
    %v3860 = vunpack.c.l.b16 %v1822
    %v3861 = vunpack.c.h.b16 %v1822
    %v3862 = vunpack.c.l.b16 %v1823
    %v3863 = vunpack.c.h.b16 %v1823
    %v3864 = vunpack.c.l.b16 %v1824
    %v3865 = vunpack.c.h.b16 %v1824
    %v3866 = vunpack.c.l.b16 %v1825
    %v3867 = vunpack.c.h.b16 %v1825
    %v3868 = vunpack.c.l.b16 %v1826
    %v3869 = vunpack.c.h.b16 %v1826
    %v3870 = vunpack.c.l.b16 %v1827
    %v3871 = vunpack.c.h.b16 %v1827
    %v3872 = vunpack.c.l.b16 %v1828
    %v3873 = vunpack.c.h.b16 %v1828
    %v3874 = vunpack.c.l.b16 %v1829
    %v3875 = vunpack.c.h.b16 %v1829
    %v3876 = vunpack.c.l.b16 %v1830
    %v3877 = vunpack.c.h.b16 %v1830
    %v3878 = vunpack.c.l.b16 %v1831
    %v3879 = vunpack.c.h.b16 %v1831
    %v3880 = vunpack.c.l.b16 %v1832
    %v3881 = vunpack.c.h.b16 %v1832
    %v3882 = vunpack.c.l.b16 %v1833
    %v3883 = vunpack.c.h.b16 %v1833
    %v3884 = vunpack.c.l.b16 %v1834
    %v3885 = vunpack.c.h.b16 %v1834
    %v3886 = vunpack.c.l.b16 %v1835
    %v3887 = vunpack.c.h.b16 %v1835
    %v3888 = vunpack.c.l.b16 %v1836
    %v3889 = vunpack.c.h.b16 %v1836
    %v3890 = vunpack.c.l.b16 %v1837
    %v3891 = vunpack.c.h.b16 %v1837
    %v3892 = vunpack.c.l.b16 %v1838
    %v3893 = vunpack.c.h.b16 %v1838
    %v3894 = vunpack.c.l.b16 %v1839
    %v3895 = vunpack.c.h.b16 %v1839
    %v3896 = vunpack.c.l.b16 %v1840
    %v3897 = vunpack.c.h.b16 %v1840
    %v3898 = vunpack.c.l.b16 %v1841
    %v3899 = vunpack.c.h.b16 %v1841
    %v3900 = vunpack.c.l.b16 %v1842
    %v3901 = vunpack.c.h.b16 %v1842
    %v3902 = vunpack.c.l.b16 %v1843
    %v3903 = vunpack.c.h.b16 %v1843
    %v3904 = vunpack.c.l.b16 %v1844
    %v3905 = vunpack.c.h.b16 %v1844
    %v3906 = vunpack.c.l.b16 %v1845
    %v3907 = vunpack.c.h.b16 %v1845
    %v3908 = vunpack.c.l.b16 %v1846
    %v3909 = vunpack.c.h.b16 %v1846
    %v3910 = vunpack.c.l.b16 %v1847
    %v3911 = vunpack.c.h.b16 %v1847
    %v3912 = vunpack.c.l.b16 %v1848
    %v3913 = vunpack.c.h.b16 %v1848
    %v3914 = vunpack.c.l.b16 %v1849
    %v3915 = vunpack.c.h.b16 %v1849
    %v3916 = vunpack.c.l.b16 %v1850
    %v3917 = vunpack.c.h.b16 %v1850
    %v3918 = vunpack.c.l.b16 %v1851
    %v3919 = vunpack.c.h.b16 %v1851
    %v3920 = vunpack.c.l.b16 %v1852
    %v3921 = vunpack.c.h.b16 %v1852
    %v3922 = vunpack.c.l.b16 %v1853
    %v3923 = vunpack.c.h.b16 %v1853
    %v3924 = vunpack.c.l.b16 %v1854
    %v3925 = vunpack.c.h.b16 %v1854
    %v3926 = vunpack.c.l.b16 %v1855
    %v3927 = vunpack.c.h.b16 %v1855
    %v3928 = vunpack.c.l.b16 %v1856
    %v3929 = vunpack.c.h.b16 %v1856
    %v3930 = vunpack.c.l.b16 %v1857
    %v3931 = vunpack.c.h.b16 %v1857
    %v3932 = vunpack.c.l.b16 %v1858
    %v3933 = vunpack.c.h.b16 %v1858
    %v3934 = vunpack.c.l.b16 %v1859
    %v3935 = vunpack.c.h.b16 %v1859
    %v3936 = vunpack.c.l.b16 %v1860
    %v3937 = vunpack.c.h.b16 %v1860
    %v3938 = vunpack.c.l.b16 %v1861
    %v3939 = vunpack.c.h.b16 %v1861
    %v3940 = vunpack.c.l.b16 %v1862
    %v3941 = vunpack.c.h.b16 %v1862
    %v3942 = vunpack.c.l.b16 %v1863
    %v3943 = vunpack.c.h.b16 %v1863
    %v3944 = vunpack.c.l.b16 %v1864
    %v3945 = vunpack.c.h.b16 %v1864
    %v3946 = vunpack.c.l.b16 %v1865
    %v3947 = vunpack.c.h.b16 %v1865
    %v3948 = vunpack.c.l.b16 %v1866
    %v3949 = vunpack.c.h.b16 %v1866
    %v3950 = vunpack.c.l.b16 %v1867
    %v3951 = vunpack.c.h.b16 %v1867
    %v3952 = vunpack.c.l.b16 %v1868
    %v3953 = vunpack.c.h.b16 %v1868
    %v3954 = vunpack.c.l.b16 %v1869
    %v3955 = vunpack.c.h.b16 %v1869
    %v3956 = vunpack.c.l.b16 %v1870
    %v3957 = vunpack.c.h.b16 %v1870
    %v3958 = vunpack.c.l.b16 %v1871
    %v3959 = vunpack.c.h.b16 %v1871
    %v3960 = vunpack.c.l.b16 %v1872
    %v3961 = vunpack.c.h.b16 %v1872
    %v3962 = vunpack.c.l.b16 %v1873
    %v3963 = vunpack.c.h.b16 %v1873
    %v3964 = vunpack.c.l.b16 %v1874
    %v3965 = vunpack.c.h.b16 %v1874
    %v3966 = vunpack.c.l.b16 %v1875
    %v3967 = vunpack.c.h.b16 %v1875
    %v3968 = vunpack.c.l.b16 %v1876
    %v3969 = vunpack.c.h.b16 %v1876
    %v3970 = vunpack.c.l.b16 %v1877
    %v3971 = vunpack.c.h.b16 %v1877
    %v3972 = vunpack.c.l.b16 %v1878
    %v3973 = vunpack.c.h.b16 %v1878
    %v3974 = vunpack.c.l.b16 %v1879
    %v3975 = vunpack.c.h.b16 %v1879
    %v3976 = vunpack.c.l.b16 %v1880
    %v3977 = vunpack.c.h.b16 %v1880
    %v3978 = vunpack.c.l.b16 %v1881
    %v3979 = vunpack.c.h.b16 %v1881
    %v3980 = vunpack.c.l.b16 %v1882
    %v3981 = vunpack.c.h.b16 %v1882
    %v3982 = vunpack.c.l.b16 %v1883
    %v3983 = vunpack.c.h.b16 %v1883
    %v3984 = vunpack.c.l.b16 %v1884
    %v3985 = vunpack.c.h.b16 %v1884
    %v3986 = vunpack.c.l.b16 %v1885
    %v3987 = vunpack.c.h.b16 %v1885
    %v3988 = vunpack.c.l.b16 %v1886
    %v3989 = vunpack.c.h.b16 %v1886
    %v3990 = vunpack.c.l.b16 %v1887
    %v3991 = vunpack.c.h.b16 %v1887
    %v3992 = vunpack.c.l.b16 %v1888
    %v3993 = vunpack.c.h.b16 %v1888
    %v3994 = vunpack.c.l.b16 %v1889
    %v3995 = vunpack.c.h.b16 %v1889
    %v3996 = vunpack.c.l.b16 %v1890
    %v3997 = vunpack.c.h.b16 %v1890
    %v3998 = vunpack.c.l.b16 %v1891
    %v3999 = vunpack.c.h.b16 %v1891
    %v4000 = vunpack.c.l.b16 %v1892
    %v4001 = vunpack.c.h.b16 %v1892
    %v4002 = vunpack.c.l.b16 %v1893
    %v4003 = vunpack.c.h.b16 %v1893
    %v4004 = vunpack.c.l.b16 %v1894
    %v4005 = vunpack.c.h.b16 %v1894
    %v4006 = vunpack.c.l.b16 %v1895
    %v4007 = vunpack.c.h.b16 %v1895
    %v4008 = vunpack.c.l.b16 %v1896
    %v4009 = vunpack.c.h.b16 %v1896
    %v4010 = vunpack.c.l.b16 %v1897
    %v4011 = vunpack.c.h.b16 %v1897
    %v4012 = vunpack.c.l.b16 %v1898
    %v4013 = vunpack.c.h.b16 %v1898
    %v4014 = vunpack.c.l.b16 %v1899
    %v4015 = vunpack.c.h.b16 %v1899
    %v4016 = vunpack.c.l.b16 %v1900
    %v4017 = vunpack.c.h.b16 %v1900
    %v4018 = vunpack.c.l.b16 %v1901
    %v4019 = vunpack.c.h.b16 %v1901
    %v4020 = vunpack.c.l.b16 %v1902
    %v4021 = vunpack.c.h.b16 %v1902
    %v4022 = vunpack.c.l.b16 %v1903
    %v4023 = vunpack.c.h.b16 %v1903
    %v4024 = vunpack.c.l.b16 %v1904
    %v4025 = vunpack.c.h.b16 %v1904
    %v4026 = vunpack.c.l.b16 %v1905
    %v4027 = vunpack.c.h.b16 %v1905
    %v4028 = vunpack.c.l.b16 %v1906
    %v4029 = vunpack.c.h.b16 %v1906
    %v4030 = vunpack.c.l.b16 %v1907
    %v4031 = vunpack.c.h.b16 %v1907
    %v4032 = vunpack.c.l.b16 %v1908
    %v4033 = vunpack.c.h.b16 %v1908
    %v4034 = vunpack.c.l.b16 %v1909
    %v4035 = vunpack.c.h.b16 %v1909
    %v4036 = vunpack.c.l.b16 %v1910
    %v4037 = vunpack.c.h.b16 %v1910
    %v4038 = vunpack.c.l.b16 %v1911
    %v4039 = vunpack.c.h.b16 %v1911
    %v4040 = vunpack.c.l.b16 %v1912
    %v4041 = vunpack.c.h.b16 %v1912
    %v4042 = vunpack.c.l.b16 %v1913
    %v4043 = vunpack.c.h.b16 %v1913
    %v4044 = vunpack.c.l.b16 %v1914
    %v4045 = vunpack.c.h.b16 %v1914
    %v4046 = vunpack.c.l.b16 %v1915
    %v4047 = vunpack.c.h.b16 %v1915
    %v4048 = vunpack.c.l.b16 %v1916
    %v4049 = vunpack.c.h.b16 %v1916
    %v4050 = vunpack.c.l.b16 %v1917
    %v4051 = vunpack.c.h.b16 %v1917
    %v4052 = vunpack.c.l.b16 %v1918
    %v4053 = vunpack.c.h.b16 %v1918
    %v4054 = vunpack.c.l.b16 %v1919
    %v4055 = vunpack.c.h.b16 %v1919
    %v4056 = vunpack.c.l.b16 %v1920
    %v4057 = vunpack.c.h.b16 %v1920
    %v4058 = vunpack.c.l.b16 %v1921
    %v4059 = vunpack.c.h.b16 %v1921
    %v4060 = vunpack.c.l.b16 %v1922
    %v4061 = vunpack.c.h.b16 %v1922
    %v4062 = vunpack.c.l.b16 %v1923
    %v4063 = vunpack.c.h.b16 %v1923
    %v4064 = vunpack.c.l.b16 %v1924
    %v4065 = vunpack.c.h.b16 %v1924
    %v4066 = vunpack.c.l.b16 %v1925
    %v4067 = vunpack.c.h.b16 %v1925
    %v4068 = vunpack.c.l.b16 %v1926
    %v4069 = vunpack.c.h.b16 %v1926
    %v4070 = vunpack.c.l.b16 %v1927
    %v4071 = vunpack.c.h.b16 %v1927
    %v4072 = vunpack.c.l.b16 %v1928
    %v4073 = vunpack.c.h.b16 %v1928
    %v4074 = vunpack.c.l.b16 %v1929
    %v4075 = vunpack.c.h.b16 %v1929
    %v4076 = vunpack.c.l.b16 %v1930
    %v4077 = vunpack.c.h.b16 %v1930
    %v4078 = vunpack.c.l.b16 %v1931
    %v4079 = vunpack.c.h.b16 %v1931
    %v4080 = vunpack.c.l.b16 %v1932
    %v4081 = vunpack.c.h.b16 %v1932
    %v4082 = vunpack.c.l.b16 %v1933
    %v4083 = vunpack.c.h.b16 %v1933
    %v4084 = vunpack.c.l.b16 %v1934
    %v4085 = vunpack.c.h.b16 %v1934
    %v4086 = vunpack.c.l.b16 %v1935
    %v4087 = vunpack.c.h.b16 %v1935
    %v4088 = vunpack.c.l.b16 %v1936
    %v4089 = vunpack.c.h.b16 %v1936
    %v4090 = vunpack.c.l.b16 %v1937
    %v4091 = vunpack.c.h.b16 %v1937
    %v4092 = vunpack.c.l.b16 %v1938
    %v4093 = vunpack.c.h.b16 %v1938
    %v4094 = vunpack.c.l.b16 %v1939
    %v4095 = vunpack.c.h.b16 %v1939
    %v4096 = vunpack.c.l.b16 %v1940
    %v4097 = vunpack.c.h.b16 %v1940
    %v4098 = vunpack.c.l.b16 %v1941
    %v4099 = vunpack.c.h.b16 %v1941
    %v4100 = vunpack.c.l.b16 %v1942
    %v4101 = vunpack.c.h.b16 %v1942
    %v4102 = vunpack.c.l.b16 %v1943
    %v4103 = vunpack.c.h.b16 %v1943
    %v4104 = vunpack.c.l.b16 %v1944
    %v4105 = vunpack.c.h.b16 %v1944
    %v4106 = vunpack.c.l.b16 %v1945
    %v4107 = vunpack.c.h.b16 %v1945
    %v4108 = vunpack.c.l.b16 %v1946
    %v4109 = vunpack.c.h.b16 %v1946
    %v4110 = vunpack.c.l.b16 %v1947
    %v4111 = vunpack.c.h.b16 %v1947
    %v4112 = vunpack.c.l.b16 %v1948
    %v4113 = vunpack.c.h.b16 %v1948
    %v4114 = vunpack.c.l.b16 %v1949
    %v4115 = vunpack.c.h.b16 %v1949
    %v4116 = vunpack.c.l.b16 %v1950
    %v4117 = vunpack.c.h.b16 %v1950
    %v4118 = vunpack.c.l.b16 %v1951
    %v4119 = vunpack.c.h.b16 %v1951
    %v4120 = vunpack.c.l.b16 %v1952
    %v4121 = vunpack.c.h.b16 %v1952
    %v4122 = vunpack.c.l.b16 %v1953
    %v4123 = vunpack.c.h.b16 %v1953
    %v4124 = vunpack.c.l.b16 %v1954
    %v4125 = vunpack.c.h.b16 %v1954
    %v4126 = vunpack.c.l.b16 %v1955
    %v4127 = vunpack.c.h.b16 %v1955
    %v4128 = vunpack.c.l.b16 %v1956
    %v4129 = vunpack.c.h.b16 %v1956
    %v4130 = vunpack.c.l.b16 %v1957
    %v4131 = vunpack.c.h.b16 %v1957
    %v4132 = vunpack.c.l.b16 %v1958
    %v4133 = vunpack.c.h.b16 %v1958
    %v4134 = vunpack.c.l.b16 %v1959
    %v4135 = vunpack.c.h.b16 %v1959
    %v4136 = vunpack.c.l.b16 %v1960
    %v4137 = vunpack.c.h.b16 %v1960
    %v4138 = vunpack.c.l.b16 %v1961
    %v4139 = vunpack.c.h.b16 %v1961
    %v4140 = vunpack.c.l.b16 %v1962
    %v4141 = vunpack.c.h.b16 %v1962
    %v4142 = vunpack.c.l.b16 %v1963
    %v4143 = vunpack.c.h.b16 %v1963
    %v4144 = vunpack.c.l.b16 %v1964
    %v4145 = vunpack.c.h.b16 %v1964
    %v4146 = vunpack.c.l.b16 %v1965
    %v4147 = vunpack.c.h.b16 %v1965
    %v4148 = vunpack.c.l.b16 %v1966
    %v4149 = vunpack.c.h.b16 %v1966
    %v4150 = vunpack.c.l.b16 %v1967
    %v4151 = vunpack.c.h.b16 %v1967
    %v4152 = vunpack.c.l.b16 %v1968
    %v4153 = vunpack.c.h.b16 %v1968
    %v4154 = vunpack.c.l.b16 %v1969
    %v4155 = vunpack.c.h.b16 %v1969
    %v4156 = vunpack.c.l.b16 %v1970
    %v4157 = vunpack.c.h.b16 %v1970
    %v4158 = vunpack.c.l.b16 %v1971
    %v4159 = vunpack.c.h.b16 %v1971
    %v4160 = vunpack.c.l.b16 %v1972
    %v4161 = vunpack.c.h.b16 %v1972
    %v4162 = vunpack.c.l.b16 %v1973
    %v4163 = vunpack.c.h.b16 %v1973
    %v4164 = vunpack.c.l.b16 %v1974
    %v4165 = vunpack.c.h.b16 %v1974
    %v4166 = vunpack.c.l.b16 %v1975
    %v4167 = vunpack.c.h.b16 %v1975
    %v4168 = vunpack.c.l.b16 %v1976
    %v4169 = vunpack.c.h.b16 %v1976
    %v4170 = vunpack.c.l.b16 %v1977
    %v4171 = vunpack.c.h.b16 %v1977
    %v4172 = vunpack.c.l.b16 %v1978
    %v4173 = vunpack.c.h.b16 %v1978
    %v4174 = vunpack.c.l.b16 %v1979
    %v4175 = vunpack.c.h.b16 %v1979
    %v4176 = vunpack.c.l.b16 %v1980
    %v4177 = vunpack.c.h.b16 %v1980
    %v4178 = vunpack.c.l.b16 %v1981
    %v4179 = vunpack.c.h.b16 %v1981
    %v4180 = vunpack.c.l.b16 %v1982
    %v4181 = vunpack.c.h.b16 %v1982
    %v4182 = vunpack.c.l.b16 %v1983
    %v4183 = vunpack.c.h.b16 %v1983
    %v4184 = vunpack.c.l.b16 %v1984
    %v4185 = vunpack.c.h.b16 %v1984
    %v4186 = vunpack.c.l.b16 %v1985
    %v4187 = vunpack.c.h.b16 %v1985
    %v4188 = vunpack.c.l.b16 %v1986
    %v4189 = vunpack.c.h.b16 %v1986
    %v4190 = vunpack.c.l.b16 %v1987
    %v4191 = vunpack.c.h.b16 %v1987
    %v4192 = vunpack.c.l.b16 %v1988
    %v4193 = vunpack.c.h.b16 %v1988
    %v4194 = vunpack.c.l.b16 %v1989
    %v4195 = vunpack.c.h.b16 %v1989
    %v4196 = vunpack.c.l.b16 %v1990
    %v4197 = vunpack.c.h.b16 %v1990
    %v4198 = vunpack.c.l.b16 %v1991
    %v4199 = vunpack.c.h.b16 %v1991
    %v4200 = vunpack.c.l.b16 %v1992
    %v4201 = vunpack.c.h.b16 %v1992
    %v4202 = vunpack.c.l.b16 %v1993
    %v4203 = vunpack.c.h.b16 %v1993
    %v4204 = vunpack.c.l.b16 %v1994
    %v4205 = vunpack.c.h.b16 %v1994
    %v4206 = vunpack.c.l.b16 %v1995
    %v4207 = vunpack.c.h.b16 %v1995
    %v4208 = vunpack.c.l.b16 %v1996
    %v4209 = vunpack.c.h.b16 %v1996
    %v4210 = vunpack.c.l.b16 %v1997
    %v4211 = vunpack.c.h.b16 %v1997
    %v4212 = vunpack.c.l.b16 %v1998
    %v4213 = vunpack.c.h.b16 %v1998
    %v4214 = vunpack.c.l.b16 %v1999
    %v4215 = vunpack.c.h.b16 %v1999
    %v4216 = vunpack.c.l.b16 %v2000
    %v4217 = vunpack.c.h.b16 %v2000
    %v4218 = vunpack.c.l.b16 %v2001
    %v4219 = vunpack.c.h.b16 %v2001
    %v4220 = vunpack.c.l.b16 %v2002
    %v4221 = vunpack.c.h.b16 %v2002
    %v4222 = vunpack.c.l.b16 %v2003
    %v4223 = vunpack.c.h.b16 %v2003
    %v4224 = vunpack.c.l.b16 %v2004
    %v4225 = vunpack.c.h.b16 %v2004
    %v4226 = vunpack.c.l.b16 %v2005
    %v4227 = vunpack.c.h.b16 %v2005
    %v4228 = vunpack.c.l.b16 %v2006
    %v4229 = vunpack.c.h.b16 %v2006
    %v4230 = vunpack.c.l.b16 %v2007
    %v4231 = vunpack.c.h.b16 %v2007
    %v4232 = vunpack.c.l.b16 %v2008
    %v4233 = vunpack.c.h.b16 %v2008
    %v4234 = vunpack.c.l.b16 %v2009
    %v4235 = vunpack.c.h.b16 %v2009
    %v4236 = vunpack.c.l.b16 %v2010
    %v4237 = vunpack.c.h.b16 %v2010
    %v4238 = vunpack.c.l.b16 %v2011
    %v4239 = vunpack.c.h.b16 %v2011
    %v4240 = vunpack.c.l.b16 %v2012
    %v4241 = vunpack.c.h.b16 %v2012
    %v4242 = vunpack.c.l.b16 %v2013
    %v4243 = vunpack.c.h.b16 %v2013
    %v4244 = vunpack.c.l.b16 %v2014
    %v4245 = vunpack.c.h.b16 %v2014
    %v4246 = vunpack.c.l.b16 %v2015
    %v4247 = vunpack.c.h.b16 %v2015
    %v4248 = vunpack.c.l.b16 %v2016
    %v4249 = vunpack.c.h.b16 %v2016
    %v4250 = vunpack.c.l.b16 %v2017
    %v4251 = vunpack.c.h.b16 %v2017
    %v4252 = vunpack.c.l.b16 %v2018
    %v4253 = vunpack.c.h.b16 %v2018
    %v4254 = vunpack.c.l.b16 %v2019
    %v4255 = vunpack.c.h.b16 %v2019
    %v4256 = vunpack.c.l.b16 %v2020
    %v4257 = vunpack.c.h.b16 %v2020
    %v4258 = vunpack.c.l.b16 %v2021
    %v4259 = vunpack.c.h.b16 %v2021
    %v4260 = vunpack.c.l.b16 %v2022
    %v4261 = vunpack.c.h.b16 %v2022
    %v4262 = vunpack.c.l.b16 %v2023
    %v4263 = vunpack.c.h.b16 %v2023
    %v4264 = vunpack.c.l.b16 %v2024
    %v4265 = vunpack.c.h.b16 %v2024
    %v4266 = vunpack.c.l.b16 %v2025
    %v4267 = vunpack.c.h.b16 %v2025
    %v4268 = vunpack.c.l.b16 %v2026
    %v4269 = vunpack.c.h.b16 %v2026
    %v4270 = vunpack.c.l.b16 %v2027
    %v4271 = vunpack.c.h.b16 %v2027
    %v4272 = vunpack.c.l.b16 %v2028
    %v4273 = vunpack.c.h.b16 %v2028
    %v4274 = vunpack.c.l.b16 %v2029
    %v4275 = vunpack.c.h.b16 %v2029
    %v4276 = vunpack.c.l.b16 %v2030
    %v4277 = vunpack.c.h.b16 %v2030
    %v4278 = vunpack.c.l.b16 %v2031
    %v4279 = vunpack.c.h.b16 %v2031
    %v4280 = vunpack.c.l.b16 %v2032
    %v4281 = vunpack.c.h.b16 %v2032
    %v4282 = vunpack.c.l.b16 %v2033
    %v4283 = vunpack.c.h.b16 %v2033
    %v4284 = vunpack.c.l.b16 %v2034
    %v4285 = vunpack.c.h.b16 %v2034
    %v4286 = vunpack.c.l.b16 %v2035
    %v4287 = vunpack.c.h.b16 %v2035
    %v4288 = vunpack.c.l.b16 %v2036
    %v4289 = vunpack.c.h.b16 %v2036
    %v4290 = vunpack.c.l.b16 %v2037
    %v4291 = vunpack.c.h.b16 %v2037
    %v4292 = vunpack.c.l.b16 %v2038
    %v4293 = vunpack.c.h.b16 %v2038
    %v4294 = vunpack.c.l.b16 %v2039
    %v4295 = vunpack.c.h.b16 %v2039
    %v4296 = vunpack.c.l.b16 %v2040
    %v4297 = vunpack.c.h.b16 %v2040
    %v4298 = vunpack.c.l.b16 %v2041
    %v4299 = vunpack.c.h.b16 %v2041
    %v4300 = vunpack.c.l.b16 %v2042
    %v4301 = vunpack.c.h.b16 %v2042
    %v4302 = vunpack.c.l.b16 %v2043
    %v4303 = vunpack.c.h.b16 %v2043
    %v4304 = vunpack.c.l.b16 %v2044
    %v4305 = vunpack.c.h.b16 %v2044
    %v4306 = vunpack.c.l.b16 %v2045
    %v4307 = vunpack.c.h.b16 %v2045
    %v4308 = vunpack.c.l.b16 %v2046
    %v4309 = vunpack.c.h.b16 %v2046
    %v4310 = vunpack.c.l.b16 %v2047
    %v4311 = vunpack.c.h.b16 %v2047
    %v4312 = vunpack.c.l.b16 %v2048
    %v4313 = vunpack.c.h.b16 %v2048
    %v4314 = vunpack.c.l.b16 %v2049
    %v4315 = vunpack.c.h.b16 %v2049
    %v4316 = vunpack.c.l.b16 %v2050
    %v4317 = vunpack.c.h.b16 %v2050
    %v4318 = vunpack.c.l.b16 %v2051
    %v4319 = vunpack.c.h.b16 %v2051
    %v4320 = vunpack.c.l.b16 %v2052
    %v4321 = vunpack.c.h.b16 %v2052
    %v4322 = vunpack.c.l.b16 %v2053
    %v4323 = vunpack.c.h.b16 %v2053
    %v4324 = vunpack.c.l.b16 %v2054
    %v4325 = vunpack.c.h.b16 %v2054
    %v4326 = vunpack.c.l.b16 %v2055
    %v4327 = vunpack.c.h.b16 %v2055
    %v4328 = vunpack.c.l.b16 %v2056
    %v4329 = vunpack.c.h.b16 %v2056
    %v4330 = vunpack.c.l.b16 %v2057
    %v4331 = vunpack.c.h.b16 %v2057
    %v4332 = vunpack.c.l.b16 %v2058
    %v4333 = vunpack.c.h.b16 %v2058
    %v4334 = vunpack.c.l.b16 %v2059
    %v4335 = vunpack.c.h.b16 %v2059
    %v4336 = vunpack.c.l.b16 %v2060
    %v4337 = vunpack.c.h.b16 %v2060
    %v4338 = vunpack.c.l.b16 %v2061
    %v4339 = vunpack.c.h.b16 %v2061
    %v4340 = vunpack.c.l.b16 %v2062
    %v4341 = vunpack.c.h.b16 %v2062
    %v4342 = vunpack.c.l.b16 %v2063
    %v4343 = vunpack.c.h.b16 %v2063
    %v4344 = vunpack.c.l.b16 %v2064
    %v4345 = vunpack.c.h.b16 %v2064
    %v4346 = vunpack.c.l.b16 %v2065
    %v4347 = vunpack.c.h.b16 %v2065
    %v4348 = vunpack.c.l.b16 %v2066
    %v4349 = vunpack.c.h.b16 %v2066
    %v4350 = vunpack.c.l.b16 %v2067
    %v4351 = vunpack.c.h.b16 %v2067
    %v4352 = vunpack.c.l.b16 %v2068
    %v4353 = vunpack.c.h.b16 %v2068
    %v4354 = vunpack.c.l.b16 %v2069
    %v4355 = vunpack.c.h.b16 %v2069
    %v4356 = vunpack.c.l.b16 %v2070
    %v4357 = vunpack.c.h.b16 %v2070
    %v4358 = vunpack.c.l.b16 %v2071
    %v4359 = vunpack.c.h.b16 %v2071
    %v4360 = vunpack.c.l.b16 %v2072
    %v4361 = vunpack.c.h.b16 %v2072
    %v4362 = vunpack.c.l.b16 %v2073
    %v4363 = vunpack.c.h.b16 %v2073
    %v4364 = vunpack.c.l.b16 %v2074
    %v4365 = vunpack.c.h.b16 %v2074
    %v4366 = vunpack.c.l.b16 %v2075
    %v4367 = vunpack.c.h.b16 %v2075
    %v4368 = vunpack.c.l.b16 %v2076
    %v4369 = vunpack.c.h.b16 %v2076
    %v4370 = vunpack.c.l.b16 %v2077
    %v4371 = vunpack.c.h.b16 %v2077
    %v4372 = vunpack.c.l.b16 %v2078
    %v4373 = vunpack.c.h.b16 %v2078
    %v4374 = vunpack.c.l.b16 %v2079
    %v4375 = vunpack.c.h.b16 %v2079
    %v4376 = vunpack.c.l.b16 %v2080
    %v4377 = vunpack.c.h.b16 %v2080
    %v4378 = vunpack.c.l.b16 %v2081
    %v4379 = vunpack.c.h.b16 %v2081
    %v4380 = vunpack.c.l.b16 %v2082
    %v4381 = vunpack.c.h.b16 %v2082
    %v4382 = vunpack.c.l.b16 %v2083
    %v4383 = vunpack.c.h.b16 %v2083
    %v4384 = vunpack.c.l.b16 %v2084
    %v4385 = vunpack.c.h.b16 %v2084
    %v4386 = vunpack.c.l.b16 %v2085
    %v4387 = vunpack.c.h.b16 %v2085
    %v4388 = vunpack.c.l.b16 %v2086
    %v4389 = vunpack.c.h.b16 %v2086
    %v4390 = vunpack.c.l.b16 %v2087
    %v4391 = vunpack.c.h.b16 %v2087
    %v4392 = vpack.c.b16 %v2864, %v2856
    %v4393 = vpack.c.b16 %v2865, %v2857
    %v4394 = vpack.c.b16 %v2866, %v2858
    %v4395 = vpack.c.b16 %v2867, %v2859
    %v4396 = vpack.c.b16 %v2868, %v2860
    %v4397 = vpack.c.b16 %v2869, %v2861
    %v4398 = vpack.c.b16 %v2870, %v2862
    %v4399 = vpack.c.b16 %v2871, %v2863
    %v4400 = vpack.c.b16 %v2880, %v2872
    %v4401 = vpack.c.b16 %v2881, %v2873
    %v4402 = vpack.c.b16 %v2882, %v2874
    %v4403 = vpack.c.b16 %v2883, %v2875
    %v4404 = vpack.c.b16 %v2884, %v2876
    %v4405 = vpack.c.b16 %v2885, %v2877
    %v4406 = vpack.c.b16 %v2886, %v2878
    %v4407 = vpack.c.b16 %v2887, %v2879
    %v4408 = vpack.c.b16 %v2896, %v2888
    %v4409 = vpack.c.b16 %v2897, %v2889
    %v4410 = vpack.c.b16 %v2898, %v2890
    %v4411 = vpack.c.b16 %v2899, %v2891
    %v4412 = vpack.c.b16 %v2900, %v2892
    %v4413 = vpack.c.b16 %v2901, %v2893
    %v4414 = vpack.c.b16 %v2902, %v2894
    %v4415 = vpack.c.b16 %v2903, %v2895
    %v4416 = vpack.c.b16 %v2912, %v2904
    %v4417 = vpack.c.b16 %v2913, %v2905
    %v4418 = vpack.c.b16 %v2914, %v2906
    %v4419 = vpack.c.b16 %v2915, %v2907
    %v4420 = vpack.c.b16 %v2916, %v2908
    %v4421 = vpack.c.b16 %v2917, %v2909
    %v4422 = vpack.c.b16 %v2918, %v2910
    %v4423 = vpack.c.b16 %v2919, %v2911
    %v4424 = vpack.c.b16 %v2928, %v2920
    %v4425 = vpack.c.b16 %v2929, %v2921
    %v4426 = vpack.c.b16 %v2930, %v2922
    %v4427 = vpack.c.b16 %v2931, %v2923
    %v4428 = vpack.c.b16 %v2932, %v2924
    %v4429 = vpack.c.b16 %v2933, %v2925
    %v4430 = vpack.c.b16 %v2934, %v2926
    %v4431 = vpack.c.b16 %v2935, %v2927
    %v4432 = vpack.c.b16 %v2944, %v2936
    %v4433 = vpack.c.b16 %v2945, %v2937
    %v4434 = vpack.c.b16 %v2946, %v2938
    %v4435 = vpack.c.b16 %v2947, %v2939
    %v4436 = vpack.c.b16 %v2948, %v2940
    %v4437 = vpack.c.b16 %v2949, %v2941
    %v4438 = vpack.c.b16 %v2950, %v2942
    %v4439 = vpack.c.b16 %v2951, %v2943
    %v4440 = vpack.c.b16 %v2960, %v2952
    %v4441 = vpack.c.b16 %v2961, %v2953
    %v4442 = vpack.c.b16 %v2962, %v2954
    %v4443 = vpack.c.b16 %v2963, %v2955
    %v4444 = vpack.c.b16 %v2964, %v2956
    %v4445 = vpack.c.b16 %v2965, %v2957
    %v4446 = vpack.c.b16 %v2966, %v2958
    %v4447 = vpack.c.b16 %v2967, %v2959
    %v4448 = vpack.c.b16 %v2976, %v2968
    %v4449 = vpack.c.b16 %v2977, %v2969
    %v4450 = vpack.c.b16 %v2978, %v2970
    %v4451 = vpack.c.b16 %v2979, %v2971
    %v4452 = vpack.c.b16 %v2980, %v2972
    %v4453 = vpack.c.b16 %v2981, %v2973
    %v4454 = vpack.c.b16 %v2982, %v2974
    %v4455 = vpack.c.b16 %v2983, %v2975
    %v4456 = vpack.c.b16 %v2992, %v2984
    %v4457 = vpack.c.b16 %v2993, %v2985
    %v4458 = vpack.c.b16 %v2994, %v2986
    %v4459 = vpack.c.b16 %v2995, %v2987
    %v4460 = vpack.c.b16 %v2996, %v2988
    %v4461 = vpack.c.b16 %v2997, %v2989
    %v4462 = vpack.c.b16 %v2998, %v2990
    %v4463 = vpack.c.b16 %v2999, %v2991
    %v4464 = vpack.c.b16 %v3008, %v3000
    %v4465 = vpack.c.b16 %v3009, %v3001
    %v4466 = vpack.c.b16 %v3010, %v3002
    %v4467 = vpack.c.b16 %v3011, %v3003
    %v4468 = vpack.c.b16 %v3012, %v3004
    %v4469 = vpack.c.b16 %v3013, %v3005
    %v4470 = vpack.c.b16 %v3014, %v3006
    %v4471 = vpack.c.b16 %v3015, %v3007
    %v4472 = vpack.c.b16 %v3024, %v3016
    %v4473 = vpack.c.b16 %v3025, %v3017
    %v4474 = vpack.c.b16 %v3026, %v3018
    %v4475 = vpack.c.b16 %v3027, %v3019
    %v4476 = vpack.c.b16 %v3028, %v3020
    %v4477 = vpack.c.b16 %v3029, %v3021
    %v4478 = vpack.c.b16 %v3030, %v3022
    %v4479 = vpack.c.b16 %v3031, %v3023
    %v4480 = vpack.c.b16 %v3040, %v3032
    %v4481 = vpack.c.b16 %v3041, %v3033
    %v4482 = vpack.c.b16 %v3042, %v3034
    %v4483 = vpack.c.b16 %v3043, %v3035
    %v4484 = vpack.c.b16 %v3044, %v3036
    %v4485 = vpack.c.b16 %v3045, %v3037
    %v4486 = vpack.c.b16 %v3046, %v3038
    %v4487 = vpack.c.b16 %v3047, %v3039
    %v4488 = vpack.c.b16 %v3056, %v3048
    %v4489 = vpack.c.b16 %v3057, %v3049
    %v4490 = vpack.c.b16 %v3058, %v3050
    %v4491 = vpack.c.b16 %v3059, %v3051
    %v4492 = vpack.c.b16 %v3060, %v3052
    %v4493 = vpack.c.b16 %v3061, %v3053
    %v4494 = vpack.c.b16 %v3062, %v3054
    %v4495 = vpack.c.b16 %v3063, %v3055
    %v4496 = vpack.c.b16 %v3072, %v3064
    %v4497 = vpack.c.b16 %v3073, %v3065
    %v4498 = vpack.c.b16 %v3074, %v3066
    %v4499 = vpack.c.b16 %v3075, %v3067
    %v4500 = vpack.c.b16 %v3076, %v3068
    %v4501 = vpack.c.b16 %v3077, %v3069
    %v4502 = vpack.c.b16 %v3078, %v3070
    %v4503 = vpack.c.b16 %v3079, %v3071
    %v4504 = vpack.c.b16 %v3088, %v3080
    %v4505 = vpack.c.b16 %v3089, %v3081
    %v4506 = vpack.c.b16 %v3090, %v3082
    %v4507 = vpack.c.b16 %v3091, %v3083
    %v4508 = vpack.c.b16 %v3092, %v3084
    %v4509 = vpack.c.b16 %v3093, %v3085
    %v4510 = vpack.c.b16 %v3094, %v3086
    %v4511 = vpack.c.b16 %v3095, %v3087
    %v4512 = vpack.c.b16 %v3104, %v3096
    %v4513 = vpack.c.b16 %v3105, %v3097
    %v4514 = vpack.c.b16 %v3106, %v3098
    %v4515 = vpack.c.b16 %v3107, %v3099
    %v4516 = vpack.c.b16 %v3108, %v3100
    %v4517 = vpack.c.b16 %v3109, %v3101
    %v4518 = vpack.c.b16 %v3110, %v3102
    %v4519 = vpack.c.b16 %v3111, %v3103
    %v4520 = vpack.c.b16 %v3120, %v3112
    %v4521 = vpack.c.b16 %v3121, %v3113
    %v4522 = vpack.c.b16 %v3122, %v3114
    %v4523 = vpack.c.b16 %v3123, %v3115
    %v4524 = vpack.c.b16 %v3124, %v3116
    %v4525 = vpack.c.b16 %v3125, %v3117
    %v4526 = vpack.c.b16 %v3126, %v3118
    %v4527 = vpack.c.b16 %v3127, %v3119
    %v4528 = vpack.c.b16 %v3136, %v3128
    %v4529 = vpack.c.b16 %v3137, %v3129
    %v4530 = vpack.c.b16 %v3138, %v3130
    %v4531 = vpack.c.b16 %v3139, %v3131
    %v4532 = vpack.c.b16 %v3140, %v3132
    %v4533 = vpack.c.b16 %v3141, %v3133
    %v4534 = vpack.c.b16 %v3142, %v3134
    %v4535 = vpack.c.b16 %v3143, %v3135
    %v4536 = vpack.c.b16 %v3152, %v3144
    %v4537 = vpack.c.b16 %v3153, %v3145
    %v4538 = vpack.c.b16 %v3154, %v3146
    %v4539 = vpack.c.b16 %v3155, %v3147
    %v4540 = vpack.c.b16 %v3156, %v3148
    %v4541 = vpack.c.b16 %v3157, %v3149
    %v4542 = vpack.c.b16 %v3158, %v3150
    %v4543 = vpack.c.b16 %v3159, %v3151
    %v4544 = vpack.c.b16 %v3168, %v3160
    %v4545 = vpack.c.b16 %v3169, %v3161
    %v4546 = vpack.c.b16 %v3170, %v3162
    %v4547 = vpack.c.b16 %v3171, %v3163
    %v4548 = vpack.c.b16 %v3172, %v3164
    %v4549 = vpack.c.b16 %v3173, %v3165
    %v4550 = vpack.c.b16 %v3174, %v3166
    %v4551 = vpack.c.b16 %v3175, %v3167
    %v4552 = vpack.c.b16 %v3184, %v3176
    %v4553 = vpack.c.b16 %v3185, %v3177
    %v4554 = vpack.c.b16 %v3186, %v3178
    %v4555 = vpack.c.b16 %v3187, %v3179
    %v4556 = vpack.c.b16 %v3188, %v3180
    %v4557 = vpack.c.b16 %v3189, %v3181
    %v4558 = vpack.c.b16 %v3190, %v3182
    %v4559 = vpack.c.b16 %v3191, %v3183
    %v4560 = vpack.c.b16 %v3200, %v3192
    %v4561 = vpack.c.b16 %v3201, %v3193
    %v4562 = vpack.c.b16 %v3202, %v3194
    %v4563 = vpack.c.b16 %v3203, %v3195
    %v4564 = vpack.c.b16 %v3204, %v3196
    %v4565 = vpack.c.b16 %v3205, %v3197
    %v4566 = vpack.c.b16 %v3206, %v3198
    %v4567 = vpack.c.b16 %v3207, %v3199
    %v4568 = vpack.c.b16 %v3216, %v3208
    %v4569 = vpack.c.b16 %v3217, %v3209
    %v4570 = vpack.c.b16 %v3218, %v3210
    %v4571 = vpack.c.b16 %v3219, %v3211
    %v4572 = vpack.c.b16 %v3220, %v3212
    %v4573 = vpack.c.b16 %v3221, %v3213
    %v4574 = vpack.c.b16 %v3222, %v3214
    %v4575 = vpack.c.b16 %v3223, %v3215
    %v4576 = vpack.c.b16 %v3232, %v3224
    %v4577 = vpack.c.b16 %v3233, %v3225
    %v4578 = vpack.c.b16 %v3234, %v3226
    %v4579 = vpack.c.b16 %v3235, %v3227
    %v4580 = vpack.c.b16 %v3236, %v3228
    %v4581 = vpack.c.b16 %v3237, %v3229
    %v4582 = vpack.c.b16 %v3238, %v3230
    %v4583 = vpack.c.b16 %v3239, %v3231
    %v4584 = vpack.c.b16 %v3248, %v3240
    %v4585 = vpack.c.b16 %v3249, %v3241
    %v4586 = vpack.c.b16 %v3250, %v3242
    %v4587 = vpack.c.b16 %v3251, %v3243
    %v4588 = vpack.c.b16 %v3252, %v3244
    %v4589 = vpack.c.b16 %v3253, %v3245
    %v4590 = vpack.c.b16 %v3254, %v3246
    %v4591 = vpack.c.b16 %v3255, %v3247
    %v4592 = vpack.c.b16 %v3264, %v3256
    %v4593 = vpack.c.b16 %v3265, %v3257
    %v4594 = vpack.c.b16 %v3266, %v3258
    %v4595 = vpack.c.b16 %v3267, %v3259
    %v4596 = vpack.c.b16 %v3268, %v3260
    %v4597 = vpack.c.b16 %v3269, %v3261
    %v4598 = vpack.c.b16 %v3270, %v3262
    %v4599 = vpack.c.b16 %v3271, %v3263
    %v4600 = vpack.c.b16 %v3280, %v3272
    %v4601 = vpack.c.b16 %v3281, %v3273
    %v4602 = vpack.c.b16 %v3282, %v3274
    %v4603 = vpack.c.b16 %v3283, %v3275
    %v4604 = vpack.c.b16 %v3284, %v3276
    %v4605 = vpack.c.b16 %v3285, %v3277
    %v4606 = vpack.c.b16 %v3286, %v3278
    %v4607 = vpack.c.b16 %v3287, %v3279
    %v4608 = vpack.c.b16 %v3296, %v3288
    %v4609 = vpack.c.b16 %v3297, %v3289
    %v4610 = vpack.c.b16 %v3298, %v3290
    %v4611 = vpack.c.b16 %v3299, %v3291
    %v4612 = vpack.c.b16 %v3300, %v3292
    %v4613 = vpack.c.b16 %v3301, %v3293
    %v4614 = vpack.c.b16 %v3302, %v3294
    %v4615 = vpack.c.b16 %v3303, %v3295
    %v4616 = vpack.c.b16 %v3312, %v3304
    %v4617 = vpack.c.b16 %v3313, %v3305
    %v4618 = vpack.c.b16 %v3314, %v3306
    %v4619 = vpack.c.b16 %v3315, %v3307
    %v4620 = vpack.c.b16 %v3316, %v3308
    %v4621 = vpack.c.b16 %v3317, %v3309
    %v4622 = vpack.c.b16 %v3318, %v3310
    %v4623 = vpack.c.b16 %v3319, %v3311
    %v4624 = vpack.c.b16 %v3328, %v3320
    %v4625 = vpack.c.b16 %v3329, %v3321
    %v4626 = vpack.c.b16 %v3330, %v3322
    %v4627 = vpack.c.b16 %v3331, %v3323
    %v4628 = vpack.c.b16 %v3332, %v3324
    %v4629 = vpack.c.b16 %v3333, %v3325
    %v4630 = vpack.c.b16 %v3334, %v3326
    %v4631 = vpack.c.b16 %v3335, %v3327
    %v4632 = vpack.c.b16 %v3344, %v3336
    %v4633 = vpack.c.b16 %v3345, %v3337
    %v4634 = vpack.c.b16 %v3346, %v3338
    %v4635 = vpack.c.b16 %v3347, %v3339
    %v4636 = vpack.c.b16 %v3348, %v3340
    %v4637 = vpack.c.b16 %v3349, %v3341
    %v4638 = vpack.c.b16 %v3350, %v3342
    %v4639 = vpack.c.b16 %v3351, %v3343
    %v4640 = vpack.c.b16 %v3360, %v3352
    %v4641 = vpack.c.b16 %v3361, %v3353
    %v4642 = vpack.c.b16 %v3362, %v3354
    %v4643 = vpack.c.b16 %v3363, %v3355
    %v4644 = vpack.c.b16 %v3364, %v3356
    %v4645 = vpack.c.b16 %v3365, %v3357
    %v4646 = vpack.c.b16 %v3366, %v3358
    %v4647 = vpack.c.b16 %v3367, %v3359
    %v4648 = vpack.c.b16 %v3376, %v3368
    %v4649 = vpack.c.b16 %v3377, %v3369
    %v4650 = vpack.c.b16 %v3378, %v3370
    %v4651 = vpack.c.b16 %v3379, %v3371
    %v4652 = vpack.c.b16 %v3380, %v3372
    %v4653 = vpack.c.b16 %v3381, %v3373
    %v4654 = vpack.c.b16 %v3382, %v3374
    %v4655 = vpack.c.b16 %v3383, %v3375
    %v4656 = vpack.c.b16 %v3392, %v3384
    %v4657 = vpack.c.b16 %v3393, %v3385
    %v4658 = vpack.c.b16 %v3394, %v3386
    %v4659 = vpack.c.b16 %v3395, %v3387
    %v4660 = vpack.c.b16 %v3396, %v3388
    %v4661 = vpack.c.b16 %v3397, %v3389
    %v4662 = vpack.c.b16 %v3398, %v3390
    %v4663 = vpack.c.b16 %v3399, %v3391
    %v4664 = vpack.c.b16 %v3408, %v3400
    %v4665 = vpack.c.b16 %v3409, %v3401
    %v4666 = vpack.c.b16 %v3410, %v3402
    %v4667 = vpack.c.b16 %v3411, %v3403
    %v4668 = vpack.c.b16 %v3412, %v3404
    %v4669 = vpack.c.b16 %v3413, %v3405
    %v4670 = vpack.c.b16 %v3414, %v3406
    %v4671 = vpack.c.b16 %v3415, %v3407
    %v4672 = vpack.c.b16 %v3424, %v3416
    %v4673 = vpack.c.b16 %v3425, %v3417
    %v4674 = vpack.c.b16 %v3426, %v3418
    %v4675 = vpack.c.b16 %v3427, %v3419
    %v4676 = vpack.c.b16 %v3428, %v3420
    %v4677 = vpack.c.b16 %v3429, %v3421
    %v4678 = vpack.c.b16 %v3430, %v3422
    %v4679 = vpack.c.b16 %v3431, %v3423
    %v4680 = vpack.c.b16 %v3440, %v3432
    %v4681 = vpack.c.b16 %v3441, %v3433
    %v4682 = vpack.c.b16 %v3442, %v3434
    %v4683 = vpack.c.b16 %v3443, %v3435
    %v4684 = vpack.c.b16 %v3444, %v3436
    %v4685 = vpack.c.b16 %v3445, %v3437
    %v4686 = vpack.c.b16 %v3446, %v3438
    %v4687 = vpack.c.b16 %v3447, %v3439
    %v4688 = vpack.c.b16 %v3456, %v3448
    %v4689 = vpack.c.b16 %v3457, %v3449
    %v4690 = vpack.c.b16 %v3458, %v3450
    %v4691 = vpack.c.b16 %v3459, %v3451
    %v4692 = vpack.c.b16 %v3460, %v3452
    %v4693 = vpack.c.b16 %v3461, %v3453
    %v4694 = vpack.c.b16 %v3462, %v3454
    %v4695 = vpack.c.b16 %v3463, %v3455
    %v4696 = vpack.c.b16 %v3472, %v3464
    %v4697 = vpack.c.b16 %v3473, %v3465
    %v4698 = vpack.c.b16 %v3474, %v3466
    %v4699 = vpack.c.b16 %v3475, %v3467
    %v4700 = vpack.c.b16 %v3476, %v3468
    %v4701 = vpack.c.b16 %v3477, %v3469
    %v4702 = vpack.c.b16 %v3478, %v3470
    %v4703 = vpack.c.b16 %v3479, %v3471
    %v4704 = vpack.c.b16 %v3488, %v3480
    %v4705 = vpack.c.b16 %v3489, %v3481
    %v4706 = vpack.c.b16 %v3490, %v3482
    %v4707 = vpack.c.b16 %v3491, %v3483
    %v4708 = vpack.c.b16 %v3492, %v3484
    %v4709 = vpack.c.b16 %v3493, %v3485
    %v4710 = vpack.c.b16 %v3494, %v3486
    %v4711 = vpack.c.b16 %v3495, %v3487
    %v4712 = vpack.c.b16 %v3504, %v3496
    %v4713 = vpack.c.b16 %v3505, %v3497
    %v4714 = vpack.c.b16 %v3506, %v3498
    %v4715 = vpack.c.b16 %v3507, %v3499
    %v4716 = vpack.c.b16 %v3508, %v3500
    %v4717 = vpack.c.b16 %v3509, %v3501
    %v4718 = vpack.c.b16 %v3510, %v3502
    %v4719 = vpack.c.b16 %v3511, %v3503
    %v4720 = vpack.c.b16 %v3520, %v3512
    %v4721 = vpack.c.b16 %v3521, %v3513
    %v4722 = vpack.c.b16 %v3522, %v3514
    %v4723 = vpack.c.b16 %v3523, %v3515
    %v4724 = vpack.c.b16 %v3524, %v3516
    %v4725 = vpack.c.b16 %v3525, %v3517
    %v4726 = vpack.c.b16 %v3526, %v3518
    %v4727 = vpack.c.b16 %v3527, %v3519
    %v4728 = vpack.c.b16 %v3536, %v3528
    %v4729 = vpack.c.b16 %v3537, %v3529
    %v4730 = vpack.c.b16 %v3538, %v3530
    %v4731 = vpack.c.b16 %v3539, %v3531
    %v4732 = vpack.c.b16 %v3540, %v3532
    %v4733 = vpack.c.b16 %v3541, %v3533
    %v4734 = vpack.c.b16 %v3542, %v3534
    %v4735 = vpack.c.b16 %v3543, %v3535
    %v4736 = vpack.c.b16 %v3552, %v3544
    %v4737 = vpack.c.b16 %v3553, %v3545
    %v4738 = vpack.c.b16 %v3554, %v3546
    %v4739 = vpack.c.b16 %v3555, %v3547
    %v4740 = vpack.c.b16 %v3556, %v3548
    %v4741 = vpack.c.b16 %v3557, %v3549
    %v4742 = vpack.c.b16 %v3558, %v3550
    %v4743 = vpack.c.b16 %v3559, %v3551
    %v4744 = vpack.c.b16 %v3568, %v3560
    %v4745 = vpack.c.b16 %v3569, %v3561
    %v4746 = vpack.c.b16 %v3570, %v3562
    %v4747 = vpack.c.b16 %v3571, %v3563
    %v4748 = vpack.c.b16 %v3572, %v3564
    %v4749 = vpack.c.b16 %v3573, %v3565
    %v4750 = vpack.c.b16 %v3574, %v3566
    %v4751 = vpack.c.b16 %v3575, %v3567
    %v4752 = vpack.c.b16 %v3584, %v3576
    %v4753 = vpack.c.b16 %v3585, %v3577
    %v4754 = vpack.c.b16 %v3586, %v3578
    %v4755 = vpack.c.b16 %v3587, %v3579
    %v4756 = vpack.c.b16 %v3588, %v3580
    %v4757 = vpack.c.b16 %v3589, %v3581
    %v4758 = vpack.c.b16 %v3590, %v3582
    %v4759 = vpack.c.b16 %v3591, %v3583
    %v4760 = vpack.c.b16 %v3600, %v3592
    %v4761 = vpack.c.b16 %v3601, %v3593
    %v4762 = vpack.c.b16 %v3602, %v3594
    %v4763 = vpack.c.b16 %v3603, %v3595
    %v4764 = vpack.c.b16 %v3604, %v3596
    %v4765 = vpack.c.b16 %v3605, %v3597
    %v4766 = vpack.c.b16 %v3606, %v3598
    %v4767 = vpack.c.b16 %v3607, %v3599
    %v4768 = vpack.c.b16 %v3616, %v3608
    %v4769 = vpack.c.b16 %v3617, %v3609
    %v4770 = vpack.c.b16 %v3618, %v3610
    %v4771 = vpack.c.b16 %v3619, %v3611
    %v4772 = vpack.c.b16 %v3620, %v3612
    %v4773 = vpack.c.b16 %v3621, %v3613
    %v4774 = vpack.c.b16 %v3622, %v3614
    %v4775 = vpack.c.b16 %v3623, %v3615
    %v4776 = vpack.c.b16 %v3632, %v3624
    %v4777 = vpack.c.b16 %v3633, %v3625
    %v4778 = vpack.c.b16 %v3634, %v3626
    %v4779 = vpack.c.b16 %v3635, %v3627
    %v4780 = vpack.c.b16 %v3636, %v3628
    %v4781 = vpack.c.b16 %v3637, %v3629
    %v4782 = vpack.c.b16 %v3638, %v3630
    %v4783 = vpack.c.b16 %v3639, %v3631
    %v4784 = vpack.c.b16 %v3648, %v3640
    %v4785 = vpack.c.b16 %v3649, %v3641
    %v4786 = vpack.c.b16 %v3650, %v3642
    %v4787 = vpack.c.b16 %v3651, %v3643
    %v4788 = vpack.c.b16 %v3652, %v3644
    %v4789 = vpack.c.b16 %v3653, %v3645
    %v4790 = vpack.c.b16 %v3654, %v3646
    %v4791 = vpack.c.b16 %v3655, %v3647
    %v4792 = vpack.c.b16 %v3664, %v3656
    %v4793 = vpack.c.b16 %v3665, %v3657
    %v4794 = vpack.c.b16 %v3666, %v3658
    %v4795 = vpack.c.b16 %v3667, %v3659
    %v4796 = vpack.c.b16 %v3668, %v3660
    %v4797 = vpack.c.b16 %v3669, %v3661
    %v4798 = vpack.c.b16 %v3670, %v3662
    %v4799 = vpack.c.b16 %v3671, %v3663
    %v4800 = vpack.c.b16 %v3680, %v3672
    %v4801 = vpack.c.b16 %v3681, %v3673
    %v4802 = vpack.c.b16 %v3682, %v3674
    %v4803 = vpack.c.b16 %v3683, %v3675
    %v4804 = vpack.c.b16 %v3684, %v3676
    %v4805 = vpack.c.b16 %v3685, %v3677
    %v4806 = vpack.c.b16 %v3686, %v3678
    %v4807 = vpack.c.b16 %v3687, %v3679
    %v4808 = vpack.c.b16 %v3696, %v3688
    %v4809 = vpack.c.b16 %v3697, %v3689
    %v4810 = vpack.c.b16 %v3698, %v3690
    %v4811 = vpack.c.b16 %v3699, %v3691
    %v4812 = vpack.c.b16 %v3700, %v3692
    %v4813 = vpack.c.b16 %v3701, %v3693
    %v4814 = vpack.c.b16 %v3702, %v3694
    %v4815 = vpack.c.b16 %v3703, %v3695
    %v4816 = vpack.c.b16 %v3712, %v3704
    %v4817 = vpack.c.b16 %v3713, %v3705
    %v4818 = vpack.c.b16 %v3714, %v3706
    %v4819 = vpack.c.b16 %v3715, %v3707
    %v4820 = vpack.c.b16 %v3716, %v3708
    %v4821 = vpack.c.b16 %v3717, %v3709
    %v4822 = vpack.c.b16 %v3718, %v3710
    %v4823 = vpack.c.b16 %v3719, %v3711
    %v4824 = vpack.c.b16 %v3728, %v3720
    %v4825 = vpack.c.b16 %v3729, %v3721
    %v4826 = vpack.c.b16 %v3730, %v3722
    %v4827 = vpack.c.b16 %v3731, %v3723
    %v4828 = vpack.c.b16 %v3732, %v3724
    %v4829 = vpack.c.b16 %v3733, %v3725
    %v4830 = vpack.c.b16 %v3734, %v3726
    %v4831 = vpack.c.b16 %v3735, %v3727
    %v4832 = vpack.c.b16 %v3744, %v3736
    %v4833 = vpack.c.b16 %v3745, %v3737
    %v4834 = vpack.c.b16 %v3746, %v3738
    %v4835 = vpack.c.b16 %v3747, %v3739
    %v4836 = vpack.c.b16 %v3748, %v3740
    %v4837 = vpack.c.b16 %v3749, %v3741
    %v4838 = vpack.c.b16 %v3750, %v3742
    %v4839 = vpack.c.b16 %v3751, %v3743
    %v4840 = vpack.c.b16 %v3760, %v3752
    %v4841 = vpack.c.b16 %v3761, %v3753
    %v4842 = vpack.c.b16 %v3762, %v3754
    %v4843 = vpack.c.b16 %v3763, %v3755
    %v4844 = vpack.c.b16 %v3764, %v3756
    %v4845 = vpack.c.b16 %v3765, %v3757
    %v4846 = vpack.c.b16 %v3766, %v3758
    %v4847 = vpack.c.b16 %v3767, %v3759
    %v4848 = vpack.c.b16 %v3776, %v3768
    %v4849 = vpack.c.b16 %v3777, %v3769
    %v4850 = vpack.c.b16 %v3778, %v3770
    %v4851 = vpack.c.b16 %v3779, %v3771
    %v4852 = vpack.c.b16 %v3780, %v3772
    %v4853 = vpack.c.b16 %v3781, %v3773
    %v4854 = vpack.c.b16 %v3782, %v3774
    %v4855 = vpack.c.b16 %v3783, %v3775
    %v4856 = vpack.c.b16 %v3792, %v3784
    %v4857 = vpack.c.b16 %v3793, %v3785
    %v4858 = vpack.c.b16 %v3794, %v3786
    %v4859 = vpack.c.b16 %v3795, %v3787
    %v4860 = vpack.c.b16 %v3796, %v3788
    %v4861 = vpack.c.b16 %v3797, %v3789
    %v4862 = vpack.c.b16 %v3798, %v3790
    %v4863 = vpack.c.b16 %v3799, %v3791
    %v4864 = vpack.c.b16 %v3808, %v3800
    %v4865 = vpack.c.b16 %v3809, %v3801
    %v4866 = vpack.c.b16 %v3810, %v3802
    %v4867 = vpack.c.b16 %v3811, %v3803
    %v4868 = vpack.c.b16 %v3812, %v3804
    %v4869 = vpack.c.b16 %v3813, %v3805
    %v4870 = vpack.c.b16 %v3814, %v3806
    %v4871 = vpack.c.b16 %v3815, %v3807
    %v4872 = vpack.c.b16 %v3824, %v3816
    %v4873 = vpack.c.b16 %v3825, %v3817
    %v4874 = vpack.c.b16 %v3826, %v3818
    %v4875 = vpack.c.b16 %v3827, %v3819
    %v4876 = vpack.c.b16 %v3828, %v3820
    %v4877 = vpack.c.b16 %v3829, %v3821
    %v4878 = vpack.c.b16 %v3830, %v3822
    %v4879 = vpack.c.b16 %v3831, %v3823
    %v4880 = vpack.c.b16 %v3840, %v3832
    %v4881 = vpack.c.b16 %v3841, %v3833
    %v4882 = vpack.c.b16 %v3842, %v3834
    %v4883 = vpack.c.b16 %v3843, %v3835
    %v4884 = vpack.c.b16 %v3844, %v3836
    %v4885 = vpack.c.b16 %v3845, %v3837
    %v4886 = vpack.c.b16 %v3846, %v3838
    %v4887 = vpack.c.b16 %v3847, %v3839
    %v4888 = vpack.c.b16 %v3856, %v3848
    %v4889 = vpack.c.b16 %v3857, %v3849
    %v4890 = vpack.c.b16 %v3858, %v3850
    %v4891 = vpack.c.b16 %v3859, %v3851
    %v4892 = vpack.c.b16 %v3860, %v3852
    %v4893 = vpack.c.b16 %v3861, %v3853
    %v4894 = vpack.c.b16 %v3862, %v3854
    %v4895 = vpack.c.b16 %v3863, %v3855
    %v4896 = vpack.c.b16 %v3872, %v3864
    %v4897 = vpack.c.b16 %v3873, %v3865
    %v4898 = vpack.c.b16 %v3874, %v3866
    %v4899 = vpack.c.b16 %v3875, %v3867
    %v4900 = vpack.c.b16 %v3876, %v3868
    %v4901 = vpack.c.b16 %v3877, %v3869
    %v4902 = vpack.c.b16 %v3878, %v3870
    %v4903 = vpack.c.b16 %v3879, %v3871
    %v4904 = vpack.c.b16 %v3888, %v3880
    %v4905 = vpack.c.b16 %v3889, %v3881
    %v4906 = vpack.c.b16 %v3890, %v3882
    %v4907 = vpack.c.b16 %v3891, %v3883
    %v4908 = vpack.c.b16 %v3892, %v3884
    %v4909 = vpack.c.b16 %v3893, %v3885
    %v4910 = vpack.c.b16 %v3894, %v3886
    %v4911 = vpack.c.b16 %v3895, %v3887
    %v4912 = vpack.c.b16 %v3904, %v3896
    %v4913 = vpack.c.b16 %v3905, %v3897
    %v4914 = vpack.c.b16 %v3906, %v3898
    %v4915 = vpack.c.b16 %v3907, %v3899
    %v4916 = vpack.c.b16 %v3908, %v3900
    %v4917 = vpack.c.b16 %v3909, %v3901
    %v4918 = vpack.c.b16 %v3910, %v3902
    %v4919 = vpack.c.b16 %v3911, %v3903
    %v4920 = vpack.c.b16 %v3920, %v3912
    %v4921 = vpack.c.b16 %v3921, %v3913
    %v4922 = vpack.c.b16 %v3922, %v3914
    %v4923 = vpack.c.b16 %v3923, %v3915
    %v4924 = vpack.c.b16 %v3924, %v3916
    %v4925 = vpack.c.b16 %v3925, %v3917
    %v4926 = vpack.c.b16 %v3926, %v3918
    %v4927 = vpack.c.b16 %v3927, %v3919
    %v4928 = vpack.c.b16 %v3936, %v3928
    %v4929 = vpack.c.b16 %v3937, %v3929
    %v4930 = vpack.c.b16 %v3938, %v3930
    %v4931 = vpack.c.b16 %v3939, %v3931
    %v4932 = vpack.c.b16 %v3940, %v3932
    %v4933 = vpack.c.b16 %v3941, %v3933
    %v4934 = vpack.c.b16 %v3942, %v3934
    %v4935 = vpack.c.b16 %v3943, %v3935
    %v4936 = vpack.c.b16 %v3952, %v3944
    %v4937 = vpack.c.b16 %v3953, %v3945
    %v4938 = vpack.c.b16 %v3954, %v3946
    %v4939 = vpack.c.b16 %v3955, %v3947
    %v4940 = vpack.c.b16 %v3956, %v3948
    %v4941 = vpack.c.b16 %v3957, %v3949
    %v4942 = vpack.c.b16 %v3958, %v3950
    %v4943 = vpack.c.b16 %v3959, %v3951
    %v4944 = vpack.c.b16 %v3968, %v3960
    %v4945 = vpack.c.b16 %v3969, %v3961
    %v4946 = vpack.c.b16 %v3970, %v3962
    %v4947 = vpack.c.b16 %v3971, %v3963
    %v4948 = vpack.c.b16 %v3972, %v3964
    %v4949 = vpack.c.b16 %v3973, %v3965
    %v4950 = vpack.c.b16 %v3974, %v3966
    %v4951 = vpack.c.b16 %v3975, %v3967
    %v4952 = vpack.c.b16 %v3984, %v3976
    %v4953 = vpack.c.b16 %v3985, %v3977
    %v4954 = vpack.c.b16 %v3986, %v3978
    %v4955 = vpack.c.b16 %v3987, %v3979
    %v4956 = vpack.c.b16 %v3988, %v3980
    %v4957 = vpack.c.b16 %v3989, %v3981
    %v4958 = vpack.c.b16 %v3990, %v3982
    %v4959 = vpack.c.b16 %v3991, %v3983
    %v4960 = vpack.c.b16 %v4000, %v3992
    %v4961 = vpack.c.b16 %v4001, %v3993
    %v4962 = vpack.c.b16 %v4002, %v3994
    %v4963 = vpack.c.b16 %v4003, %v3995
    %v4964 = vpack.c.b16 %v4004, %v3996
    %v4965 = vpack.c.b16 %v4005, %v3997
    %v4966 = vpack.c.b16 %v4006, %v3998
    %v4967 = vpack.c.b16 %v4007, %v3999
    %v4968 = vpack.c.b16 %v4016, %v4008
    %v4969 = vpack.c.b16 %v4017, %v4009
    %v4970 = vpack.c.b16 %v4018, %v4010
    %v4971 = vpack.c.b16 %v4019, %v4011
    %v4972 = vpack.c.b16 %v4020, %v4012
    %v4973 = vpack.c.b16 %v4021, %v4013
    %v4974 = vpack.c.b16 %v4022, %v4014
    %v4975 = vpack.c.b16 %v4023, %v4015
    %v4976 = vpack.c.b16 %v4032, %v4024
    %v4977 = vpack.c.b16 %v4033, %v4025
    %v4978 = vpack.c.b16 %v4034, %v4026
    %v4979 = vpack.c.b16 %v4035, %v4027
    %v4980 = vpack.c.b16 %v4036, %v4028
    %v4981 = vpack.c.b16 %v4037, %v4029
    %v4982 = vpack.c.b16 %v4038, %v4030
    %v4983 = vpack.c.b16 %v4039, %v4031
    %v4984 = vpack.c.b16 %v4048, %v4040
    %v4985 = vpack.c.b16 %v4049, %v4041
    %v4986 = vpack.c.b16 %v4050, %v4042
    %v4987 = vpack.c.b16 %v4051, %v4043
    %v4988 = vpack.c.b16 %v4052, %v4044
    %v4989 = vpack.c.b16 %v4053, %v4045
    %v4990 = vpack.c.b16 %v4054, %v4046
    %v4991 = vpack.c.b16 %v4055, %v4047
    %v4992 = vpack.c.b16 %v4064, %v4056
    %v4993 = vpack.c.b16 %v4065, %v4057
    %v4994 = vpack.c.b16 %v4066, %v4058
    %v4995 = vpack.c.b16 %v4067, %v4059
    %v4996 = vpack.c.b16 %v4068, %v4060
    %v4997 = vpack.c.b16 %v4069, %v4061
    %v4998 = vpack.c.b16 %v4070, %v4062
    %v4999 = vpack.c.b16 %v4071, %v4063
    %v5000 = vpack.c.b16 %v4080, %v4072
    %v5001 = vpack.c.b16 %v4081, %v4073
    %v5002 = vpack.c.b16 %v4082, %v4074
    %v5003 = vpack.c.b16 %v4083, %v4075
    %v5004 = vpack.c.b16 %v4084, %v4076
    %v5005 = vpack.c.b16 %v4085, %v4077
    %v5006 = vpack.c.b16 %v4086, %v4078
    %v5007 = vpack.c.b16 %v4087, %v4079
    %v5008 = vpack.c.b16 %v4096, %v4088
    %v5009 = vpack.c.b16 %v4097, %v4089
    %v5010 = vpack.c.b16 %v4098, %v4090
    %v5011 = vpack.c.b16 %v4099, %v4091
    %v5012 = vpack.c.b16 %v4100, %v4092
    %v5013 = vpack.c.b16 %v4101, %v4093
    %v5014 = vpack.c.b16 %v4102, %v4094
    %v5015 = vpack.c.b16 %v4103, %v4095
    %v5016 = vpack.c.b16 %v4112, %v4104
    %v5017 = vpack.c.b16 %v4113, %v4105
    %v5018 = vpack.c.b16 %v4114, %v4106
    %v5019 = vpack.c.b16 %v4115, %v4107
    %v5020 = vpack.c.b16 %v4116, %v4108
    %v5021 = vpack.c.b16 %v4117, %v4109
    %v5022 = vpack.c.b16 %v4118, %v4110
    %v5023 = vpack.c.b16 %v4119, %v4111
    %v5024 = vpack.c.b16 %v4128, %v4120
    %v5025 = vpack.c.b16 %v4129, %v4121
    %v5026 = vpack.c.b16 %v4130, %v4122
    %v5027 = vpack.c.b16 %v4131, %v4123
    %v5028 = vpack.c.b16 %v4132, %v4124
    %v5029 = vpack.c.b16 %v4133, %v4125
    %v5030 = vpack.c.b16 %v4134, %v4126
    %v5031 = vpack.c.b16 %v4135, %v4127
    %v5032 = vpack.c.b16 %v4144, %v4136
    %v5033 = vpack.c.b16 %v4145, %v4137
    %v5034 = vpack.c.b16 %v4146, %v4138
    %v5035 = vpack.c.b16 %v4147, %v4139
    %v5036 = vpack.c.b16 %v4148, %v4140
    %v5037 = vpack.c.b16 %v4149, %v4141
    %v5038 = vpack.c.b16 %v4150, %v4142
    %v5039 = vpack.c.b16 %v4151, %v4143
    %v5040 = vpack.c.b16 %v4160, %v4152
    %v5041 = vpack.c.b16 %v4161, %v4153
    %v5042 = vpack.c.b16 %v4162, %v4154
    %v5043 = vpack.c.b16 %v4163, %v4155
    %v5044 = vpack.c.b16 %v4164, %v4156
    %v5045 = vpack.c.b16 %v4165, %v4157
    %v5046 = vpack.c.b16 %v4166, %v4158
    %v5047 = vpack.c.b16 %v4167, %v4159
    %v5048 = vpack.c.b16 %v4176, %v4168
    %v5049 = vpack.c.b16 %v4177, %v4169
    %v5050 = vpack.c.b16 %v4178, %v4170
    %v5051 = vpack.c.b16 %v4179, %v4171
    %v5052 = vpack.c.b16 %v4180, %v4172
    %v5053 = vpack.c.b16 %v4181, %v4173
    %v5054 = vpack.c.b16 %v4182, %v4174
    %v5055 = vpack.c.b16 %v4183, %v4175
    %v5056 = vpack.c.b16 %v4192, %v4184
    %v5057 = vpack.c.b16 %v4193, %v4185
    %v5058 = vpack.c.b16 %v4194, %v4186
    %v5059 = vpack.c.b16 %v4195, %v4187
    %v5060 = vpack.c.b16 %v4196, %v4188
    %v5061 = vpack.c.b16 %v4197, %v4189
    %v5062 = vpack.c.b16 %v4198, %v4190
    %v5063 = vpack.c.b16 %v4199, %v4191
    %v5064 = vpack.c.b16 %v4208, %v4200
    %v5065 = vpack.c.b16 %v4209, %v4201
    %v5066 = vpack.c.b16 %v4210, %v4202
    %v5067 = vpack.c.b16 %v4211, %v4203
    %v5068 = vpack.c.b16 %v4212, %v4204
    %v5069 = vpack.c.b16 %v4213, %v4205
    %v5070 = vpack.c.b16 %v4214, %v4206
    %v5071 = vpack.c.b16 %v4215, %v4207
    %v5072 = vpack.c.b16 %v4224, %v4216
    %v5073 = vpack.c.b16 %v4225, %v4217
    %v5074 = vpack.c.b16 %v4226, %v4218
    %v5075 = vpack.c.b16 %v4227, %v4219
    %v5076 = vpack.c.b16 %v4228, %v4220
    %v5077 = vpack.c.b16 %v4229, %v4221
    %v5078 = vpack.c.b16 %v4230, %v4222
    %v5079 = vpack.c.b16 %v4231, %v4223
    %v5080 = vpack.c.b16 %v4240, %v4232
    %v5081 = vpack.c.b16 %v4241, %v4233
    %v5082 = vpack.c.b16 %v4242, %v4234
    %v5083 = vpack.c.b16 %v4243, %v4235
    %v5084 = vpack.c.b16 %v4244, %v4236
    %v5085 = vpack.c.b16 %v4245, %v4237
    %v5086 = vpack.c.b16 %v4246, %v4238
    %v5087 = vpack.c.b16 %v4247, %v4239
    %v5088 = vpack.c.b16 %v4256, %v4248
    %v5089 = vpack.c.b16 %v4257, %v4249
    %v5090 = vpack.c.b16 %v4258, %v4250
    %v5091 = vpack.c.b16 %v4259, %v4251
    %v5092 = vpack.c.b16 %v4260, %v4252
    %v5093 = vpack.c.b16 %v4261, %v4253
    %v5094 = vpack.c.b16 %v4262, %v4254
    %v5095 = vpack.c.b16 %v4263, %v4255
    %v5096 = vpack.c.b16 %v4272, %v4264
    %v5097 = vpack.c.b16 %v4273, %v4265
    %v5098 = vpack.c.b16 %v4274, %v4266
    %v5099 = vpack.c.b16 %v4275, %v4267
    %v5100 = vpack.c.b16 %v4276, %v4268
    %v5101 = vpack.c.b16 %v4277, %v4269
    %v5102 = vpack.c.b16 %v4278, %v4270
    %v5103 = vpack.c.b16 %v4279, %v4271
    %v5104 = vpack.c.b16 %v4288, %v4280
    %v5105 = vpack.c.b16 %v4289, %v4281
    %v5106 = vpack.c.b16 %v4290, %v4282
    %v5107 = vpack.c.b16 %v4291, %v4283
    %v5108 = vpack.c.b16 %v4292, %v4284
    %v5109 = vpack.c.b16 %v4293, %v4285
    %v5110 = vpack.c.b16 %v4294, %v4286
    %v5111 = vpack.c.b16 %v4295, %v4287
    %v5112 = vpack.c.b16 %v4304, %v4296
    %v5113 = vpack.c.b16 %v4305, %v4297
    %v5114 = vpack.c.b16 %v4306, %v4298
    %v5115 = vpack.c.b16 %v4307, %v4299
    %v5116 = vpack.c.b16 %v4308, %v4300
    %v5117 = vpack.c.b16 %v4309, %v4301
    %v5118 = vpack.c.b16 %v4310, %v4302
    %v5119 = vpack.c.b16 %v4311, %v4303
    %v5120 = vpack.c.b16 %v4320, %v4312
    %v5121 = vpack.c.b16 %v4321, %v4313
    %v5122 = vpack.c.b16 %v4322, %v4314
    %v5123 = vpack.c.b16 %v4323, %v4315
    %v5124 = vpack.c.b16 %v4324, %v4316
    %v5125 = vpack.c.b16 %v4325, %v4317
    %v5126 = vpack.c.b16 %v4326, %v4318
    %v5127 = vpack.c.b16 %v4327, %v4319
    %v5128 = vpack.c.b16 %v4336, %v4328
    %v5129 = vpack.c.b16 %v4337, %v4329
    %v5130 = vpack.c.b16 %v4338, %v4330
    %v5131 = vpack.c.b16 %v4339, %v4331
    %v5132 = vpack.c.b16 %v4340, %v4332
    %v5133 = vpack.c.b16 %v4341, %v4333
    %v5134 = vpack.c.b16 %v4342, %v4334
    %v5135 = vpack.c.b16 %v4343, %v4335
    %v5136 = vpack.c.b16 %v4352, %v4344
    %v5137 = vpack.c.b16 %v4353, %v4345
    %v5138 = vpack.c.b16 %v4354, %v4346
    %v5139 = vpack.c.b16 %v4355, %v4347
    %v5140 = vpack.c.b16 %v4356, %v4348
    %v5141 = vpack.c.b16 %v4357, %v4349
    %v5142 = vpack.c.b16 %v4358, %v4350
    %v5143 = vpack.c.b16 %v4359, %v4351
    %v5144 = vpack.c.b16 %v4368, %v4360
    %v5145 = vpack.c.b16 %v4369, %v4361
    %v5146 = vpack.c.b16 %v4370, %v4362
    %v5147 = vpack.c.b16 %v4371, %v4363
    %v5148 = vpack.c.b16 %v4372, %v4364
    %v5149 = vpack.c.b16 %v4373, %v4365
    %v5150 = vpack.c.b16 %v4374, %v4366
    %v5151 = vpack.c.b16 %v4375, %v4367
    %v5152 = vpack.c.b16 %v4384, %v4376
    %v5153 = vpack.c.b16 %v4385, %v4377
    %v5154 = vpack.c.b16 %v4386, %v4378
    %v5155 = vpack.c.b16 %v4387, %v4379
    %v5156 = vpack.c.b16 %v4388, %v4380
    %v5157 = vpack.c.b16 %v4389, %v4381
    %v5158 = vpack.c.b16 %v4390, %v4382
    %v5159 = vpack.c.b16 %v4391, %v4383
    %5928 = vmatprep.subr.bf16.mxu0 %v4393
    %5929 = vmatpush1.bf16.msra.mxu0 %v4392
    %5930 = vmatprep.subr.bf16.mxu0 %v4401
    %5931 = vmatpush1.bf16.msra.mxu0 %v4400
    %5932 = vmatprep.subr.bf16.mxu0 %v4409
    %5933 = vmatpush1.bf16.msra.mxu0 %v4408
    %5934 = vmatprep.subr.bf16.mxu0 %v4417
    %5935 = vmatpush1.bf16.msra.mxu0 %v4416
    %5936 = vmatprep.subr.bf16.mxu0 %v4425
    %5937 = vmatpush1.bf16.msra.mxu0 %v4424
    %5938 = vmatprep.subr.bf16.mxu0 %v4433
    %5939 = vmatpush1.bf16.msra.mxu0 %v4432
    %5940 = vmatprep.subr.bf16.mxu0 %v4441
    %5941 = vmatpush1.bf16.msra.mxu0 %v4440
    %5942 = vmatprep.subr.bf16.mxu0 %v4449
    %5943 = vmatpush1.bf16.msra.mxu0 %v4448
    %5944 = vmatprep.subr.bf16.mxu0 %v4457
    %5945 = vmatpush1.bf16.msra.mxu0 %v4456
    %5946 = vmatprep.subr.bf16.mxu0 %v4465
    %5947 = vmatpush1.bf16.msra.mxu0 %v4464
    %5948 = vmatprep.subr.bf16.mxu0 %v4473
    %5949 = vmatpush1.bf16.msra.mxu0 %v4472
    %5950 = vmatprep.subr.bf16.mxu0 %v4481
    %5951 = vmatpush1.bf16.msra.mxu0 %v4480
    %5952 = vmatprep.subr.bf16.mxu0 %v4489
    %5953 = vmatpush1.bf16.msra.mxu0 %v4488
    %5954 = vmatprep.subr.bf16.mxu0 %v4497
    %5955 = vmatpush1.bf16.msra.mxu0 %v4496
    %5956 = vmatprep.subr.bf16.mxu0 %v4505
    %5957 = vmatpush1.bf16.msra.mxu0 %v4504
    %5958 = vmatprep.subr.bf16.mxu0 %v4513
    %5959 = vmatpush1.bf16.msra.mxu0 %v4512
    %5960 = vmatprep.mubr.bf16.mxu0 %v985
    %5961 = vmatmul.mubr.bf16.gmra.mrb[0].mxu0 %v984
    %v5962 = vpop.f32.mrb[0].mxu0
    %v5963 = vadd.f32 0.0, %v5962
    %v5964 = vpop.f32.mrb[0].mxu0
    %v5965 = vadd.f32 0.0, %v5964
    %v5966 = vpop.f32.mrb[0].mxu0
    %v5967 = vadd.f32 0.0, %v5966
    %v5968 = vpop.f32.mrb[0].mxu0
    %v5969 = vadd.f32 0.0, %v5968
    %5970 = vdwg.mxu0
    %5971 = vmatprep.subr.bf16.mxu0 %v4521
    %5972 = vmatpush1.bf16.msra.mxu0 %v4520
    %5973 = vmatprep.subr.bf16.mxu0 %v4529
    %5974 = vmatpush1.bf16.msra.mxu0 %v4528
    %5975 = vmatprep.subr.bf16.mxu0 %v4537
    %5976 = vmatpush1.bf16.msra.mxu0 %v4536
    %5977 = vmatprep.subr.bf16.mxu0 %v4545
    %5978 = vmatpush1.bf16.msra.mxu0 %v4544
    %5979 = vmatprep.subr.bf16.mxu0 %v4553
    %5980 = vmatpush1.bf16.msra.mxu0 %v4552
    %5981 = vmatprep.subr.bf16.mxu0 %v4561
    %5982 = vmatpush1.bf16.msra.mxu0 %v4560
    %5983 = vmatprep.subr.bf16.mxu0 %v4569
    %5984 = vmatpush1.bf16.msra.mxu0 %v4568
    %5985 = vmatprep.subr.bf16.mxu0 %v4577
    %5986 = vmatpush1.bf16.msra.mxu0 %v4576
    %5987 = vmatprep.subr.bf16.mxu0 %v4585
    %5988 = vmatpush1.bf16.msra.mxu0 %v4584
    %5989 = vmatprep.subr.bf16.mxu0 %v4593
    %5990 = vmatpush1.bf16.msra.mxu0 %v4592
    %5991 = vmatprep.subr.bf16.mxu0 %v4601
    %5992 = vmatpush1.bf16.msra.mxu0 %v4600
    %5993 = vmatprep.subr.bf16.mxu0 %v4609
    %5994 = vmatpush1.bf16.msra.mxu0 %v4608
    %5995 = vmatprep.subr.bf16.mxu0 %v4617
    %5996 = vmatpush1.bf16.msra.mxu0 %v4616
    %5997 = vmatprep.subr.bf16.mxu0 %v4625
    %5998 = vmatpush1.bf16.msra.mxu0 %v4624
    %5999 = vmatprep.subr.bf16.mxu0 %v4633
    %6000 = vmatpush1.bf16.msra.mxu0 %v4632
    %6001 = vmatprep.subr.bf16.mxu0 %v4641
    %6002 = vmatpush1.bf16.msra.mxu0 %v4640
    %6003 = vmatprep.mubr.bf16.mxu0 %v987
    %6004 = vmatmul.mubr.bf16.gmra.mrb[0].mxu0 %v986
    %v6005 = vpop.f32.mrb[0].mxu0
    %v6006 = vadd.f32 %v5963, %v6005
    %v6007 = vpop.f32.mrb[0].mxu0
    %v6008 = vadd.f32 %v5965, %v6007
    %v6009 = vpop.f32.mrb[0].mxu0
    %v6010 = vadd.f32 %v5967, %v6009
    %v6011 = vpop.f32.mrb[0].mxu0
    %v6012 = vadd.f32 %v5969, %v6011
    %6013 = vdwg.mxu0
    %6014 = vmatprep.subr.bf16.mxu0 %v4649
    %6015 = vmatpush1.bf16.msra.mxu0 %v4648
    %6016 = vmatprep.subr.bf16.mxu0 %v4657
    %6017 = vmatpush1.bf16.msra.mxu0 %v4656
    %6018 = vmatprep.subr.bf16.mxu0 %v4665
    %6019 = vmatpush1.bf16.msra.mxu0 %v4664
    %6020 = vmatprep.subr.bf16.mxu0 %v4673
    %6021 = vmatpush1.bf16.msra.mxu0 %v4672
    %6022 = vmatprep.subr.bf16.mxu0 %v4681
    %6023 = vmatpush1.bf16.msra.mxu0 %v4680
    %6024 = vmatprep.subr.bf16.mxu0 %v4689
    %6025 = vmatpush1.bf16.msra.mxu0 %v4688
    %6026 = vmatprep.subr.bf16.mxu0 %v4697
    %6027 = vmatpush1.bf16.msra.mxu0 %v4696
    %6028 = vmatprep.subr.bf16.mxu0 %v4705
    %6029 = vmatpush1.bf16.msra.mxu0 %v4704
    %6030 = vmatprep.subr.bf16.mxu0 %v4713
    %6031 = vmatpush1.bf16.msra.mxu0 %v4712
    %6032 = vmatprep.subr.bf16.mxu0 %v4721
    %6033 = vmatpush1.bf16.msra.mxu0 %v4720
    %6034 = vmatprep.subr.bf16.mxu0 %v4729
    %6035 = vmatpush1.bf16.msra.mxu0 %v4728
    %6036 = vmatprep.subr.bf16.mxu0 %v4737
    %6037 = vmatpush1.bf16.msra.mxu0 %v4736
    %6038 = vmatprep.subr.bf16.mxu0 %v4745
    %6039 = vmatpush1.bf16.msra.mxu0 %v4744
    %6040 = vmatprep.subr.bf16.mxu0 %v4753
    %6041 = vmatpush1.bf16.msra.mxu0 %v4752
    %6042 = vmatprep.subr.bf16.mxu0 %v4761
    %6043 = vmatpush1.bf16.msra.mxu0 %v4760
    %6044 = vmatprep.subr.bf16.mxu0 %v4769
    %6045 = vmatpush1.bf16.msra.mxu0 %v4768
    %6046 = vmatprep.mubr.bf16.mxu0 %v989
    %6047 = vmatmul.mubr.bf16.gmra.mrb[0].mxu0 %v988
    %v6048 = vpop.f32.mrb[0].mxu0
    %v6049 = vadd.f32 %v6006, %v6048
    %v6050 = vpop.f32.mrb[0].mxu0
    %v6051 = vadd.f32 %v6008, %v6050
    %v6052 = vpop.f32.mrb[0].mxu0
    %v6053 = vadd.f32 %v6010, %v6052
    %v6054 = vpop.f32.mrb[0].mxu0
    %v6055 = vadd.f32 %v6012, %v6054
    %6056 = vdwg.mxu0
    %6057 = vmatprep.subr.bf16.mxu0 %v4777
    %6058 = vmatpush1.bf16.msra.mxu0 %v4776
    %6059 = vmatprep.subr.bf16.mxu0 %v4785
    %6060 = vmatpush1.bf16.msra.mxu0 %v4784
    %6061 = vmatprep.subr.bf16.mxu0 %v4793
    %6062 = vmatpush1.bf16.msra.mxu0 %v4792
    %6063 = vmatprep.subr.bf16.mxu0 %v4801
    %6064 = vmatpush1.bf16.msra.mxu0 %v4800
    %6065 = vmatprep.subr.bf16.mxu0 %v4809
    %6066 = vmatpush1.bf16.msra.mxu0 %v4808
    %6067 = vmatprep.subr.bf16.mxu0 %v4817
    %6068 = vmatpush1.bf16.msra.mxu0 %v4816
    %6069 = vmatprep.subr.bf16.mxu0 %v4825
    %6070 = vmatpush1.bf16.msra.mxu0 %v4824
    %6071 = vmatprep.subr.bf16.mxu0 %v4833
    %6072 = vmatpush1.bf16.msra.mxu0 %v4832
    %6073 = vmatprep.subr.bf16.mxu0 %v4841
    %6074 = vmatpush1.bf16.msra.mxu0 %v4840
    %6075 = vmatprep.subr.bf16.mxu0 %v4849
    %6076 = vmatpush1.bf16.msra.mxu0 %v4848
    %6077 = vmatprep.subr.bf16.mxu0 %v4857
    %6078 = vmatpush1.bf16.msra.mxu0 %v4856
    %6079 = vmatprep.subr.bf16.mxu0 %v4865
    %6080 = vmatpush1.bf16.msra.mxu0 %v4864
    %6081 = vmatprep.subr.bf16.mxu0 %v4873
    %6082 = vmatpush1.bf16.msra.mxu0 %v4872
    %6083 = vmatprep.subr.bf16.mxu0 %v4881
    %6084 = vmatpush1.bf16.msra.mxu0 %v4880
    %6085 = vmatprep.subr.bf16.mxu0 %v4889
    %6086 = vmatpush1.bf16.msra.mxu0 %v4888
    %6087 = vmatprep.subr.bf16.mxu0 %v4897
    %6088 = vmatpush1.bf16.msra.mxu0 %v4896
    %6089 = vmatprep.mubr.bf16.mxu0 %v991
    %6090 = vmatmul.mubr.bf16.gmra.mrb[0].mxu0 %v990
    %v6091 = vpop.f32.mrb[0].mxu0
    %v6092 = vadd.f32 %v6049, %v6091
    %v6093 = vpop.f32.mrb[0].mxu0
    %v6094 = vadd.f32 %v6051, %v6093
    %v6095 = vpop.f32.mrb[0].mxu0
    %v6096 = vadd.f32 %v6053, %v6095
    %v6097 = vpop.f32.mrb[0].mxu0
    %v6098 = vadd.f32 %v6055, %v6097
    %6099 = vdwg.mxu0
    %6100 = vmatprep.subr.bf16.mxu0 %v4905
    %6101 = vmatpush1.bf16.msra.mxu0 %v4904
    %6102 = vmatprep.subr.bf16.mxu0 %v4913
    %6103 = vmatpush1.bf16.msra.mxu0 %v4912
    %6104 = vmatprep.subr.bf16.mxu0 %v4921
    %6105 = vmatpush1.bf16.msra.mxu0 %v4920
    %6106 = vmatprep.subr.bf16.mxu0 %v4929
    %6107 = vmatpush1.bf16.msra.mxu0 %v4928
    %6108 = vmatprep.subr.bf16.mxu0 %v4937
    %6109 = vmatpush1.bf16.msra.mxu0 %v4936
    %6110 = vmatprep.subr.bf16.mxu0 %v4945
    %6111 = vmatpush1.bf16.msra.mxu0 %v4944
    %6112 = vmatprep.subr.bf16.mxu0 %v4953
    %6113 = vmatpush1.bf16.msra.mxu0 %v4952
    %6114 = vmatprep.subr.bf16.mxu0 %v4961
    %6115 = vmatpush1.bf16.msra.mxu0 %v4960
    %6116 = vmatprep.subr.bf16.mxu0 %v4969
    %6117 = vmatpush1.bf16.msra.mxu0 %v4968
    %6118 = vmatprep.subr.bf16.mxu0 %v4977
    %6119 = vmatpush1.bf16.msra.mxu0 %v4976
    %6120 = vmatprep.subr.bf16.mxu0 %v4985
    %6121 = vmatpush1.bf16.msra.mxu0 %v4984
    %6122 = vmatprep.subr.bf16.mxu0 %v4993
    %6123 = vmatpush1.bf16.msra.mxu0 %v4992
    %6124 = vmatprep.subr.bf16.mxu0 %v5001
    %6125 = vmatpush1.bf16.msra.mxu0 %v5000
    %6126 = vmatprep.subr.bf16.mxu0 %v5009
    %6127 = vmatpush1.bf16.msra.mxu0 %v5008
    %6128 = vmatprep.subr.bf16.mxu0 %v5017
    %6129 = vmatpush1.bf16.msra.mxu0 %v5016
    %6130 = vmatprep.subr.bf16.mxu0 %v5025
    %6131 = vmatpush1.bf16.msra.mxu0 %v5024
    %6132 = vmatprep.mubr.bf16.mxu0 %v993
    %6133 = vmatmul.mubr.bf16.gmra.mrb[0].mxu0 %v992
    %v6134 = vpop.f32.mrb[0].mxu0
    %v6135 = vadd.f32 %v6092, %v6134
    %v6136 = vpop.f32.mrb[0].mxu0
    %v6137 = vadd.f32 %v6094, %v6136
    %v6138 = vpop.f32.mrb[0].mxu0
    %v6139 = vadd.f32 %v6096, %v6138
    %v6140 = vpop.f32.mrb[0].mxu0
    %v6141 = vadd.f32 %v6098, %v6140
    %6142 = vdwg.mxu0
    %6143 = vmatprep.subr.bf16.mxu0 %v5033
    %6144 = vmatpush1.bf16.msra.mxu0 %v5032
    %6145 = vmatprep.subr.bf16.mxu0 %v5041
    %6146 = vmatpush1.bf16.msra.mxu0 %v5040
    %6147 = vmatprep.subr.bf16.mxu0 %v5049
    %6148 = vmatpush1.bf16.msra.mxu0 %v5048
    %6149 = vmatprep.subr.bf16.mxu0 %v5057
    %6150 = vmatpush1.bf16.msra.mxu0 %v5056
    %6151 = vmatprep.subr.bf16.mxu0 %v5065
    %6152 = vmatpush1.bf16.msra.mxu0 %v5064
    %6153 = vmatprep.subr.bf16.mxu0 %v5073
    %6154 = vmatpush1.bf16.msra.mxu0 %v5072
    %6155 = vmatprep.subr.bf16.mxu0 %v5081
    %6156 = vmatpush1.bf16.msra.mxu0 %v5080
    %6157 = vmatprep.subr.bf16.mxu0 %v5089
    %6158 = vmatpush1.bf16.msra.mxu0 %v5088
    %6159 = vmatprep.subr.bf16.mxu0 %v5097
    %6160 = vmatpush1.bf16.msra.mxu0 %v5096
    %6161 = vmatprep.subr.bf16.mxu0 %v5105
    %6162 = vmatpush1.bf16.msra.mxu0 %v5104
    %6163 = vmatprep.subr.bf16.mxu0 %v5113
    %6164 = vmatpush1.bf16.msra.mxu0 %v5112
    %6165 = vmatprep.subr.bf16.mxu0 %v5121
    %6166 = vmatpush1.bf16.msra.mxu0 %v5120
    %6167 = vmatprep.subr.bf16.mxu0 %v5129
    %6168 = vmatpush1.bf16.msra.mxu0 %v5128
    %6169 = vmatprep.subr.bf16.mxu0 %v5137
    %6170 = vmatpush1.bf16.msra.mxu0 %v5136
    %6171 = vmatprep.subr.bf16.mxu0 %v5145
    %6172 = vmatpush1.bf16.msra.mxu0 %v5144
    %6173 = vmatprep.subr.bf16.mxu0 %v5153
    %6174 = vmatpush1.bf16.msra.mxu0 %v5152
    %6175 = vmatprep.mubr.bf16.mxu0 %v995
    %6176 = vmatmul.mubr.bf16.gmra.mrb[0].mxu0 %v994
    %v6177 = vpop.f32.mrb[0].mxu0
    %v6178 = vadd.f32 %v6135, %v6177
    %v6179 = vpop.f32.mrb[0].mxu0
    %v6180 = vadd.f32 %v6137, %v6179
    %v6181 = vpop.f32.mrb[0].mxu0
    %v6182 = vadd.f32 %v6139, %v6181
    %v6183 = vpop.f32.mrb[0].mxu0
    %v6184 = vadd.f32 %v6141, %v6183
    %6185 = vdwg.mxu0
    %6186 = vmatprep.subr.bf16.mxu0 %v4395
    %6187 = vmatpush1.bf16.msra.mxu0 %v4394
    %6188 = vmatprep.subr.bf16.mxu0 %v4403
    %6189 = vmatpush1.bf16.msra.mxu0 %v4402
    %6190 = vmatprep.subr.bf16.mxu0 %v4411
    %6191 = vmatpush1.bf16.msra.mxu0 %v4410
    %6192 = vmatprep.subr.bf16.mxu0 %v4419
    %6193 = vmatpush1.bf16.msra.mxu0 %v4418
    %6194 = vmatprep.subr.bf16.mxu0 %v4427
    %6195 = vmatpush1.bf16.msra.mxu0 %v4426
    %6196 = vmatprep.subr.bf16.mxu0 %v4435
    %6197 = vmatpush1.bf16.msra.mxu0 %v4434
    %6198 = vmatprep.subr.bf16.mxu0 %v4443
    %6199 = vmatpush1.bf16.msra.mxu0 %v4442
    %6200 = vmatprep.subr.bf16.mxu0 %v4451
    %6201 = vmatpush1.bf16.msra.mxu0 %v4450
    %6202 = vmatprep.subr.bf16.mxu0 %v4459
    %6203 = vmatpush1.bf16.msra.mxu0 %v4458
    %6204 = vmatprep.subr.bf16.mxu0 %v4467
    %6205 = vmatpush1.bf16.msra.mxu0 %v4466
    %6206 = vmatprep.subr.bf16.mxu0 %v4475
    %6207 = vmatpush1.bf16.msra.mxu0 %v4474
    %6208 = vmatprep.subr.bf16.mxu0 %v4483
    %6209 = vmatpush1.bf16.msra.mxu0 %v4482
    %6210 = vmatprep.subr.bf16.mxu0 %v4491
    %6211 = vmatpush1.bf16.msra.mxu0 %v4490
    %6212 = vmatprep.subr.bf16.mxu0 %v4499
    %6213 = vmatpush1.bf16.msra.mxu0 %v4498
    %6214 = vmatprep.subr.bf16.mxu0 %v4507
    %6215 = vmatpush1.bf16.msra.mxu0 %v4506
    %6216 = vmatprep.subr.bf16.mxu0 %v4515
    %6217 = vmatpush1.bf16.msra.mxu0 %v4514
    %6218 = vmatprep.mubr.bf16.mxu0 %v985
    %6219 = vmatmul.mubr.bf16.gmra.mrb[0].mxu0 %v984
    %v6220 = vpop.f32.mrb[0].mxu0
    %v6221 = vadd.f32 0.0, %v6220
    %v6222 = vpop.f32.mrb[0].mxu0
    %v6223 = vadd.f32 0.0, %v6222
    %v6224 = vpop.f32.mrb[0].mxu0
    %v6225 = vadd.f32 0.0, %v6224
    %v6226 = vpop.f32.mrb[0].mxu0
    %v6227 = vadd.f32 0.0, %v6226
    %6228 = vdwg.mxu0
    %6229 = vmatprep.subr.bf16.mxu0 %v4523
    %6230 = vmatpush1.bf16.msra.mxu0 %v4522
    %6231 = vmatprep.subr.bf16.mxu0 %v4531
    %6232 = vmatpush1.bf16.msra.mxu0 %v4530
    %6233 = vmatprep.subr.bf16.mxu0 %v4539
    %6234 = vmatpush1.bf16.msra.mxu0 %v4538
    %6235 = vmatprep.subr.bf16.mxu0 %v4547
    %6236 = vmatpush1.bf16.msra.mxu0 %v4546
    %6237 = vmatprep.subr.bf16.mxu0 %v4555
    %6238 = vmatpush1.bf16.msra.mxu0 %v4554
    %6239 = vmatprep.subr.bf16.mxu0 %v4563
    %6240 = vmatpush1.bf16.msra.mxu0 %v4562
    %6241 = vmatprep.subr.bf16.mxu0 %v4571
    %6242 = vmatpush1.bf16.msra.mxu0 %v4570
    %6243 = vmatprep.subr.bf16.mxu0 %v4579
    %6244 = vmatpush1.bf16.msra.mxu0 %v4578
    %6245 = vmatprep.subr.bf16.mxu0 %v4587
    %6246 = vmatpush1.bf16.msra.mxu0 %v4586
    %6247 = vmatprep.subr.bf16.mxu0 %v4595
    %6248 = vmatpush1.bf16.msra.mxu0 %v4594
    %6249 = vmatprep.subr.bf16.mxu0 %v4603
    %6250 = vmatpush1.bf16.msra.mxu0 %v4602
    %6251 = vmatprep.subr.bf16.mxu0 %v4611
    %6252 = vmatpush1.bf16.msra.mxu0 %v4610
    %6253 = vmatprep.subr.bf16.mxu0 %v4619
    %6254 = vmatpush1.bf16.msra.mxu0 %v4618
    %6255 = vmatprep.subr.bf16.mxu0 %v4627
    %6256 = vmatpush1.bf16.msra.mxu0 %v4626
    %6257 = vmatprep.subr.bf16.mxu0 %v4635
    %6258 = vmatpush1.bf16.msra.mxu0 %v4634
    %6259 = vmatprep.subr.bf16.mxu0 %v4643
    %6260 = vmatpush1.bf16.msra.mxu0 %v4642
    %6261 = vmatprep.mubr.bf16.mxu0 %v987
    %6262 = vmatmul.mubr.bf16.gmra.mrb[0].mxu0 %v986
    %v6263 = vpop.f32.mrb[0].mxu0
    %v6264 = vadd.f32 %v6221, %v6263
    %v6265 = vpop.f32.mrb[0].mxu0
    %v6266 = vadd.f32 %v6223, %v6265
    %v6267 = vpop.f32.mrb[0].mxu0
    %v6268 = vadd.f32 %v6225, %v6267
    %v6269 = vpop.f32.mrb[0].mxu0
    %v6270 = vadd.f32 %v6227, %v6269
    %6271 = vdwg.mxu0
    %6272 = vmatprep.subr.bf16.mxu0 %v4651
    %6273 = vmatpush1.bf16.msra.mxu0 %v4650
    %6274 = vmatprep.subr.bf16.mxu0 %v4659
    %6275 = vmatpush1.bf16.msra.mxu0 %v4658
    %6276 = vmatprep.subr.bf16.mxu0 %v4667
    %6277 = vmatpush1.bf16.msra.mxu0 %v4666
    %6278 = vmatprep.subr.bf16.mxu0 %v4675
    %6279 = vmatpush1.bf16.msra.mxu0 %v4674
    %6280 = vmatprep.subr.bf16.mxu0 %v4683
    %6281 = vmatpush1.bf16.msra.mxu0 %v4682
    %6282 = vmatprep.subr.bf16.mxu0 %v4691
    %6283 = vmatpush1.bf16.msra.mxu0 %v4690
    %6284 = vmatprep.subr.bf16.mxu0 %v4699
    %6285 = vmatpush1.bf16.msra.mxu0 %v4698
    %6286 = vmatprep.subr.bf16.mxu0 %v4707
    %6287 = vmatpush1.bf16.msra.mxu0 %v4706
    %6288 = vmatprep.subr.bf16.mxu0 %v4715
    %6289 = vmatpush1.bf16.msra.mxu0 %v4714
    %6290 = vmatprep.subr.bf16.mxu0 %v4723
    %6291 = vmatpush1.bf16.msra.mxu0 %v4722
    %6292 = vmatprep.subr.bf16.mxu0 %v4731
    %6293 = vmatpush1.bf16.msra.mxu0 %v4730
    %6294 = vmatprep.subr.bf16.mxu0 %v4739
    %6295 = vmatpush1.bf16.msra.mxu0 %v4738
    %6296 = vmatprep.subr.bf16.mxu0 %v4747
    %6297 = vmatpush1.bf16.msra.mxu0 %v4746
    %6298 = vmatprep.subr.bf16.mxu0 %v4755
    %6299 = vmatpush1.bf16.msra.mxu0 %v4754
    %6300 = vmatprep.subr.bf16.mxu0 %v4763
    %6301 = vmatpush1.bf16.msra.mxu0 %v4762
    %6302 = vmatprep.subr.bf16.mxu0 %v4771
    %6303 = vmatpush1.bf16.msra.mxu0 %v4770
    %6304 = vmatprep.mubr.bf16.mxu0 %v989
    %6305 = vmatmul.mubr.bf16.gmra.mrb[0].mxu0 %v988
    %v6306 = vpop.f32.mrb[0].mxu0
    %v6307 = vadd.f32 %v6264, %v6306
    %v6308 = vpop.f32.mrb[0].mxu0
    %v6309 = vadd.f32 %v6266, %v6308
    %v6310 = vpop.f32.mrb[0].mxu0
    %v6311 = vadd.f32 %v6268, %v6310
    %v6312 = vpop.f32.mrb[0].mxu0
    %v6313 = vadd.f32 %v6270, %v6312
    %6314 = vdwg.mxu0
    %6315 = vmatprep.subr.bf16.mxu0 %v4779
    %6316 = vmatpush1.bf16.msra.mxu0 %v4778
    %6317 = vmatprep.subr.bf16.mxu0 %v4787
    %6318 = vmatpush1.bf16.msra.mxu0 %v4786
    %6319 = vmatprep.subr.bf16.mxu0 %v4795
    %6320 = vmatpush1.bf16.msra.mxu0 %v4794
    %6321 = vmatprep.subr.bf16.mxu0 %v4803
    %6322 = vmatpush1.bf16.msra.mxu0 %v4802
    %6323 = vmatprep.subr.bf16.mxu0 %v4811
    %6324 = vmatpush1.bf16.msra.mxu0 %v4810
    %6325 = vmatprep.subr.bf16.mxu0 %v4819
    %6326 = vmatpush1.bf16.msra.mxu0 %v4818
    %6327 = vmatprep.subr.bf16.mxu0 %v4827
    %6328 = vmatpush1.bf16.msra.mxu0 %v4826
    %6329 = vmatprep.subr.bf16.mxu0 %v4835
    %6330 = vmatpush1.bf16.msra.mxu0 %v4834
    %6331 = vmatprep.subr.bf16.mxu0 %v4843
    %6332 = vmatpush1.bf16.msra.mxu0 %v4842
    %6333 = vmatprep.subr.bf16.mxu0 %v4851
    %6334 = vmatpush1.bf16.msra.mxu0 %v4850
    %6335 = vmatprep.subr.bf16.mxu0 %v4859
    %6336 = vmatpush1.bf16.msra.mxu0 %v4858
    %6337 = vmatprep.subr.bf16.mxu0 %v4867
    %6338 = vmatpush1.bf16.msra.mxu0 %v4866
    %6339 = vmatprep.subr.bf16.mxu0 %v4875
    %6340 = vmatpush1.bf16.msra.mxu0 %v4874
    %6341 = vmatprep.subr.bf16.mxu0 %v4883
    %6342 = vmatpush1.bf16.msra.mxu0 %v4882
    %6343 = vmatprep.subr.bf16.mxu0 %v4891
    %6344 = vmatpush1.bf16.msra.mxu0 %v4890
    %6345 = vmatprep.subr.bf16.mxu0 %v4899
    %6346 = vmatpush1.bf16.msra.mxu0 %v4898
    %6347 = vmatprep.mubr.bf16.mxu0 %v991
    %6348 = vmatmul.mubr.bf16.gmra.mrb[0].mxu0 %v990
    %v6349 = vpop.f32.mrb[0].mxu0
    %v6350 = vadd.f32 %v6307, %v6349
    %v6351 = vpop.f32.mrb[0].mxu0
    %v6352 = vadd.f32 %v6309, %v6351
    %v6353 = vpop.f32.mrb[0].mxu0
    %v6354 = vadd.f32 %v6311, %v6353
    %v6355 = vpop.f32.mrb[0].mxu0
    %v6356 = vadd.f32 %v6313, %v6355
    %6357 = vdwg.mxu0
    %6358 = vmatprep.subr.bf16.mxu0 %v4907
    %6359 = vmatpush1.bf16.msra.mxu0 %v4906
    %6360 = vmatprep.subr.bf16.mxu0 %v4915
    %6361 = vmatpush1.bf16.msra.mxu0 %v4914
    %6362 = vmatprep.subr.bf16.mxu0 %v4923
    %6363 = vmatpush1.bf16.msra.mxu0 %v4922
    %6364 = vmatprep.subr.bf16.mxu0 %v4931
    %6365 = vmatpush1.bf16.msra.mxu0 %v4930
    %6366 = vmatprep.subr.bf16.mxu0 %v4939
    %6367 = vmatpush1.bf16.msra.mxu0 %v4938
    %6368 = vmatprep.subr.bf16.mxu0 %v4947
    %6369 = vmatpush1.bf16.msra.mxu0 %v4946
    %6370 = vmatprep.subr.bf16.mxu0 %v4955
    %6371 = vmatpush1.bf16.msra.mxu0 %v4954
    %6372 = vmatprep.subr.bf16.mxu0 %v4963
    %6373 = vmatpush1.bf16.msra.mxu0 %v4962
    %6374 = vmatprep.subr.bf16.mxu0 %v4971
    %6375 = vmatpush1.bf16.msra.mxu0 %v4970
    %6376 = vmatprep.subr.bf16.mxu0 %v4979
    %6377 = vmatpush1.bf16.msra.mxu0 %v4978
    %6378 = vmatprep.subr.bf16.mxu0 %v4987
    %6379 = vmatpush1.bf16.msra.mxu0 %v4986
    %6380 = vmatprep.subr.bf16.mxu0 %v4995
    %6381 = vmatpush1.bf16.msra.mxu0 %v4994
    %6382 = vmatprep.subr.bf16.mxu0 %v5003
    %6383 = vmatpush1.bf16.msra.mxu0 %v5002
    %6384 = vmatprep.subr.bf16.mxu0 %v5011
    %6385 = vmatpush1.bf16.msra.mxu0 %v5010
    %6386 = vmatprep.subr.bf16.mxu0 %v5019
    %6387 = vmatpush1.bf16.msra.mxu0 %v5018
    %6388 = vmatprep.subr.bf16.mxu0 %v5027
    %6389 = vmatpush1.bf16.msra.mxu0 %v5026
    %6390 = vmatprep.mubr.bf16.mxu0 %v993
    %6391 = vmatmul.mubr.bf16.gmra.mrb[0].mxu0 %v992
    %v6392 = vpop.f32.mrb[0].mxu0
    %v6393 = vadd.f32 %v6350, %v6392
    %v6394 = vpop.f32.mrb[0].mxu0
    %v6395 = vadd.f32 %v6352, %v6394
    %v6396 = vpop.f32.mrb[0].mxu0
    %v6397 = vadd.f32 %v6354, %v6396
    %v6398 = vpop.f32.mrb[0].mxu0
    %v6399 = vadd.f32 %v6356, %v6398
    %6400 = vdwg.mxu0
    %6401 = vmatprep.subr.bf16.mxu0 %v5035
    %6402 = vmatpush1.bf16.msra.mxu0 %v5034
    %6403 = vmatprep.subr.bf16.mxu0 %v5043
    %6404 = vmatpush1.bf16.msra.mxu0 %v5042
    %6405 = vmatprep.subr.bf16.mxu0 %v5051
    %6406 = vmatpush1.bf16.msra.mxu0 %v5050
    %6407 = vmatprep.subr.bf16.mxu0 %v5059
    %6408 = vmatpush1.bf16.msra.mxu0 %v5058
    %6409 = vmatprep.subr.bf16.mxu0 %v5067
    %6410 = vmatpush1.bf16.msra.mxu0 %v5066
    %6411 = vmatprep.subr.bf16.mxu0 %v5075
    %6412 = vmatpush1.bf16.msra.mxu0 %v5074
    %6413 = vmatprep.subr.bf16.mxu0 %v5083
    %6414 = vmatpush1.bf16.msra.mxu0 %v5082
    %6415 = vmatprep.subr.bf16.mxu0 %v5091
    %6416 = vmatpush1.bf16.msra.mxu0 %v5090
    %6417 = vmatprep.subr.bf16.mxu0 %v5099
    %6418 = vmatpush1.bf16.msra.mxu0 %v5098
    %6419 = vmatprep.subr.bf16.mxu0 %v5107
    %6420 = vmatpush1.bf16.msra.mxu0 %v5106
    %6421 = vmatprep.subr.bf16.mxu0 %v5115
    %6422 = vmatpush1.bf16.msra.mxu0 %v5114
    %6423 = vmatprep.subr.bf16.mxu0 %v5123
    %6424 = vmatpush1.bf16.msra.mxu0 %v5122
    %6425 = vmatprep.subr.bf16.mxu0 %v5131
    %6426 = vmatpush1.bf16.msra.mxu0 %v5130
    %6427 = vmatprep.subr.bf16.mxu0 %v5139
    %6428 = vmatpush1.bf16.msra.mxu0 %v5138
    %6429 = vmatprep.subr.bf16.mxu0 %v5147
    %6430 = vmatpush1.bf16.msra.mxu0 %v5146
    %6431 = vmatprep.subr.bf16.mxu0 %v5155
    %6432 = vmatpush1.bf16.msra.mxu0 %v5154
    %6433 = vmatprep.mubr.bf16.mxu0 %v995
    %6434 = vmatmul.mubr.bf16.gmra.mrb[0].mxu0 %v994
    %v6435 = vpop.f32.mrb[0].mxu0
    %v6436 = vadd.f32 %v6393, %v6435
    %v6437 = vpop.f32.mrb[0].mxu0
    %v6438 = vadd.f32 %v6395, %v6437
    %v6439 = vpop.f32.mrb[0].mxu0
    %v6440 = vadd.f32 %v6397, %v6439
    %v6441 = vpop.f32.mrb[0].mxu0
    %v6442 = vadd.f32 %v6399, %v6441
    %6443 = vdwg.mxu0
    %6444 = vmatprep.subr.bf16.mxu0 %v4397
    %6445 = vmatpush1.bf16.msra.mxu0 %v4396
    %6446 = vmatprep.subr.bf16.mxu0 %v4405
    %6447 = vmatpush1.bf16.msra.mxu0 %v4404
    %6448 = vmatprep.subr.bf16.mxu0 %v4413
    %6449 = vmatpush1.bf16.msra.mxu0 %v4412
    %6450 = vmatprep.subr.bf16.mxu0 %v4421
    %6451 = vmatpush1.bf16.msra.mxu0 %v4420
    %6452 = vmatprep.subr.bf16.mxu0 %v4429
    %6453 = vmatpush1.bf16.msra.mxu0 %v4428
    %6454 = vmatprep.subr.bf16.mxu0 %v4437
    %6455 = vmatpush1.bf16.msra.mxu0 %v4436
    %6456 = vmatprep.subr.bf16.mxu0 %v4445
    %6457 = vmatpush1.bf16.msra.mxu0 %v4444
    %6458 = vmatprep.subr.bf16.mxu0 %v4453
    %6459 = vmatpush1.bf16.msra.mxu0 %v4452
    %6460 = vmatprep.subr.bf16.mxu0 %v4461
    %6461 = vmatpush1.bf16.msra.mxu0 %v4460
    %6462 = vmatprep.subr.bf16.mxu0 %v4469
    %6463 = vmatpush1.bf16.msra.mxu0 %v4468
    %6464 = vmatprep.subr.bf16.mxu0 %v4477
    %6465 = vmatpush1.bf16.msra.mxu0 %v4476
    %6466 = vmatprep.subr.bf16.mxu0 %v4485
    %6467 = vmatpush1.bf16.msra.mxu0 %v4484
    %6468 = vmatprep.subr.bf16.mxu0 %v4493
    %6469 = vmatpush1.bf16.msra.mxu0 %v4492
    %6470 = vmatprep.subr.bf16.mxu0 %v4501
    %6471 = vmatpush1.bf16.msra.mxu0 %v4500
    %6472 = vmatprep.subr.bf16.mxu0 %v4509
    %6473 = vmatpush1.bf16.msra.mxu0 %v4508
    %6474 = vmatprep.subr.bf16.mxu0 %v4517
    %6475 = vmatpush1.bf16.msra.mxu0 %v4516
    %6476 = vmatprep.mubr.bf16.mxu0 %v985
    %6477 = vmatmul.mubr.bf16.gmra.mrb[0].mxu0 %v984
    %v6478 = vpop.f32.mrb[0].mxu0
    %v6479 = vadd.f32 0.0, %v6478
    %v6480 = vpop.f32.mrb[0].mxu0
    %v6481 = vadd.f32 0.0, %v6480
    %v6482 = vpop.f32.mrb[0].mxu0
    %v6483 = vadd.f32 0.0, %v6482
    %v6484 = vpop.f32.mrb[0].mxu0
    %v6485 = vadd.f32 0.0, %v6484
    %6486 = vdwg.mxu0
    %6487 = vmatprep.subr.bf16.mxu0 %v4525
    %6488 = vmatpush1.bf16.msra.mxu0 %v4524
    %6489 = vmatprep.subr.bf16.mxu0 %v4533
    %6490 = vmatpush1.bf16.msra.mxu0 %v4532
    %6491 = vmatprep.subr.bf16.mxu0 %v4541
    %6492 = vmatpush1.bf16.msra.mxu0 %v4540
    %6493 = vmatprep.subr.bf16.mxu0 %v4549
    %6494 = vmatpush1.bf16.msra.mxu0 %v4548
    %6495 = vmatprep.subr.bf16.mxu0 %v4557
    %6496 = vmatpush1.bf16.msra.mxu0 %v4556
    %6497 = vmatprep.subr.bf16.mxu0 %v4565
    %6498 = vmatpush1.bf16.msra.mxu0 %v4564
    %6499 = vmatprep.subr.bf16.mxu0 %v4573
    %6500 = vmatpush1.bf16.msra.mxu0 %v4572
    %6501 = vmatprep.subr.bf16.mxu0 %v4581
    %6502 = vmatpush1.bf16.msra.mxu0 %v4580
    %6503 = vmatprep.subr.bf16.mxu0 %v4589
    %6504 = vmatpush1.bf16.msra.mxu0 %v4588
    %6505 = vmatprep.subr.bf16.mxu0 %v4597
    %6506 = vmatpush1.bf16.msra.mxu0 %v4596
    %6507 = vmatprep.subr.bf16.mxu0 %v4605
    %6508 = vmatpush1.bf16.msra.mxu0 %v4604
    %6509 = vmatprep.subr.bf16.mxu0 %v4613
    %6510 = vmatpush1.bf16.msra.mxu0 %v4612
    %6511 = vmatprep.subr.bf16.mxu0 %v4621
    %6512 = vmatpush1.bf16.msra.mxu0 %v4620
    %6513 = vmatprep.subr.bf16.mxu0 %v4629
    %6514 = vmatpush1.bf16.msra.mxu0 %v4628
    %6515 = vmatprep.subr.bf16.mxu0 %v4637
    %6516 = vmatpush1.bf16.msra.mxu0 %v4636
    %6517 = vmatprep.subr.bf16.mxu0 %v4645
    %6518 = vmatpush1.bf16.msra.mxu0 %v4644
    %6519 = vmatprep.mubr.bf16.mxu0 %v987
    %6520 = vmatmul.mubr.bf16.gmra.mrb[0].mxu0 %v986
    %v6521 = vpop.f32.mrb[0].mxu0
    %v6522 = vadd.f32 %v6479, %v6521
    %v6523 = vpop.f32.mrb[0].mxu0
    %v6524 = vadd.f32 %v6481, %v6523
    %v6525 = vpop.f32.mrb[0].mxu0
    %v6526 = vadd.f32 %v6483, %v6525
    %v6527 = vpop.f32.mrb[0].mxu0
    %v6528 = vadd.f32 %v6485, %v6527
    %6529 = vdwg.mxu0
    %6530 = vmatprep.subr.bf16.mxu0 %v4653
    %6531 = vmatpush1.bf16.msra.mxu0 %v4652
    %6532 = vmatprep.subr.bf16.mxu0 %v4661
    %6533 = vmatpush1.bf16.msra.mxu0 %v4660
    %6534 = vmatprep.subr.bf16.mxu0 %v4669
    %6535 = vmatpush1.bf16.msra.mxu0 %v4668
    %6536 = vmatprep.subr.bf16.mxu0 %v4677
    %6537 = vmatpush1.bf16.msra.mxu0 %v4676
    %6538 = vmatprep.subr.bf16.mxu0 %v4685
    %6539 = vmatpush1.bf16.msra.mxu0 %v4684
    %6540 = vmatprep.subr.bf16.mxu0 %v4693
    %6541 = vmatpush1.bf16.msra.mxu0 %v4692
    %6542 = vmatprep.subr.bf16.mxu0 %v4701
    %6543 = vmatpush1.bf16.msra.mxu0 %v4700
    %6544 = vmatprep.subr.bf16.mxu0 %v4709
    %6545 = vmatpush1.bf16.msra.mxu0 %v4708
    %6546 = vmatprep.subr.bf16.mxu0 %v4717
    %6547 = vmatpush1.bf16.msra.mxu0 %v4716
    %6548 = vmatprep.subr.bf16.mxu0 %v4725
    %6549 = vmatpush1.bf16.msra.mxu0 %v4724
    %6550 = vmatprep.subr.bf16.mxu0 %v4733
    %6551 = vmatpush1.bf16.msra.mxu0 %v4732
    %6552 = vmatprep.subr.bf16.mxu0 %v4741
    %6553 = vmatpush1.bf16.msra.mxu0 %v4740
    %6554 = vmatprep.subr.bf16.mxu0 %v4749
    %6555 = vmatpush1.bf16.msra.mxu0 %v4748
    %6556 = vmatprep.subr.bf16.mxu0 %v4757
    %6557 = vmatpush1.bf16.msra.mxu0 %v4756
    %6558 = vmatprep.subr.bf16.mxu0 %v4765
    %6559 = vmatpush1.bf16.msra.mxu0 %v4764
    %6560 = vmatprep.subr.bf16.mxu0 %v4773
    %6561 = vmatpush1.bf16.msra.mxu0 %v4772
    %6562 = vmatprep.mubr.bf16.mxu0 %v989
    %6563 = vmatmul.mubr.bf16.gmra.mrb[0].mxu0 %v988
    %v6564 = vpop.f32.mrb[0].mxu0
    %v6565 = vadd.f32 %v6522, %v6564
    %v6566 = vpop.f32.mrb[0].mxu0
    %v6567 = vadd.f32 %v6524, %v6566
    %v6568 = vpop.f32.mrb[0].mxu0
    %v6569 = vadd.f32 %v6526, %v6568
    %v6570 = vpop.f32.mrb[0].mxu0
    %v6571 = vadd.f32 %v6528, %v6570
    %6572 = vdwg.mxu0
    %6573 = vmatprep.subr.bf16.mxu0 %v4781
    %6574 = vmatpush1.bf16.msra.mxu0 %v4780
    %6575 = vmatprep.subr.bf16.mxu0 %v4789
    %6576 = vmatpush1.bf16.msra.mxu0 %v4788
    %6577 = vmatprep.subr.bf16.mxu0 %v4797
    %6578 = vmatpush1.bf16.msra.mxu0 %v4796
    %6579 = vmatprep.subr.bf16.mxu0 %v4805
    %6580 = vmatpush1.bf16.msra.mxu0 %v4804
    %6581 = vmatprep.subr.bf16.mxu0 %v4813
    %6582 = vmatpush1.bf16.msra.mxu0 %v4812
    %6583 = vmatprep.subr.bf16.mxu0 %v4821
    %6584 = vmatpush1.bf16.msra.mxu0 %v4820
    %6585 = vmatprep.subr.bf16.mxu0 %v4829
    %6586 = vmatpush1.bf16.msra.mxu0 %v4828
    %6587 = vmatprep.subr.bf16.mxu0 %v4837
    %6588 = vmatpush1.bf16.msra.mxu0 %v4836
    %6589 = vmatprep.subr.bf16.mxu0 %v4845
    %6590 = vmatpush1.bf16.msra.mxu0 %v4844
    %6591 = vmatprep.subr.bf16.mxu0 %v4853
    %6592 = vmatpush1.bf16.msra.mxu0 %v4852
    %6593 = vmatprep.subr.bf16.mxu0 %v4861
    %6594 = vmatpush1.bf16.msra.mxu0 %v4860
    %6595 = vmatprep.subr.bf16.mxu0 %v4869
    %6596 = vmatpush1.bf16.msra.mxu0 %v4868
    %6597 = vmatprep.subr.bf16.mxu0 %v4877
    %6598 = vmatpush1.bf16.msra.mxu0 %v4876
    %6599 = vmatprep.subr.bf16.mxu0 %v4885
    %6600 = vmatpush1.bf16.msra.mxu0 %v4884
    %6601 = vmatprep.subr.bf16.mxu0 %v4893
    %6602 = vmatpush1.bf16.msra.mxu0 %v4892
    %6603 = vmatprep.subr.bf16.mxu0 %v4901
    %6604 = vmatpush1.bf16.msra.mxu0 %v4900
    %6605 = vmatprep.mubr.bf16.mxu0 %v991
    %6606 = vmatmul.mubr.bf16.gmra.mrb[0].mxu0 %v990
    %v6607 = vpop.f32.mrb[0].mxu0
    %v6608 = vadd.f32 %v6565, %v6607
    %v6609 = vpop.f32.mrb[0].mxu0
    %v6610 = vadd.f32 %v6567, %v6609
    %v6611 = vpop.f32.mrb[0].mxu0
    %v6612 = vadd.f32 %v6569, %v6611
    %v6613 = vpop.f32.mrb[0].mxu0
    %v6614 = vadd.f32 %v6571, %v6613
    %6615 = vdwg.mxu0
    %6616 = vmatprep.subr.bf16.mxu0 %v4909
    %6617 = vmatpush1.bf16.msra.mxu0 %v4908
    %6618 = vmatprep.subr.bf16.mxu0 %v4917
    %6619 = vmatpush1.bf16.msra.mxu0 %v4916
    %6620 = vmatprep.subr.bf16.mxu0 %v4925
    %6621 = vmatpush1.bf16.msra.mxu0 %v4924
    %6622 = vmatprep.subr.bf16.mxu0 %v4933
    %6623 = vmatpush1.bf16.msra.mxu0 %v4932
    %6624 = vmatprep.subr.bf16.mxu0 %v4941
    %6625 = vmatpush1.bf16.msra.mxu0 %v4940
    %6626 = vmatprep.subr.bf16.mxu0 %v4949
    %6627 = vmatpush1.bf16.msra.mxu0 %v4948
    %6628 = vmatprep.subr.bf16.mxu0 %v4957
    %6629 = vmatpush1.bf16.msra.mxu0 %v4956
    %6630 = vmatprep.subr.bf16.mxu0 %v4965
    %6631 = vmatpush1.bf16.msra.mxu0 %v4964
    %6632 = vmatprep.subr.bf16.mxu0 %v4973
    %6633 = vmatpush1.bf16.msra.mxu0 %v4972
    %6634 = vmatprep.subr.bf16.mxu0 %v4981
    %6635 = vmatpush1.bf16.msra.mxu0 %v4980
    %6636 = vmatprep.subr.bf16.mxu0 %v4989
    %6637 = vmatpush1.bf16.msra.mxu0 %v4988
    %6638 = vmatprep.subr.bf16.mxu0 %v4997
    %6639 = vmatpush1.bf16.msra.mxu0 %v4996
    %6640 = vmatprep.subr.bf16.mxu0 %v5005
    %6641 = vmatpush1.bf16.msra.mxu0 %v5004
    %6642 = vmatprep.subr.bf16.mxu0 %v5013
    %6643 = vmatpush1.bf16.msra.mxu0 %v5012
    %6644 = vmatprep.subr.bf16.mxu0 %v5021
    %6645 = vmatpush1.bf16.msra.mxu0 %v5020
    %6646 = vmatprep.subr.bf16.mxu0 %v5029
    %6647 = vmatpush1.bf16.msra.mxu0 %v5028
    %6648 = vmatprep.mubr.bf16.mxu0 %v993
    %6649 = vmatmul.mubr.bf16.gmra.mrb[0].mxu0 %v992
    %v6650 = vpop.f32.mrb[0].mxu0
    %v6651 = vadd.f32 %v6608, %v6650
    %v6652 = vpop.f32.mrb[0].mxu0
    %v6653 = vadd.f32 %v6610, %v6652
    %v6654 = vpop.f32.mrb[0].mxu0
    %v6655 = vadd.f32 %v6612, %v6654
    %v6656 = vpop.f32.mrb[0].mxu0
    %v6657 = vadd.f32 %v6614, %v6656
    %6658 = vdwg.mxu0
    %6659 = vmatprep.subr.bf16.mxu0 %v5037
    %6660 = vmatpush1.bf16.msra.mxu0 %v5036
    %6661 = vmatprep.subr.bf16.mxu0 %v5045
    %6662 = vmatpush1.bf16.msra.mxu0 %v5044
    %6663 = vmatprep.subr.bf16.mxu0 %v5053
    %6664 = vmatpush1.bf16.msra.mxu0 %v5052
    %6665 = vmatprep.subr.bf16.mxu0 %v5061
    %6666 = vmatpush1.bf16.msra.mxu0 %v5060
    %6667 = vmatprep.subr.bf16.mxu0 %v5069
    %6668 = vmatpush1.bf16.msra.mxu0 %v5068
    %6669 = vmatprep.subr.bf16.mxu0 %v5077
    %6670 = vmatpush1.bf16.msra.mxu0 %v5076
    %6671 = vmatprep.subr.bf16.mxu0 %v5085
    %6672 = vmatpush1.bf16.msra.mxu0 %v5084
    %6673 = vmatprep.subr.bf16.mxu0 %v5093
    %6674 = vmatpush1.bf16.msra.mxu0 %v5092
    %6675 = vmatprep.subr.bf16.mxu0 %v5101
    %6676 = vmatpush1.bf16.msra.mxu0 %v5100
    %6677 = vmatprep.subr.bf16.mxu0 %v5109
    %6678 = vmatpush1.bf16.msra.mxu0 %v5108
    %6679 = vmatprep.subr.bf16.mxu0 %v5117
    %6680 = vmatpush1.bf16.msra.mxu0 %v5116
    %6681 = vmatprep.subr.bf16.mxu0 %v5125
    %6682 = vmatpush1.bf16.msra.mxu0 %v5124
    %6683 = vmatprep.subr.bf16.mxu0 %v5133
    %6684 = vmatpush1.bf16.msra.mxu0 %v5132
    %6685 = vmatprep.subr.bf16.mxu0 %v5141
    %6686 = vmatpush1.bf16.msra.mxu0 %v5140
    %6687 = vmatprep.subr.bf16.mxu0 %v5149
    %6688 = vmatpush1.bf16.msra.mxu0 %v5148
    %6689 = vmatprep.subr.bf16.mxu0 %v5157
    %6690 = vmatpush1.bf16.msra.mxu0 %v5156
    %6691 = vmatprep.mubr.bf16.mxu0 %v995
    %6692 = vmatmul.mubr.bf16.gmra.mrb[0].mxu0 %v994
    %v6693 = vpop.f32.mrb[0].mxu0
    %v6694 = vadd.f32 %v6651, %v6693
    %v6695 = vpop.f32.mrb[0].mxu0
    %v6696 = vadd.f32 %v6653, %v6695
    %v6697 = vpop.f32.mrb[0].mxu0
    %v6698 = vadd.f32 %v6655, %v6697
    %v6699 = vpop.f32.mrb[0].mxu0
    %v6700 = vadd.f32 %v6657, %v6699
    %6701 = vdwg.mxu0
    %6702 = vmatprep.subr.bf16.mxu0 %v4399
    %6703 = vmatpush1.bf16.msra.mxu0 %v4398
    %6704 = vmatprep.subr.bf16.mxu0 %v4407
    %6705 = vmatpush1.bf16.msra.mxu0 %v4406
    %6706 = vmatprep.subr.bf16.mxu0 %v4415
    %6707 = vmatpush1.bf16.msra.mxu0 %v4414
    %6708 = vmatprep.subr.bf16.mxu0 %v4423
    %6709 = vmatpush1.bf16.msra.mxu0 %v4422
    %6710 = vmatprep.subr.bf16.mxu0 %v4431
    %6711 = vmatpush1.bf16.msra.mxu0 %v4430
    %6712 = vmatprep.subr.bf16.mxu0 %v4439
    %6713 = vmatpush1.bf16.msra.mxu0 %v4438
    %6714 = vmatprep.subr.bf16.mxu0 %v4447
    %6715 = vmatpush1.bf16.msra.mxu0 %v4446
    %6716 = vmatprep.subr.bf16.mxu0 %v4455
    %6717 = vmatpush1.bf16.msra.mxu0 %v4454
    %6718 = vmatprep.subr.bf16.mxu0 %v4463
    %6719 = vmatpush1.bf16.msra.mxu0 %v4462
    %6720 = vmatprep.subr.bf16.mxu0 %v4471
    %6721 = vmatpush1.bf16.msra.mxu0 %v4470
    %6722 = vmatprep.subr.bf16.mxu0 %v4479
    %6723 = vmatpush1.bf16.msra.mxu0 %v4478
    %6724 = vmatprep.subr.bf16.mxu0 %v4487
    %6725 = vmatpush1.bf16.msra.mxu0 %v4486
    %6726 = vmatprep.subr.bf16.mxu0 %v4495
    %6727 = vmatpush1.bf16.msra.mxu0 %v4494
    %6728 = vmatprep.subr.bf16.mxu0 %v4503
    %6729 = vmatpush1.bf16.msra.mxu0 %v4502
    %6730 = vmatprep.subr.bf16.mxu0 %v4511
    %6731 = vmatpush1.bf16.msra.mxu0 %v4510
    %6732 = vmatprep.subr.bf16.mxu0 %v4519
    %6733 = vmatpush1.bf16.msra.mxu0 %v4518
    %6734 = vmatprep.mubr.bf16.mxu0 %v985
    %6735 = vmatmul.mubr.bf16.gmra.mrb[0].mxu0 %v984
    %v6736 = vpop.f32.mrb[0].mxu0
    %v6737 = vadd.f32 0.0, %v6736
    %v6738 = vpop.f32.mrb[0].mxu0
    %v6739 = vadd.f32 0.0, %v6738
    %v6740 = vpop.f32.mrb[0].mxu0
    %v6741 = vadd.f32 0.0, %v6740
    %v6742 = vpop.f32.mrb[0].mxu0
    %v6743 = vadd.f32 0.0, %v6742
    %6744 = vdwg.mxu0
    %6745 = vmatprep.subr.bf16.mxu0 %v4527
    %6746 = vmatpush1.bf16.msra.mxu0 %v4526
    %6747 = vmatprep.subr.bf16.mxu0 %v4535
    %6748 = vmatpush1.bf16.msra.mxu0 %v4534
    %6749 = vmatprep.subr.bf16.mxu0 %v4543
    %6750 = vmatpush1.bf16.msra.mxu0 %v4542
    %6751 = vmatprep.subr.bf16.mxu0 %v4551
    %6752 = vmatpush1.bf16.msra.mxu0 %v4550
    %6753 = vmatprep.subr.bf16.mxu0 %v4559
    %6754 = vmatpush1.bf16.msra.mxu0 %v4558
    %6755 = vmatprep.subr.bf16.mxu0 %v4567
    %6756 = vmatpush1.bf16.msra.mxu0 %v4566
    %6757 = vmatprep.subr.bf16.mxu0 %v4575
    %6758 = vmatpush1.bf16.msra.mxu0 %v4574
    %6759 = vmatprep.subr.bf16.mxu0 %v4583
    %6760 = vmatpush1.bf16.msra.mxu0 %v4582
    %6761 = vmatprep.subr.bf16.mxu0 %v4591
    %6762 = vmatpush1.bf16.msra.mxu0 %v4590
    %6763 = vmatprep.subr.bf16.mxu0 %v4599
    %6764 = vmatpush1.bf16.msra.mxu0 %v4598
    %6765 = vmatprep.subr.bf16.mxu0 %v4607
    %6766 = vmatpush1.bf16.msra.mxu0 %v4606
    %6767 = vmatprep.subr.bf16.mxu0 %v4615
    %6768 = vmatpush1.bf16.msra.mxu0 %v4614
    %6769 = vmatprep.subr.bf16.mxu0 %v4623
    %6770 = vmatpush1.bf16.msra.mxu0 %v4622
    %6771 = vmatprep.subr.bf16.mxu0 %v4631
    %6772 = vmatpush1.bf16.msra.mxu0 %v4630
    %6773 = vmatprep.subr.bf16.mxu0 %v4639
    %6774 = vmatpush1.bf16.msra.mxu0 %v4638
    %6775 = vmatprep.subr.bf16.mxu0 %v4647
    %6776 = vmatpush1.bf16.msra.mxu0 %v4646
    %6777 = vmatprep.mubr.bf16.mxu0 %v987
    %6778 = vmatmul.mubr.bf16.gmra.mrb[0].mxu0 %v986
    %v6779 = vpop.f32.mrb[0].mxu0
    %v6780 = vadd.f32 %v6737, %v6779
    %v6781 = vpop.f32.mrb[0].mxu0
    %v6782 = vadd.f32 %v6739, %v6781
    %v6783 = vpop.f32.mrb[0].mxu0
    %v6784 = vadd.f32 %v6741, %v6783
    %v6785 = vpop.f32.mrb[0].mxu0
    %v6786 = vadd.f32 %v6743, %v6785
    %6787 = vdwg.mxu0
    %6788 = vmatprep.subr.bf16.mxu0 %v4655
    %6789 = vmatpush1.bf16.msra.mxu0 %v4654
    %6790 = vmatprep.subr.bf16.mxu0 %v4663
    %6791 = vmatpush1.bf16.msra.mxu0 %v4662
    %6792 = vmatprep.subr.bf16.mxu0 %v4671
    %6793 = vmatpush1.bf16.msra.mxu0 %v4670
    %6794 = vmatprep.subr.bf16.mxu0 %v4679
    %6795 = vmatpush1.bf16.msra.mxu0 %v4678
    %6796 = vmatprep.subr.bf16.mxu0 %v4687
    %6797 = vmatpush1.bf16.msra.mxu0 %v4686
    %6798 = vmatprep.subr.bf16.mxu0 %v4695
    %6799 = vmatpush1.bf16.msra.mxu0 %v4694
    %6800 = vmatprep.subr.bf16.mxu0 %v4703
    %6801 = vmatpush1.bf16.msra.mxu0 %v4702
    %6802 = vmatprep.subr.bf16.mxu0 %v4711
    %6803 = vmatpush1.bf16.msra.mxu0 %v4710
    %6804 = vmatprep.subr.bf16.mxu0 %v4719
    %6805 = vmatpush1.bf16.msra.mxu0 %v4718
    %6806 = vmatprep.subr.bf16.mxu0 %v4727
    %6807 = vmatpush1.bf16.msra.mxu0 %v4726
    %6808 = vmatprep.subr.bf16.mxu0 %v4735
    %6809 = vmatpush1.bf16.msra.mxu0 %v4734
    %6810 = vmatprep.subr.bf16.mxu0 %v4743
    %6811 = vmatpush1.bf16.msra.mxu0 %v4742
    %6812 = vmatprep.subr.bf16.mxu0 %v4751
    %6813 = vmatpush1.bf16.msra.mxu0 %v4750
    %6814 = vmatprep.subr.bf16.mxu0 %v4759
    %6815 = vmatpush1.bf16.msra.mxu0 %v4758
    %6816 = vmatprep.subr.bf16.mxu0 %v4767
    %6817 = vmatpush1.bf16.msra.mxu0 %v4766
    %6818 = vmatprep.subr.bf16.mxu0 %v4775
    %6819 = vmatpush1.bf16.msra.mxu0 %v4774
    %6820 = vmatprep.mubr.bf16.mxu0 %v989
    %6821 = vmatmul.mubr.bf16.gmra.mrb[0].mxu0 %v988
    %v6822 = vpop.f32.mrb[0].mxu0
    %v6823 = vadd.f32 %v6780, %v6822
    %v6824 = vpop.f32.mrb[0].mxu0
    %v6825 = vadd.f32 %v6782, %v6824
    %v6826 = vpop.f32.mrb[0].mxu0
    %v6827 = vadd.f32 %v6784, %v6826
    %v6828 = vpop.f32.mrb[0].mxu0
    %v6829 = vadd.f32 %v6786, %v6828
    %6830 = vdwg.mxu0
    %6831 = vmatprep.subr.bf16.mxu0 %v4783
    %6832 = vmatpush1.bf16.msra.mxu0 %v4782
    %6833 = vmatprep.subr.bf16.mxu0 %v4791
    %6834 = vmatpush1.bf16.msra.mxu0 %v4790
    %6835 = vmatprep.subr.bf16.mxu0 %v4799
    %6836 = vmatpush1.bf16.msra.mxu0 %v4798
    %6837 = vmatprep.subr.bf16.mxu0 %v4807
    %6838 = vmatpush1.bf16.msra.mxu0 %v4806
    %6839 = vmatprep.subr.bf16.mxu0 %v4815
    %6840 = vmatpush1.bf16.msra.mxu0 %v4814
    %6841 = vmatprep.subr.bf16.mxu0 %v4823
    %6842 = vmatpush1.bf16.msra.mxu0 %v4822
    %6843 = vmatprep.subr.bf16.mxu0 %v4831
    %6844 = vmatpush1.bf16.msra.mxu0 %v4830
    %6845 = vmatprep.subr.bf16.mxu0 %v4839
    %6846 = vmatpush1.bf16.msra.mxu0 %v4838
    %6847 = vmatprep.subr.bf16.mxu0 %v4847
    %6848 = vmatpush1.bf16.msra.mxu0 %v4846
    %6849 = vmatprep.subr.bf16.mxu0 %v4855
    %6850 = vmatpush1.bf16.msra.mxu0 %v4854
    %6851 = vmatprep.subr.bf16.mxu0 %v4863
    %6852 = vmatpush1.bf16.msra.mxu0 %v4862
    %6853 = vmatprep.subr.bf16.mxu0 %v4871
    %6854 = vmatpush1.bf16.msra.mxu0 %v4870
    %6855 = vmatprep.subr.bf16.mxu0 %v4879
    %6856 = vmatpush1.bf16.msra.mxu0 %v4878
    %6857 = vmatprep.subr.bf16.mxu0 %v4887
    %6858 = vmatpush1.bf16.msra.mxu0 %v4886
    %6859 = vmatprep.subr.bf16.mxu0 %v4895
    %6860 = vmatpush1.bf16.msra.mxu0 %v4894
    %6861 = vmatprep.subr.bf16.mxu0 %v4903
    %6862 = vmatpush1.bf16.msra.mxu0 %v4902
    %6863 = vmatprep.mubr.bf16.mxu0 %v991
    %6864 = vmatmul.mubr.bf16.gmra.mrb[0].mxu0 %v990
    %v6865 = vpop.f32.mrb[0].mxu0
    %v6866 = vadd.f32 %v6823, %v6865
    %v6867 = vpop.f32.mrb[0].mxu0
    %v6868 = vadd.f32 %v6825, %v6867
    %v6869 = vpop.f32.mrb[0].mxu0
    %v6870 = vadd.f32 %v6827, %v6869
    %v6871 = vpop.f32.mrb[0].mxu0
    %v6872 = vadd.f32 %v6829, %v6871
    %6873 = vdwg.mxu0
    %6874 = vmatprep.subr.bf16.mxu0 %v4911
    %6875 = vmatpush1.bf16.msra.mxu0 %v4910
    %6876 = vmatprep.subr.bf16.mxu0 %v4919
    %6877 = vmatpush1.bf16.msra.mxu0 %v4918
    %6878 = vmatprep.subr.bf16.mxu0 %v4927
    %6879 = vmatpush1.bf16.msra.mxu0 %v4926
    %6880 = vmatprep.subr.bf16.mxu0 %v4935
    %6881 = vmatpush1.bf16.msra.mxu0 %v4934
    %6882 = vmatprep.subr.bf16.mxu0 %v4943
    %6883 = vmatpush1.bf16.msra.mxu0 %v4942
    %6884 = vmatprep.subr.bf16.mxu0 %v4951
    %6885 = vmatpush1.bf16.msra.mxu0 %v4950
    %6886 = vmatprep.subr.bf16.mxu0 %v4959
    %6887 = vmatpush1.bf16.msra.mxu0 %v4958
    %6888 = vmatprep.subr.bf16.mxu0 %v4967
    %6889 = vmatpush1.bf16.msra.mxu0 %v4966
    %6890 = vmatprep.subr.bf16.mxu0 %v4975
    %6891 = vmatpush1.bf16.msra.mxu0 %v4974
    %6892 = vmatprep.subr.bf16.mxu0 %v4983
    %6893 = vmatpush1.bf16.msra.mxu0 %v4982
    %6894 = vmatprep.subr.bf16.mxu0 %v4991
    %6895 = vmatpush1.bf16.msra.mxu0 %v4990
    %6896 = vmatprep.subr.bf16.mxu0 %v4999
    %6897 = vmatpush1.bf16.msra.mxu0 %v4998
    %6898 = vmatprep.subr.bf16.mxu0 %v5007
    %6899 = vmatpush1.bf16.msra.mxu0 %v5006
    %6900 = vmatprep.subr.bf16.mxu0 %v5015
    %6901 = vmatpush1.bf16.msra.mxu0 %v5014
    %6902 = vmatprep.subr.bf16.mxu0 %v5023
    %6903 = vmatpush1.bf16.msra.mxu0 %v5022
    %6904 = vmatprep.subr.bf16.mxu0 %v5031
    %6905 = vmatpush1.bf16.msra.mxu0 %v5030
    %6906 = vmatprep.mubr.bf16.mxu0 %v993
    %6907 = vmatmul.mubr.bf16.gmra.mrb[0].mxu0 %v992
    %v6908 = vpop.f32.mrb[0].mxu0
    %v6909 = vadd.f32 %v6866, %v6908
    %v6910 = vpop.f32.mrb[0].mxu0
    %v6911 = vadd.f32 %v6868, %v6910
    %v6912 = vpop.f32.mrb[0].mxu0
    %v6913 = vadd.f32 %v6870, %v6912
    %v6914 = vpop.f32.mrb[0].mxu0
    %v6915 = vadd.f32 %v6872, %v6914
    %6916 = vdwg.mxu0
    %6917 = vmatprep.subr.bf16.mxu0 %v5039
    %6918 = vmatpush1.bf16.msra.mxu0 %v5038
    %6919 = vmatprep.subr.bf16.mxu0 %v5047
    %6920 = vmatpush1.bf16.msra.mxu0 %v5046
    %6921 = vmatprep.subr.bf16.mxu0 %v5055
    %6922 = vmatpush1.bf16.msra.mxu0 %v5054
    %6923 = vmatprep.subr.bf16.mxu0 %v5063
    %6924 = vmatpush1.bf16.msra.mxu0 %v5062
    %6925 = vmatprep.subr.bf16.mxu0 %v5071
    %6926 = vmatpush1.bf16.msra.mxu0 %v5070
    %6927 = vmatprep.subr.bf16.mxu0 %v5079
    %6928 = vmatpush1.bf16.msra.mxu0 %v5078
    %6929 = vmatprep.subr.bf16.mxu0 %v5087
    %6930 = vmatpush1.bf16.msra.mxu0 %v5086
    %6931 = vmatprep.subr.bf16.mxu0 %v5095
    %6932 = vmatpush1.bf16.msra.mxu0 %v5094
    %6933 = vmatprep.subr.bf16.mxu0 %v5103
    %6934 = vmatpush1.bf16.msra.mxu0 %v5102
    %6935 = vmatprep.subr.bf16.mxu0 %v5111
    %6936 = vmatpush1.bf16.msra.mxu0 %v5110
    %6937 = vmatprep.subr.bf16.mxu0 %v5119
    %6938 = vmatpush1.bf16.msra.mxu0 %v5118
    %6939 = vmatprep.subr.bf16.mxu0 %v5127
    %6940 = vmatpush1.bf16.msra.mxu0 %v5126
    %6941 = vmatprep.subr.bf16.mxu0 %v5135
    %6942 = vmatpush1.bf16.msra.mxu0 %v5134
    %6943 = vmatprep.subr.bf16.mxu0 %v5143
    %6944 = vmatpush1.bf16.msra.mxu0 %v5142
    %6945 = vmatprep.subr.bf16.mxu0 %v5151
    %6946 = vmatpush1.bf16.msra.mxu0 %v5150
    %6947 = vmatprep.subr.bf16.mxu0 %v5159
    %6948 = vmatpush1.bf16.msra.mxu0 %v5158
    %6949 = vmatprep.mubr.bf16.mxu0 %v995
    %6950 = vmatmul.mubr.bf16.gmra.mrb[0].mxu0 %v994
    %v6951 = vpop.f32.mrb[0].mxu0
    %v6952 = vadd.f32 %v6909, %v6951
    %v6953 = vpop.f32.mrb[0].mxu0
    %v6954 = vadd.f32 %v6911, %v6953
    %v6955 = vpop.f32.mrb[0].mxu0
    %v6956 = vadd.f32 %v6913, %v6955
    %v6957 = vpop.f32.mrb[0].mxu0
    %v6958 = vadd.f32 %v6915, %v6957
    %6959 = vdwg.mxu0
    %v6960 = vmul.f32 %v6178, 0.01
    %v6961 = vmul.f32 %v6180, 0.01
    %v6962 = vmul.f32 %v6436, 0.01
    %v6963 = vmul.f32 %v6438, 0.01
    %v6964 = vmul.f32 %v6694, 0.01
    %v6965 = vmul.f32 %v6696, 0.01
    %v6966 = vmul.f32 %v6952, 0.01
    %v6967 = vmul.f32 %v6954, 0.01
    %v6968 = vmul.f32 %v6182, 0.01
    %v6969 = vmul.f32 %v6184, 0.01
    %v6970 = vmul.f32 %v6440, 0.01
    %v6971 = vmul.f32 %v6442, 0.01
    %v6972 = vmul.f32 %v6698, 0.01
    %v6973 = vmul.f32 %v6700, 0.01
    %v6974 = vmul.f32 %v6956, 0.01
    %v6975 = vmul.f32 %v6958, 0.01
    %v6976 = vmax.f32 %v6178, %v6960
    %v6977 = vmax.f32 %v6180, %v6961
    %v6978 = vmax.f32 %v6436, %v6962
    %v6979 = vmax.f32 %v6438, %v6963
    %v6980 = vmax.f32 %v6694, %v6964
    %v6981 = vmax.f32 %v6696, %v6965
    %v6982 = vmax.f32 %v6952, %v6966
    %v6983 = vmax.f32 %v6954, %v6967
    %v6984 = vmax.f32 %v6182, %v6968
    %v6985 = vmax.f32 %v6184, %v6969
    %v6986 = vmax.f32 %v6440, %v6970
    %v6987 = vmax.f32 %v6442, %v6971
    %v6988 = vmax.f32 %v6698, %v6972
    %v6989 = vmax.f32 %v6700, %v6973
    %v6990 = vmax.f32 %v6956, %v6974
    %v6991 = vmax.f32 %v6958, %v6975
    %v6992 = vpack.c.bf16 %v6984, %v6976
    %v6993 = vpack.c.bf16 %v6985, %v6977
    %v6994 = vpack.c.bf16 %v6986, %v6978
    %v6995 = vpack.c.bf16 %v6987, %v6979
    %v6996 = vpack.c.bf16 %v6988, %v6980
    %v6997 = vpack.c.bf16 %v6989, %v6981
    %v6998 = vpack.c.bf16 %v6990, %v6982
    %v6999 = vpack.c.bf16 %v6991, %v6983
    %7000 = vmatprep.subr.bf16.mxu0 %v4393
    %7001 = vmatpush1.bf16.msra.mxu0 %v4392
    %7002 = vmatprep.subr.bf16.mxu0 %v4401
    %7003 = vmatpush1.bf16.msra.mxu0 %v4400
    %7004 = vmatprep.subr.bf16.mxu0 %v4409
    %7005 = vmatpush1.bf16.msra.mxu0 %v4408
    %7006 = vmatprep.subr.bf16.mxu0 %v4417
    %7007 = vmatpush1.bf16.msra.mxu0 %v4416
    %7008 = vmatprep.subr.bf16.mxu0 %v4425
    %7009 = vmatpush1.bf16.msra.mxu0 %v4424
    %7010 = vmatprep.subr.bf16.mxu0 %v4433
    %7011 = vmatpush1.bf16.msra.mxu0 %v4432
    %7012 = vmatprep.subr.bf16.mxu0 %v4441
    %7013 = vmatpush1.bf16.msra.mxu0 %v4440
    %7014 = vmatprep.subr.bf16.mxu0 %v4449
    %7015 = vmatpush1.bf16.msra.mxu0 %v4448
    %7016 = vmatprep.subr.bf16.mxu0 %v4457
    %7017 = vmatpush1.bf16.msra.mxu0 %v4456
    %7018 = vmatprep.subr.bf16.mxu0 %v4465
    %7019 = vmatpush1.bf16.msra.mxu0 %v4464
    %7020 = vmatprep.subr.bf16.mxu0 %v4473
    %7021 = vmatpush1.bf16.msra.mxu0 %v4472
    %7022 = vmatprep.subr.bf16.mxu0 %v4481
    %7023 = vmatpush1.bf16.msra.mxu0 %v4480
    %7024 = vmatprep.subr.bf16.mxu0 %v4489
    %7025 = vmatpush1.bf16.msra.mxu0 %v4488
    %7026 = vmatprep.subr.bf16.mxu0 %v4497
    %7027 = vmatpush1.bf16.msra.mxu0 %v4496
    %7028 = vmatprep.subr.bf16.mxu0 %v4505
    %7029 = vmatpush1.bf16.msra.mxu0 %v4504
    %7030 = vmatprep.subr.bf16.mxu0 %v4513
    %7031 = vmatpush1.bf16.msra.mxu0 %v4512
    %7032 = vmatprep.mubr.bf16.mxu0 %v1309
    %7033 = vmatmul.mubr.bf16.gmra.mrb[0].mxu0 %v1308
    %v7034 = vpop.f32.mrb[0].mxu0
    %v7035 = vadd.f32 0.0, %v7034
    %v7036 = vpop.f32.mrb[0].mxu0
    %v7037 = vadd.f32 0.0, %v7036
    %v7038 = vpop.f32.mrb[0].mxu0
    %v7039 = vadd.f32 0.0, %v7038
    %v7040 = vpop.f32.mrb[0].mxu0
    %v7041 = vadd.f32 0.0, %v7040
    %7042 = vdwg.mxu0
    %7043 = vmatprep.subr.bf16.mxu0 %v4521
    %7044 = vmatpush1.bf16.msra.mxu0 %v4520
    %7045 = vmatprep.subr.bf16.mxu0 %v4529
    %7046 = vmatpush1.bf16.msra.mxu0 %v4528
    %7047 = vmatprep.subr.bf16.mxu0 %v4537
    %7048 = vmatpush1.bf16.msra.mxu0 %v4536
    %7049 = vmatprep.subr.bf16.mxu0 %v4545
    %7050 = vmatpush1.bf16.msra.mxu0 %v4544
    %7051 = vmatprep.subr.bf16.mxu0 %v4553
    %7052 = vmatpush1.bf16.msra.mxu0 %v4552
    %7053 = vmatprep.subr.bf16.mxu0 %v4561
    %7054 = vmatpush1.bf16.msra.mxu0 %v4560
    %7055 = vmatprep.subr.bf16.mxu0 %v4569
    %7056 = vmatpush1.bf16.msra.mxu0 %v4568
    %7057 = vmatprep.subr.bf16.mxu0 %v4577
    %7058 = vmatpush1.bf16.msra.mxu0 %v4576
    %7059 = vmatprep.subr.bf16.mxu0 %v4585
    %7060 = vmatpush1.bf16.msra.mxu0 %v4584
    %7061 = vmatprep.subr.bf16.mxu0 %v4593
    %7062 = vmatpush1.bf16.msra.mxu0 %v4592
    %7063 = vmatprep.subr.bf16.mxu0 %v4601
    %7064 = vmatpush1.bf16.msra.mxu0 %v4600
    %7065 = vmatprep.subr.bf16.mxu0 %v4609
    %7066 = vmatpush1.bf16.msra.mxu0 %v4608
    %7067 = vmatprep.subr.bf16.mxu0 %v4617
    %7068 = vmatpush1.bf16.msra.mxu0 %v4616
    %7069 = vmatprep.subr.bf16.mxu0 %v4625
    %7070 = vmatpush1.bf16.msra.mxu0 %v4624
    %7071 = vmatprep.subr.bf16.mxu0 %v4633
    %7072 = vmatpush1.bf16.msra.mxu0 %v4632
    %7073 = vmatprep.subr.bf16.mxu0 %v4641
    %7074 = vmatpush1.bf16.msra.mxu0 %v4640
    %7075 = vmatprep.mubr.bf16.mxu0 %v1311
    %7076 = vmatmul.mubr.bf16.gmra.mrb[0].mxu0 %v1310
    %v7077 = vpop.f32.mrb[0].mxu0
    %v7078 = vadd.f32 %v7035, %v7077
    %v7079 = vpop.f32.mrb[0].mxu0
    %v7080 = vadd.f32 %v7037, %v7079
    %v7081 = vpop.f32.mrb[0].mxu0
    %v7082 = vadd.f32 %v7039, %v7081
    %v7083 = vpop.f32.mrb[0].mxu0
    %v7084 = vadd.f32 %v7041, %v7083
    %7085 = vdwg.mxu0
    %7086 = vmatprep.subr.bf16.mxu0 %v4649
    %7087 = vmatpush1.bf16.msra.mxu0 %v4648
    %7088 = vmatprep.subr.bf16.mxu0 %v4657
    %7089 = vmatpush1.bf16.msra.mxu0 %v4656
    %7090 = vmatprep.subr.bf16.mxu0 %v4665
    %7091 = vmatpush1.bf16.msra.mxu0 %v4664
    %7092 = vmatprep.subr.bf16.mxu0 %v4673
    %7093 = vmatpush1.bf16.msra.mxu0 %v4672
    %7094 = vmatprep.subr.bf16.mxu0 %v4681
    %7095 = vmatpush1.bf16.msra.mxu0 %v4680
    %7096 = vmatprep.subr.bf16.mxu0 %v4689
    %7097 = vmatpush1.bf16.msra.mxu0 %v4688
    %7098 = vmatprep.subr.bf16.mxu0 %v4697
    %7099 = vmatpush1.bf16.msra.mxu0 %v4696
    %7100 = vmatprep.subr.bf16.mxu0 %v4705
    %7101 = vmatpush1.bf16.msra.mxu0 %v4704
    %7102 = vmatprep.subr.bf16.mxu0 %v4713
    %7103 = vmatpush1.bf16.msra.mxu0 %v4712
    %7104 = vmatprep.subr.bf16.mxu0 %v4721
    %7105 = vmatpush1.bf16.msra.mxu0 %v4720
    %7106 = vmatprep.subr.bf16.mxu0 %v4729
    %7107 = vmatpush1.bf16.msra.mxu0 %v4728
    %7108 = vmatprep.subr.bf16.mxu0 %v4737
    %7109 = vmatpush1.bf16.msra.mxu0 %v4736
    %7110 = vmatprep.subr.bf16.mxu0 %v4745
    %7111 = vmatpush1.bf16.msra.mxu0 %v4744
    %7112 = vmatprep.subr.bf16.mxu0 %v4753
    %7113 = vmatpush1.bf16.msra.mxu0 %v4752
    %7114 = vmatprep.subr.bf16.mxu0 %v4761
    %7115 = vmatpush1.bf16.msra.mxu0 %v4760
    %7116 = vmatprep.subr.bf16.mxu0 %v4769
    %7117 = vmatpush1.bf16.msra.mxu0 %v4768
    %7118 = vmatprep.mubr.bf16.mxu0 %v1313
    %7119 = vmatmul.mubr.bf16.gmra.mrb[0].mxu0 %v1312
    %v7120 = vpop.f32.mrb[0].mxu0
    %v7121 = vadd.f32 %v7078, %v7120
    %v7122 = vpop.f32.mrb[0].mxu0
    %v7123 = vadd.f32 %v7080, %v7122
    %v7124 = vpop.f32.mrb[0].mxu0
    %v7125 = vadd.f32 %v7082, %v7124
    %v7126 = vpop.f32.mrb[0].mxu0
    %v7127 = vadd.f32 %v7084, %v7126
    %7128 = vdwg.mxu0
    %7129 = vmatprep.subr.bf16.mxu0 %v4777
    %7130 = vmatpush1.bf16.msra.mxu0 %v4776
    %7131 = vmatprep.subr.bf16.mxu0 %v4785
    %7132 = vmatpush1.bf16.msra.mxu0 %v4784
    %7133 = vmatprep.subr.bf16.mxu0 %v4793
    %7134 = vmatpush1.bf16.msra.mxu0 %v4792
    %7135 = vmatprep.subr.bf16.mxu0 %v4801
    %7136 = vmatpush1.bf16.msra.mxu0 %v4800
    %7137 = vmatprep.subr.bf16.mxu0 %v4809
    %7138 = vmatpush1.bf16.msra.mxu0 %v4808
    %7139 = vmatprep.subr.bf16.mxu0 %v4817
    %7140 = vmatpush1.bf16.msra.mxu0 %v4816
    %7141 = vmatprep.subr.bf16.mxu0 %v4825
    %7142 = vmatpush1.bf16.msra.mxu0 %v4824
    %7143 = vmatprep.subr.bf16.mxu0 %v4833
    %7144 = vmatpush1.bf16.msra.mxu0 %v4832
    %7145 = vmatprep.subr.bf16.mxu0 %v4841
    %7146 = vmatpush1.bf16.msra.mxu0 %v4840
    %7147 = vmatprep.subr.bf16.mxu0 %v4849
    %7148 = vmatpush1.bf16.msra.mxu0 %v4848
    %7149 = vmatprep.subr.bf16.mxu0 %v4857
    %7150 = vmatpush1.bf16.msra.mxu0 %v4856
    %7151 = vmatprep.subr.bf16.mxu0 %v4865
    %7152 = vmatpush1.bf16.msra.mxu0 %v4864
    %7153 = vmatprep.subr.bf16.mxu0 %v4873
    %7154 = vmatpush1.bf16.msra.mxu0 %v4872
    %7155 = vmatprep.subr.bf16.mxu0 %v4881
    %7156 = vmatpush1.bf16.msra.mxu0 %v4880
    %7157 = vmatprep.subr.bf16.mxu0 %v4889
    %7158 = vmatpush1.bf16.msra.mxu0 %v4888
    %7159 = vmatprep.subr.bf16.mxu0 %v4897
    %7160 = vmatpush1.bf16.msra.mxu0 %v4896
    %7161 = vmatprep.mubr.bf16.mxu0 %v1315
    %7162 = vmatmul.mubr.bf16.gmra.mrb[0].mxu0 %v1314
    %v7163 = vpop.f32.mrb[0].mxu0
    %v7164 = vadd.f32 %v7121, %v7163
    %v7165 = vpop.f32.mrb[0].mxu0
    %v7166 = vadd.f32 %v7123, %v7165
    %v7167 = vpop.f32.mrb[0].mxu0
    %v7168 = vadd.f32 %v7125, %v7167
    %v7169 = vpop.f32.mrb[0].mxu0
    %v7170 = vadd.f32 %v7127, %v7169
    %7171 = vdwg.mxu0
    %7172 = vmatprep.subr.bf16.mxu0 %v4905
    %7173 = vmatpush1.bf16.msra.mxu0 %v4904
    %7174 = vmatprep.subr.bf16.mxu0 %v4913
    %7175 = vmatpush1.bf16.msra.mxu0 %v4912
    %7176 = vmatprep.subr.bf16.mxu0 %v4921
    %7177 = vmatpush1.bf16.msra.mxu0 %v4920
    %7178 = vmatprep.subr.bf16.mxu0 %v4929
    %7179 = vmatpush1.bf16.msra.mxu0 %v4928
    %7180 = vmatprep.subr.bf16.mxu0 %v4937
    %7181 = vmatpush1.bf16.msra.mxu0 %v4936
    %7182 = vmatprep.subr.bf16.mxu0 %v4945
    %7183 = vmatpush1.bf16.msra.mxu0 %v4944
    %7184 = vmatprep.subr.bf16.mxu0 %v4953
    %7185 = vmatpush1.bf16.msra.mxu0 %v4952
    %7186 = vmatprep.subr.bf16.mxu0 %v4961
    %7187 = vmatpush1.bf16.msra.mxu0 %v4960
    %7188 = vmatprep.subr.bf16.mxu0 %v4969
    %7189 = vmatpush1.bf16.msra.mxu0 %v4968
    %7190 = vmatprep.subr.bf16.mxu0 %v4977
    %7191 = vmatpush1.bf16.msra.mxu0 %v4976
    %7192 = vmatprep.subr.bf16.mxu0 %v4985
    %7193 = vmatpush1.bf16.msra.mxu0 %v4984
    %7194 = vmatprep.subr.bf16.mxu0 %v4993
    %7195 = vmatpush1.bf16.msra.mxu0 %v4992
    %7196 = vmatprep.subr.bf16.mxu0 %v5001
    %7197 = vmatpush1.bf16.msra.mxu0 %v5000
    %7198 = vmatprep.subr.bf16.mxu0 %v5009
    %7199 = vmatpush1.bf16.msra.mxu0 %v5008
    %7200 = vmatprep.subr.bf16.mxu0 %v5017
    %7201 = vmatpush1.bf16.msra.mxu0 %v5016
    %7202 = vmatprep.subr.bf16.mxu0 %v5025
    %7203 = vmatpush1.bf16.msra.mxu0 %v5024
    %7204 = vmatprep.mubr.bf16.mxu0 %v1317
    %7205 = vmatmul.mubr.bf16.gmra.mrb[0].mxu0 %v1316
    %v7206 = vpop.f32.mrb[0].mxu0
    %v7207 = vadd.f32 %v7164, %v7206
    %v7208 = vpop.f32.mrb[0].mxu0
    %v7209 = vadd.f32 %v7166, %v7208
    %v7210 = vpop.f32.mrb[0].mxu0
    %v7211 = vadd.f32 %v7168, %v7210
    %v7212 = vpop.f32.mrb[0].mxu0
    %v7213 = vadd.f32 %v7170, %v7212
    %7214 = vdwg.mxu0
    %7215 = vmatprep.subr.bf16.mxu0 %v5033
    %7216 = vmatpush1.bf16.msra.mxu0 %v5032
    %7217 = vmatprep.subr.bf16.mxu0 %v5041
    %7218 = vmatpush1.bf16.msra.mxu0 %v5040
    %7219 = vmatprep.subr.bf16.mxu0 %v5049
    %7220 = vmatpush1.bf16.msra.mxu0 %v5048
    %7221 = vmatprep.subr.bf16.mxu0 %v5057
    %7222 = vmatpush1.bf16.msra.mxu0 %v5056
    %7223 = vmatprep.subr.bf16.mxu0 %v5065
    %7224 = vmatpush1.bf16.msra.mxu0 %v5064
    %7225 = vmatprep.subr.bf16.mxu0 %v5073
    %7226 = vmatpush1.bf16.msra.mxu0 %v5072
    %7227 = vmatprep.subr.bf16.mxu0 %v5081
    %7228 = vmatpush1.bf16.msra.mxu0 %v5080
    %7229 = vmatprep.subr.bf16.mxu0 %v5089
    %7230 = vmatpush1.bf16.msra.mxu0 %v5088
    %7231 = vmatprep.subr.bf16.mxu0 %v5097
    %7232 = vmatpush1.bf16.msra.mxu0 %v5096
    %7233 = vmatprep.subr.bf16.mxu0 %v5105
    %7234 = vmatpush1.bf16.msra.mxu0 %v5104
    %7235 = vmatprep.subr.bf16.mxu0 %v5113
    %7236 = vmatpush1.bf16.msra.mxu0 %v5112
    %7237 = vmatprep.subr.bf16.mxu0 %v5121
    %7238 = vmatpush1.bf16.msra.mxu0 %v5120
    %7239 = vmatprep.subr.bf16.mxu0 %v5129
    %7240 = vmatpush1.bf16.msra.mxu0 %v5128
    %7241 = vmatprep.subr.bf16.mxu0 %v5137
    %7242 = vmatpush1.bf16.msra.mxu0 %v5136
    %7243 = vmatprep.subr.bf16.mxu0 %v5145
    %7244 = vmatpush1.bf16.msra.mxu0 %v5144
    %7245 = vmatprep.subr.bf16.mxu0 %v5153
    %7246 = vmatpush1.bf16.msra.mxu0 %v5152
    %7247 = vmatprep.mubr.bf16.mxu0 %v1319
    %7248 = vmatmul.mubr.bf16.gmra.mrb[0].mxu0 %v1318
    %v7249 = vpop.f32.mrb[0].mxu0
    %v7250 = vadd.f32 %v7207, %v7249
    %v7251 = vpop.f32.mrb[0].mxu0
    %v7252 = vadd.f32 %v7209, %v7251
    %v7253 = vpop.f32.mrb[0].mxu0
    %v7254 = vadd.f32 %v7211, %v7253
    %v7255 = vpop.f32.mrb[0].mxu0
    %v7256 = vadd.f32 %v7213, %v7255
    %7257 = vdwg.mxu0
    %7258 = vmatprep.subr.bf16.mxu0 %v4395
    %7259 = vmatpush1.bf16.msra.mxu0 %v4394
    %7260 = vmatprep.subr.bf16.mxu0 %v4403
    %7261 = vmatpush1.bf16.msra.mxu0 %v4402
    %7262 = vmatprep.subr.bf16.mxu0 %v4411
    %7263 = vmatpush1.bf16.msra.mxu0 %v4410
    %7264 = vmatprep.subr.bf16.mxu0 %v4419
    %7265 = vmatpush1.bf16.msra.mxu0 %v4418
    %7266 = vmatprep.subr.bf16.mxu0 %v4427
    %7267 = vmatpush1.bf16.msra.mxu0 %v4426
    %7268 = vmatprep.subr.bf16.mxu0 %v4435
    %7269 = vmatpush1.bf16.msra.mxu0 %v4434
    %7270 = vmatprep.subr.bf16.mxu0 %v4443
    %7271 = vmatpush1.bf16.msra.mxu0 %v4442
    %7272 = vmatprep.subr.bf16.mxu0 %v4451
    %7273 = vmatpush1.bf16.msra.mxu0 %v4450
    %7274 = vmatprep.subr.bf16.mxu0 %v4459
    %7275 = vmatpush1.bf16.msra.mxu0 %v4458
    %7276 = vmatprep.subr.bf16.mxu0 %v4467
    %7277 = vmatpush1.bf16.msra.mxu0 %v4466
    %7278 = vmatprep.subr.bf16.mxu0 %v4475
    %7279 = vmatpush1.bf16.msra.mxu0 %v4474
    %7280 = vmatprep.subr.bf16.mxu0 %v4483
    %7281 = vmatpush1.bf16.msra.mxu0 %v4482
    %7282 = vmatprep.subr.bf16.mxu0 %v4491
    %7283 = vmatpush1.bf16.msra.mxu0 %v4490
    %7284 = vmatprep.subr.bf16.mxu0 %v4499
    %7285 = vmatpush1.bf16.msra.mxu0 %v4498
    %7286 = vmatprep.subr.bf16.mxu0 %v4507
    %7287 = vmatpush1.bf16.msra.mxu0 %v4506
    %7288 = vmatprep.subr.bf16.mxu0 %v4515
    %7289 = vmatpush1.bf16.msra.mxu0 %v4514
    %7290 = vmatprep.mubr.bf16.mxu0 %v1309
    %7291 = vmatmul.mubr.bf16.gmra.mrb[0].mxu0 %v1308
    %v7292 = vpop.f32.mrb[0].mxu0
    %v7293 = vadd.f32 0.0, %v7292
    %v7294 = vpop.f32.mrb[0].mxu0
    %v7295 = vadd.f32 0.0, %v7294
    %v7296 = vpop.f32.mrb[0].mxu0
    %v7297 = vadd.f32 0.0, %v7296
    %v7298 = vpop.f32.mrb[0].mxu0
    %v7299 = vadd.f32 0.0, %v7298
    %7300 = vdwg.mxu0
    %7301 = vmatprep.subr.bf16.mxu0 %v4523
    %7302 = vmatpush1.bf16.msra.mxu0 %v4522
    %7303 = vmatprep.subr.bf16.mxu0 %v4531
    %7304 = vmatpush1.bf16.msra.mxu0 %v4530
    %7305 = vmatprep.subr.bf16.mxu0 %v4539
    %7306 = vmatpush1.bf16.msra.mxu0 %v4538
    %7307 = vmatprep.subr.bf16.mxu0 %v4547
    %7308 = vmatpush1.bf16.msra.mxu0 %v4546
    %7309 = vmatprep.subr.bf16.mxu0 %v4555
    %7310 = vmatpush1.bf16.msra.mxu0 %v4554
    %7311 = vmatprep.subr.bf16.mxu0 %v4563
    %7312 = vmatpush1.bf16.msra.mxu0 %v4562
    %7313 = vmatprep.subr.bf16.mxu0 %v4571
    %7314 = vmatpush1.bf16.msra.mxu0 %v4570
    %7315 = vmatprep.subr.bf16.mxu0 %v4579
    %7316 = vmatpush1.bf16.msra.mxu0 %v4578
    %7317 = vmatprep.subr.bf16.mxu0 %v4587
    %7318 = vmatpush1.bf16.msra.mxu0 %v4586
    %7319 = vmatprep.subr.bf16.mxu0 %v4595
    %7320 = vmatpush1.bf16.msra.mxu0 %v4594
    %7321 = vmatprep.subr.bf16.mxu0 %v4603
    %7322 = vmatpush1.bf16.msra.mxu0 %v4602
    %7323 = vmatprep.subr.bf16.mxu0 %v4611
    %7324 = vmatpush1.bf16.msra.mxu0 %v4610
    %7325 = vmatprep.subr.bf16.mxu0 %v4619
    %7326 = vmatpush1.bf16.msra.mxu0 %v4618
    %7327 = vmatprep.subr.bf16.mxu0 %v4627
    %7328 = vmatpush1.bf16.msra.mxu0 %v4626
    %7329 = vmatprep.subr.bf16.mxu0 %v4635
    %7330 = vmatpush1.bf16.msra.mxu0 %v4634
    %7331 = vmatprep.subr.bf16.mxu0 %v4643
    %7332 = vmatpush1.bf16.msra.mxu0 %v4642
    %7333 = vmatprep.mubr.bf16.mxu0 %v1311
    %7334 = vmatmul.mubr.bf16.gmra.mrb[0].mxu0 %v1310
    %v7335 = vpop.f32.mrb[0].mxu0
    %v7336 = vadd.f32 %v7293, %v7335
    %v7337 = vpop.f32.mrb[0].mxu0
    %v7338 = vadd.f32 %v7295, %v7337
    %v7339 = vpop.f32.mrb[0].mxu0
    %v7340 = vadd.f32 %v7297, %v7339
    %v7341 = vpop.f32.mrb[0].mxu0
    %v7342 = vadd.f32 %v7299, %v7341
    %7343 = vdwg.mxu0
    %7344 = vmatprep.subr.bf16.mxu0 %v4651
    %7345 = vmatpush1.bf16.msra.mxu0 %v4650
    %7346 = vmatprep.subr.bf16.mxu0 %v4659
    %7347 = vmatpush1.bf16.msra.mxu0 %v4658
    %7348 = vmatprep.subr.bf16.mxu0 %v4667
    %7349 = vmatpush1.bf16.msra.mxu0 %v4666
    %7350 = vmatprep.subr.bf16.mxu0 %v4675
    %7351 = vmatpush1.bf16.msra.mxu0 %v4674
    %7352 = vmatprep.subr.bf16.mxu0 %v4683
    %7353 = vmatpush1.bf16.msra.mxu0 %v4682
    %7354 = vmatprep.subr.bf16.mxu0 %v4691
    %7355 = vmatpush1.bf16.msra.mxu0 %v4690
    %7356 = vmatprep.subr.bf16.mxu0 %v4699
    %7357 = vmatpush1.bf16.msra.mxu0 %v4698
    %7358 = vmatprep.subr.bf16.mxu0 %v4707
    %7359 = vmatpush1.bf16.msra.mxu0 %v4706
    %7360 = vmatprep.subr.bf16.mxu0 %v4715
    %7361 = vmatpush1.bf16.msra.mxu0 %v4714
    %7362 = vmatprep.subr.bf16.mxu0 %v4723
    %7363 = vmatpush1.bf16.msra.mxu0 %v4722
    %7364 = vmatprep.subr.bf16.mxu0 %v4731
    %7365 = vmatpush1.bf16.msra.mxu0 %v4730
    %7366 = vmatprep.subr.bf16.mxu0 %v4739
    %7367 = vmatpush1.bf16.msra.mxu0 %v4738
    %7368 = vmatprep.subr.bf16.mxu0 %v4747
    %7369 = vmatpush1.bf16.msra.mxu0 %v4746
    %7370 = vmatprep.subr.bf16.mxu0 %v4755
    %7371 = vmatpush1.bf16.msra.mxu0 %v4754
    %7372 = vmatprep.subr.bf16.mxu0 %v4763
    %7373 = vmatpush1.bf16.msra.mxu0 %v4762
    %7374 = vmatprep.subr.bf16.mxu0 %v4771
    %7375 = vmatpush1.bf16.msra.mxu0 %v4770
    %7376 = vmatprep.mubr.bf16.mxu0 %v1313
    %7377 = vmatmul.mubr.bf16.gmra.mrb[0].mxu0 %v1312
    %v7378 = vpop.f32.mrb[0].mxu0
    %v7379 = vadd.f32 %v7336, %v7378
    %v7380 = vpop.f32.mrb[0].mxu0
    %v7381 = vadd.f32 %v7338, %v7380
    %v7382 = vpop.f32.mrb[0].mxu0
    %v7383 = vadd.f32 %v7340, %v7382
    %v7384 = vpop.f32.mrb[0].mxu0
    %v7385 = vadd.f32 %v7342, %v7384
    %7386 = vdwg.mxu0
    %7387 = vmatprep.subr.bf16.mxu0 %v4779
    %7388 = vmatpush1.bf16.msra.mxu0 %v4778
    %7389 = vmatprep.subr.bf16.mxu0 %v4787
    %7390 = vmatpush1.bf16.msra.mxu0 %v4786
    %7391 = vmatprep.subr.bf16.mxu0 %v4795
    %7392 = vmatpush1.bf16.msra.mxu0 %v4794
    %7393 = vmatprep.subr.bf16.mxu0 %v4803
    %7394 = vmatpush1.bf16.msra.mxu0 %v4802
    %7395 = vmatprep.subr.bf16.mxu0 %v4811
    %7396 = vmatpush1.bf16.msra.mxu0 %v4810
    %7397 = vmatprep.subr.bf16.mxu0 %v4819
    %7398 = vmatpush1.bf16.msra.mxu0 %v4818
    %7399 = vmatprep.subr.bf16.mxu0 %v4827
    %7400 = vmatpush1.bf16.msra.mxu0 %v4826
    %7401 = vmatprep.subr.bf16.mxu0 %v4835
    %7402 = vmatpush1.bf16.msra.mxu0 %v4834
    %7403 = vmatprep.subr.bf16.mxu0 %v4843
    %7404 = vmatpush1.bf16.msra.mxu0 %v4842
    %7405 = vmatprep.subr.bf16.mxu0 %v4851
    %7406 = vmatpush1.bf16.msra.mxu0 %v4850
    %7407 = vmatprep.subr.bf16.mxu0 %v4859
    %7408 = vmatpush1.bf16.msra.mxu0 %v4858
    %7409 = vmatprep.subr.bf16.mxu0 %v4867
    %7410 = vmatpush1.bf16.msra.mxu0 %v4866
    %7411 = vmatprep.subr.bf16.mxu0 %v4875
    %7412 = vmatpush1.bf16.msra.mxu0 %v4874
    %7413 = vmatprep.subr.bf16.mxu0 %v4883
    %7414 = vmatpush1.bf16.msra.mxu0 %v4882
    %7415 = vmatprep.subr.bf16.mxu0 %v4891
    %7416 = vmatpush1.bf16.msra.mxu0 %v4890
    %7417 = vmatprep.subr.bf16.mxu0 %v4899
    %7418 = vmatpush1.bf16.msra.mxu0 %v4898
    %7419 = vmatprep.mubr.bf16.mxu0 %v1315
    %7420 = vmatmul.mubr.bf16.gmra.mrb[0].mxu0 %v1314
    %v7421 = vpop.f32.mrb[0].mxu0
    %v7422 = vadd.f32 %v7379, %v7421
    %v7423 = vpop.f32.mrb[0].mxu0
    %v7424 = vadd.f32 %v7381, %v7423
    %v7425 = vpop.f32.mrb[0].mxu0
    %v7426 = vadd.f32 %v7383, %v7425
    %v7427 = vpop.f32.mrb[0].mxu0
    %v7428 = vadd.f32 %v7385, %v7427
    %7429 = vdwg.mxu0
    %7430 = vmatprep.subr.bf16.mxu0 %v4907
    %7431 = vmatpush1.bf16.msra.mxu0 %v4906
    %7432 = vmatprep.subr.bf16.mxu0 %v4915
    %7433 = vmatpush1.bf16.msra.mxu0 %v4914
    %7434 = vmatprep.subr.bf16.mxu0 %v4923
    %7435 = vmatpush1.bf16.msra.mxu0 %v4922
    %7436 = vmatprep.subr.bf16.mxu0 %v4931
    %7437 = vmatpush1.bf16.msra.mxu0 %v4930
    %7438 = vmatprep.subr.bf16.mxu0 %v4939
    %7439 = vmatpush1.bf16.msra.mxu0 %v4938
    %7440 = vmatprep.subr.bf16.mxu0 %v4947
    %7441 = vmatpush1.bf16.msra.mxu0 %v4946
    %7442 = vmatprep.subr.bf16.mxu0 %v4955
    %7443 = vmatpush1.bf16.msra.mxu0 %v4954
    %7444 = vmatprep.subr.bf16.mxu0 %v4963
    %7445 = vmatpush1.bf16.msra.mxu0 %v4962
    %7446 = vmatprep.subr.bf16.mxu0 %v4971
    %7447 = vmatpush1.bf16.msra.mxu0 %v4970
    %7448 = vmatprep.subr.bf16.mxu0 %v4979
    %7449 = vmatpush1.bf16.msra.mxu0 %v4978
    %7450 = vmatprep.subr.bf16.mxu0 %v4987
    %7451 = vmatpush1.bf16.msra.mxu0 %v4986
    %7452 = vmatprep.subr.bf16.mxu0 %v4995
    %7453 = vmatpush1.bf16.msra.mxu0 %v4994
    %7454 = vmatprep.subr.bf16.mxu0 %v5003
    %7455 = vmatpush1.bf16.msra.mxu0 %v5002
    %7456 = vmatprep.subr.bf16.mxu0 %v5011
    %7457 = vmatpush1.bf16.msra.mxu0 %v5010
    %7458 = vmatprep.subr.bf16.mxu0 %v5019
    %7459 = vmatpush1.bf16.msra.mxu0 %v5018
    %7460 = vmatprep.subr.bf16.mxu0 %v5027
    %7461 = vmatpush1.bf16.msra.mxu0 %v5026
    %7462 = vmatprep.mubr.bf16.mxu0 %v1317
    %7463 = vmatmul.mubr.bf16.gmra.mrb[0].mxu0 %v1316
    %v7464 = vpop.f32.mrb[0].mxu0
    %v7465 = vadd.f32 %v7422, %v7464
    %v7466 = vpop.f32.mrb[0].mxu0
    %v7467 = vadd.f32 %v7424, %v7466
    %v7468 = vpop.f32.mrb[0].mxu0
    %v7469 = vadd.f32 %v7426, %v7468
    %v7470 = vpop.f32.mrb[0].mxu0
    %v7471 = vadd.f32 %v7428, %v7470
    %7472 = vdwg.mxu0
    %7473 = vmatprep.subr.bf16.mxu0 %v5035
    %7474 = vmatpush1.bf16.msra.mxu0 %v5034
    %7475 = vmatprep.subr.bf16.mxu0 %v5043
    %7476 = vmatpush1.bf16.msra.mxu0 %v5042
    %7477 = vmatprep.subr.bf16.mxu0 %v5051
    %7478 = vmatpush1.bf16.msra.mxu0 %v5050
    %7479 = vmatprep.subr.bf16.mxu0 %v5059
    %7480 = vmatpush1.bf16.msra.mxu0 %v5058
    %7481 = vmatprep.subr.bf16.mxu0 %v5067
    %7482 = vmatpush1.bf16.msra.mxu0 %v5066
    %7483 = vmatprep.subr.bf16.mxu0 %v5075
    %7484 = vmatpush1.bf16.msra.mxu0 %v5074
    %7485 = vmatprep.subr.bf16.mxu0 %v5083
    %7486 = vmatpush1.bf16.msra.mxu0 %v5082
    %7487 = vmatprep.subr.bf16.mxu0 %v5091
    %7488 = vmatpush1.bf16.msra.mxu0 %v5090
    %7489 = vmatprep.subr.bf16.mxu0 %v5099
    %7490 = vmatpush1.bf16.msra.mxu0 %v5098
    %7491 = vmatprep.subr.bf16.mxu0 %v5107
    %7492 = vmatpush1.bf16.msra.mxu0 %v5106
    %7493 = vmatprep.subr.bf16.mxu0 %v5115
    %7494 = vmatpush1.bf16.msra.mxu0 %v5114
    %7495 = vmatprep.subr.bf16.mxu0 %v5123
    %7496 = vmatpush1.bf16.msra.mxu0 %v5122
    %7497 = vmatprep.subr.bf16.mxu0 %v5131
    %7498 = vmatpush1.bf16.msra.mxu0 %v5130
    %7499 = vmatprep.subr.bf16.mxu0 %v5139
    %7500 = vmatpush1.bf16.msra.mxu0 %v5138
    %7501 = vmatprep.subr.bf16.mxu0 %v5147
    %7502 = vmatpush1.bf16.msra.mxu0 %v5146
    %7503 = vmatprep.subr.bf16.mxu0 %v5155
    %7504 = vmatpush1.bf16.msra.mxu0 %v5154
    %7505 = vmatprep.mubr.bf16.mxu0 %v1319
    %7506 = vmatmul.mubr.bf16.gmra.mrb[0].mxu0 %v1318
    %v7507 = vpop.f32.mrb[0].mxu0
    %v7508 = vadd.f32 %v7465, %v7507
    %v7509 = vpop.f32.mrb[0].mxu0
    %v7510 = vadd.f32 %v7467, %v7509
    %v7511 = vpop.f32.mrb[0].mxu0
    %v7512 = vadd.f32 %v7469, %v7511
    %v7513 = vpop.f32.mrb[0].mxu0
    %v7514 = vadd.f32 %v7471, %v7513
    %7515 = vdwg.mxu0
    %7516 = vmatprep.subr.bf16.mxu0 %v4397
    %7517 = vmatpush1.bf16.msra.mxu0 %v4396
    %7518 = vmatprep.subr.bf16.mxu0 %v4405
    %7519 = vmatpush1.bf16.msra.mxu0 %v4404
    %7520 = vmatprep.subr.bf16.mxu0 %v4413
    %7521 = vmatpush1.bf16.msra.mxu0 %v4412
    %7522 = vmatprep.subr.bf16.mxu0 %v4421
    %7523 = vmatpush1.bf16.msra.mxu0 %v4420
    %7524 = vmatprep.subr.bf16.mxu0 %v4429
    %7525 = vmatpush1.bf16.msra.mxu0 %v4428
    %7526 = vmatprep.subr.bf16.mxu0 %v4437
    %7527 = vmatpush1.bf16.msra.mxu0 %v4436
    %7528 = vmatprep.subr.bf16.mxu0 %v4445
    %7529 = vmatpush1.bf16.msra.mxu0 %v4444
    %7530 = vmatprep.subr.bf16.mxu0 %v4453
    %7531 = vmatpush1.bf16.msra.mxu0 %v4452
    %7532 = vmatprep.subr.bf16.mxu0 %v4461
    %7533 = vmatpush1.bf16.msra.mxu0 %v4460
    %7534 = vmatprep.subr.bf16.mxu0 %v4469
    %7535 = vmatpush1.bf16.msra.mxu0 %v4468
    %7536 = vmatprep.subr.bf16.mxu0 %v4477
    %7537 = vmatpush1.bf16.msra.mxu0 %v4476
    %7538 = vmatprep.subr.bf16.mxu0 %v4485
    %7539 = vmatpush1.bf16.msra.mxu0 %v4484
    %7540 = vmatprep.subr.bf16.mxu0 %v4493
    %7541 = vmatpush1.bf16.msra.mxu0 %v4492
    %7542 = vmatprep.subr.bf16.mxu0 %v4501
    %7543 = vmatpush1.bf16.msra.mxu0 %v4500
    %7544 = vmatprep.subr.bf16.mxu0 %v4509
    %7545 = vmatpush1.bf16.msra.mxu0 %v4508
    %7546 = vmatprep.subr.bf16.mxu0 %v4517
    %7547 = vmatpush1.bf16.msra.mxu0 %v4516
    %7548 = vmatprep.mubr.bf16.mxu0 %v1309
    %7549 = vmatmul.mubr.bf16.gmra.mrb[0].mxu0 %v1308
    %v7550 = vpop.f32.mrb[0].mxu0
    %v7551 = vadd.f32 0.0, %v7550
    %v7552 = vpop.f32.mrb[0].mxu0
    %v7553 = vadd.f32 0.0, %v7552
    %v7554 = vpop.f32.mrb[0].mxu0
    %v7555 = vadd.f32 0.0, %v7554
    %v7556 = vpop.f32.mrb[0].mxu0
    %v7557 = vadd.f32 0.0, %v7556
    %7558 = vdwg.mxu0
    %7559 = vmatprep.subr.bf16.mxu0 %v4525
    %7560 = vmatpush1.bf16.msra.mxu0 %v4524
    %7561 = vmatprep.subr.bf16.mxu0 %v4533
    %7562 = vmatpush1.bf16.msra.mxu0 %v4532
    %7563 = vmatprep.subr.bf16.mxu0 %v4541
    %7564 = vmatpush1.bf16.msra.mxu0 %v4540
    %7565 = vmatprep.subr.bf16.mxu0 %v4549
    %7566 = vmatpush1.bf16.msra.mxu0 %v4548
    %7567 = vmatprep.subr.bf16.mxu0 %v4557
    %7568 = vmatpush1.bf16.msra.mxu0 %v4556
    %7569 = vmatprep.subr.bf16.mxu0 %v4565
    %7570 = vmatpush1.bf16.msra.mxu0 %v4564
    %7571 = vmatprep.subr.bf16.mxu0 %v4573
    %7572 = vmatpush1.bf16.msra.mxu0 %v4572
    %7573 = vmatprep.subr.bf16.mxu0 %v4581
    %7574 = vmatpush1.bf16.msra.mxu0 %v4580
    %7575 = vmatprep.subr.bf16.mxu0 %v4589
    %7576 = vmatpush1.bf16.msra.mxu0 %v4588
    %7577 = vmatprep.subr.bf16.mxu0 %v4597
    %7578 = vmatpush1.bf16.msra.mxu0 %v4596
    %7579 = vmatprep.subr.bf16.mxu0 %v4605
    %7580 = vmatpush1.bf16.msra.mxu0 %v4604
    %7581 = vmatprep.subr.bf16.mxu0 %v4613
    %7582 = vmatpush1.bf16.msra.mxu0 %v4612
    %7583 = vmatprep.subr.bf16.mxu0 %v4621
    %7584 = vmatpush1.bf16.msra.mxu0 %v4620
    %7585 = vmatprep.subr.bf16.mxu0 %v4629
    %7586 = vmatpush1.bf16.msra.mxu0 %v4628
    %7587 = vmatprep.subr.bf16.mxu0 %v4637
    %7588 = vmatpush1.bf16.msra.mxu0 %v4636
    %7589 = vmatprep.subr.bf16.mxu0 %v4645
    %7590 = vmatpush1.bf16.msra.mxu0 %v4644
    %7591 = vmatprep.mubr.bf16.mxu0 %v1311
    %7592 = vmatmul.mubr.bf16.gmra.mrb[0].mxu0 %v1310
    %v7593 = vpop.f32.mrb[0].mxu0
    %v7594 = vadd.f32 %v7551, %v7593
    %v7595 = vpop.f32.mrb[0].mxu0
    %v7596 = vadd.f32 %v7553, %v7595
    %v7597 = vpop.f32.mrb[0].mxu0
    %v7598 = vadd.f32 %v7555, %v7597
    %v7599 = vpop.f32.mrb[0].mxu0
    %v7600 = vadd.f32 %v7557, %v7599
    %7601 = vdwg.mxu0
    %7602 = vmatprep.subr.bf16.mxu0 %v4653
    %7603 = vmatpush1.bf16.msra.mxu0 %v4652
    %7604 = vmatprep.subr.bf16.mxu0 %v4661
    %7605 = vmatpush1.bf16.msra.mxu0 %v4660
    %7606 = vmatprep.subr.bf16.mxu0 %v4669
    %7607 = vmatpush1.bf16.msra.mxu0 %v4668
    %7608 = vmatprep.subr.bf16.mxu0 %v4677
    %7609 = vmatpush1.bf16.msra.mxu0 %v4676
    %7610 = vmatprep.subr.bf16.mxu0 %v4685
    %7611 = vmatpush1.bf16.msra.mxu0 %v4684
    %7612 = vmatprep.subr.bf16.mxu0 %v4693
    %7613 = vmatpush1.bf16.msra.mxu0 %v4692
    %7614 = vmatprep.subr.bf16.mxu0 %v4701
    %7615 = vmatpush1.bf16.msra.mxu0 %v4700
    %7616 = vmatprep.subr.bf16.mxu0 %v4709
    %7617 = vmatpush1.bf16.msra.mxu0 %v4708
    %7618 = vmatprep.subr.bf16.mxu0 %v4717
    %7619 = vmatpush1.bf16.msra.mxu0 %v4716
    %7620 = vmatprep.subr.bf16.mxu0 %v4725
    %7621 = vmatpush1.bf16.msra.mxu0 %v4724
    %7622 = vmatprep.subr.bf16.mxu0 %v4733
    %7623 = vmatpush1.bf16.msra.mxu0 %v4732
    %7624 = vmatprep.subr.bf16.mxu0 %v4741
    %7625 = vmatpush1.bf16.msra.mxu0 %v4740
    %7626 = vmatprep.subr.bf16.mxu0 %v4749
    %7627 = vmatpush1.bf16.msra.mxu0 %v4748
    %7628 = vmatprep.subr.bf16.mxu0 %v4757
    %7629 = vmatpush1.bf16.msra.mxu0 %v4756
    %7630 = vmatprep.subr.bf16.mxu0 %v4765
    %7631 = vmatpush1.bf16.msra.mxu0 %v4764
    %7632 = vmatprep.subr.bf16.mxu0 %v4773
    %7633 = vmatpush1.bf16.msra.mxu0 %v4772
    %7634 = vmatprep.mubr.bf16.mxu0 %v1313
    %7635 = vmatmul.mubr.bf16.gmra.mrb[0].mxu0 %v1312
    %v7636 = vpop.f32.mrb[0].mxu0
    %v7637 = vadd.f32 %v7594, %v7636
    %v7638 = vpop.f32.mrb[0].mxu0
    %v7639 = vadd.f32 %v7596, %v7638
    %v7640 = vpop.f32.mrb[0].mxu0
    %v7641 = vadd.f32 %v7598, %v7640
    %v7642 = vpop.f32.mrb[0].mxu0
    %v7643 = vadd.f32 %v7600, %v7642
    %7644 = vdwg.mxu0
    %7645 = vmatprep.subr.bf16.mxu0 %v4781
    %7646 = vmatpush1.bf16.msra.mxu0 %v4780
    %7647 = vmatprep.subr.bf16.mxu0 %v4789
    %7648 = vmatpush1.bf16.msra.mxu0 %v4788
    %7649 = vmatprep.subr.bf16.mxu0 %v4797
    %7650 = vmatpush1.bf16.msra.mxu0 %v4796
    %7651 = vmatprep.subr.bf16.mxu0 %v4805
    %7652 = vmatpush1.bf16.msra.mxu0 %v4804
    %7653 = vmatprep.subr.bf16.mxu0 %v4813
    %7654 = vmatpush1.bf16.msra.mxu0 %v4812
    %7655 = vmatprep.subr.bf16.mxu0 %v4821
    %7656 = vmatpush1.bf16.msra.mxu0 %v4820
    %7657 = vmatprep.subr.bf16.mxu0 %v4829
    %7658 = vmatpush1.bf16.msra.mxu0 %v4828
    %7659 = vmatprep.subr.bf16.mxu0 %v4837
    %7660 = vmatpush1.bf16.msra.mxu0 %v4836
    %7661 = vmatprep.subr.bf16.mxu0 %v4845
    %7662 = vmatpush1.bf16.msra.mxu0 %v4844
    %7663 = vmatprep.subr.bf16.mxu0 %v4853
    %7664 = vmatpush1.bf16.msra.mxu0 %v4852
    %7665 = vmatprep.subr.bf16.mxu0 %v4861
    %7666 = vmatpush1.bf16.msra.mxu0 %v4860
    %7667 = vmatprep.subr.bf16.mxu0 %v4869
    %7668 = vmatpush1.bf16.msra.mxu0 %v4868
    %7669 = vmatprep.subr.bf16.mxu0 %v4877
    %7670 = vmatpush1.bf16.msra.mxu0 %v4876
    %7671 = vmatprep.subr.bf16.mxu0 %v4885
    %7672 = vmatpush1.bf16.msra.mxu0 %v4884
    %7673 = vmatprep.subr.bf16.mxu0 %v4893
    %7674 = vmatpush1.bf16.msra.mxu0 %v4892
    %7675 = vmatprep.subr.bf16.mxu0 %v4901
    %7676 = vmatpush1.bf16.msra.mxu0 %v4900
    %7677 = vmatprep.mubr.bf16.mxu0 %v1315
    %7678 = vmatmul.mubr.bf16.gmra.mrb[0].mxu0 %v1314
    %v7679 = vpop.f32.mrb[0].mxu0
    %v7680 = vadd.f32 %v7637, %v7679
    %v7681 = vpop.f32.mrb[0].mxu0
    %v7682 = vadd.f32 %v7639, %v7681
    %v7683 = vpop.f32.mrb[0].mxu0
    %v7684 = vadd.f32 %v7641, %v7683
    %v7685 = vpop.f32.mrb[0].mxu0
    %v7686 = vadd.f32 %v7643, %v7685
    %7687 = vdwg.mxu0
    %7688 = vmatprep.subr.bf16.mxu0 %v4909
    %7689 = vmatpush1.bf16.msra.mxu0 %v4908
    %7690 = vmatprep.subr.bf16.mxu0 %v4917
    %7691 = vmatpush1.bf16.msra.mxu0 %v4916
    %7692 = vmatprep.subr.bf16.mxu0 %v4925
    %7693 = vmatpush1.bf16.msra.mxu0 %v4924
    %7694 = vmatprep.subr.bf16.mxu0 %v4933
    %7695 = vmatpush1.bf16.msra.mxu0 %v4932
    %7696 = vmatprep.subr.bf16.mxu0 %v4941
    %7697 = vmatpush1.bf16.msra.mxu0 %v4940
    %7698 = vmatprep.subr.bf16.mxu0 %v4949
    %7699 = vmatpush1.bf16.msra.mxu0 %v4948
    %7700 = vmatprep.subr.bf16.mxu0 %v4957
    %7701 = vmatpush1.bf16.msra.mxu0 %v4956
    %7702 = vmatprep.subr.bf16.mxu0 %v4965
    %7703 = vmatpush1.bf16.msra.mxu0 %v4964
    %7704 = vmatprep.subr.bf16.mxu0 %v4973
    %7705 = vmatpush1.bf16.msra.mxu0 %v4972
    %7706 = vmatprep.subr.bf16.mxu0 %v4981
    %7707 = vmatpush1.bf16.msra.mxu0 %v4980
    %7708 = vmatprep.subr.bf16.mxu0 %v4989
    %7709 = vmatpush1.bf16.msra.mxu0 %v4988
    %7710 = vmatprep.subr.bf16.mxu0 %v4997
    %7711 = vmatpush1.bf16.msra.mxu0 %v4996
    %7712 = vmatprep.subr.bf16.mxu0 %v5005
    %7713 = vmatpush1.bf16.msra.mxu0 %v5004
    %7714 = vmatprep.subr.bf16.mxu0 %v5013
    %7715 = vmatpush1.bf16.msra.mxu0 %v5012
    %7716 = vmatprep.subr.bf16.mxu0 %v5021
    %7717 = vmatpush1.bf16.msra.mxu0 %v5020
    %7718 = vmatprep.subr.bf16.mxu0 %v5029
    %7719 = vmatpush1.bf16.msra.mxu0 %v5028
    %7720 = vmatprep.mubr.bf16.mxu0 %v1317
    %7721 = vmatmul.mubr.bf16.gmra.mrb[0].mxu0 %v1316
    %v7722 = vpop.f32.mrb[0].mxu0
    %v7723 = vadd.f32 %v7680, %v7722
    %v7724 = vpop.f32.mrb[0].mxu0
    %v7725 = vadd.f32 %v7682, %v7724
    %v7726 = vpop.f32.mrb[0].mxu0
    %v7727 = vadd.f32 %v7684, %v7726
    %v7728 = vpop.f32.mrb[0].mxu0
    %v7729 = vadd.f32 %v7686, %v7728
    %7730 = vdwg.mxu0
    %7731 = vmatprep.subr.bf16.mxu0 %v5037
    %7732 = vmatpush1.bf16.msra.mxu0 %v5036
    %7733 = vmatprep.subr.bf16.mxu0 %v5045
    %7734 = vmatpush1.bf16.msra.mxu0 %v5044
    %7735 = vmatprep.subr.bf16.mxu0 %v5053
    %7736 = vmatpush1.bf16.msra.mxu0 %v5052
    %7737 = vmatprep.subr.bf16.mxu0 %v5061
    %7738 = vmatpush1.bf16.msra.mxu0 %v5060
    %7739 = vmatprep.subr.bf16.mxu0 %v5069
    %7740 = vmatpush1.bf16.msra.mxu0 %v5068
    %7741 = vmatprep.subr.bf16.mxu0 %v5077
    %7742 = vmatpush1.bf16.msra.mxu0 %v5076
    %7743 = vmatprep.subr.bf16.mxu0 %v5085
    %7744 = vmatpush1.bf16.msra.mxu0 %v5084
    %7745 = vmatprep.subr.bf16.mxu0 %v5093
    %7746 = vmatpush1.bf16.msra.mxu0 %v5092
    %7747 = vmatprep.subr.bf16.mxu0 %v5101
    %7748 = vmatpush1.bf16.msra.mxu0 %v5100
    %7749 = vmatprep.subr.bf16.mxu0 %v5109
    %7750 = vmatpush1.bf16.msra.mxu0 %v5108
    %7751 = vmatprep.subr.bf16.mxu0 %v5117
    %7752 = vmatpush1.bf16.msra.mxu0 %v5116
    %7753 = vmatprep.subr.bf16.mxu0 %v5125
    %7754 = vmatpush1.bf16.msra.mxu0 %v5124
    %7755 = vmatprep.subr.bf16.mxu0 %v5133
    %7756 = vmatpush1.bf16.msra.mxu0 %v5132
    %7757 = vmatprep.subr.bf16.mxu0 %v5141
    %7758 = vmatpush1.bf16.msra.mxu0 %v5140
    %7759 = vmatprep.subr.bf16.mxu0 %v5149
    %7760 = vmatpush1.bf16.msra.mxu0 %v5148
    %7761 = vmatprep.subr.bf16.mxu0 %v5157
    %7762 = vmatpush1.bf16.msra.mxu0 %v5156
    %7763 = vmatprep.mubr.bf16.mxu0 %v1319
    %7764 = vmatmul.mubr.bf16.gmra.mrb[0].mxu0 %v1318
    %v7765 = vpop.f32.mrb[0].mxu0
    %v7766 = vadd.f32 %v7723, %v7765
    %v7767 = vpop.f32.mrb[0].mxu0
    %v7768 = vadd.f32 %v7725, %v7767
    %v7769 = vpop.f32.mrb[0].mxu0
    %v7770 = vadd.f32 %v7727, %v7769
    %v7771 = vpop.f32.mrb[0].mxu0
    %v7772 = vadd.f32 %v7729, %v7771
    %7773 = vdwg.mxu0
    %7774 = vmatprep.subr.bf16.mxu0 %v4399
    %7775 = vmatpush1.bf16.msra.mxu0 %v4398
    %7776 = vmatprep.subr.bf16.mxu0 %v4407
    %7777 = vmatpush1.bf16.msra.mxu0 %v4406
    %7778 = vmatprep.subr.bf16.mxu0 %v4415
    %7779 = vmatpush1.bf16.msra.mxu0 %v4414
    %7780 = vmatprep.subr.bf16.mxu0 %v4423
    %7781 = vmatpush1.bf16.msra.mxu0 %v4422
    %7782 = vmatprep.subr.bf16.mxu0 %v4431
    %7783 = vmatpush1.bf16.msra.mxu0 %v4430
    %7784 = vmatprep.subr.bf16.mxu0 %v4439
    %7785 = vmatpush1.bf16.msra.mxu0 %v4438
    %7786 = vmatprep.subr.bf16.mxu0 %v4447
    %7787 = vmatpush1.bf16.msra.mxu0 %v4446
    %7788 = vmatprep.subr.bf16.mxu0 %v4455
    %7789 = vmatpush1.bf16.msra.mxu0 %v4454
    %7790 = vmatprep.subr.bf16.mxu0 %v4463
    %7791 = vmatpush1.bf16.msra.mxu0 %v4462
    %7792 = vmatprep.subr.bf16.mxu0 %v4471
    %7793 = vmatpush1.bf16.msra.mxu0 %v4470
    %7794 = vmatprep.subr.bf16.mxu0 %v4479
    %7795 = vmatpush1.bf16.msra.mxu0 %v4478
    %7796 = vmatprep.subr.bf16.mxu0 %v4487
    %7797 = vmatpush1.bf16.msra.mxu0 %v4486
    %7798 = vmatprep.subr.bf16.mxu0 %v4495
    %7799 = vmatpush1.bf16.msra.mxu0 %v4494
    %7800 = vmatprep.subr.bf16.mxu0 %v4503
    %7801 = vmatpush1.bf16.msra.mxu0 %v4502
    %7802 = vmatprep.subr.bf16.mxu0 %v4511
    %7803 = vmatpush1.bf16.msra.mxu0 %v4510
    %7804 = vmatprep.subr.bf16.mxu0 %v4519
    %7805 = vmatpush1.bf16.msra.mxu0 %v4518
    %7806 = vmatprep.mubr.bf16.mxu0 %v1309
    %7807 = vmatmul.mubr.bf16.gmra.mrb[0].mxu0 %v1308
    %v7808 = vpop.f32.mrb[0].mxu0
    %v7809 = vadd.f32 0.0, %v7808
    %v7810 = vpop.f32.mrb[0].mxu0
    %v7811 = vadd.f32 0.0, %v7810
    %v7812 = vpop.f32.mrb[0].mxu0
    %v7813 = vadd.f32 0.0, %v7812
    %v7814 = vpop.f32.mrb[0].mxu0
    %v7815 = vadd.f32 0.0, %v7814
    %7816 = vdwg.mxu0
    %7817 = vmatprep.subr.bf16.mxu0 %v4527
    %7818 = vmatpush1.bf16.msra.mxu0 %v4526
    %7819 = vmatprep.subr.bf16.mxu0 %v4535
    %7820 = vmatpush1.bf16.msra.mxu0 %v4534
    %7821 = vmatprep.subr.bf16.mxu0 %v4543
    %7822 = vmatpush1.bf16.msra.mxu0 %v4542
    %7823 = vmatprep.subr.bf16.mxu0 %v4551
    %7824 = vmatpush1.bf16.msra.mxu0 %v4550
    %7825 = vmatprep.subr.bf16.mxu0 %v4559
    %7826 = vmatpush1.bf16.msra.mxu0 %v4558
    %7827 = vmatprep.subr.bf16.mxu0 %v4567
    %7828 = vmatpush1.bf16.msra.mxu0 %v4566
    %7829 = vmatprep.subr.bf16.mxu0 %v4575
    %7830 = vmatpush1.bf16.msra.mxu0 %v4574
    %7831 = vmatprep.subr.bf16.mxu0 %v4583
    %7832 = vmatpush1.bf16.msra.mxu0 %v4582
    %7833 = vmatprep.subr.bf16.mxu0 %v4591
    %7834 = vmatpush1.bf16.msra.mxu0 %v4590
    %7835 = vmatprep.subr.bf16.mxu0 %v4599
    %7836 = vmatpush1.bf16.msra.mxu0 %v4598
    %7837 = vmatprep.subr.bf16.mxu0 %v4607
    %7838 = vmatpush1.bf16.msra.mxu0 %v4606
    %7839 = vmatprep.subr.bf16.mxu0 %v4615
    %7840 = vmatpush1.bf16.msra.mxu0 %v4614
    %7841 = vmatprep.subr.bf16.mxu0 %v4623
    %7842 = vmatpush1.bf16.msra.mxu0 %v4622
    %7843 = vmatprep.subr.bf16.mxu0 %v4631
    %7844 = vmatpush1.bf16.msra.mxu0 %v4630
    %7845 = vmatprep.subr.bf16.mxu0 %v4639
    %7846 = vmatpush1.bf16.msra.mxu0 %v4638
    %7847 = vmatprep.subr.bf16.mxu0 %v4647
    %7848 = vmatpush1.bf16.msra.mxu0 %v4646
    %7849 = vmatprep.mubr.bf16.mxu0 %v1311
    %7850 = vmatmul.mubr.bf16.gmra.mrb[0].mxu0 %v1310
    %v7851 = vpop.f32.mrb[0].mxu0
    %v7852 = vadd.f32 %v7809, %v7851
    %v7853 = vpop.f32.mrb[0].mxu0
    %v7854 = vadd.f32 %v7811, %v7853
    %v7855 = vpop.f32.mrb[0].mxu0
    %v7856 = vadd.f32 %v7813, %v7855
    %v7857 = vpop.f32.mrb[0].mxu0
    %v7858 = vadd.f32 %v7815, %v7857
    %7859 = vdwg.mxu0
    %7860 = vmatprep.subr.bf16.mxu0 %v4655
    %7861 = vmatpush1.bf16.msra.mxu0 %v4654
    %7862 = vmatprep.subr.bf16.mxu0 %v4663
    %7863 = vmatpush1.bf16.msra.mxu0 %v4662
    %7864 = vmatprep.subr.bf16.mxu0 %v4671
    %7865 = vmatpush1.bf16.msra.mxu0 %v4670
    %7866 = vmatprep.subr.bf16.mxu0 %v4679
    %7867 = vmatpush1.bf16.msra.mxu0 %v4678
    %7868 = vmatprep.subr.bf16.mxu0 %v4687
    %7869 = vmatpush1.bf16.msra.mxu0 %v4686
    %7870 = vmatprep.subr.bf16.mxu0 %v4695
    %7871 = vmatpush1.bf16.msra.mxu0 %v4694
    %7872 = vmatprep.subr.bf16.mxu0 %v4703
    %7873 = vmatpush1.bf16.msra.mxu0 %v4702
    %7874 = vmatprep.subr.bf16.mxu0 %v4711
    %7875 = vmatpush1.bf16.msra.mxu0 %v4710
    %7876 = vmatprep.subr.bf16.mxu0 %v4719
    %7877 = vmatpush1.bf16.msra.mxu0 %v4718
    %7878 = vmatprep.subr.bf16.mxu0 %v4727
    %7879 = vmatpush1.bf16.msra.mxu0 %v4726
    %7880 = vmatprep.subr.bf16.mxu0 %v4735
    %7881 = vmatpush1.bf16.msra.mxu0 %v4734
    %7882 = vmatprep.subr.bf16.mxu0 %v4743
    %7883 = vmatpush1.bf16.msra.mxu0 %v4742
    %7884 = vmatprep.subr.bf16.mxu0 %v4751
    %7885 = vmatpush1.bf16.msra.mxu0 %v4750
    %7886 = vmatprep.subr.bf16.mxu0 %v4759
    %7887 = vmatpush1.bf16.msra.mxu0 %v4758
    %7888 = vmatprep.subr.bf16.mxu0 %v4767
    %7889 = vmatpush1.bf16.msra.mxu0 %v4766
    %7890 = vmatprep.subr.bf16.mxu0 %v4775
    %7891 = vmatpush1.bf16.msra.mxu0 %v4774
    %7892 = vmatprep.mubr.bf16.mxu0 %v1313
    %7893 = vmatmul.mubr.bf16.gmra.mrb[0].mxu0 %v1312
    %v7894 = vpop.f32.mrb[0].mxu0
    %v7895 = vadd.f32 %v7852, %v7894
    %v7896 = vpop.f32.mrb[0].mxu0
    %v7897 = vadd.f32 %v7854, %v7896
    %v7898 = vpop.f32.mrb[0].mxu0
    %v7899 = vadd.f32 %v7856, %v7898
    %v7900 = vpop.f32.mrb[0].mxu0
    %v7901 = vadd.f32 %v7858, %v7900
    %7902 = vdwg.mxu0
    %7903 = vmatprep.subr.bf16.mxu0 %v4783
    %7904 = vmatpush1.bf16.msra.mxu0 %v4782
    %7905 = vmatprep.subr.bf16.mxu0 %v4791
    %7906 = vmatpush1.bf16.msra.mxu0 %v4790
    %7907 = vmatprep.subr.bf16.mxu0 %v4799
    %7908 = vmatpush1.bf16.msra.mxu0 %v4798
    %7909 = vmatprep.subr.bf16.mxu0 %v4807
    %7910 = vmatpush1.bf16.msra.mxu0 %v4806
    %7911 = vmatprep.subr.bf16.mxu0 %v4815
    %7912 = vmatpush1.bf16.msra.mxu0 %v4814
    %7913 = vmatprep.subr.bf16.mxu0 %v4823
    %7914 = vmatpush1.bf16.msra.mxu0 %v4822
    %7915 = vmatprep.subr.bf16.mxu0 %v4831
    %7916 = vmatpush1.bf16.msra.mxu0 %v4830
    %7917 = vmatprep.subr.bf16.mxu0 %v4839
    %7918 = vmatpush1.bf16.msra.mxu0 %v4838
    %7919 = vmatprep.subr.bf16.mxu0 %v4847
    %7920 = vmatpush1.bf16.msra.mxu0 %v4846
    %7921 = vmatprep.subr.bf16.mxu0 %v4855
    %7922 = vmatpush1.bf16.msra.mxu0 %v4854
    %7923 = vmatprep.subr.bf16.mxu0 %v4863
    %7924 = vmatpush1.bf16.msra.mxu0 %v4862
    %7925 = vmatprep.subr.bf16.mxu0 %v4871
    %7926 = vmatpush1.bf16.msra.mxu0 %v4870
    %7927 = vmatprep.subr.bf16.mxu0 %v4879
    %7928 = vmatpush1.bf16.msra.mxu0 %v4878
    %7929 = vmatprep.subr.bf16.mxu0 %v4887
    %7930 = vmatpush1.bf16.msra.mxu0 %v4886
    %7931 = vmatprep.subr.bf16.mxu0 %v4895
    %7932 = vmatpush1.bf16.msra.mxu0 %v4894
    %7933 = vmatprep.subr.bf16.mxu0 %v4903
    %7934 = vmatpush1.bf16.msra.mxu0 %v4902
    %7935 = vmatprep.mubr.bf16.mxu0 %v1315
    %7936 = vmatmul.mubr.bf16.gmra.mrb[0].mxu0 %v1314
    %v7937 = vpop.f32.mrb[0].mxu0
    %v7938 = vadd.f32 %v7895, %v7937
    %v7939 = vpop.f32.mrb[0].mxu0
    %v7940 = vadd.f32 %v7897, %v7939
    %v7941 = vpop.f32.mrb[0].mxu0
    %v7942 = vadd.f32 %v7899, %v7941
    %v7943 = vpop.f32.mrb[0].mxu0
    %v7944 = vadd.f32 %v7901, %v7943
    %7945 = vdwg.mxu0
    %7946 = vmatprep.subr.bf16.mxu0 %v4911
    %7947 = vmatpush1.bf16.msra.mxu0 %v4910
    %7948 = vmatprep.subr.bf16.mxu0 %v4919
    %7949 = vmatpush1.bf16.msra.mxu0 %v4918
    %7950 = vmatprep.subr.bf16.mxu0 %v4927
    %7951 = vmatpush1.bf16.msra.mxu0 %v4926
    %7952 = vmatprep.subr.bf16.mxu0 %v4935
    %7953 = vmatpush1.bf16.msra.mxu0 %v4934
    %7954 = vmatprep.subr.bf16.mxu0 %v4943
    %7955 = vmatpush1.bf16.msra.mxu0 %v4942
    %7956 = vmatprep.subr.bf16.mxu0 %v4951
    %7957 = vmatpush1.bf16.msra.mxu0 %v4950
    %7958 = vmatprep.subr.bf16.mxu0 %v4959
    %7959 = vmatpush1.bf16.msra.mxu0 %v4958
    %7960 = vmatprep.subr.bf16.mxu0 %v4967
    %7961 = vmatpush1.bf16.msra.mxu0 %v4966
    %7962 = vmatprep.subr.bf16.mxu0 %v4975
    %7963 = vmatpush1.bf16.msra.mxu0 %v4974
    %7964 = vmatprep.subr.bf16.mxu0 %v4983
    %7965 = vmatpush1.bf16.msra.mxu0 %v4982
    %7966 = vmatprep.subr.bf16.mxu0 %v4991
    %7967 = vmatpush1.bf16.msra.mxu0 %v4990
    %7968 = vmatprep.subr.bf16.mxu0 %v4999
    %7969 = vmatpush1.bf16.msra.mxu0 %v4998
    %7970 = vmatprep.subr.bf16.mxu0 %v5007
    %7971 = vmatpush1.bf16.msra.mxu0 %v5006
    %7972 = vmatprep.subr.bf16.mxu0 %v5015
    %7973 = vmatpush1.bf16.msra.mxu0 %v5014
    %7974 = vmatprep.subr.bf16.mxu0 %v5023
    %7975 = vmatpush1.bf16.msra.mxu0 %v5022
    %7976 = vmatprep.subr.bf16.mxu0 %v5031
    %7977 = vmatpush1.bf16.msra.mxu0 %v5030
    %7978 = vmatprep.mubr.bf16.mxu0 %v1317
    %7979 = vmatmul.mubr.bf16.gmra.mrb[0].mxu0 %v1316
    %v7980 = vpop.f32.mrb[0].mxu0
    %v7981 = vadd.f32 %v7938, %v7980
    %v7982 = vpop.f32.mrb[0].mxu0
    %v7983 = vadd.f32 %v7940, %v7982
    %v7984 = vpop.f32.mrb[0].mxu0
    %v7985 = vadd.f32 %v7942, %v7984
    %v7986 = vpop.f32.mrb[0].mxu0
    %v7987 = vadd.f32 %v7944, %v7986
    %7988 = vdwg.mxu0
    %7989 = vmatprep.subr.bf16.mxu0 %v5039
    %7990 = vmatpush1.bf16.msra.mxu0 %v5038
    %7991 = vmatprep.subr.bf16.mxu0 %v5047
    %7992 = vmatpush1.bf16.msra.mxu0 %v5046
    %7993 = vmatprep.subr.bf16.mxu0 %v5055
    %7994 = vmatpush1.bf16.msra.mxu0 %v5054
    %7995 = vmatprep.subr.bf16.mxu0 %v5063
    %7996 = vmatpush1.bf16.msra.mxu0 %v5062
    %7997 = vmatprep.subr.bf16.mxu0 %v5071
    %7998 = vmatpush1.bf16.msra.mxu0 %v5070
    %7999 = vmatprep.subr.bf16.mxu0 %v5079
    %8000 = vmatpush1.bf16.msra.mxu0 %v5078
    %8001 = vmatprep.subr.bf16.mxu0 %v5087
    %8002 = vmatpush1.bf16.msra.mxu0 %v5086
    %8003 = vmatprep.subr.bf16.mxu0 %v5095
    %8004 = vmatpush1.bf16.msra.mxu0 %v5094
    %8005 = vmatprep.subr.bf16.mxu0 %v5103
    %8006 = vmatpush1.bf16.msra.mxu0 %v5102
    %8007 = vmatprep.subr.bf16.mxu0 %v5111
    %8008 = vmatpush1.bf16.msra.mxu0 %v5110
    %8009 = vmatprep.subr.bf16.mxu0 %v5119
    %8010 = vmatpush1.bf16.msra.mxu0 %v5118
    %8011 = vmatprep.subr.bf16.mxu0 %v5127
    %8012 = vmatpush1.bf16.msra.mxu0 %v5126
    %8013 = vmatprep.subr.bf16.mxu0 %v5135
    %8014 = vmatpush1.bf16.msra.mxu0 %v5134
    %8015 = vmatprep.subr.bf16.mxu0 %v5143
    %8016 = vmatpush1.bf16.msra.mxu0 %v5142
    %8017 = vmatprep.subr.bf16.mxu0 %v5151
    %8018 = vmatpush1.bf16.msra.mxu0 %v5150
    %8019 = vmatprep.subr.bf16.mxu0 %v5159
    %8020 = vmatpush1.bf16.msra.mxu0 %v5158
    %8021 = vmatprep.mubr.bf16.mxu0 %v1319
    %8022 = vmatmul.mubr.bf16.gmra.mrb[0].mxu0 %v1318
    %v8023 = vpop.f32.mrb[0].mxu0
    %v8024 = vadd.f32 %v7981, %v8023
    %v8025 = vpop.f32.mrb[0].mxu0
    %v8026 = vadd.f32 %v7983, %v8025
    %v8027 = vpop.f32.mrb[0].mxu0
    %v8028 = vadd.f32 %v7985, %v8027
    %v8029 = vpop.f32.mrb[0].mxu0
    %v8030 = vadd.f32 %v7987, %v8029
    %8031 = vdwg.mxu0
    %v8032 = vmul.f32 %v7250, 0.01
    %v8033 = vmul.f32 %v7252, 0.01
    %v8034 = vmul.f32 %v7508, 0.01
    %v8035 = vmul.f32 %v7510, 0.01
    %v8036 = vmul.f32 %v7766, 0.01
    %v8037 = vmul.f32 %v7768, 0.01
    %v8038 = vmul.f32 %v8024, 0.01
    %v8039 = vmul.f32 %v8026, 0.01
    %v8040 = vmul.f32 %v7254, 0.01
    %v8041 = vmul.f32 %v7256, 0.01
    %v8042 = vmul.f32 %v7512, 0.01
    %v8043 = vmul.f32 %v7514, 0.01
    %v8044 = vmul.f32 %v7770, 0.01
    %v8045 = vmul.f32 %v7772, 0.01
    %v8046 = vmul.f32 %v8028, 0.01
    %v8047 = vmul.f32 %v8030, 0.01
    %v8048 = vmax.f32 %v7250, %v8032
    %v8049 = vmax.f32 %v7252, %v8033
    %v8050 = vmax.f32 %v7508, %v8034
    %v8051 = vmax.f32 %v7510, %v8035
    %v8052 = vmax.f32 %v7766, %v8036
    %v8053 = vmax.f32 %v7768, %v8037
    %v8054 = vmax.f32 %v8024, %v8038
    %v8055 = vmax.f32 %v8026, %v8039
    %v8056 = vmax.f32 %v7254, %v8040
    %v8057 = vmax.f32 %v7256, %v8041
    %v8058 = vmax.f32 %v7512, %v8042
    %v8059 = vmax.f32 %v7514, %v8043
    %v8060 = vmax.f32 %v7770, %v8044
    %v8061 = vmax.f32 %v7772, %v8045
    %v8062 = vmax.f32 %v8028, %v8046
    %v8063 = vmax.f32 %v8030, %v8047
    %v8064 = vpack.c.bf16 %v8056, %v8048
    %v8065 = vpack.c.bf16 %v8057, %v8049
    %v8066 = vpack.c.bf16 %v8058, %v8050
    %v8067 = vpack.c.bf16 %v8059, %v8051
    %v8068 = vpack.c.bf16 %v8060, %v8052
    %v8069 = vpack.c.bf16 %v8061, %v8053
    %v8070 = vpack.c.bf16 %v8062, %v8054
    %v8071 = vpack.c.bf16 %v8063, %v8055
    %v8072 = vld [vmem:[#allocation6] sm:$0xff]
    %v8073 = vld [vmem:[#allocation6 + $0x8] sm:$0xff]
    %v8074 = vld [vmem:[#allocation6 + $0x10] sm:$0xff]
    %v8075 = vld [vmem:[#allocation6 + $0x18] sm:$0xff]
    %v8076 = vld [vmem:[#allocation6 + $0x20] sm:$0xff]
    %v8077 = vld [vmem:[#allocation6 + $0x28] sm:$0xff]
    %v8078 = vld [vmem:[#allocation6 + $0x30] sm:$0xff]
    %v8079 = vld [vmem:[#allocation6 + $0x38] sm:$0xff]
    %v8080 = vld [vmem:[#allocation6 + $0x40] sm:$0xff]
    %v8081 = vld [vmem:[#allocation6 + $0x48] sm:$0xff]
    %v8082 = vld [vmem:[#allocation6 + $0x50] sm:$0xff]
    %v8083 = vld [vmem:[#allocation6 + $0x58] sm:$0xff]
    %v8084 = vld [vmem:[#allocation6 + $0x60] sm:$0xff]
    %v8085 = vld [vmem:[#allocation6 + $0x68] sm:$0xff]
    %v8086 = vld [vmem:[#allocation6 + $0x70] sm:$0xff]
    %v8087 = vld [vmem:[#allocation6 + $0x78] sm:$0xff]
    %v8088 = vld [vmem:[#allocation6 + $0x80] sm:$0xff]
    %v8089 = vld [vmem:[#allocation6 + $0x88] sm:$0xff]
    %v8090 = vld [vmem:[#allocation6 + $0x90] sm:$0xff]
    %v8091 = vld [vmem:[#allocation6 + $0x98] sm:$0xff]
    %v8092 = vld [vmem:[#allocation6 + $0xa0] sm:$0xff]
    %v8093 = vld [vmem:[#allocation6 + $0xa8] sm:$0xff]
    %v8094 = vld [vmem:[#allocation6 + $0xb0] sm:$0xff]
    %v8095 = vld [vmem:[#allocation6 + $0xb8] sm:$0xff]
    %v8096 = vld [vmem:[#allocation6 + $0xc0] sm:$0xff]
    %v8097 = vld [vmem:[#allocation6 + $0xc8] sm:$0xff]
    %v8098 = vld [vmem:[#allocation6 + $0xd0] sm:$0xff]
    %v8099 = vld [vmem:[#allocation6 + $0xd8] sm:$0xff]
    %v8100 = vld [vmem:[#allocation6 + $0xe0] sm:$0xff]
    %v8101 = vld [vmem:[#allocation6 + $0xe8] sm:$0xff]
    %v8102 = vld [vmem:[#allocation6 + $0xf0] sm:$0xff]
    %v8103 = vld [vmem:[#allocation6 + $0xf8] sm:$0xff]
    %v8104 = vld [vmem:[#allocation6 + $0x100] sm:$0xff]
    %v8105 = vld [vmem:[#allocation6 + $0x108] sm:$0xff]
    %v8106 = vld [vmem:[#allocation6 + $0x110] sm:$0xff]
    %v8107 = vld [vmem:[#allocation6 + $0x118] sm:$0xff]
    %v8108 = vld [vmem:[#allocation6 + $0x120] sm:$0xff]
    %v8109 = vld [vmem:[#allocation6 + $0x128] sm:$0xff]
    %v8110 = vld [vmem:[#allocation6 + $0x130] sm:$0xff]
    %v8111 = vld [vmem:[#allocation6 + $0x138] sm:$0xff]
    %v8112 = vld [vmem:[#allocation6 + $0x140] sm:$0xff]
    %v8113 = vld [vmem:[#allocation6 + $0x148] sm:$0xff]
    %v8114 = vld [vmem:[#allocation6 + $0x150] sm:$0xff]
    %v8115 = vld [vmem:[#allocation6 + $0x158] sm:$0xff]
    %v8116 = vld [vmem:[#allocation6 + $0x160] sm:$0xff]
    %v8117 = vld [vmem:[#allocation6 + $0x168] sm:$0xff]
    %v8118 = vld [vmem:[#allocation6 + $0x170] sm:$0xff]
    %v8119 = vld [vmem:[#allocation6 + $0x178] sm:$0xff]
    %v8120 = vld [vmem:[#allocation6 + $0x180] sm:$0xff]
    %v8121 = vld [vmem:[#allocation6 + $0x188] sm:$0xff]
    %v8122 = vld [vmem:[#allocation6 + $0x190] sm:$0xff]
    %v8123 = vld [vmem:[#allocation6 + $0x198] sm:$0xff]
    %v8124 = vld [vmem:[#allocation6 + $0x1a0] sm:$0xff]
    %v8125 = vld [vmem:[#allocation6 + $0x1a8] sm:$0xff]
    %v8126 = vld [vmem:[#allocation6 + $0x1b0] sm:$0xff]
    %v8127 = vld [vmem:[#allocation6 + $0x1b8] sm:$0xff]
    %v8128 = vld [vmem:[#allocation6 + $0x1c0] sm:$0xff]
    %v8129 = vld [vmem:[#allocation6 + $0x1c8] sm:$0xff]
    %v8130 = vld [vmem:[#allocation6 + $0x1d0] sm:$0xff]
    %v8131 = vld [vmem:[#allocation6 + $0x1d8] sm:$0xff]
    %v8132 = vld [vmem:[#allocation6 + $0x1e0] sm:$0xff]
    %v8133 = vld [vmem:[#allocation6 + $0x1e8] sm:$0xff]
    %v8134 = vld [vmem:[#allocation6 + $0x1f0] sm:$0xff]
    %v8135 = vld [vmem:[#allocation6 + $0x1f8] sm:$0xff]
    %v8136 = vld [vmem:[#allocation6 + $0x200] sm:$0xff]
    %v8137 = vld [vmem:[#allocation6 + $0x208] sm:$0xff]
    %v8138 = vld [vmem:[#allocation6 + $0x210] sm:$0xff]
    %v8139 = vld [vmem:[#allocation6 + $0x218] sm:$0xff]
    %v8140 = vld [vmem:[#allocation6 + $0x220] sm:$0xff]
    %v8141 = vld [vmem:[#allocation6 + $0x228] sm:$0xff]
    %v8142 = vld [vmem:[#allocation6 + $0x230] sm:$0xff]
    %v8143 = vld [vmem:[#allocation6 + $0x238] sm:$0xff]
    %v8144 = vld [vmem:[#allocation6 + $0x240] sm:$0xff]
    %v8145 = vld [vmem:[#allocation6 + $0x248] sm:$0xff]
    %v8146 = vld [vmem:[#allocation6 + $0x250] sm:$0xff]
    %v8147 = vld [vmem:[#allocation6 + $0x258] sm:$0xff]
    %v8148 = vld [vmem:[#allocation6 + $0x260] sm:$0xff]
    %v8149 = vld [vmem:[#allocation6 + $0x268] sm:$0xff]
    %v8150 = vld [vmem:[#allocation6 + $0x270] sm:$0xff]
    %v8151 = vld [vmem:[#allocation6 + $0x278] sm:$0xff]
    %v8152 = vld [vmem:[#allocation6 + $0x280] sm:$0xff]
    %v8153 = vld [vmem:[#allocation6 + $0x288] sm:$0xff]
    %v8154 = vld [vmem:[#allocation6 + $0x290] sm:$0xff]
    %v8155 = vld [vmem:[#allocation6 + $0x298] sm:$0xff]
    %v8156 = vld [vmem:[#allocation6 + $0x2a0] sm:$0xff]
    %v8157 = vld [vmem:[#allocation6 + $0x2a8] sm:$0xff]
    %v8158 = vld [vmem:[#allocation6 + $0x2b0] sm:$0xff]
    %v8159 = vld [vmem:[#allocation6 + $0x2b8] sm:$0xff]
    %v8160 = vld [vmem:[#allocation6 + $0x2c0] sm:$0xff]
    %v8161 = vld [vmem:[#allocation6 + $0x2c8] sm:$0xff]
    %v8162 = vld [vmem:[#allocation6 + $0x2d0] sm:$0xff]
    %v8163 = vld [vmem:[#allocation6 + $0x2d8] sm:$0xff]
    %v8164 = vld [vmem:[#allocation6 + $0x2e0] sm:$0xff]
    %v8165 = vld [vmem:[#allocation6 + $0x2e8] sm:$0xff]
    %v8166 = vld [vmem:[#allocation6 + $0x2f0] sm:$0xff]
    %v8167 = vld [vmem:[#allocation6 + $0x2f8] sm:$0xff]
    %v8168 = vld [vmem:[#allocation6 + $0x300] sm:$0xff]
    %v8169 = vld [vmem:[#allocation6 + $0x308] sm:$0xff]
    %v8170 = vld [vmem:[#allocation6 + $0x310] sm:$0xff]
    %v8171 = vld [vmem:[#allocation6 + $0x318] sm:$0xff]
    %v8172 = vld [vmem:[#allocation6 + $0x320] sm:$0xff]
    %v8173 = vld [vmem:[#allocation6 + $0x328] sm:$0xff]
    %v8174 = vld [vmem:[#allocation6 + $0x330] sm:$0xff]
    %v8175 = vld [vmem:[#allocation6 + $0x338] sm:$0xff]
    %v8176 = vld [vmem:[#allocation6 + $0x340] sm:$0xff]
    %v8177 = vld [vmem:[#allocation6 + $0x348] sm:$0xff]
    %v8178 = vld [vmem:[#allocation6 + $0x350] sm:$0xff]
    %v8179 = vld [vmem:[#allocation6 + $0x358] sm:$0xff]
    %v8180 = vld [vmem:[#allocation6 + $0x360] sm:$0xff]
    %v8181 = vld [vmem:[#allocation6 + $0x368] sm:$0xff]
    %v8182 = vld [vmem:[#allocation6 + $0x370] sm:$0xff]
    %v8183 = vld [vmem:[#allocation6 + $0x378] sm:$0xff]
    %v8184 = vld [vmem:[#allocation6 + $0x380] sm:$0xff]
    %v8185 = vld [vmem:[#allocation6 + $0x388] sm:$0xff]
    %v8186 = vld [vmem:[#allocation6 + $0x390] sm:$0xff]
    %v8187 = vld [vmem:[#allocation6 + $0x398] sm:$0xff]
    %v8188 = vld [vmem:[#allocation6 + $0x3a0] sm:$0xff]
    %v8189 = vld [vmem:[#allocation6 + $0x3a8] sm:$0xff]
    %v8190 = vld [vmem:[#allocation6 + $0x3b0] sm:$0xff]
    %v8191 = vld [vmem:[#allocation6 + $0x3b8] sm:$0xff]
    %v8192 = vld [vmem:[#allocation6 + $0x3c0] sm:$0xff]
    %v8193 = vld [vmem:[#allocation6 + $0x3c8] sm:$0xff]
    %v8194 = vld [vmem:[#allocation6 + $0x3d0] sm:$0xff]
    %v8195 = vld [vmem:[#allocation6 + $0x3d8] sm:$0xff]
    %v8196 = vld [vmem:[#allocation6 + $0x3e0] sm:$0xff]
    %v8197 = vld [vmem:[#allocation6 + $0x3e8] sm:$0xff]
    %v8198 = vld [vmem:[#allocation6 + $0x3f0] sm:$0xff]
    %v8199 = vld [vmem:[#allocation6 + $0x3f8] sm:$0xff]
    %v8328 = vunpack.c.l.b16 %v8072
    %v8329 = vunpack.c.h.b16 %v8072
    %v8330 = vunpack.c.l.b16 %v8073
    %v8331 = vunpack.c.h.b16 %v8073
    %v8332 = vunpack.c.l.b16 %v8074
    %v8333 = vunpack.c.h.b16 %v8074
    %v8334 = vunpack.c.l.b16 %v8075
    %v8335 = vunpack.c.h.b16 %v8075
    %v8336 = vunpack.c.l.b16 %v8076
    %v8337 = vunpack.c.h.b16 %v8076
    %v8338 = vunpack.c.l.b16 %v8077
    %v8339 = vunpack.c.h.b16 %v8077
    %v8340 = vunpack.c.l.b16 %v8078
    %v8341 = vunpack.c.h.b16 %v8078
    %v8342 = vunpack.c.l.b16 %v8079
    %v8343 = vunpack.c.h.b16 %v8079
    %v8344 = vunpack.c.l.b16 %v8080
    %v8345 = vunpack.c.h.b16 %v8080
    %v8346 = vunpack.c.l.b16 %v8081
    %v8347 = vunpack.c.h.b16 %v8081
    %v8348 = vunpack.c.l.b16 %v8082
    %v8349 = vunpack.c.h.b16 %v8082
    %v8350 = vunpack.c.l.b16 %v8083
    %v8351 = vunpack.c.h.b16 %v8083
    %v8352 = vunpack.c.l.b16 %v8084
    %v8353 = vunpack.c.h.b16 %v8084
    %v8354 = vunpack.c.l.b16 %v8085
    %v8355 = vunpack.c.h.b16 %v8085
    %v8356 = vunpack.c.l.b16 %v8086
    %v8357 = vunpack.c.h.b16 %v8086
    %v8358 = vunpack.c.l.b16 %v8087
    %v8359 = vunpack.c.h.b16 %v8087
    %v8360 = vunpack.c.l.b16 %v8088
    %v8361 = vunpack.c.h.b16 %v8088
    %v8362 = vunpack.c.l.b16 %v8089
    %v8363 = vunpack.c.h.b16 %v8089
    %v8364 = vunpack.c.l.b16 %v8090
    %v8365 = vunpack.c.h.b16 %v8090
    %v8366 = vunpack.c.l.b16 %v8091
    %v8367 = vunpack.c.h.b16 %v8091
    %v8368 = vunpack.c.l.b16 %v8092
    %v8369 = vunpack.c.h.b16 %v8092
    %v8370 = vunpack.c.l.b16 %v8093
    %v8371 = vunpack.c.h.b16 %v8093
    %v8372 = vunpack.c.l.b16 %v8094
    %v8373 = vunpack.c.h.b16 %v8094
    %v8374 = vunpack.c.l.b16 %v8095
    %v8375 = vunpack.c.h.b16 %v8095
    %v8376 = vunpack.c.l.b16 %v8096
    %v8377 = vunpack.c.h.b16 %v8096
    %v8378 = vunpack.c.l.b16 %v8097
    %v8379 = vunpack.c.h.b16 %v8097
    %v8380 = vunpack.c.l.b16 %v8098
    %v8381 = vunpack.c.h.b16 %v8098
    %v8382 = vunpack.c.l.b16 %v8099
    %v8383 = vunpack.c.h.b16 %v8099
    %v8384 = vunpack.c.l.b16 %v8100
    %v8385 = vunpack.c.h.b16 %v8100
    %v8386 = vunpack.c.l.b16 %v8101
    %v8387 = vunpack.c.h.b16 %v8101
    %v8388 = vunpack.c.l.b16 %v8102
    %v8389 = vunpack.c.h.b16 %v8102
    %v8390 = vunpack.c.l.b16 %v8103
    %v8391 = vunpack.c.h.b16 %v8103
    %v8392 = vunpack.c.l.b16 %v8104
    %v8393 = vunpack.c.h.b16 %v8104
    %v8394 = vunpack.c.l.b16 %v8105
    %v8395 = vunpack.c.h.b16 %v8105
    %v8396 = vunpack.c.l.b16 %v8106
    %v8397 = vunpack.c.h.b16 %v8106
    %v8398 = vunpack.c.l.b16 %v8107
    %v8399 = vunpack.c.h.b16 %v8107
    %v8400 = vunpack.c.l.b16 %v8108
    %v8401 = vunpack.c.h.b16 %v8108
    %v8402 = vunpack.c.l.b16 %v8109
    %v8403 = vunpack.c.h.b16 %v8109
    %v8404 = vunpack.c.l.b16 %v8110
    %v8405 = vunpack.c.h.b16 %v8110
    %v8406 = vunpack.c.l.b16 %v8111
    %v8407 = vunpack.c.h.b16 %v8111
    %v8408 = vunpack.c.l.b16 %v8112
    %v8409 = vunpack.c.h.b16 %v8112
    %v8410 = vunpack.c.l.b16 %v8113
    %v8411 = vunpack.c.h.b16 %v8113
    %v8412 = vunpack.c.l.b16 %v8114
    %v8413 = vunpack.c.h.b16 %v8114
    %v8414 = vunpack.c.l.b16 %v8115
    %v8415 = vunpack.c.h.b16 %v8115
    %v8416 = vunpack.c.l.b16 %v8116
    %v8417 = vunpack.c.h.b16 %v8116
    %v8418 = vunpack.c.l.b16 %v8117
    %v8419 = vunpack.c.h.b16 %v8117
    %v8420 = vunpack.c.l.b16 %v8118
    %v8421 = vunpack.c.h.b16 %v8118
    %v8422 = vunpack.c.l.b16 %v8119
    %v8423 = vunpack.c.h.b16 %v8119
    %v8424 = vunpack.c.l.b16 %v8120
    %v8425 = vunpack.c.h.b16 %v8120
    %v8426 = vunpack.c.l.b16 %v8121
    %v8427 = vunpack.c.h.b16 %v8121
    %v8428 = vunpack.c.l.b16 %v8122
    %v8429 = vunpack.c.h.b16 %v8122
    %v8430 = vunpack.c.l.b16 %v8123
    %v8431 = vunpack.c.h.b16 %v8123
    %v8432 = vunpack.c.l.b16 %v8124
    %v8433 = vunpack.c.h.b16 %v8124
    %v8434 = vunpack.c.l.b16 %v8125
    %v8435 = vunpack.c.h.b16 %v8125
    %v8436 = vunpack.c.l.b16 %v8126
    %v8437 = vunpack.c.h.b16 %v8126
    %v8438 = vunpack.c.l.b16 %v8127
    %v8439 = vunpack.c.h.b16 %v8127
    %v8440 = vunpack.c.l.b16 %v8128
    %v8441 = vunpack.c.h.b16 %v8128
    %v8442 = vunpack.c.l.b16 %v8129
    %v8443 = vunpack.c.h.b16 %v8129
    %v8444 = vunpack.c.l.b16 %v8130
    %v8445 = vunpack.c.h.b16 %v8130
    %v8446 = vunpack.c.l.b16 %v8131
    %v8447 = vunpack.c.h.b16 %v8131
    %v8448 = vunpack.c.l.b16 %v8132
    %v8449 = vunpack.c.h.b16 %v8132
    %v8450 = vunpack.c.l.b16 %v8133
    %v8451 = vunpack.c.h.b16 %v8133
    %v8452 = vunpack.c.l.b16 %v8134
    %v8453 = vunpack.c.h.b16 %v8134
    %v8454 = vunpack.c.l.b16 %v8135
    %v8455 = vunpack.c.h.b16 %v8135
    %v8456 = vunpack.c.l.b16 %v8136
    %v8457 = vunpack.c.h.b16 %v8136
    %v8458 = vunpack.c.l.b16 %v8137
    %v8459 = vunpack.c.h.b16 %v8137
    %v8460 = vunpack.c.l.b16 %v8138
    %v8461 = vunpack.c.h.b16 %v8138
    %v8462 = vunpack.c.l.b16 %v8139
    %v8463 = vunpack.c.h.b16 %v8139
    %v8464 = vunpack.c.l.b16 %v8140
    %v8465 = vunpack.c.h.b16 %v8140
    %v8466 = vunpack.c.l.b16 %v8141
    %v8467 = vunpack.c.h.b16 %v8141
    %v8468 = vunpack.c.l.b16 %v8142
    %v8469 = vunpack.c.h.b16 %v8142
    %v8470 = vunpack.c.l.b16 %v8143
    %v8471 = vunpack.c.h.b16 %v8143
    %v8472 = vunpack.c.l.b16 %v8144
    %v8473 = vunpack.c.h.b16 %v8144
    %v8474 = vunpack.c.l.b16 %v8145
    %v8475 = vunpack.c.h.b16 %v8145
    %v8476 = vunpack.c.l.b16 %v8146
    %v8477 = vunpack.c.h.b16 %v8146
    %v8478 = vunpack.c.l.b16 %v8147
    %v8479 = vunpack.c.h.b16 %v8147
    %v8480 = vunpack.c.l.b16 %v8148
    %v8481 = vunpack.c.h.b16 %v8148
    %v8482 = vunpack.c.l.b16 %v8149
    %v8483 = vunpack.c.h.b16 %v8149
    %v8484 = vunpack.c.l.b16 %v8150
    %v8485 = vunpack.c.h.b16 %v8150
    %v8486 = vunpack.c.l.b16 %v8151
    %v8487 = vunpack.c.h.b16 %v8151
    %v8488 = vunpack.c.l.b16 %v8152
    %v8489 = vunpack.c.h.b16 %v8152
    %v8490 = vunpack.c.l.b16 %v8153
    %v8491 = vunpack.c.h.b16 %v8153
    %v8492 = vunpack.c.l.b16 %v8154
    %v8493 = vunpack.c.h.b16 %v8154
    %v8494 = vunpack.c.l.b16 %v8155
    %v8495 = vunpack.c.h.b16 %v8155
    %v8496 = vunpack.c.l.b16 %v8156
    %v8497 = vunpack.c.h.b16 %v8156
    %v8498 = vunpack.c.l.b16 %v8157
    %v8499 = vunpack.c.h.b16 %v8157
    %v8500 = vunpack.c.l.b16 %v8158
    %v8501 = vunpack.c.h.b16 %v8158
    %v8502 = vunpack.c.l.b16 %v8159
    %v8503 = vunpack.c.h.b16 %v8159
    %v8504 = vunpack.c.l.b16 %v8160
    %v8505 = vunpack.c.h.b16 %v8160
    %v8506 = vunpack.c.l.b16 %v8161
    %v8507 = vunpack.c.h.b16 %v8161
    %v8508 = vunpack.c.l.b16 %v8162
    %v8509 = vunpack.c.h.b16 %v8162
    %v8510 = vunpack.c.l.b16 %v8163
    %v8511 = vunpack.c.h.b16 %v8163
    %v8512 = vunpack.c.l.b16 %v8164
    %v8513 = vunpack.c.h.b16 %v8164
    %v8514 = vunpack.c.l.b16 %v8165
    %v8515 = vunpack.c.h.b16 %v8165
    %v8516 = vunpack.c.l.b16 %v8166
    %v8517 = vunpack.c.h.b16 %v8166
    %v8518 = vunpack.c.l.b16 %v8167
    %v8519 = vunpack.c.h.b16 %v8167
    %v8520 = vunpack.c.l.b16 %v8168
    %v8521 = vunpack.c.h.b16 %v8168
    %v8522 = vunpack.c.l.b16 %v8169
    %v8523 = vunpack.c.h.b16 %v8169
    %v8524 = vunpack.c.l.b16 %v8170
    %v8525 = vunpack.c.h.b16 %v8170
    %v8526 = vunpack.c.l.b16 %v8171
    %v8527 = vunpack.c.h.b16 %v8171
    %v8528 = vunpack.c.l.b16 %v8172
    %v8529 = vunpack.c.h.b16 %v8172
    %v8530 = vunpack.c.l.b16 %v8173
    %v8531 = vunpack.c.h.b16 %v8173
    %v8532 = vunpack.c.l.b16 %v8174
    %v8533 = vunpack.c.h.b16 %v8174
    %v8534 = vunpack.c.l.b16 %v8175
    %v8535 = vunpack.c.h.b16 %v8175
    %v8536 = vunpack.c.l.b16 %v8176
    %v8537 = vunpack.c.h.b16 %v8176
    %v8538 = vunpack.c.l.b16 %v8177
    %v8539 = vunpack.c.h.b16 %v8177
    %v8540 = vunpack.c.l.b16 %v8178
    %v8541 = vunpack.c.h.b16 %v8178
    %v8542 = vunpack.c.l.b16 %v8179
    %v8543 = vunpack.c.h.b16 %v8179
    %v8544 = vunpack.c.l.b16 %v8180
    %v8545 = vunpack.c.h.b16 %v8180
    %v8546 = vunpack.c.l.b16 %v8181
    %v8547 = vunpack.c.h.b16 %v8181
    %v8548 = vunpack.c.l.b16 %v8182
    %v8549 = vunpack.c.h.b16 %v8182
    %v8550 = vunpack.c.l.b16 %v8183
    %v8551 = vunpack.c.h.b16 %v8183
    %v8552 = vunpack.c.l.b16 %v8184
    %v8553 = vunpack.c.h.b16 %v8184
    %v8554 = vunpack.c.l.b16 %v8185
    %v8555 = vunpack.c.h.b16 %v8185
    %v8556 = vunpack.c.l.b16 %v8186
    %v8557 = vunpack.c.h.b16 %v8186
    %v8558 = vunpack.c.l.b16 %v8187
    %v8559 = vunpack.c.h.b16 %v8187
    %v8560 = vunpack.c.l.b16 %v8188
    %v8561 = vunpack.c.h.b16 %v8188
    %v8562 = vunpack.c.l.b16 %v8189
    %v8563 = vunpack.c.h.b16 %v8189
    %v8564 = vunpack.c.l.b16 %v8190
    %v8565 = vunpack.c.h.b16 %v8190
    %v8566 = vunpack.c.l.b16 %v8191
    %v8567 = vunpack.c.h.b16 %v8191
    %v8568 = vunpack.c.l.b16 %v8192
    %v8569 = vunpack.c.h.b16 %v8192
    %v8570 = vunpack.c.l.b16 %v8193
    %v8571 = vunpack.c.h.b16 %v8193
    %v8572 = vunpack.c.l.b16 %v8194
    %v8573 = vunpack.c.h.b16 %v8194
    %v8574 = vunpack.c.l.b16 %v8195
    %v8575 = vunpack.c.h.b16 %v8195
    %v8576 = vunpack.c.l.b16 %v8196
    %v8577 = vunpack.c.h.b16 %v8196
    %v8578 = vunpack.c.l.b16 %v8197
    %v8579 = vunpack.c.h.b16 %v8197
    %v8580 = vunpack.c.l.b16 %v8198
    %v8581 = vunpack.c.h.b16 %v8198
    %v8582 = vunpack.c.l.b16 %v8199
    %v8583 = vunpack.c.h.b16 %v8199
    %v8584 = vpack.c.b16 %v8330, %v8328
    %v8585 = vpack.c.b16 %v8331, %v8329
    %v8586 = vpack.c.b16 %v8334, %v8332
    %v8587 = vpack.c.b16 %v8335, %v8333
    %v8588 = vpack.c.b16 %v8338, %v8336
    %v8589 = vpack.c.b16 %v8339, %v8337
    %v8590 = vpack.c.b16 %v8342, %v8340
    %v8591 = vpack.c.b16 %v8343, %v8341
    %v8592 = vpack.c.b16 %v8346, %v8344
    %v8593 = vpack.c.b16 %v8347, %v8345
    %v8594 = vpack.c.b16 %v8350, %v8348
    %v8595 = vpack.c.b16 %v8351, %v8349
    %v8596 = vpack.c.b16 %v8354, %v8352
    %v8597 = vpack.c.b16 %v8355, %v8353
    %v8598 = vpack.c.b16 %v8358, %v8356
    %v8599 = vpack.c.b16 %v8359, %v8357
    %v8600 = vpack.c.b16 %v8362, %v8360
    %v8601 = vpack.c.b16 %v8363, %v8361
    %v8602 = vpack.c.b16 %v8366, %v8364
    %v8603 = vpack.c.b16 %v8367, %v8365
    %v8604 = vpack.c.b16 %v8370, %v8368
    %v8605 = vpack.c.b16 %v8371, %v8369
    %v8606 = vpack.c.b16 %v8374, %v8372
    %v8607 = vpack.c.b16 %v8375, %v8373
    %v8608 = vpack.c.b16 %v8378, %v8376
    %v8609 = vpack.c.b16 %v8379, %v8377
    %v8610 = vpack.c.b16 %v8382, %v8380
    %v8611 = vpack.c.b16 %v8383, %v8381
    %v8612 = vpack.c.b16 %v8386, %v8384
    %v8613 = vpack.c.b16 %v8387, %v8385
    %v8614 = vpack.c.b16 %v8390, %v8388
    %v8615 = vpack.c.b16 %v8391, %v8389
    %v8616 = vpack.c.b16 %v8394, %v8392
    %v8617 = vpack.c.b16 %v8395, %v8393
    %v8618 = vpack.c.b16 %v8398, %v8396
    %v8619 = vpack.c.b16 %v8399, %v8397
    %v8620 = vpack.c.b16 %v8402, %v8400
    %v8621 = vpack.c.b16 %v8403, %v8401
    %v8622 = vpack.c.b16 %v8406, %v8404
    %v8623 = vpack.c.b16 %v8407, %v8405
    %v8624 = vpack.c.b16 %v8410, %v8408
    %v8625 = vpack.c.b16 %v8411, %v8409
    %v8626 = vpack.c.b16 %v8414, %v8412
    %v8627 = vpack.c.b16 %v8415, %v8413
    %v8628 = vpack.c.b16 %v8418, %v8416
    %v8629 = vpack.c.b16 %v8419, %v8417
    %v8630 = vpack.c.b16 %v8422, %v8420
    %v8631 = vpack.c.b16 %v8423, %v8421
    %v8632 = vpack.c.b16 %v8426, %v8424
    %v8633 = vpack.c.b16 %v8427, %v8425
    %v8634 = vpack.c.b16 %v8430, %v8428
    %v8635 = vpack.c.b16 %v8431, %v8429
    %v8636 = vpack.c.b16 %v8434, %v8432
    %v8637 = vpack.c.b16 %v8435, %v8433
    %v8638 = vpack.c.b16 %v8438, %v8436
    %v8639 = vpack.c.b16 %v8439, %v8437
    %v8640 = vpack.c.b16 %v8442, %v8440
    %v8641 = vpack.c.b16 %v8443, %v8441
    %v8642 = vpack.c.b16 %v8446, %v8444
    %v8643 = vpack.c.b16 %v8447, %v8445
    %v8644 = vpack.c.b16 %v8450, %v8448
    %v8645 = vpack.c.b16 %v8451, %v8449
    %v8646 = vpack.c.b16 %v8454, %v8452
    %v8647 = vpack.c.b16 %v8455, %v8453
    %v8648 = vpack.c.b16 %v8458, %v8456
    %v8649 = vpack.c.b16 %v8459, %v8457
    %v8650 = vpack.c.b16 %v8462, %v8460
    %v8651 = vpack.c.b16 %v8463, %v8461
    %v8652 = vpack.c.b16 %v8466, %v8464
    %v8653 = vpack.c.b16 %v8467, %v8465
    %v8654 = vpack.c.b16 %v8470, %v8468
    %v8655 = vpack.c.b16 %v8471, %v8469
    %v8656 = vpack.c.b16 %v8474, %v8472
    %v8657 = vpack.c.b16 %v8475, %v8473
    %v8658 = vpack.c.b16 %v8478, %v8476
    %v8659 = vpack.c.b16 %v8479, %v8477
    %v8660 = vpack.c.b16 %v8482, %v8480
    %v8661 = vpack.c.b16 %v8483, %v8481
    %v8662 = vpack.c.b16 %v8486, %v8484
    %v8663 = vpack.c.b16 %v8487, %v8485
    %v8664 = vpack.c.b16 %v8490, %v8488
    %v8665 = vpack.c.b16 %v8491, %v8489
    %v8666 = vpack.c.b16 %v8494, %v8492
    %v8667 = vpack.c.b16 %v8495, %v8493
    %v8668 = vpack.c.b16 %v8498, %v8496
    %v8669 = vpack.c.b16 %v8499, %v8497
    %v8670 = vpack.c.b16 %v8502, %v8500
    %v8671 = vpack.c.b16 %v8503, %v8501
    %v8672 = vpack.c.b16 %v8506, %v8504
    %v8673 = vpack.c.b16 %v8507, %v8505
    %v8674 = vpack.c.b16 %v8510, %v8508
    %v8675 = vpack.c.b16 %v8511, %v8509
    %v8676 = vpack.c.b16 %v8514, %v8512
    %v8677 = vpack.c.b16 %v8515, %v8513
    %v8678 = vpack.c.b16 %v8518, %v8516
    %v8679 = vpack.c.b16 %v8519, %v8517
    %v8680 = vpack.c.b16 %v8522, %v8520
    %v8681 = vpack.c.b16 %v8523, %v8521
    %v8682 = vpack.c.b16 %v8526, %v8524
    %v8683 = vpack.c.b16 %v8527, %v8525
    %v8684 = vpack.c.b16 %v8530, %v8528
    %v8685 = vpack.c.b16 %v8531, %v8529
    %v8686 = vpack.c.b16 %v8534, %v8532
    %v8687 = vpack.c.b16 %v8535, %v8533
    %v8688 = vpack.c.b16 %v8538, %v8536
    %v8689 = vpack.c.b16 %v8539, %v8537
    %v8690 = vpack.c.b16 %v8542, %v8540
    %v8691 = vpack.c.b16 %v8543, %v8541
    %v8692 = vpack.c.b16 %v8546, %v8544
    %v8693 = vpack.c.b16 %v8547, %v8545
    %v8694 = vpack.c.b16 %v8550, %v8548
    %v8695 = vpack.c.b16 %v8551, %v8549
    %v8696 = vpack.c.b16 %v8554, %v8552
    %v8697 = vpack.c.b16 %v8555, %v8553
    %v8698 = vpack.c.b16 %v8558, %v8556
    %v8699 = vpack.c.b16 %v8559, %v8557
    %v8700 = vpack.c.b16 %v8562, %v8560
    %v8701 = vpack.c.b16 %v8563, %v8561
    %v8702 = vpack.c.b16 %v8566, %v8564
    %v8703 = vpack.c.b16 %v8567, %v8565
    %v8704 = vpack.c.b16 %v8570, %v8568
    %v8705 = vpack.c.b16 %v8571, %v8569
    %v8706 = vpack.c.b16 %v8574, %v8572
    %v8707 = vpack.c.b16 %v8575, %v8573
    %v8708 = vpack.c.b16 %v8578, %v8576
    %v8709 = vpack.c.b16 %v8579, %v8577
    %v8710 = vpack.c.b16 %v8582, %v8580
    %v8711 = vpack.c.b16 %v8583, %v8581
    %8840 = vmatprep.subr.bf16.mxu0 %v8585
    %8841 = vmatpush1.bf16.msra.mxu0 %v8584
    %8842 = vmatprep.subr.bf16.mxu0 %v8587
    %8843 = vmatpush1.bf16.msra.mxu0 %v8586
    %8844 = vmatprep.subr.bf16.mxu0 %v8589
    %8845 = vmatpush1.bf16.msra.mxu0 %v8588
    %8846 = vmatprep.subr.bf16.mxu0 %v8591
    %8847 = vmatpush1.bf16.msra.mxu0 %v8590
    %8848 = vmatprep.subr.bf16.mxu0 %v8593
    %8849 = vmatpush1.bf16.msra.mxu0 %v8592
    %8850 = vmatprep.subr.bf16.mxu0 %v8595
    %8851 = vmatpush1.bf16.msra.mxu0 %v8594
    %8852 = vmatprep.subr.bf16.mxu0 %v8597
    %8853 = vmatpush1.bf16.msra.mxu0 %v8596
    %8854 = vmatprep.subr.bf16.mxu0 %v8599
    %8855 = vmatpush1.bf16.msra.mxu0 %v8598
    %8856 = vmatprep.subr.bf16.mxu0 %v8601
    %8857 = vmatpush1.bf16.msra.mxu0 %v8600
    %8858 = vmatprep.subr.bf16.mxu0 %v8603
    %8859 = vmatpush1.bf16.msra.mxu0 %v8602
    %8860 = vmatprep.subr.bf16.mxu0 %v8605
    %8861 = vmatpush1.bf16.msra.mxu0 %v8604
    %8862 = vmatprep.subr.bf16.mxu0 %v8607
    %8863 = vmatpush1.bf16.msra.mxu0 %v8606
    %8864 = vmatprep.subr.bf16.mxu0 %v8609
    %8865 = vmatpush1.bf16.msra.mxu0 %v8608
    %8866 = vmatprep.subr.bf16.mxu0 %v8611
    %8867 = vmatpush1.bf16.msra.mxu0 %v8610
    %8868 = vmatprep.subr.bf16.mxu0 %v8613
    %8869 = vmatpush1.bf16.msra.mxu0 %v8612
    %8870 = vmatprep.subr.bf16.mxu0 %v8615
    %8871 = vmatpush1.bf16.msra.mxu0 %v8614
    %8872 = vmatprep.mubr.bf16.mxu0 %v6993
    %8873 = vmatmul.mubr.bf16.gmra.mrb[0].mxu0 %v6992
    %v8874 = vpop.f32.mrb[0].mxu0
    %v8875 = vadd.f32 0.0, %v8874
    %v8876 = vpop.f32.mrb[0].mxu0
    %v8877 = vadd.f32 0.0, %v8876
    %v8878 = vpop.f32.mrb[0].mxu0
    %v8879 = vadd.f32 0.0, %v8878
    %v8880 = vpop.f32.mrb[0].mxu0
    %v8881 = vadd.f32 0.0, %v8880
    %8882 = vdwg.mxu0
    %8883 = vmatprep.subr.bf16.mxu0 %v8617
    %8884 = vmatpush1.bf16.msra.mxu0 %v8616
    %8885 = vmatprep.subr.bf16.mxu0 %v8619
    %8886 = vmatpush1.bf16.msra.mxu0 %v8618
    %8887 = vmatprep.subr.bf16.mxu0 %v8621
    %8888 = vmatpush1.bf16.msra.mxu0 %v8620
    %8889 = vmatprep.subr.bf16.mxu0 %v8623
    %8890 = vmatpush1.bf16.msra.mxu0 %v8622
    %8891 = vmatprep.subr.bf16.mxu0 %v8625
    %8892 = vmatpush1.bf16.msra.mxu0 %v8624
    %8893 = vmatprep.subr.bf16.mxu0 %v8627
    %8894 = vmatpush1.bf16.msra.mxu0 %v8626
    %8895 = vmatprep.subr.bf16.mxu0 %v8629
    %8896 = vmatpush1.bf16.msra.mxu0 %v8628
    %8897 = vmatprep.subr.bf16.mxu0 %v8631
    %8898 = vmatpush1.bf16.msra.mxu0 %v8630
    %8899 = vmatprep.subr.bf16.mxu0 %v8633
    %8900 = vmatpush1.bf16.msra.mxu0 %v8632
    %8901 = vmatprep.subr.bf16.mxu0 %v8635
    %8902 = vmatpush1.bf16.msra.mxu0 %v8634
    %8903 = vmatprep.subr.bf16.mxu0 %v8637
    %8904 = vmatpush1.bf16.msra.mxu0 %v8636
    %8905 = vmatprep.subr.bf16.mxu0 %v8639
    %8906 = vmatpush1.bf16.msra.mxu0 %v8638
    %8907 = vmatprep.subr.bf16.mxu0 %v8641
    %8908 = vmatpush1.bf16.msra.mxu0 %v8640
    %8909 = vmatprep.subr.bf16.mxu0 %v8643
    %8910 = vmatpush1.bf16.msra.mxu0 %v8642
    %8911 = vmatprep.subr.bf16.mxu0 %v8645
    %8912 = vmatpush1.bf16.msra.mxu0 %v8644
    %8913 = vmatprep.subr.bf16.mxu0 %v8647
    %8914 = vmatpush1.bf16.msra.mxu0 %v8646
    %8915 = vmatprep.mubr.bf16.mxu0 %v6995
    %8916 = vmatmul.mubr.bf16.gmra.mrb[0].mxu0 %v6994
    %v8917 = vpop.f32.mrb[0].mxu0
    %v8918 = vadd.f32 %v8875, %v8917
    %v8919 = vpop.f32.mrb[0].mxu0
    %v8920 = vadd.f32 %v8877, %v8919
    %v8921 = vpop.f32.mrb[0].mxu0
    %v8922 = vadd.f32 %v8879, %v8921
    %v8923 = vpop.f32.mrb[0].mxu0
    %v8924 = vadd.f32 %v8881, %v8923
    %8925 = vdwg.mxu0
    %8926 = vmatprep.subr.bf16.mxu0 %v8649
    %8927 = vmatpush1.bf16.msra.mxu0 %v8648
    %8928 = vmatprep.subr.bf16.mxu0 %v8651
    %8929 = vmatpush1.bf16.msra.mxu0 %v8650
    %8930 = vmatprep.subr.bf16.mxu0 %v8653
    %8931 = vmatpush1.bf16.msra.mxu0 %v8652
    %8932 = vmatprep.subr.bf16.mxu0 %v8655
    %8933 = vmatpush1.bf16.msra.mxu0 %v8654
    %8934 = vmatprep.subr.bf16.mxu0 %v8657
    %8935 = vmatpush1.bf16.msra.mxu0 %v8656
    %8936 = vmatprep.subr.bf16.mxu0 %v8659
    %8937 = vmatpush1.bf16.msra.mxu0 %v8658
    %8938 = vmatprep.subr.bf16.mxu0 %v8661
    %8939 = vmatpush1.bf16.msra.mxu0 %v8660
    %8940 = vmatprep.subr.bf16.mxu0 %v8663
    %8941 = vmatpush1.bf16.msra.mxu0 %v8662
    %8942 = vmatprep.subr.bf16.mxu0 %v8665
    %8943 = vmatpush1.bf16.msra.mxu0 %v8664
    %8944 = vmatprep.subr.bf16.mxu0 %v8667
    %8945 = vmatpush1.bf16.msra.mxu0 %v8666
    %8946 = vmatprep.subr.bf16.mxu0 %v8669
    %8947 = vmatpush1.bf16.msra.mxu0 %v8668
    %8948 = vmatprep.subr.bf16.mxu0 %v8671
    %8949 = vmatpush1.bf16.msra.mxu0 %v8670
    %8950 = vmatprep.subr.bf16.mxu0 %v8673
    %8951 = vmatpush1.bf16.msra.mxu0 %v8672
    %8952 = vmatprep.subr.bf16.mxu0 %v8675
    %8953 = vmatpush1.bf16.msra.mxu0 %v8674
    %8954 = vmatprep.subr.bf16.mxu0 %v8677
    %8955 = vmatpush1.bf16.msra.mxu0 %v8676
    %8956 = vmatprep.subr.bf16.mxu0 %v8679
    %8957 = vmatpush1.bf16.msra.mxu0 %v8678
    %8958 = vmatprep.mubr.bf16.mxu0 %v6997
    %8959 = vmatmul.mubr.bf16.gmra.mrb[0].mxu0 %v6996
    %v8960 = vpop.f32.mrb[0].mxu0
    %v8961 = vadd.f32 %v8918, %v8960
    %v8962 = vpop.f32.mrb[0].mxu0
    %v8963 = vadd.f32 %v8920, %v8962
    %v8964 = vpop.f32.mrb[0].mxu0
    %v8965 = vadd.f32 %v8922, %v8964
    %v8966 = vpop.f32.mrb[0].mxu0
    %v8967 = vadd.f32 %v8924, %v8966
    %8968 = vdwg.mxu0
    %8969 = vmatprep.subr.bf16.mxu0 %v8681
    %8970 = vmatpush1.bf16.msra.mxu0 %v8680
    %8971 = vmatprep.subr.bf16.mxu0 %v8683
    %8972 = vmatpush1.bf16.msra.mxu0 %v8682
    %8973 = vmatprep.subr.bf16.mxu0 %v8685
    %8974 = vmatpush1.bf16.msra.mxu0 %v8684
    %8975 = vmatprep.subr.bf16.mxu0 %v8687
    %8976 = vmatpush1.bf16.msra.mxu0 %v8686
    %8977 = vmatprep.subr.bf16.mxu0 %v8689
    %8978 = vmatpush1.bf16.msra.mxu0 %v8688
    %8979 = vmatprep.subr.bf16.mxu0 %v8691
    %8980 = vmatpush1.bf16.msra.mxu0 %v8690
    %8981 = vmatprep.subr.bf16.mxu0 %v8693
    %8982 = vmatpush1.bf16.msra.mxu0 %v8692
    %8983 = vmatprep.subr.bf16.mxu0 %v8695
    %8984 = vmatpush1.bf16.msra.mxu0 %v8694
    %8985 = vmatprep.subr.bf16.mxu0 %v8697
    %8986 = vmatpush1.bf16.msra.mxu0 %v8696
    %8987 = vmatprep.subr.bf16.mxu0 %v8699
    %8988 = vmatpush1.bf16.msra.mxu0 %v8698
    %8989 = vmatprep.subr.bf16.mxu0 %v8701
    %8990 = vmatpush1.bf16.msra.mxu0 %v8700
    %8991 = vmatprep.subr.bf16.mxu0 %v8703
    %8992 = vmatpush1.bf16.msra.mxu0 %v8702
    %8993 = vmatprep.subr.bf16.mxu0 %v8705
    %8994 = vmatpush1.bf16.msra.mxu0 %v8704
    %8995 = vmatprep.subr.bf16.mxu0 %v8707
    %8996 = vmatpush1.bf16.msra.mxu0 %v8706
    %8997 = vmatprep.subr.bf16.mxu0 %v8709
    %8998 = vmatpush1.bf16.msra.mxu0 %v8708
    %8999 = vmatprep.subr.bf16.mxu0 %v8711
    %9000 = vmatpush1.bf16.msra.mxu0 %v8710
    %9001 = vmatprep.mubr.bf16.mxu0 %v6999
    %9002 = vmatmul.mubr.bf16.gmra.mrb[0].mxu0 %v6998
    %v9003 = vpop.f32.mrb[0].mxu0
    %v9004 = vadd.f32 %v8961, %v9003
    %v9005 = vpop.f32.mrb[0].mxu0
    %v9006 = vadd.f32 %v8963, %v9005
    %v9007 = vpop.f32.mrb[0].mxu0
    %v9008 = vadd.f32 %v8965, %v9007
    %v9009 = vpop.f32.mrb[0].mxu0
    %v9010 = vadd.f32 %v8967, %v9009
    %9011 = vdwg.mxu0
    %v9012 = vmul.f32 %v9004, 0.01
    %v9013 = vmul.f32 %v9006, 0.01
    %v9014 = vmul.f32 %v9008, 0.01
    %v9015 = vmul.f32 %v9010, 0.01
    %v9016 = vmax.f32 %v9004, %v9012
    %v9017 = vmax.f32 %v9006, %v9013
    %v9018 = vmax.f32 %v9008, %v9014
    %v9019 = vmax.f32 %v9010, %v9015
    %v9020 = vpack.c.bf16 %v9018, %v9016
    %v9021 = vpack.c.bf16 %v9019, %v9017
    %9022 = vmatprep.subr.bf16.mxu0 %v8585
    %9023 = vmatpush1.bf16.msra.mxu0 %v8584
    %9024 = vmatprep.subr.bf16.mxu0 %v8587
    %9025 = vmatpush1.bf16.msra.mxu0 %v8586
    %9026 = vmatprep.subr.bf16.mxu0 %v8589
    %9027 = vmatpush1.bf16.msra.mxu0 %v8588
    %9028 = vmatprep.subr.bf16.mxu0 %v8591
    %9029 = vmatpush1.bf16.msra.mxu0 %v8590
    %9030 = vmatprep.subr.bf16.mxu0 %v8593
    %9031 = vmatpush1.bf16.msra.mxu0 %v8592
    %9032 = vmatprep.subr.bf16.mxu0 %v8595
    %9033 = vmatpush1.bf16.msra.mxu0 %v8594
    %9034 = vmatprep.subr.bf16.mxu0 %v8597
    %9035 = vmatpush1.bf16.msra.mxu0 %v8596
    %9036 = vmatprep.subr.bf16.mxu0 %v8599
    %9037 = vmatpush1.bf16.msra.mxu0 %v8598
    %9038 = vmatprep.subr.bf16.mxu0 %v8601
    %9039 = vmatpush1.bf16.msra.mxu0 %v8600
    %9040 = vmatprep.subr.bf16.mxu0 %v8603
    %9041 = vmatpush1.bf16.msra.mxu0 %v8602
    %9042 = vmatprep.subr.bf16.mxu0 %v8605
    %9043 = vmatpush1.bf16.msra.mxu0 %v8604
    %9044 = vmatprep.subr.bf16.mxu0 %v8607
    %9045 = vmatpush1.bf16.msra.mxu0 %v8606
    %9046 = vmatprep.subr.bf16.mxu0 %v8609
    %9047 = vmatpush1.bf16.msra.mxu0 %v8608
    %9048 = vmatprep.subr.bf16.mxu0 %v8611
    %9049 = vmatpush1.bf16.msra.mxu0 %v8610
    %9050 = vmatprep.subr.bf16.mxu0 %v8613
    %9051 = vmatpush1.bf16.msra.mxu0 %v8612
    %9052 = vmatprep.subr.bf16.mxu0 %v8615
    %9053 = vmatpush1.bf16.msra.mxu0 %v8614
    %9054 = vmatprep.mubr.bf16.mxu0 %v8065
    %9055 = vmatmul.mubr.bf16.gmra.mrb[0].mxu0 %v8064
    %v9056 = vpop.f32.mrb[0].mxu0
    %v9057 = vadd.f32 0.0, %v9056
    %v9058 = vpop.f32.mrb[0].mxu0
    %v9059 = vadd.f32 0.0, %v9058
    %v9060 = vpop.f32.mrb[0].mxu0
    %v9061 = vadd.f32 0.0, %v9060
    %v9062 = vpop.f32.mrb[0].mxu0
    %v9063 = vadd.f32 0.0, %v9062
    %9064 = vdwg.mxu0
    %9065 = vmatprep.subr.bf16.mxu0 %v8617
    %9066 = vmatpush1.bf16.msra.mxu0 %v8616
    %9067 = vmatprep.subr.bf16.mxu0 %v8619
    %9068 = vmatpush1.bf16.msra.mxu0 %v8618
    %9069 = vmatprep.subr.bf16.mxu0 %v8621
    %9070 = vmatpush1.bf16.msra.mxu0 %v8620
    %9071 = vmatprep.subr.bf16.mxu0 %v8623
    %9072 = vmatpush1.bf16.msra.mxu0 %v8622
    %9073 = vmatprep.subr.bf16.mxu0 %v8625
    %9074 = vmatpush1.bf16.msra.mxu0 %v8624
    %9075 = vmatprep.subr.bf16.mxu0 %v8627
    %9076 = vmatpush1.bf16.msra.mxu0 %v8626
    %9077 = vmatprep.subr.bf16.mxu0 %v8629
    %9078 = vmatpush1.bf16.msra.mxu0 %v8628
    %9079 = vmatprep.subr.bf16.mxu0 %v8631
    %9080 = vmatpush1.bf16.msra.mxu0 %v8630
    %9081 = vmatprep.subr.bf16.mxu0 %v8633
    %9082 = vmatpush1.bf16.msra.mxu0 %v8632
    %9083 = vmatprep.subr.bf16.mxu0 %v8635
    %9084 = vmatpush1.bf16.msra.mxu0 %v8634
    %9085 = vmatprep.subr.bf16.mxu0 %v8637
    %9086 = vmatpush1.bf16.msra.mxu0 %v8636
    %9087 = vmatprep.subr.bf16.mxu0 %v8639
    %9088 = vmatpush1.bf16.msra.mxu0 %v8638
    %9089 = vmatprep.subr.bf16.mxu0 %v8641
    %9090 = vmatpush1.bf16.msra.mxu0 %v8640
    %9091 = vmatprep.subr.bf16.mxu0 %v8643
    %9092 = vmatpush1.bf16.msra.mxu0 %v8642
    %9093 = vmatprep.subr.bf16.mxu0 %v8645
    %9094 = vmatpush1.bf16.msra.mxu0 %v8644
    %9095 = vmatprep.subr.bf16.mxu0 %v8647
    %9096 = vmatpush1.bf16.msra.mxu0 %v8646
    %9097 = vmatprep.mubr.bf16.mxu0 %v8067
    %9098 = vmatmul.mubr.bf16.gmra.mrb[0].mxu0 %v8066
    %v9099 = vpop.f32.mrb[0].mxu0
    %v9100 = vadd.f32 %v9057, %v9099
    %v9101 = vpop.f32.mrb[0].mxu0
    %v9102 = vadd.f32 %v9059, %v9101
    %v9103 = vpop.f32.mrb[0].mxu0
    %v9104 = vadd.f32 %v9061, %v9103
    %v9105 = vpop.f32.mrb[0].mxu0
    %v9106 = vadd.f32 %v9063, %v9105
    %9107 = vdwg.mxu0
    %9108 = vmatprep.subr.bf16.mxu0 %v8649
    %9109 = vmatpush1.bf16.msra.mxu0 %v8648
    %9110 = vmatprep.subr.bf16.mxu0 %v8651
    %9111 = vmatpush1.bf16.msra.mxu0 %v8650
    %9112 = vmatprep.subr.bf16.mxu0 %v8653
    %9113 = vmatpush1.bf16.msra.mxu0 %v8652
    %9114 = vmatprep.subr.bf16.mxu0 %v8655
    %9115 = vmatpush1.bf16.msra.mxu0 %v8654
    %9116 = vmatprep.subr.bf16.mxu0 %v8657
    %9117 = vmatpush1.bf16.msra.mxu0 %v8656
    %9118 = vmatprep.subr.bf16.mxu0 %v8659
    %9119 = vmatpush1.bf16.msra.mxu0 %v8658
    %9120 = vmatprep.subr.bf16.mxu0 %v8661
    %9121 = vmatpush1.bf16.msra.mxu0 %v8660
    %9122 = vmatprep.subr.bf16.mxu0 %v8663
    %9123 = vmatpush1.bf16.msra.mxu0 %v8662
    %9124 = vmatprep.subr.bf16.mxu0 %v8665
    %9125 = vmatpush1.bf16.msra.mxu0 %v8664
    %9126 = vmatprep.subr.bf16.mxu0 %v8667
    %9127 = vmatpush1.bf16.msra.mxu0 %v8666
    %9128 = vmatprep.subr.bf16.mxu0 %v8669
    %9129 = vmatpush1.bf16.msra.mxu0 %v8668
    %9130 = vmatprep.subr.bf16.mxu0 %v8671
    %9131 = vmatpush1.bf16.msra.mxu0 %v8670
    %9132 = vmatprep.subr.bf16.mxu0 %v8673
    %9133 = vmatpush1.bf16.msra.mxu0 %v8672
    %9134 = vmatprep.subr.bf16.mxu0 %v8675
    %9135 = vmatpush1.bf16.msra.mxu0 %v8674
    %9136 = vmatprep.subr.bf16.mxu0 %v8677
    %9137 = vmatpush1.bf16.msra.mxu0 %v8676
    %9138 = vmatprep.subr.bf16.mxu0 %v8679
    %9139 = vmatpush1.bf16.msra.mxu0 %v8678
    %9140 = vmatprep.mubr.bf16.mxu0 %v8069
    %9141 = vmatmul.mubr.bf16.gmra.mrb[0].mxu0 %v8068
    %v9142 = vpop.f32.mrb[0].mxu0
    %v9143 = vadd.f32 %v9100, %v9142
    %v9144 = vpop.f32.mrb[0].mxu0
    %v9145 = vadd.f32 %v9102, %v9144
    %v9146 = vpop.f32.mrb[0].mxu0
    %v9147 = vadd.f32 %v9104, %v9146
    %v9148 = vpop.f32.mrb[0].mxu0
    %v9149 = vadd.f32 %v9106, %v9148
    %9150 = vdwg.mxu0
    %9151 = vmatprep.subr.bf16.mxu0 %v8681
    %9152 = vmatpush1.bf16.msra.mxu0 %v8680
    %9153 = vmatprep.subr.bf16.mxu0 %v8683
    %9154 = vmatpush1.bf16.msra.mxu0 %v8682
    %9155 = vmatprep.subr.bf16.mxu0 %v8685
    %9156 = vmatpush1.bf16.msra.mxu0 %v8684
    %9157 = vmatprep.subr.bf16.mxu0 %v8687
    %9158 = vmatpush1.bf16.msra.mxu0 %v8686
    %9159 = vmatprep.subr.bf16.mxu0 %v8689
    %9160 = vmatpush1.bf16.msra.mxu0 %v8688
    %9161 = vmatprep.subr.bf16.mxu0 %v8691
    %9162 = vmatpush1.bf16.msra.mxu0 %v8690
    %9163 = vmatprep.subr.bf16.mxu0 %v8693
    %9164 = vmatpush1.bf16.msra.mxu0 %v8692
    %9165 = vmatprep.subr.bf16.mxu0 %v8695
    %9166 = vmatpush1.bf16.msra.mxu0 %v8694
    %9167 = vmatprep.subr.bf16.mxu0 %v8697
    %9168 = vmatpush1.bf16.msra.mxu0 %v8696
    %9169 = vmatprep.subr.bf16.mxu0 %v8699
    %9170 = vmatpush1.bf16.msra.mxu0 %v8698
    %9171 = vmatprep.subr.bf16.mxu0 %v8701
    %9172 = vmatpush1.bf16.msra.mxu0 %v8700
    %9173 = vmatprep.subr.bf16.mxu0 %v8703
    %9174 = vmatpush1.bf16.msra.mxu0 %v8702
    %9175 = vmatprep.subr.bf16.mxu0 %v8705
    %9176 = vmatpush1.bf16.msra.mxu0 %v8704
    %9177 = vmatprep.subr.bf16.mxu0 %v8707
    %9178 = vmatpush1.bf16.msra.mxu0 %v8706
    %9179 = vmatprep.subr.bf16.mxu0 %v8709
    %9180 = vmatpush1.bf16.msra.mxu0 %v8708
    %9181 = vmatprep.subr.bf16.mxu0 %v8711
    %9182 = vmatpush1.bf16.msra.mxu0 %v8710
    %9183 = vmatprep.mubr.bf16.mxu0 %v8071
    %9184 = vmatmul.mubr.bf16.gmra.mrb[0].mxu0 %v8070
    %v9185 = vpop.f32.mrb[0].mxu0
    %v9186 = vadd.f32 %v9143, %v9185
    %v9187 = vpop.f32.mrb[0].mxu0
    %v9188 = vadd.f32 %v9145, %v9187
    %v9189 = vpop.f32.mrb[0].mxu0
    %v9190 = vadd.f32 %v9147, %v9189
    %v9191 = vpop.f32.mrb[0].mxu0
    %v9192 = vadd.f32 %v9149, %v9191
    %9193 = vdwg.mxu0
    %v9194 = vmul.f32 %v9186, 0.01
    %v9195 = vmul.f32 %v9188, 0.01
    %v9196 = vmul.f32 %v9190, 0.01
    %v9197 = vmul.f32 %v9192, 0.01
    %v9198 = vmax.f32 %v9186, %v9194
    %v9199 = vmax.f32 %v9188, %v9195
    %v9200 = vmax.f32 %v9190, %v9196
    %v9201 = vmax.f32 %v9192, %v9197
    %v9202 = vpack.c.bf16 %v9200, %v9198
    %v9203 = vpack.c.bf16 %v9201, %v9199
    %v9204 = vld [vmem:[#allocation7] sm:$0xf]
    %v9205 = vld [vmem:[#allocation7 + $0x4] sm:$0xf]
    %v9206 = vld [vmem:[#allocation7 + $0x8] sm:$0xf]
    %v9207 = vld [vmem:[#allocation7 + $0xc] sm:$0xf]
    %v9208 = vld [vmem:[#allocation7 + $0x10] sm:$0xf]
    %v9209 = vld [vmem:[#allocation7 + $0x14] sm:$0xf]
    %v9210 = vld [vmem:[#allocation7 + $0x18] sm:$0xf]
    %v9211 = vld [vmem:[#allocation7 + $0x1c] sm:$0xf]
    %v9212 = vld [vmem:[#allocation7 + $0x20] sm:$0xf]
    %v9213 = vld [vmem:[#allocation7 + $0x24] sm:$0xf]
    %v9214 = vld [vmem:[#allocation7 + $0x28] sm:$0xf]
    %v9215 = vld [vmem:[#allocation7 + $0x2c] sm:$0xf]
    %v9216 = vld [vmem:[#allocation7 + $0x30] sm:$0xf]
    %v9217 = vld [vmem:[#allocation7 + $0x34] sm:$0xf]
    %v9218 = vld [vmem:[#allocation7 + $0x38] sm:$0xf]
    %v9219 = vld [vmem:[#allocation7 + $0x3c] sm:$0xf]
    %v9220 = vld [vmem:[#allocation7 + $0x40] sm:$0xf]
    %v9221 = vld [vmem:[#allocation7 + $0x44] sm:$0xf]
    %v9222 = vld [vmem:[#allocation7 + $0x48] sm:$0xf]
    %v9223 = vld [vmem:[#allocation7 + $0x4c] sm:$0xf]
    %v9224 = vld [vmem:[#allocation7 + $0x50] sm:$0xf]
    %v9225 = vld [vmem:[#allocation7 + $0x54] sm:$0xf]
    %v9226 = vld [vmem:[#allocation7 + $0x58] sm:$0xf]
    %v9227 = vld [vmem:[#allocation7 + $0x5c] sm:$0xf]
    %v9228 = vld [vmem:[#allocation7 + $0x60] sm:$0xf]
    %v9229 = vld [vmem:[#allocation7 + $0x64] sm:$0xf]
    %v9230 = vld [vmem:[#allocation7 + $0x68] sm:$0xf]
    %v9231 = vld [vmem:[#allocation7 + $0x6c] sm:$0xf]
    %v9232 = vld [vmem:[#allocation7 + $0x70] sm:$0xf]
    %v9233 = vld [vmem:[#allocation7 + $0x74] sm:$0xf]
    %v9234 = vld [vmem:[#allocation7 + $0x78] sm:$0xf]
    %v9235 = vld [vmem:[#allocation7 + $0x7c] sm:$0xf]
    %v9268 = vunpack.c.l.b16 %v9204
    %v9269 = vunpack.c.l.b16 %v9205
    %v9270 = vunpack.c.l.b16 %v9206
    %v9271 = vunpack.c.l.b16 %v9207
    %v9272 = vunpack.c.l.b16 %v9208
    %v9273 = vunpack.c.l.b16 %v9209
    %v9274 = vunpack.c.l.b16 %v9210
    %v9275 = vunpack.c.l.b16 %v9211
    %v9276 = vunpack.c.l.b16 %v9212
    %v9277 = vunpack.c.l.b16 %v9213
    %v9278 = vunpack.c.l.b16 %v9214
    %v9279 = vunpack.c.l.b16 %v9215
    %v9280 = vunpack.c.l.b16 %v9216
    %v9281 = vunpack.c.l.b16 %v9217
    %v9282 = vunpack.c.l.b16 %v9218
    %v9283 = vunpack.c.l.b16 %v9219
    %v9284 = vunpack.c.l.b16 %v9220
    %v9285 = vunpack.c.l.b16 %v9221
    %v9286 = vunpack.c.l.b16 %v9222
    %v9287 = vunpack.c.l.b16 %v9223
    %v9288 = vunpack.c.l.b16 %v9224
    %v9289 = vunpack.c.l.b16 %v9225
    %v9290 = vunpack.c.l.b16 %v9226
    %v9291 = vunpack.c.l.b16 %v9227
    %v9292 = vunpack.c.l.b16 %v9228
    %v9293 = vunpack.c.l.b16 %v9229
    %v9294 = vunpack.c.l.b16 %v9230
    %v9295 = vunpack.c.l.b16 %v9231
    %v9296 = vunpack.c.l.b16 %v9232
    %v9297 = vunpack.c.l.b16 %v9233
    %v9298 = vunpack.c.l.b16 %v9234
    %v9299 = vunpack.c.l.b16 %v9235
    %v9300 = vpack.c.b16 %v9269, %v9268
    %v9301 = vpack.c.b16 %v9271, %v9270
    %v9302 = vpack.c.b16 %v9273, %v9272
    %v9303 = vpack.c.b16 %v9275, %v9274
    %v9304 = vpack.c.b16 %v9277, %v9276
    %v9305 = vpack.c.b16 %v9279, %v9278
    %v9306 = vpack.c.b16 %v9281, %v9280
    %v9307 = vpack.c.b16 %v9283, %v9282
    %v9308 = vpack.c.b16 %v9285, %v9284
    %v9309 = vpack.c.b16 %v9287, %v9286
    %v9310 = vpack.c.b16 %v9289, %v9288
    %v9311 = vpack.c.b16 %v9291, %v9290
    %v9312 = vpack.c.b16 %v9293, %v9292
    %v9313 = vpack.c.b16 %v9295, %v9294
    %v9314 = vpack.c.b16 %v9297, %v9296
    %v9315 = vpack.c.b16 %v9299, %v9298
    %9332 = vmatprep.subr.bf16.mxu0 0
    %9333 = vmatpush1.bf16.msra.mxu0 %v9300
    %9334 = vmatprep.subr.bf16.mxu0 0
    %9335 = vmatpush1.bf16.msra.mxu0 %v9301
    %9336 = vmatprep.subr.bf16.mxu0 0
    %9337 = vmatpush1.bf16.msra.mxu0 %v9302
    %9338 = vmatprep.subr.bf16.mxu0 0
    %9339 = vmatpush1.bf16.msra.mxu0 %v9303
    %9340 = vmatprep.subr.bf16.mxu0 0
    %9341 = vmatpush1.bf16.msra.mxu0 %v9304
    %9342 = vmatprep.subr.bf16.mxu0 0
    %9343 = vmatpush1.bf16.msra.mxu0 %v9305
    %9344 = vmatprep.subr.bf16.mxu0 0
    %9345 = vmatpush1.bf16.msra.mxu0 %v9306
    %9346 = vmatprep.subr.bf16.mxu0 0
    %9347 = vmatpush1.bf16.msra.mxu0 %v9307
    %9348 = vmatprep.subr.bf16.mxu0 0
    %9349 = vmatpush1.bf16.msra.mxu0 %v9308
    %9350 = vmatprep.subr.bf16.mxu0 0
    %9351 = vmatpush1.bf16.msra.mxu0 %v9309
    %9352 = vmatprep.subr.bf16.mxu0 0
    %9353 = vmatpush1.bf16.msra.mxu0 %v9310
    %9354 = vmatprep.subr.bf16.mxu0 0
    %9355 = vmatpush1.bf16.msra.mxu0 %v9311
    %9356 = vmatprep.subr.bf16.mxu0 0
    %9357 = vmatpush1.bf16.msra.mxu0 %v9312
    %9358 = vmatprep.subr.bf16.mxu0 0
    %9359 = vmatpush1.bf16.msra.mxu0 %v9313
    %9360 = vmatprep.subr.bf16.mxu0 0
    %9361 = vmatpush1.bf16.msra.mxu0 %v9314
    %9362 = vmatprep.subr.bf16.mxu0 0
    %9363 = vmatpush1.bf16.msra.mxu0 %v9315
    %9364 = vmatprep.mubr.bf16.mxu0 %v9021
    %9365 = vmatmul.mubr.bf16.gmra.mrb[0].mxu0 %v9020
    %v9366 = vpop.f32.mrb[0].mxu0
    %v9367 = vadd.f32 0.0, %v9366
    %v9368 = vpop.f32.mrb[0].mxu0
    %v9369 = vpop.f32.mrb[0].mxu0
    %v9370 = vadd.f32 0.0, %v9369
    %v9371 = vpop.f32.mrb[0].mxu0
    %9372 = vdwg.mxu0
    %v9373 = vmul.f32 %v9367, 0.01
    %v9374 = vmul.f32 %v9370, 0.01
    %v9375 = vmax.f32 %v9367, %v9373
    %v9376 = vmax.f32 %v9370, %v9374
    %v9377 = vpack.c.bf16 %v9376, %v9375
    %9378 = vmatprep.subr.bf16.mxu0 0
    %9379 = vmatpush1.bf16.msra.mxu0 %v9300
    %9380 = vmatprep.subr.bf16.mxu0 0
    %9381 = vmatpush1.bf16.msra.mxu0 %v9301
    %9382 = vmatprep.subr.bf16.mxu0 0
    %9383 = vmatpush1.bf16.msra.mxu0 %v9302
    %9384 = vmatprep.subr.bf16.mxu0 0
    %9385 = vmatpush1.bf16.msra.mxu0 %v9303
    %9386 = vmatprep.subr.bf16.mxu0 0
    %9387 = vmatpush1.bf16.msra.mxu0 %v9304
    %9388 = vmatprep.subr.bf16.mxu0 0
    %9389 = vmatpush1.bf16.msra.mxu0 %v9305
    %9390 = vmatprep.subr.bf16.mxu0 0
    %9391 = vmatpush1.bf16.msra.mxu0 %v9306
    %9392 = vmatprep.subr.bf16.mxu0 0
    %9393 = vmatpush1.bf16.msra.mxu0 %v9307
    %9394 = vmatprep.subr.bf16.mxu0 0
    %9395 = vmatpush1.bf16.msra.mxu0 %v9308
    %9396 = vmatprep.subr.bf16.mxu0 0
    %9397 = vmatpush1.bf16.msra.mxu0 %v9309
    %9398 = vmatprep.subr.bf16.mxu0 0
    %9399 = vmatpush1.bf16.msra.mxu0 %v9310
    %9400 = vmatprep.subr.bf16.mxu0 0
    %9401 = vmatpush1.bf16.msra.mxu0 %v9311
    %9402 = vmatprep.subr.bf16.mxu0 0
    %9403 = vmatpush1.bf16.msra.mxu0 %v9312
    %9404 = vmatprep.subr.bf16.mxu0 0
    %9405 = vmatpush1.bf16.msra.mxu0 %v9313
    %9406 = vmatprep.subr.bf16.mxu0 0
    %9407 = vmatpush1.bf16.msra.mxu0 %v9314
    %9408 = vmatprep.subr.bf16.mxu0 0
    %9409 = vmatpush1.bf16.msra.mxu0 %v9315
    %9410 = vmatprep.mubr.bf16.mxu0 %v9203
    %9411 = vmatmul.mubr.bf16.gmra.mrb[0].mxu0 %v9202
    %v9412 = vpop.f32.mrb[0].mxu0
    %v9413 = vadd.f32 0.0, %v9412
    %v9414 = vpop.f32.mrb[0].mxu0
    %v9415 = vpop.f32.mrb[0].mxu0
    %v9416 = vadd.f32 0.0, %v9415
    %v9417 = vpop.f32.mrb[0].mxu0
    %9418 = vdwg.mxu0
    %v9419 = vmul.f32 %v9413, 0.01
    %v9420 = vmul.f32 %v9416, 0.01
    %v9421 = vmax.f32 %v9413, %v9419
    %v9422 = vmax.f32 %v9416, %v9420
    %v9423 = vpack.c.bf16 %v9422, %v9421
    %v9424 = vld [vmem:[#allocation9] sm:$0xf]
    %v9425 = vld [vmem:[#allocation9 + $0x4] sm:$0xf]
    %v9426 = vld [vmem:[#allocation9 + $0x8] sm:$0xf]
    %v9427 = vld [vmem:[#allocation9 + $0xc] sm:$0xf]
    %v9428 = vld [vmem:[#allocation9 + $0x10] sm:$0xf]
    %v9429 = vld [vmem:[#allocation9 + $0x14] sm:$0xf]
    %v9430 = vld [vmem:[#allocation9 + $0x18] sm:$0xf]
    %v9431 = vld [vmem:[#allocation9 + $0x1c] sm:$0xf]
    %v9432 = vld [vmem:[#allocation9 + $0x20] sm:$0xf]
    %v9433 = vld [vmem:[#allocation9 + $0x24] sm:$0xf]
    %v9434 = vld [vmem:[#allocation9 + $0x28] sm:$0xf]
    %v9435 = vld [vmem:[#allocation9 + $0x2c] sm:$0xf]
    %v9436 = vld [vmem:[#allocation9 + $0x30] sm:$0xf]
    %v9437 = vld [vmem:[#allocation9 + $0x34] sm:$0xf]
    %v9438 = vld [vmem:[#allocation9 + $0x38] sm:$0xf]
    %v9439 = vld [vmem:[#allocation9 + $0x3c] sm:$0xf]
    %v9456 = vunpack.c.l.b16 %v9424
    %v9457 = vunpack.c.l.b16 %v9425
    %v9458 = vunpack.c.l.b16 %v9426
    %v9459 = vunpack.c.l.b16 %v9427
    %v9460 = vunpack.c.l.b16 %v9428
    %v9461 = vunpack.c.l.b16 %v9429
    %v9462 = vunpack.c.l.b16 %v9430
    %v9463 = vunpack.c.l.b16 %v9431
    %v9464 = vunpack.c.l.b16 %v9432
    %v9465 = vunpack.c.l.b16 %v9433
    %v9466 = vunpack.c.l.b16 %v9434
    %v9467 = vunpack.c.l.b16 %v9435
    %v9468 = vunpack.c.l.b16 %v9436
    %v9469 = vunpack.c.l.b16 %v9437
    %v9470 = vunpack.c.l.b16 %v9438
    %v9471 = vunpack.c.l.b16 %v9439
    %v9472 = vpack.c.b16 %v9457, %v9456
    %v9473 = vpack.c.b16 %v9459, %v9458
    %v9474 = vpack.c.b16 %v9461, %v9460
    %v9475 = vpack.c.b16 %v9463, %v9462
    %v9476 = vpack.c.b16 %v9465, %v9464
    %v9477 = vpack.c.b16 %v9467, %v9466
    %v9478 = vpack.c.b16 %v9469, %v9468
    %v9479 = vpack.c.b16 %v9471, %v9470
    %9488 = vmatprep.subr.bf16.mxu0 0
    %9489 = vmatpush1.bf16.msra.mxu0 %v9472
    %9490 = vmatprep.subr.bf16.mxu0 0
    %9491 = vmatpush1.bf16.msra.mxu0 %v9473
    %9492 = vmatprep.subr.bf16.mxu0 0
    %9493 = vmatpush1.bf16.msra.mxu0 %v9474
    %9494 = vmatprep.subr.bf16.mxu0 0
    %9495 = vmatpush1.bf16.msra.mxu0 %v9475
    %9496 = vmatprep.subr.bf16.mxu0 0
    %9497 = vmatpush1.bf16.msra.mxu0 %v9476
    %9498 = vmatprep.subr.bf16.mxu0 0
    %9499 = vmatpush1.bf16.msra.mxu0 %v9477
    %9500 = vmatprep.subr.bf16.mxu0 0
    %9501 = vmatpush1.bf16.msra.mxu0 %v9478
    %9502 = vmatprep.subr.bf16.mxu0 0
    %9503 = vmatpush1.bf16.msra.mxu0 %v9479
    %9504 = vmatprep.subr.bf16.mxu0 0
    %9505 = vmatpush1.bf16.msra.mxu0 0
    %9506 = vmatprep.subr.bf16.mxu0 0
    %9507 = vmatpush1.bf16.msra.mxu0 0
    %9508 = vmatprep.subr.bf16.mxu0 0
    %9509 = vmatpush1.bf16.msra.mxu0 0
    %9510 = vmatprep.subr.bf16.mxu0 0
    %9511 = vmatpush1.bf16.msra.mxu0 0
    %9512 = vmatprep.subr.bf16.mxu0 0
    %9513 = vmatpush1.bf16.msra.mxu0 0
    %9514 = vmatprep.subr.bf16.mxu0 0
    %9515 = vmatpush1.bf16.msra.mxu0 0
    %9516 = vmatprep.subr.bf16.mxu0 0
    %9517 = vmatpush1.bf16.msra.mxu0 0
    %9518 = vmatprep.subr.bf16.mxu0 0
    %9519 = vmatpush1.bf16.msra.mxu0 0
    %9520 = vmatprep.mubr.bf16.mxu0 0
    %9521 = vmatmul.mubr.bf16.gmra.mrb[0].mxu0 %v9377
    %v9522 = vpop.f32.mrb[0].mxu0
    %v9523 = vadd.f32 0.0, %v9522
    %v9524 = vpop.f32.mrb[0].mxu0
    %v9525 = vpop.f32.mrb[0].mxu0
    %v9526 = vadd.f32 0.0, %v9525
    %v9527 = vpop.f32.mrb[0].mxu0
    %9528 = vdwg.mxu0
    %v9529 = vxor.u32 %v9523, 2147483648
    %v9530 = vxor.u32 %v9526, 2147483648
    %v9531 = vmul.f32 %v9529, 1.442695
    %v9532 = vpow.pop %v9531
    %v9533 = vmul.f32 %v9530, 1.442695
    %v9534 = vpow.pop %v9533
    %v9535 = vadd.f32 %v9532, 1.0
    %v9536 = vadd.f32 %v9534, 1.0
    %v9537 = vrcp.pop %v9535
    %v9538 = vmul.f32 1.0, %v9537
    %v9539 = vrcp.pop %v9536
    %v9540 = vmul.f32 1.0, %v9539
    %v9541 = vpack.c.bf16 %v9540, %v9538
    %v9543 = vunpack.c.l.b16 %v9541
    %v9544 = vunpack.c.h.b16 %v9541
    %v9545 = vpack.c.b16 %v9543, %v9543
    %v9546 = vpack.c.b16 %v9544, %v9544
    %9549 = vst [vmem:[%s6] sm:$0xf] %v9545
    %9550 = vst [vmem:[%s6 + $0x4] sm:$0xf] %v9546
    %v9551 = vld [vmem:[#allocation9] sm:$0xf]
    %v9552 = vld [vmem:[#allocation9 + $0x4] sm:$0xf]
    %v9553 = vld [vmem:[#allocation9 + $0x8] sm:$0xf]
    %v9554 = vld [vmem:[#allocation9 + $0xc] sm:$0xf]
    %v9555 = vld [vmem:[#allocation9 + $0x10] sm:$0xf]
    %v9556 = vld [vmem:[#allocation9 + $0x14] sm:$0xf]
    %v9557 = vld [vmem:[#allocation9 + $0x18] sm:$0xf]
    %v9558 = vld [vmem:[#allocation9 + $0x1c] sm:$0xf]
    %v9559 = vld [vmem:[#allocation9 + $0x20] sm:$0xf]
    %v9560 = vld [vmem:[#allocation9 + $0x24] sm:$0xf]
    %v9561 = vld [vmem:[#allocation9 + $0x28] sm:$0xf]
    %v9562 = vld [vmem:[#allocation9 + $0x2c] sm:$0xf]
    %v9563 = vld [vmem:[#allocation9 + $0x30] sm:$0xf]
    %v9564 = vld [vmem:[#allocation9 + $0x34] sm:$0xf]
    %v9565 = vld [vmem:[#allocation9 + $0x38] sm:$0xf]
    %v9566 = vld [vmem:[#allocation9 + $0x3c] sm:$0xf]
    %v9583 = vunpack.c.l.b16 %v9551
    %v9584 = vunpack.c.l.b16 %v9552
    %v9585 = vunpack.c.l.b16 %v9553
    %v9586 = vunpack.c.l.b16 %v9554
    %v9587 = vunpack.c.l.b16 %v9555
    %v9588 = vunpack.c.l.b16 %v9556
    %v9589 = vunpack.c.l.b16 %v9557
    %v9590 = vunpack.c.l.b16 %v9558
    %v9591 = vunpack.c.l.b16 %v9559
    %v9592 = vunpack.c.l.b16 %v9560
    %v9593 = vunpack.c.l.b16 %v9561
    %v9594 = vunpack.c.l.b16 %v9562
    %v9595 = vunpack.c.l.b16 %v9563
    %v9596 = vunpack.c.l.b16 %v9564
    %v9597 = vunpack.c.l.b16 %v9565
    %v9598 = vunpack.c.l.b16 %v9566
    %v9599 = vpack.c.b16 %v9584, %v9583
    %v9600 = vpack.c.b16 %v9586, %v9585
    %v9601 = vpack.c.b16 %v9588, %v9587
    %v9602 = vpack.c.b16 %v9590, %v9589
    %v9603 = vpack.c.b16 %v9592, %v9591
    %v9604 = vpack.c.b16 %v9594, %v9593
    %v9605 = vpack.c.b16 %v9596, %v9595
    %v9606 = vpack.c.b16 %v9598, %v9597
    %9615 = vmatprep.subr.bf16.mxu0 0
    %9616 = vmatpush1.bf16.msra.mxu0 %v9599
    %9617 = vmatprep.subr.bf16.mxu0 0
    %9618 = vmatpush1.bf16.msra.mxu0 %v9600
    %9619 = vmatprep.subr.bf16.mxu0 0
    %9620 = vmatpush1.bf16.msra.mxu0 %v9601
    %9621 = vmatprep.subr.bf16.mxu0 0
    %9622 = vmatpush1.bf16.msra.mxu0 %v9602
    %9623 = vmatprep.subr.bf16.mxu0 0
    %9624 = vmatpush1.bf16.msra.mxu0 %v9603
    %9625 = vmatprep.subr.bf16.mxu0 0
    %9626 = vmatpush1.bf16.msra.mxu0 %v9604
    %9627 = vmatprep.subr.bf16.mxu0 0
    %9628 = vmatpush1.bf16.msra.mxu0 %v9605
    %9629 = vmatprep.subr.bf16.mxu0 0
    %9630 = vmatpush1.bf16.msra.mxu0 %v9606
    %9631 = vmatprep.subr.bf16.mxu0 0
    %9632 = vmatpush1.bf16.msra.mxu0 0
    %9633 = vmatprep.subr.bf16.mxu0 0
    %9634 = vmatpush1.bf16.msra.mxu0 0
    %9635 = vmatprep.subr.bf16.mxu0 0
    %9636 = vmatpush1.bf16.msra.mxu0 0
    %9637 = vmatprep.subr.bf16.mxu0 0
    %9638 = vmatpush1.bf16.msra.mxu0 0
    %9639 = vmatprep.subr.bf16.mxu0 0
    %9640 = vmatpush1.bf16.msra.mxu0 0
    %9641 = vmatprep.subr.bf16.mxu0 0
    %9642 = vmatpush1.bf16.msra.mxu0 0
    %9643 = vmatprep.subr.bf16.mxu0 0
    %9644 = vmatpush1.bf16.msra.mxu0 0
    %9645 = vmatprep.subr.bf16.mxu0 0
    %9646 = vmatpush1.bf16.msra.mxu0 0
    %9647 = vmatprep.mubr.bf16.mxu0 0
    %9648 = vmatmul.mubr.bf16.gmra.mrb[0].mxu0 %v9423
    %v9649 = vpop.f32.mrb[0].mxu0
    %v9650 = vadd.f32 0.0, %v9649
    %v9651 = vpop.f32.mrb[0].mxu0
    %v9652 = vpop.f32.mrb[0].mxu0
    %v9653 = vadd.f32 0.0, %v9652
    %v9654 = vpop.f32.mrb[0].mxu0
    %9655 = vdwg.mxu0
    %v9656 = vxor.u32 %v9650, 2147483648
    %v9657 = vxor.u32 %v9653, 2147483648
    %v9658 = vmul.f32 %v9656, 1.442695
    %v9659 = vpow.pop %v9658
    %v9660 = vmul.f32 %v9657, 1.442695
    %v9661 = vpow.pop %v9660
    %v9662 = vadd.f32 %v9659, 1.0
    %v9663 = vadd.f32 %v9661, 1.0
    %v9664 = vrcp.pop %v9662
    %v9665 = vmul.f32 1.0, %v9664
    %v9666 = vrcp.pop %v9663
    %v9667 = vmul.f32 1.0, %v9666
    %v9668 = vpack.c.bf16 %v9667, %v9665
    %v9670 = vunpack.c.l.b16 %v9668
    %v9671 = vunpack.c.h.b16 %v9668
    %v9672 = vpack.c.b16 %v9670, %v9670
    %v9673 = vpack.c.b16 %v9671, %v9671
    %9676 = vst [vmem:[%s6 + $0x8] sm:$0xf] %v9672
    %9677 = vst [vmem:[%s6 + $0xc] sm:$0xf] %v9673
    // Predicated region
    $region46: #{bragg_class_conv1d_forward.1} parent=1 // pred_check
      _
    $region47: #{bragg_class_conv1d_forward.1} parent=1 // pred_check_branch
      %9679 = sbr.rel (0) target = $region49
    $region48: #{bragg_class_conv1d_forward.1} parent=1 // pred_region
      _
    $region49: #{bragg_class_conv1d_forward.1} parent=1 // pred_fallthru
      _
    // Predicated region
    $region50: #{bragg_class_conv1d_forward.1} parent=1 // pred_check
      _
    $region51: #{bragg_class_conv1d_forward.1} parent=1 // pred_check_branch
      %9681 = sbr.rel (0) target = $region53
    $region52: #{bragg_class_conv1d_forward.1} parent=1 // pred_region
      _
    $region53: #{bragg_class_conv1d_forward.1} parent=1 // pred_fallthru
      _
    %9682 = vsyncpa [#allocation3], 1
    %9683 = vsyncpa [#allocation5], 1
    %9684 = vsyncpa [#allocation8], 1

</llo_original>
